<compile_context>
chip_gen: v7x
topology: tpu7x:2x2x1
jax: 0.10.0
libtpu: 0.0.40
codegen_flags: <defaults>
</compile_context>

<pallas_src>
import jax
import jax.numpy as jnp
import numpy as np
from jax.experimental import pallas as pl
from jax.experimental.pallas import tpu as pltpu

CAPACITY = 32
LATENT_DIM = 16
BATCH = 2

C2 = CAPACITY * 2            # 64 channels out of fc1 / into conv2
NPIX = 7 * 7
NF = C2 * NPIX               # 3136 fc1 features
C2OUT = 4 * CAPACITY         # 128 = 4 conv2 phases x 32 channels (lane axis)

PITCH = 9 * BATCH            # 18: padded 9-wide raster row pitch (batch minor)
NROW = 7 * PITCH             # 126: rows of the 7x7 output raster (a*18+g*2+b)
GUARD = PITCH + BATCH + 4    # 24: >= max |row shift| (20) used by conv1, aligned
XP_ROWS = 168                # >= NROW + 2*(PITCH+BATCH) = 166
H2_ROWS = 176                # >= GUARD + NROW + (PITCH+BATCH) + margin


# ------------------------------ Pallas kernel ------------------------------ #

def _decoder_kernel(x_ref, wfc_ref, bfc_ref, w2z_ref, b2_ref, w1b_ref, b1_ref,
                    out_ref, y_ref, xp_ref, h2p_ref):
    # Zero raster scratches: padding / guard rows must be exact zeros (they
    # implement the spatial zero padding of both transposed convs).
    xp_ref[...] = jnp.zeros_like(xp_ref)
    h2p_ref[...] = jnp.zeros_like(h2p_ref)

    # ---------------- fc1 + leaky_relu ----------------
    y = jnp.dot(x_ref[...], wfc_ref[...], preferred_element_type=jnp.float32)
    y = y + bfc_ref[...]
    y_ref[...] = jnp.where(y >= 0.0, y, 0.2 * y)      # (B, 3136), (h,w,c) order

    # Scatter fc output into the zero-padded conv2 input raster:
    #   xp row = (1+h)*PITCH + (1+w)*B + b , lanes = 64 input channels.
    for h in range(7):
        for w in range(7):
            p = h * 7 + w
            row = (1 + h) * PITCH + (1 + w) * BATCH
            xp_ref[pl.ds(row, BATCH), :] = y_ref[:, pl.ds(p * C2, C2)]

    # -------- conv2: ConvTranspose2d(64->32, k4, s2, p1) + leaky_relu -------
    # Phase decomposition: out[b, 2m+py, 2n+px, :] is a 2x2 stride-1 conv of
    # the padded input; concatenating the 4 (py,px) phases on the lane axis
    # turns the layer into 9 uniformly row-shifted (126,64)@(64,128) matmuls.
    acc2 = jnp.zeros((NROW, C2OUT), jnp.float32)
    for oy in range(3):
        for ox in range(3):
            lhs = xp_ref[pl.ds(oy * PITCH + ox * BATCH, NROW), :]
            acc2 = acc2 + jnp.dot(lhs, w2z_ref[oy * 3 + ox],
                                  preferred_element_type=jnp.float32)
    acc2 = acc2 + b2_ref[...]
    acc2 = jnp.where(acc2 >= 0.0, acc2, 0.2 * acc2)
    h2p_ref[pl.ds(GUARD, NROW), :] = acc2
    # Kill the junk raster columns (padded W slots 7,8): conv1 must read zeros.
    for a in range(7):
        h2p_ref[pl.ds(GUARD + a * PITCH + 7 * BATCH, 2 * BATCH), :] = (
            jnp.zeros((2 * BATCH, C2OUT), jnp.float32))

    # -------- conv1: ConvTranspose2d(32->1, k4, s2, p1) + sigmoid -----------
    # Two-level phase decomposition (output row = 4a + 2ey + qy): 16 output
    # sub-phases on the lane axis, 9 uniformly row-shifted matmuls over the
    # phase-major conv2 raster.
    acc1 = jnp.zeros((NROW, 16), jnp.float32)
    for my in range(3):
        for mx in range(3):
            shift = GUARD + (my - 1) * PITCH + (mx - 1) * BATCH
            lhs = h2p_ref[pl.ds(shift, NROW), :]
            acc1 = acc1 + jnp.dot(lhs, w1b_ref[my * 3 + mx],
                                  preferred_element_type=jnp.float32)
    out_ref[...] = jax.nn.sigmoid(acc1 + b1_ref[...])


def _full_spec(shape):
    return pl.BlockSpec(shape, lambda i, _n=len(shape): (0,) * _n)


@jax.jit
def decoder_forward(x, prep):
    out_k = pl.pallas_call(
        _decoder_kernel,
        out_shape=jax.ShapeDtypeStruct((NROW, 16), jnp.float32),
        grid=(1,),
        in_specs=[
            _full_spec((BATCH, LATENT_DIM)),
            _full_spec((LATENT_DIM, NF)),
            _full_spec((1, NF)),
            _full_spec((9, C2, C2OUT)),
            _full_spec((1, C2OUT)),
            _full_spec((9, C2OUT, 16)),
            _full_spec((1, 16)),
        ],
        out_specs=_full_spec((NROW, 16)),
        scratch_shapes=[
            pltpu.VMEM((BATCH, NF), jnp.float32),      # fc1 output
            pltpu.VMEM((XP_ROWS, C2), jnp.float32),    # padded conv2 input raster
            pltpu.VMEM((H2_ROWS, C2OUT), jnp.float32),  # phase-major conv2 output
        ],
        compiler_params=pltpu.CompilerParams(
            dimension_semantics=("arbitrary",)),
    )(x, prep["wfc"], prep["bfc"], prep["w2z"], prep["b2"],
      prep["w1big"], prep["b1"])

    # De-interleave: rows = (a, g9, b), cols = (ey, qy, ex, qx);
    # output pixel (b, 4a+2ey+qy, 4g+2ex+qx).  1568 useful floats -> trivial.
    o = out_k.reshape(7, 9, BATCH, 2, 2, 2, 2)[:, :7]
    o = jnp.transpose(o, (2, 0, 3, 4, 1, 5, 6))
    return o.reshape(BATCH, 1, 28, 28)


# ------------------------- host-side weight packing ------------------------ #

def prepare_params(params):
    """One-time repack of torch-layout params into kernel-friendly tensors."""
    # fc1: permute columns from torch feature order f = c*49 + (h*7+w)
    #      to (h*7+w)*64 + c so the fc output is already (h, w, c)-ordered.
    j = np.arange(NF)
    perm = (j % C2) * 49 + (j // C2)
    wfc = np.asarray(params["fc1_w"], np.float32)[:, perm]
    bfc = np.asarray(params["fc1_b"], np.float32)[perm][None, :]

    # conv2: zero-padded, phase-concatenated weights for the 9 padded-grid
    # offsets (oy, ox).  Lane block (2*py+px)*32 holds output phase (py, px).
    w2 = np.asarray(params["conv2_w"], np.float32)      # (64, 32, 4, 4)
    w2z = np.zeros((9, C2, C2OUT), np.float32)
    for oy in range(3):
        for ox in range(3):
            for py in range(2):
                for px in range(2):
                    if (oy - py) in (0, 1) and (ox - px) in (0, 1):
                        kh = 3 + py - 2 * oy
                        kw = 3 + px - 2 * ox
                        blk = (2 * py + px) * CAPACITY
                        w2z[oy * 3 + ox, :, blk:blk + CAPACITY] = w2[:, :, kh, kw]
    b2 = np.tile(np.asarray(params["conv2_b"], np.float32), 4)[None, :]

    # conv1: two-level phase decomposition.  For row shift (my, mx) and conv2
    # phase (py, px), weight column (ey, qy, ex, qx) gets w1[:, 0, kh, kw].
    w1 = np.asarray(params["conv1_w"], np.float32)       # (32, 1, 4, 4)
    w1big = np.zeros((9, C2OUT, 16), np.float32)
    ty_map = {(-1, 1): -1, (0, 0): 0, (0, 1): 1, (1, 0): 2}
    for my in (-1, 0, 1):
        for mx in (-1, 0, 1):
            s = (my + 1) * 3 + (mx + 1)
            for py in range(2):
                ty = ty_map.get((my, py))
                if ty is None:
                    continue
                for px in range(2):
                    tx = ty_map.get((mx, px))
                    if tx is None:
                        continue
                    blk = (2 * py + px) * CAPACITY
                    for ey in range(2):
                        for qy in range(2):
                            dy = ty - ey - qy + 1
                            if dy not in (0, 1):
                                continue
                            kh = 3 - qy - 2 * dy
                            for ex in range(2):
                                for qx in range(2):
                                    dx = tx - ex - qx + 1
                                    if dx not in (0, 1):
                                        continue
                                    kw = 3 - qx - 2 * dx
                                    col = ey * 8 + qy * 4 + ex * 2 + qx
                                    w1big[s, blk:blk + CAPACITY, col] = w1[:, 0, kh, kw]
    b1 = np.full((1, 16), float(np.asarray(params["conv1_b"])[0]), np.float32)

    packed = dict(wfc=wfc, bfc=bfc, w2z=w2z, b2=b2, w1big=w1big, b1=b1)
    return {k: jnp.asarray(v) for k, v in packed.items()}


def init_params(key, latent_dim):
    c = CAPACITY
    ks = jax.random.split(key, 6)
    s = 0.05
    return {
        # fc1 stored (in, out) with torch feature order; torch stores (out, in).
        "fc1_w": s * jax.random.normal(ks[0], (latent_dim, c * 2 * 7 * 7), jnp.float32),
        "fc1_b": s * jax.random.normal(ks[1], (c * 2 * 7 * 7,), jnp.float32),
        # PyTorch ConvTranspose2d weight layout: (Cin, Cout, kh, kw)
        "conv2_w": s * jax.random.normal(ks[2], (c * 2, c, 4, 4), jnp.float32),
        "conv2_b": s * jax.random.normal(ks[3], (c,), jnp.float32),
        "conv1_w": s * jax.random.normal(ks[4], (c, 1, 4, 4), jnp.float32),
        "conv1_b": s * jax.random.normal(ks[5], (1,), jnp.float32),
    }


# ---------------------------- pure-JAX reference ---------------------------- #

def _ref_conv_transpose_nchw(x, w_ct, b, s, p):
    """Independent scatter-style ConvTranspose2d reference (NCHW)."""
    B, Cin, H, W = x.shape
    _, Cout, kh, kw = w_ct.shape
    Ho = (H - 1) * s - 2 * p + kh
    Wo = (W - 1) * s - 2 * p + kw
    y = jnp.zeros((B, Cout, Ho + 2 * p, Wo + 2 * p), jnp.float32)
    for i in range(kh):
        for j in range(kw):
            contrib = jnp.einsum("bchw,cd->bdhw", x, w_ct[:, :, i, j])
            y = y.at[:, :,
                     i:i + (H - 1) * s + 1:s,
                     j:j + (W - 1) * s + 1:s].add(contrib)
    return y[:, :, p:p + Ho, p:p + Wo] + b[None, :, None, None]


def _ref_forward(x, params):
    h = x @ params["fc1_w"] + params["fc1_b"]
    h = jnp.where(h >= 0, h, 0.2 * h)
    B = x.shape[0]
    h = h.reshape(B, CAPACITY * 2, 7, 7)
    h = _ref_conv_transpose_nchw(h, params["conv2_w"], params["conv2_b"], 2, 1)
    h = jnp.where(h >= 0, h, 0.2 * h)
    h = _ref_conv_transpose_nchw(h, params["conv1_w"], params["conv1_b"], 2, 1)
    return jax.nn.sigmoid(h)


# ----------------------------------- main ----------------------------------- #

if __name__ == "__main__":
    key = jax.random.PRNGKey(0)
    pkey, xkey = jax.random.split(key)
    params = init_params(pkey, LATENT_DIM)
    prep = prepare_params(params)
    x = jax.random.normal(xkey, (BATCH, LATENT_DIM), jnp.float32)

    out = decoder_forward(x, prep)
    out = jax.block_until_ready(out)

    assert out.shape == (BATCH, 1, 28, 28), out.shape
    ref = _ref_forward(x, params)
    err = float(jnp.max(jnp.abs(out - ref)))
    assert jnp.allclose(out, ref, atol=1e-4, rtol=1e-4), err

    print("KERNEL_OK")
</pallas_src>

<mosaic_0001>
module attributes {stable_mosaic.version = 11 : i64} {
  func.func @_decoder_kernel(%arg0: i32, %arg1: memref<2x16xf32, #tpu.memory_space<vmem>>, %arg2: memref<16x3136xf32, #tpu.memory_space<vmem>>, %arg3: memref<1x3136xf32, #tpu.memory_space<vmem>>, %arg4: memref<9x64x128xf32, #tpu.memory_space<vmem>>, %arg5: memref<1x128xf32, #tpu.memory_space<vmem>>, %arg6: memref<9x128x16xf32, #tpu.memory_space<vmem>>, %arg7: memref<1x16xf32, #tpu.memory_space<vmem>>, %arg8: memref<126x16xf32, #tpu.memory_space<vmem>>, %arg9: memref<2x3136xf32, #tpu.memory_space<vmem>>, %arg10: memref<168x64xf32, #tpu.memory_space<vmem>>, %arg11: memref<176x128xf32, #tpu.memory_space<vmem>>) attributes {dimension_semantics = [#tpu.dimension_semantics<arbitrary>], iteration_bounds = array<i64: 1>, scalar_prefetch = 0 : i64, scratch_operands = 3 : i64, tpu.core_type = #tpu.core_type<tc>, window_params = [{pipeline_mode = #tpu.pipeline_mode<synchronous>, transform_indices = @transform_0, window_bounds = array<i64: 2, 16>}, {pipeline_mode = #tpu.pipeline_mode<synchronous>, transform_indices = @transform_1, window_bounds = array<i64: 16, 3136>}, {pipeline_mode = #tpu.pipeline_mode<synchronous>, transform_indices = @transform_2, window_bounds = array<i64: 1, 3136>}, {pipeline_mode = #tpu.pipeline_mode<synchronous>, transform_indices = @transform_3, window_bounds = array<i64: 9, 64, 128>}, {pipeline_mode = #tpu.pipeline_mode<synchronous>, transform_indices = @transform_4, window_bounds = array<i64: 1, 128>}, {pipeline_mode = #tpu.pipeline_mode<synchronous>, transform_indices = @transform_5, window_bounds = array<i64: 9, 128, 16>}, {pipeline_mode = #tpu.pipeline_mode<synchronous>, transform_indices = @transform_6, window_bounds = array<i64: 1, 16>}, {pipeline_mode = #tpu.pipeline_mode<synchronous>, transform_indices = @transform_7, window_bounds = array<i64: 126, 16>}]} {
    %cst = arith.constant 0.000000e+00 : f32
    %0 = vector.broadcast %cst : f32 to vector<168x64xf32>
    %c0 = arith.constant 0 : index
    %c0_0 = arith.constant 0 : index
    %1 = vector.load %arg10[%c0, %c0_0] : memref<168x64xf32, #tpu.memory_space<vmem>>, vector<168x64xf32>
    tpu.vector_store %arg10[%c0, %c0_0], %0 {strides = array<i32>} : memref<168x64xf32, #tpu.memory_space<vmem>>, vector<168x64xf32>,
    %cst_1 = arith.constant 0.000000e+00 : f32
    %2 = vector.broadcast %cst_1 : f32 to vector<176x128xf32>
    %c0_2 = arith.constant 0 : index
    %c0_3 = arith.constant 0 : index
    %3 = vector.load %arg11[%c0_2, %c0_3] : memref<176x128xf32, #tpu.memory_space<vmem>>, vector<176x128xf32>
    tpu.vector_store %arg11[%c0_2, %c0_3], %2 {strides = array<i32>} : memref<176x128xf32, #tpu.memory_space<vmem>>, vector<176x128xf32>,
    %c0_4 = arith.constant 0 : index
    %c0_5 = arith.constant 0 : index
    %4 = vector.load %arg1[%c0_4, %c0_5] : memref<2x16xf32, #tpu.memory_space<vmem>>, vector<2x16xf32>
    %c0_6 = arith.constant 0 : index
    %c0_7 = arith.constant 0 : index
    %5 = vector.load %arg2[%c0_6, %c0_7] : memref<16x3136xf32, #tpu.memory_space<vmem>>, vector<16x3136xf32>
    %cst_8 = arith.constant dense<0.000000e+00> : vector<2x3136xf32>
    %6 = tpu.matmul %4, %5, %cst_8 {dimension_numbers = #tpu.dot_dimension_numbers<[1], [0], [0], [1], [0, 0, 1, 1], [], []>} : vector<2x16xf32>, vector<16x3136xf32>, vector<2x3136xf32> -> vector<2x3136xf32>
    %c0_9 = arith.constant 0 : index
    %c0_10 = arith.constant 0 : index
    %7 = vector.load %arg3[%c0_9, %c0_10] : memref<1x3136xf32, #tpu.memory_space<vmem>>, vector<1x3136xf32>
    %8 = vector.broadcast %7 : vector<1x3136xf32> to vector<2x3136xf32>
    %9 = arith.addf %6, %8 : vector<2x3136xf32>
    %cst_11 = arith.constant 0.000000e+00 : f32
    %10 = vector.broadcast %cst_11 : f32 to vector<2x3136xf32>
    %11 = arith.cmpf oge, %9, %10 : vector<2x3136xf32>
    %cst_12 = arith.constant 2.000000e-01 : f32
    %12 = vector.broadcast %cst_12 : f32 to vector<2x3136xf32>
    %13 = arith.mulf %12, %9 : vector<2x3136xf32>
    %14 = arith.select %11, %9, %13 : vector<2x3136xi1>, vector<2x3136xf32>
    %c0_13 = arith.constant 0 : index
    %c0_14 = arith.constant 0 : index
    %15 = vector.load %arg9[%c0_13, %c0_14] : memref<2x3136xf32, #tpu.memory_space<vmem>>, vector<2x3136xf32>
    tpu.vector_store %arg9[%c0_13, %c0_14], %14 {strides = array<i32>} : memref<2x3136xf32, #tpu.memory_space<vmem>>, vector<2x3136xf32>,
    %c0_15 = arith.constant 0 : index
    %c0_16 = arith.constant 0 : index
    %16 = vector.load %arg9[%c0_15, %c0_16] : memref<2x3136xf32, #tpu.memory_space<vmem>>, vector<2x64xf32>
    %c20 = arith.constant 20 : index
    %c0_17 = arith.constant 0 : index
    %17 = vector.load %arg10[%c20, %c0_17] : memref<168x64xf32, #tpu.memory_space<vmem>>, vector<2x64xf32>
    tpu.vector_store %arg10[%c20, %c0_17], %16 {strides = array<i32>} : memref<168x64xf32, #tpu.memory_space<vmem>>, vector<2x64xf32>,
    %c0_18 = arith.constant 0 : index
    %c64 = arith.constant 64 : index
    %18 = vector.load %arg9[%c0_18, %c64] : memref<2x3136xf32, #tpu.memory_space<vmem>>, vector<2x64xf32>
    %c22 = arith.constant 22 : index
    %c0_19 = arith.constant 0 : index
    %19 = vector.load %arg10[%c22, %c0_19] : memref<168x64xf32, #tpu.memory_space<vmem>>, vector<2x64xf32>
    tpu.vector_store %arg10[%c22, %c0_19], %18 {strides = array<i32>} : memref<168x64xf32, #tpu.memory_space<vmem>>, vector<2x64xf32>,
    %c0_20 = arith.constant 0 : index
    %c128 = arith.constant 128 : index
    %20 = vector.load %arg9[%c0_20, %c128] : memref<2x3136xf32, #tpu.memory_space<vmem>>, vector<2x64xf32>
    %c24 = arith.constant 24 : index
    %c0_21 = arith.constant 0 : index
    %21 = vector.load %arg10[%c24, %c0_21] : memref<168x64xf32, #tpu.memory_space<vmem>>, vector<2x64xf32>
    tpu.vector_store %arg10[%c24, %c0_21], %20 {strides = array<i32>} : memref<168x64xf32, #tpu.memory_space<vmem>>, vector<2x64xf32>,
    %c0_22 = arith.constant 0 : index
    %c192 = arith.constant 192 : index
    %22 = vector.load %arg9[%c0_22, %c192] : memref<2x3136xf32, #tpu.memory_space<vmem>>, vector<2x64xf32>
    %c26 = arith.constant 26 : index
    %c0_23 = arith.constant 0 : index
    %23 = vector.load %arg10[%c26, %c0_23] : memref<168x64xf32, #tpu.memory_space<vmem>>, vector<2x64xf32>
    tpu.vector_store %arg10[%c26, %c0_23], %22 {strides = array<i32>} : memref<168x64xf32, #tpu.memory_space<vmem>>, vector<2x64xf32>,
    %c0_24 = arith.constant 0 : index
    %c256 = arith.constant 256 : index
    %24 = vector.load %arg9[%c0_24, %c256] : memref<2x3136xf32, #tpu.memory_space<vmem>>, vector<2x64xf32>
    %c28 = arith.constant 28 : index
    %c0_25 = arith.constant 0 : index
    %25 = vector.load %arg10[%c28, %c0_25] : memref<168x64xf32, #tpu.memory_space<vmem>>, vector<2x64xf32>
    tpu.vector_store %arg10[%c28, %c0_25], %24 {strides = array<i32>} : memref<168x64xf32, #tpu.memory_space<vmem>>, vector<2x64xf32>,
    %c0_26 = arith.constant 0 : index
    %c320 = arith.constant 320 : index
    %26 = vector.load %arg9[%c0_26, %c320] : memref<2x3136xf32, #tpu.memory_space<vmem>>, vector<2x64xf32>
    %c30 = arith.constant 30 : index
    %c0_27 = arith.constant 0 : index
    %27 = vector.load %arg10[%c30, %c0_27] : memref<168x64xf32, #tpu.memory_space<vmem>>, vector<2x64xf32>
    tpu.vector_store %arg10[%c30, %c0_27], %26 {strides = array<i32>} : memref<168x64xf32, #tpu.memory_space<vmem>>, vector<2x64xf32>,
    %c0_28 = arith.constant 0 : index
    %c384 = arith.constant 384 : index
    %28 = vector.load %arg9[%c0_28, %c384] : memref<2x3136xf32, #tpu.memory_space<vmem>>, vector<2x64xf32>
    %c32 = arith.constant 32 : index
    %c0_29 = arith.constant 0 : index
    %29 = vector.load %arg10[%c32, %c0_29] : memref<168x64xf32, #tpu.memory_space<vmem>>, vector<2x64xf32>
    tpu.vector_store %arg10[%c32, %c0_29], %28 {strides = array<i32>} : memref<168x64xf32, #tpu.memory_space<vmem>>, vector<2x64xf32>,
    %c0_30 = arith.constant 0 : index
    %c448 = arith.constant 448 : index
    %30 = vector.load %arg9[%c0_30, %c448] : memref<2x3136xf32, #tpu.memory_space<vmem>>, vector<2x64xf32>
    %c38 = arith.constant 38 : index
    %c0_31 = arith.constant 0 : index
    %31 = vector.load %arg10[%c38, %c0_31] : memref<168x64xf32, #tpu.memory_space<vmem>>, vector<2x64xf32>
    tpu.vector_store %arg10[%c38, %c0_31], %30 {strides = array<i32>} : memref<168x64xf32, #tpu.memory_space<vmem>>, vector<2x64xf32>,
    %c0_32 = arith.constant 0 : index
    %c512 = arith.constant 512 : index
    %32 = vector.load %arg9[%c0_32, %c512] : memref<2x3136xf32, #tpu.memory_space<vmem>>, vector<2x64xf32>
    %c40 = arith.constant 40 : index
    %c0_33 = arith.constant 0 : index
    %33 = vector.load %arg10[%c40, %c0_33] : memref<168x64xf32, #tpu.memory_space<vmem>>, vector<2x64xf32>
    tpu.vector_store %arg10[%c40, %c0_33], %32 {strides = array<i32>} : memref<168x64xf32, #tpu.memory_space<vmem>>, vector<2x64xf32>,
    %c0_34 = arith.constant 0 : index
    %c576 = arith.constant 576 : index
    %34 = vector.load %arg9[%c0_34, %c576] : memref<2x3136xf32, #tpu.memory_space<vmem>>, vector<2x64xf32>
    %c42 = arith.constant 42 : index
    %c0_35 = arith.constant 0 : index
    %35 = vector.load %arg10[%c42, %c0_35] : memref<168x64xf32, #tpu.memory_space<vmem>>, vector<2x64xf32>
    tpu.vector_store %arg10[%c42, %c0_35], %34 {strides = array<i32>} : memref<168x64xf32, #tpu.memory_space<vmem>>, vector<2x64xf32>,
    %c0_36 = arith.constant 0 : index
    %c640 = arith.constant 640 : index
    %36 = vector.load %arg9[%c0_36, %c640] : memref<2x3136xf32, #tpu.memory_space<vmem>>, vector<2x64xf32>
    %c44 = arith.constant 44 : index
    %c0_37 = arith.constant 0 : index
    %37 = vector.load %arg10[%c44, %c0_37] : memref<168x64xf32, #tpu.memory_space<vmem>>, vector<2x64xf32>
    tpu.vector_store %arg10[%c44, %c0_37], %36 {strides = array<i32>} : memref<168x64xf32, #tpu.memory_space<vmem>>, vector<2x64xf32>,
    %c0_38 = arith.constant 0 : index
    %c704 = arith.constant 704 : index
    %38 = vector.load %arg9[%c0_38, %c704] : memref<2x3136xf32, #tpu.memory_space<vmem>>, vector<2x64xf32>
    %c46 = arith.constant 46 : index
    %c0_39 = arith.constant 0 : index
    %39 = vector.load %arg10[%c46, %c0_39] : memref<168x64xf32, #tpu.memory_space<vmem>>, vector<2x64xf32>
    tpu.vector_store %arg10[%c46, %c0_39], %38 {strides = array<i32>} : memref<168x64xf32, #tpu.memory_space<vmem>>, vector<2x64xf32>,
    %c0_40 = arith.constant 0 : index
    %c768 = arith.constant 768 : index
    %40 = vector.load %arg9[%c0_40, %c768] : memref<2x3136xf32, #tpu.memory_space<vmem>>, vector<2x64xf32>
    %c48 = arith.constant 48 : index
    %c0_41 = arith.constant 0 : index
    %41 = vector.load %arg10[%c48, %c0_41] : memref<168x64xf32, #tpu.memory_space<vmem>>, vector<2x64xf32>
    tpu.vector_store %arg10[%c48, %c0_41], %40 {strides = array<i32>} : memref<168x64xf32, #tpu.memory_space<vmem>>, vector<2x64xf32>,
    %c0_42 = arith.constant 0 : index
    %c832 = arith.constant 832 : index
    %42 = vector.load %arg9[%c0_42, %c832] : memref<2x3136xf32, #tpu.memory_space<vmem>>, vector<2x64xf32>
    %c50 = arith.constant 50 : index
    %c0_43 = arith.constant 0 : index
    %43 = vector.load %arg10[%c50, %c0_43] : memref<168x64xf32, #tpu.memory_space<vmem>>, vector<2x64xf32>
    tpu.vector_store %arg10[%c50, %c0_43], %42 {strides = array<i32>} : memref<168x64xf32, #tpu.memory_space<vmem>>, vector<2x64xf32>,
    %c0_44 = arith.constant 0 : index
    %c896 = arith.constant 896 : index
    %44 = vector.load %arg9[%c0_44, %c896] : memref<2x3136xf32, #tpu.memory_space<vmem>>, vector<2x64xf32>
    %c56 = arith.constant 56 : index
    %c0_45 = arith.constant 0 : index
    %45 = vector.load %arg10[%c56, %c0_45] : memref<168x64xf32, #tpu.memory_space<vmem>>, vector<2x64xf32>
    tpu.vector_store %arg10[%c56, %c0_45], %44 {strides = array<i32>} : memref<168x64xf32, #tpu.memory_space<vmem>>, vector<2x64xf32>,
    %c0_46 = arith.constant 0 : index
    %c960 = arith.constant 960 : index
    %46 = vector.load %arg9[%c0_46, %c960] : memref<2x3136xf32, #tpu.memory_space<vmem>>, vector<2x64xf32>
    %c58 = arith.constant 58 : index
    %c0_47 = arith.constant 0 : index
    %47 = vector.load %arg10[%c58, %c0_47] : memref<168x64xf32, #tpu.memory_space<vmem>>, vector<2x64xf32>
    tpu.vector_store %arg10[%c58, %c0_47], %46 {strides = array<i32>} : memref<168x64xf32, #tpu.memory_space<vmem>>, vector<2x64xf32>,
    %c0_48 = arith.constant 0 : index
    %c1024 = arith.constant 1024 : index
    %48 = vector.load %arg9[%c0_48, %c1024] : memref<2x3136xf32, #tpu.memory_space<vmem>>, vector<2x64xf32>
    %c60 = arith.constant 60 : index
    %c0_49 = arith.constant 0 : index
    %49 = vector.load %arg10[%c60, %c0_49] : memref<168x64xf32, #tpu.memory_space<vmem>>, vector<2x64xf32>
    tpu.vector_store %arg10[%c60, %c0_49], %48 {strides = array<i32>} : memref<168x64xf32, #tpu.memory_space<vmem>>, vector<2x64xf32>,
    %c0_50 = arith.constant 0 : index
    %c1088 = arith.constant 1088 : index
    %50 = vector.load %arg9[%c0_50, %c1088] : memref<2x3136xf32, #tpu.memory_space<vmem>>, vector<2x64xf32>
    %c62 = arith.constant 62 : index
    %c0_51 = arith.constant 0 : index
    %51 = vector.load %arg10[%c62, %c0_51] : memref<168x64xf32, #tpu.memory_space<vmem>>, vector<2x64xf32>
    tpu.vector_store %arg10[%c62, %c0_51], %50 {strides = array<i32>} : memref<168x64xf32, #tpu.memory_space<vmem>>, vector<2x64xf32>,
    %c0_52 = arith.constant 0 : index
    %c1152 = arith.constant 1152 : index
    %52 = vector.load %arg9[%c0_52, %c1152] : memref<2x3136xf32, #tpu.memory_space<vmem>>, vector<2x64xf32>
    %c64_53 = arith.constant 64 : index
    %c0_54 = arith.constant 0 : index
    %53 = vector.load %arg10[%c64_53, %c0_54] : memref<168x64xf32, #tpu.memory_space<vmem>>, vector<2x64xf32>
    tpu.vector_store %arg10[%c64_53, %c0_54], %52 {strides = array<i32>} : memref<168x64xf32, #tpu.memory_space<vmem>>, vector<2x64xf32>,
    %c0_55 = arith.constant 0 : index
    %c1216 = arith.constant 1216 : index
    %54 = vector.load %arg9[%c0_55, %c1216] : memref<2x3136xf32, #tpu.memory_space<vmem>>, vector<2x64xf32>
    %c66 = arith.constant 66 : index
    %c0_56 = arith.constant 0 : index
    %55 = vector.load %arg10[%c66, %c0_56] : memref<168x64xf32, #tpu.memory_space<vmem>>, vector<2x64xf32>
    tpu.vector_store %arg10[%c66, %c0_56], %54 {strides = array<i32>} : memref<168x64xf32, #tpu.memory_space<vmem>>, vector<2x64xf32>,
    %c0_57 = arith.constant 0 : index
    %c1280 = arith.constant 1280 : index
    %56 = vector.load %arg9[%c0_57, %c1280] : memref<2x3136xf32, #tpu.memory_space<vmem>>, vector<2x64xf32>
    %c68 = arith.constant 68 : index
    %c0_58 = arith.constant 0 : index
    %57 = vector.load %arg10[%c68, %c0_58] : memref<168x64xf32, #tpu.memory_space<vmem>>, vector<2x64xf32>
    tpu.vector_store %arg10[%c68, %c0_58], %56 {strides = array<i32>} : memref<168x64xf32, #tpu.memory_space<vmem>>, vector<2x64xf32>,
    %c0_59 = arith.constant 0 : index
    %c1344 = arith.constant 1344 : index
    %58 = vector.load %arg9[%c0_59, %c1344] : memref<2x3136xf32, #tpu.memory_space<vmem>>, vector<2x64xf32>
    %c74 = arith.constant 74 : index
    %c0_60 = arith.constant 0 : index
    %59 = vector.load %arg10[%c74, %c0_60] : memref<168x64xf32, #tpu.memory_space<vmem>>, vector<2x64xf32>
    tpu.vector_store %arg10[%c74, %c0_60], %58 {strides = array<i32>} : memref<168x64xf32, #tpu.memory_space<vmem>>, vector<2x64xf32>,
    %c0_61 = arith.constant 0 : index
    %c1408 = arith.constant 1408 : index
    %60 = vector.load %arg9[%c0_61, %c1408] : memref<2x3136xf32, #tpu.memory_space<vmem>>, vector<2x64xf32>
    %c76 = arith.constant 76 : index
    %c0_62 = arith.constant 0 : index
    %61 = vector.load %arg10[%c76, %c0_62] : memref<168x64xf32, #tpu.memory_space<vmem>>, vector<2x64xf32>
    tpu.vector_store %arg10[%c76, %c0_62], %60 {strides = array<i32>} : memref<168x64xf32, #tpu.memory_space<vmem>>, vector<2x64xf32>,
    %c0_63 = arith.constant 0 : index
    %c1472 = arith.constant 1472 : index
    %62 = vector.load %arg9[%c0_63, %c1472] : memref<2x3136xf32, #tpu.memory_space<vmem>>, vector<2x64xf32>
    %c78 = arith.constant 78 : index
    %c0_64 = arith.constant 0 : index
    %63 = vector.load %arg10[%c78, %c0_64] : memref<168x64xf32, #tpu.memory_space<vmem>>, vector<2x64xf32>
    tpu.vector_store %arg10[%c78, %c0_64], %62 {strides = array<i32>} : memref<168x64xf32, #tpu.memory_space<vmem>>, vector<2x64xf32>,
    %c0_65 = arith.constant 0 : index
    %c1536 = arith.constant 1536 : index
    %64 = vector.load %arg9[%c0_65, %c1536] : memref<2x3136xf32, #tpu.memory_space<vmem>>, vector<2x64xf32>
    %c80 = arith.constant 80 : index
    %c0_66 = arith.constant 0 : index
    %65 = vector.load %arg10[%c80, %c0_66] : memref<168x64xf32, #tpu.memory_space<vmem>>, vector<2x64xf32>
    tpu.vector_store %arg10[%c80, %c0_66], %64 {strides = array<i32>} : memref<168x64xf32, #tpu.memory_space<vmem>>, vector<2x64xf32>,
    %c0_67 = arith.constant 0 : index
    %c1600 = arith.constant 1600 : index
    %66 = vector.load %arg9[%c0_67, %c1600] : memref<2x3136xf32, #tpu.memory_space<vmem>>, vector<2x64xf32>
    %c82 = arith.constant 82 : index
    %c0_68 = arith.constant 0 : index
    %67 = vector.load %arg10[%c82, %c0_68] : memref<168x64xf32, #tpu.memory_space<vmem>>, vector<2x64xf32>
    tpu.vector_store %arg10[%c82, %c0_68], %66 {strides = array<i32>} : memref<168x64xf32, #tpu.memory_space<vmem>>, vector<2x64xf32>,
    %c0_69 = arith.constant 0 : index
    %c1664 = arith.constant 1664 : index
    %68 = vector.load %arg9[%c0_69, %c1664] : memref<2x3136xf32, #tpu.memory_space<vmem>>, vector<2x64xf32>
    %c84 = arith.constant 84 : index
    %c0_70 = arith.constant 0 : index
    %69 = vector.load %arg10[%c84, %c0_70] : memref<168x64xf32, #tpu.memory_space<vmem>>, vector<2x64xf32>
    tpu.vector_store %arg10[%c84, %c0_70], %68 {strides = array<i32>} : memref<168x64xf32, #tpu.memory_space<vmem>>, vector<2x64xf32>,
    %c0_71 = arith.constant 0 : index
    %c1728 = arith.constant 1728 : index
    %70 = vector.load %arg9[%c0_71, %c1728] : memref<2x3136xf32, #tpu.memory_space<vmem>>, vector<2x64xf32>
    %c86 = arith.constant 86 : index
    %c0_72 = arith.constant 0 : index
    %71 = vector.load %arg10[%c86, %c0_72] : memref<168x64xf32, #tpu.memory_space<vmem>>, vector<2x64xf32>
    tpu.vector_store %arg10[%c86, %c0_72], %70 {strides = array<i32>} : memref<168x64xf32, #tpu.memory_space<vmem>>, vector<2x64xf32>,
    %c0_73 = arith.constant 0 : index
    %c1792 = arith.constant 1792 : index
    %72 = vector.load %arg9[%c0_73, %c1792] : memref<2x3136xf32, #tpu.memory_space<vmem>>, vector<2x64xf32>
    %c92 = arith.constant 92 : index
    %c0_74 = arith.constant 0 : index
    %73 = vector.load %arg10[%c92, %c0_74] : memref<168x64xf32, #tpu.memory_space<vmem>>, vector<2x64xf32>
    tpu.vector_store %arg10[%c92, %c0_74], %72 {strides = array<i32>} : memref<168x64xf32, #tpu.memory_space<vmem>>, vector<2x64xf32>,
    %c0_75 = arith.constant 0 : index
    %c1856 = arith.constant 1856 : index
    %74 = vector.load %arg9[%c0_75, %c1856] : memref<2x3136xf32, #tpu.memory_space<vmem>>, vector<2x64xf32>
    %c94 = arith.constant 94 : index
    %c0_76 = arith.constant 0 : index
    %75 = vector.load %arg10[%c94, %c0_76] : memref<168x64xf32, #tpu.memory_space<vmem>>, vector<2x64xf32>
    tpu.vector_store %arg10[%c94, %c0_76], %74 {strides = array<i32>} : memref<168x64xf32, #tpu.memory_space<vmem>>, vector<2x64xf32>,
    %c0_77 = arith.constant 0 : index
    %c1920 = arith.constant 1920 : index
    %76 = vector.load %arg9[%c0_77, %c1920] : memref<2x3136xf32, #tpu.memory_space<vmem>>, vector<2x64xf32>
    %c96 = arith.constant 96 : index
    %c0_78 = arith.constant 0 : index
    %77 = vector.load %arg10[%c96, %c0_78] : memref<168x64xf32, #tpu.memory_space<vmem>>, vector<2x64xf32>
    tpu.vector_store %arg10[%c96, %c0_78], %76 {strides = array<i32>} : memref<168x64xf32, #tpu.memory_space<vmem>>, vector<2x64xf32>,
    %c0_79 = arith.constant 0 : index
    %c1984 = arith.constant 1984 : index
    %78 = vector.load %arg9[%c0_79, %c1984] : memref<2x3136xf32, #tpu.memory_space<vmem>>, vector<2x64xf32>
    %c98 = arith.constant 98 : index
    %c0_80 = arith.constant 0 : index
    %79 = vector.load %arg10[%c98, %c0_80] : memref<168x64xf32, #tpu.memory_space<vmem>>, vector<2x64xf32>
    tpu.vector_store %arg10[%c98, %c0_80], %78 {strides = array<i32>} : memref<168x64xf32, #tpu.memory_space<vmem>>, vector<2x64xf32>,
    %c0_81 = arith.constant 0 : index
    %c2048 = arith.constant 2048 : index
    %80 = vector.load %arg9[%c0_81, %c2048] : memref<2x3136xf32, #tpu.memory_space<vmem>>, vector<2x64xf32>
    %c100 = arith.constant 100 : index
    %c0_82 = arith.constant 0 : index
    %81 = vector.load %arg10[%c100, %c0_82] : memref<168x64xf32, #tpu.memory_space<vmem>>, vector<2x64xf32>
    tpu.vector_store %arg10[%c100, %c0_82], %80 {strides = array<i32>} : memref<168x64xf32, #tpu.memory_space<vmem>>, vector<2x64xf32>,
    %c0_83 = arith.constant 0 : index
    %c2112 = arith.constant 2112 : index
    %82 = vector.load %arg9[%c0_83, %c2112] : memref<2x3136xf32, #tpu.memory_space<vmem>>, vector<2x64xf32>
    %c102 = arith.constant 102 : index
    %c0_84 = arith.constant 0 : index
    %83 = vector.load %arg10[%c102, %c0_84] : memref<168x64xf32, #tpu.memory_space<vmem>>, vector<2x64xf32>
    tpu.vector_store %arg10[%c102, %c0_84], %82 {strides = array<i32>} : memref<168x64xf32, #tpu.memory_space<vmem>>, vector<2x64xf32>,
    %c0_85 = arith.constant 0 : index
    %c2176 = arith.constant 2176 : index
    %84 = vector.load %arg9[%c0_85, %c2176] : memref<2x3136xf32, #tpu.memory_space<vmem>>, vector<2x64xf32>
    %c104 = arith.constant 104 : index
    %c0_86 = arith.constant 0 : index
    %85 = vector.load %arg10[%c104, %c0_86] : memref<168x64xf32, #tpu.memory_space<vmem>>, vector<2x64xf32>
    tpu.vector_store %arg10[%c104, %c0_86], %84 {strides = array<i32>} : memref<168x64xf32, #tpu.memory_space<vmem>>, vector<2x64xf32>,
    %c0_87 = arith.constant 0 : index
    %c2240 = arith.constant 2240 : index
    %86 = vector.load %arg9[%c0_87, %c2240] : memref<2x3136xf32, #tpu.memory_space<vmem>>, vector<2x64xf32>
    %c110 = arith.constant 110 : index
    %c0_88 = arith.constant 0 : index
    %87 = vector.load %arg10[%c110, %c0_88] : memref<168x64xf32, #tpu.memory_space<vmem>>, vector<2x64xf32>
    tpu.vector_store %arg10[%c110, %c0_88], %86 {strides = array<i32>} : memref<168x64xf32, #tpu.memory_space<vmem>>, vector<2x64xf32>,
    %c0_89 = arith.constant 0 : index
    %c2304 = arith.constant 2304 : index
    %88 = vector.load %arg9[%c0_89, %c2304] : memref<2x3136xf32, #tpu.memory_space<vmem>>, vector<2x64xf32>
    %c112 = arith.constant 112 : index
    %c0_90 = arith.constant 0 : index
    %89 = vector.load %arg10[%c112, %c0_90] : memref<168x64xf32, #tpu.memory_space<vmem>>, vector<2x64xf32>
    tpu.vector_store %arg10[%c112, %c0_90], %88 {strides = array<i32>} : memref<168x64xf32, #tpu.memory_space<vmem>>, vector<2x64xf32>,
    %c0_91 = arith.constant 0 : index
    %c2368 = arith.constant 2368 : index
    %90 = vector.load %arg9[%c0_91, %c2368] : memref<2x3136xf32, #tpu.memory_space<vmem>>, vector<2x64xf32>
    %c114 = arith.constant 114 : index
    %c0_92 = arith.constant 0 : index
    %91 = vector.load %arg10[%c114, %c0_92] : memref<168x64xf32, #tpu.memory_space<vmem>>, vector<2x64xf32>
    tpu.vector_store %arg10[%c114, %c0_92], %90 {strides = array<i32>} : memref<168x64xf32, #tpu.memory_space<vmem>>, vector<2x64xf32>,
    %c0_93 = arith.constant 0 : index
    %c2432 = arith.constant 2432 : index
    %92 = vector.load %arg9[%c0_93, %c2432] : memref<2x3136xf32, #tpu.memory_space<vmem>>, vector<2x64xf32>
    %c116 = arith.constant 116 : index
    %c0_94 = arith.constant 0 : index
    %93 = vector.load %arg10[%c116, %c0_94] : memref<168x64xf32, #tpu.memory_space<vmem>>, vector<2x64xf32>
    tpu.vector_store %arg10[%c116, %c0_94], %92 {strides = array<i32>} : memref<168x64xf32, #tpu.memory_space<vmem>>, vector<2x64xf32>,
    %c0_95 = arith.constant 0 : index
    %c2496 = arith.constant 2496 : index
    %94 = vector.load %arg9[%c0_95, %c2496] : memref<2x3136xf32, #tpu.memory_space<vmem>>, vector<2x64xf32>
    %c118 = arith.constant 118 : index
    %c0_96 = arith.constant 0 : index
    %95 = vector.load %arg10[%c118, %c0_96] : memref<168x64xf32, #tpu.memory_space<vmem>>, vector<2x64xf32>
    tpu.vector_store %arg10[%c118, %c0_96], %94 {strides = array<i32>} : memref<168x64xf32, #tpu.memory_space<vmem>>, vector<2x64xf32>,
    %c0_97 = arith.constant 0 : index
    %c2560 = arith.constant 2560 : index
    %96 = vector.load %arg9[%c0_97, %c2560] : memref<2x3136xf32, #tpu.memory_space<vmem>>, vector<2x64xf32>
    %c120 = arith.constant 120 : index
    %c0_98 = arith.constant 0 : index
    %97 = vector.load %arg10[%c120, %c0_98] : memref<168x64xf32, #tpu.memory_space<vmem>>, vector<2x64xf32>
    tpu.vector_store %arg10[%c120, %c0_98], %96 {strides = array<i32>} : memref<168x64xf32, #tpu.memory_space<vmem>>, vector<2x64xf32>,
    %c0_99 = arith.constant 0 : index
    %c2624 = arith.constant 2624 : index
    %98 = vector.load %arg9[%c0_99, %c2624] : memref<2x3136xf32, #tpu.memory_space<vmem>>, vector<2x64xf32>
    %c122 = arith.constant 122 : index
    %c0_100 = arith.constant 0 : index
    %99 = vector.load %arg10[%c122, %c0_100] : memref<168x64xf32, #tpu.memory_space<vmem>>, vector<2x64xf32>
    tpu.vector_store %arg10[%c122, %c0_100], %98 {strides = array<i32>} : memref<168x64xf32, #tpu.memory_space<vmem>>, vector<2x64xf32>,
    %c0_101 = arith.constant 0 : index
    %c2688 = arith.constant 2688 : index
    %100 = vector.load %arg9[%c0_101, %c2688] : memref<2x3136xf32, #tpu.memory_space<vmem>>, vector<2x64xf32>
    %c128_102 = arith.constant 128 : index
    %c0_103 = arith.constant 0 : index
    %101 = vector.load %arg10[%c128_102, %c0_103] : memref<168x64xf32, #tpu.memory_space<vmem>>, vector<2x64xf32>
    tpu.vector_store %arg10[%c128_102, %c0_103], %100 {strides = array<i32>} : memref<168x64xf32, #tpu.memory_space<vmem>>, vector<2x64xf32>,
    %c0_104 = arith.constant 0 : index
    %c2752 = arith.constant 2752 : index
    %102 = vector.load %arg9[%c0_104, %c2752] : memref<2x3136xf32, #tpu.memory_space<vmem>>, vector<2x64xf32>
    %c130 = arith.constant 130 : index
    %c0_105 = arith.constant 0 : index
    %103 = vector.load %arg10[%c130, %c0_105] : memref<168x64xf32, #tpu.memory_space<vmem>>, vector<2x64xf32>
    tpu.vector_store %arg10[%c130, %c0_105], %102 {strides = array<i32>} : memref<168x64xf32, #tpu.memory_space<vmem>>, vector<2x64xf32>,
    %c0_106 = arith.constant 0 : index
    %c2816 = arith.constant 2816 : index
    %104 = vector.load %arg9[%c0_106, %c2816] : memref<2x3136xf32, #tpu.memory_space<vmem>>, vector<2x64xf32>
    %c132 = arith.constant 132 : index
    %c0_107 = arith.constant 0 : index
    %105 = vector.load %arg10[%c132, %c0_107] : memref<168x64xf32, #tpu.memory_space<vmem>>, vector<2x64xf32>
    tpu.vector_store %arg10[%c132, %c0_107], %104 {strides = array<i32>} : memref<168x64xf32, #tpu.memory_space<vmem>>, vector<2x64xf32>,
    %c0_108 = arith.constant 0 : index
    %c2880 = arith.constant 2880 : index
    %106 = vector.load %arg9[%c0_108, %c2880] : memref<2x3136xf32, #tpu.memory_space<vmem>>, vector<2x64xf32>
    %c134 = arith.constant 134 : index
    %c0_109 = arith.constant 0 : index
    %107 = vector.load %arg10[%c134, %c0_109] : memref<168x64xf32, #tpu.memory_space<vmem>>, vector<2x64xf32>
    tpu.vector_store %arg10[%c134, %c0_109], %106 {strides = array<i32>} : memref<168x64xf32, #tpu.memory_space<vmem>>, vector<2x64xf32>,
    %c0_110 = arith.constant 0 : index
    %c2944 = arith.constant 2944 : index
    %108 = vector.load %arg9[%c0_110, %c2944] : memref<2x3136xf32, #tpu.memory_space<vmem>>, vector<2x64xf32>
    %c136 = arith.constant 136 : index
    %c0_111 = arith.constant 0 : index
    %109 = vector.load %arg10[%c136, %c0_111] : memref<168x64xf32, #tpu.memory_space<vmem>>, vector<2x64xf32>
    tpu.vector_store %arg10[%c136, %c0_111], %108 {strides = array<i32>} : memref<168x64xf32, #tpu.memory_space<vmem>>, vector<2x64xf32>,
    %c0_112 = arith.constant 0 : index
    %c3008 = arith.constant 3008 : index
    %110 = vector.load %arg9[%c0_112, %c3008] : memref<2x3136xf32, #tpu.memory_space<vmem>>, vector<2x64xf32>
    %c138 = arith.constant 138 : index
    %c0_113 = arith.constant 0 : index
    %111 = vector.load %arg10[%c138, %c0_113] : memref<168x64xf32, #tpu.memory_space<vmem>>, vector<2x64xf32>
    tpu.vector_store %arg10[%c138, %c0_113], %110 {strides = array<i32>} : memref<168x64xf32, #tpu.memory_space<vmem>>, vector<2x64xf32>,
    %c0_114 = arith.constant 0 : index
    %c3072 = arith.constant 3072 : index
    %112 = vector.load %arg9[%c0_114, %c3072] : memref<2x3136xf32, #tpu.memory_space<vmem>>, vector<2x64xf32>
    %c140 = arith.constant 140 : index
    %c0_115 = arith.constant 0 : index
    %113 = vector.load %arg10[%c140, %c0_115] : memref<168x64xf32, #tpu.memory_space<vmem>>, vector<2x64xf32>
    tpu.vector_store %arg10[%c140, %c0_115], %112 {strides = array<i32>} : memref<168x64xf32, #tpu.memory_space<vmem>>, vector<2x64xf32>,
    %cst_116 = arith.constant 0.000000e+00 : f32
    %114 = vector.broadcast %cst_116 : f32 to vector<126x128xf32>
    %c0_117 = arith.constant 0 : index
    %c0_118 = arith.constant 0 : index
    %115 = vector.load %arg10[%c0_117, %c0_118] : memref<168x64xf32, #tpu.memory_space<vmem>>, vector<126x64xf32>
    %c0_119 = arith.constant 0 : index
    %c0_120 = arith.constant 0 : index
    %c0_121 = arith.constant 0 : index
    %116 = vector.load %arg4[%c0_119, %c0_120, %c0_121] : memref<9x64x128xf32, #tpu.memory_space<vmem>>, vector<1x64x128xf32>
    %117 = vector.shape_cast %116 : vector<1x64x128xf32> to vector<64x128xf32>
    %cst_122 = arith.constant dense<0.000000e+00> : vector<126x128xf32>
    %118 = tpu.matmul %115, %117, %cst_122 {dimension_numbers = #tpu.dot_dimension_numbers<[1], [0], [0], [1], [0, 0, 1, 1], [], []>} : vector<126x64xf32>, vector<64x128xf32>, vector<126x128xf32> -> vector<126x128xf32>
    %119 = arith.addf %114, %118 : vector<126x128xf32>
    %c2 = arith.constant 2 : index
    %c0_123 = arith.constant 0 : index
    %120 = vector.load %arg10[%c2, %c0_123] : memref<168x64xf32, #tpu.memory_space<vmem>>, vector<126x64xf32>
    %c1 = arith.constant 1 : index
    %c0_124 = arith.constant 0 : index
    %c0_125 = arith.constant 0 : index
    %121 = vector.load %arg4[%c1, %c0_124, %c0_125] : memref<9x64x128xf32, #tpu.memory_space<vmem>>, vector<1x64x128xf32>
    %122 = vector.shape_cast %121 : vector<1x64x128xf32> to vector<64x128xf32>
    %cst_126 = arith.constant dense<0.000000e+00> : vector<126x128xf32>
    %123 = tpu.matmul %120, %122, %cst_126 {dimension_numbers = #tpu.dot_dimension_numbers<[1], [0], [0], [1], [0, 0, 1, 1], [], []>} : vector<126x64xf32>, vector<64x128xf32>, vector<126x128xf32> -> vector<126x128xf32>
    %124 = arith.addf %119, %123 : vector<126x128xf32>
    %c4 = arith.constant 4 : index
    %c0_127 = arith.constant 0 : index
    %125 = vector.load %arg10[%c4, %c0_127] : memref<168x64xf32, #tpu.memory_space<vmem>>, vector<126x64xf32>
    %c2_128 = arith.constant 2 : index
    %c0_129 = arith.constant 0 : index
    %c0_130 = arith.constant 0 : index
    %126 = vector.load %arg4[%c2_128, %c0_129, %c0_130] : memref<9x64x128xf32, #tpu.memory_space<vmem>>, vector<1x64x128xf32>
    %127 = vector.shape_cast %126 : vector<1x64x128xf32> to vector<64x128xf32>
    %cst_131 = arith.constant dense<0.000000e+00> : vector<126x128xf32>
    %128 = tpu.matmul %125, %127, %cst_131 {dimension_numbers = #tpu.dot_dimension_numbers<[1], [0], [0], [1], [0, 0, 1, 1], [], []>} : vector<126x64xf32>, vector<64x128xf32>, vector<126x128xf32> -> vector<126x128xf32>
    %129 = arith.addf %124, %128 : vector<126x128xf32>
    %c18 = arith.constant 18 : index
    %c0_132 = arith.constant 0 : index
    %130 = vector.load %arg10[%c18, %c0_132] : memref<168x64xf32, #tpu.memory_space<vmem>>, vector<126x64xf32>
    %c3 = arith.constant 3 : index
    %c0_133 = arith.constant 0 : index
    %c0_134 = arith.constant 0 : index
    %131 = vector.load %arg4[%c3, %c0_133, %c0_134] : memref<9x64x128xf32, #tpu.memory_space<vmem>>, vector<1x64x128xf32>
    %132 = vector.shape_cast %131 : vector<1x64x128xf32> to vector<64x128xf32>
    %cst_135 = arith.constant dense<0.000000e+00> : vector<126x128xf32>
    %133 = tpu.matmul %130, %132, %cst_135 {dimension_numbers = #tpu.dot_dimension_numbers<[1], [0], [0], [1], [0, 0, 1, 1], [], []>} : vector<126x64xf32>, vector<64x128xf32>, vector<126x128xf32> -> vector<126x128xf32>
    %134 = arith.addf %129, %133 : vector<126x128xf32>
    %c20_136 = arith.constant 20 : index
    %c0_137 = arith.constant 0 : index
    %135 = vector.load %arg10[%c20_136, %c0_137] : memref<168x64xf32, #tpu.memory_space<vmem>>, vector<126x64xf32>
    %c4_138 = arith.constant 4 : index
    %c0_139 = arith.constant 0 : index
    %c0_140 = arith.constant 0 : index
    %136 = vector.load %arg4[%c4_138, %c0_139, %c0_140] : memref<9x64x128xf32, #tpu.memory_space<vmem>>, vector<1x64x128xf32>
    %137 = vector.shape_cast %136 : vector<1x64x128xf32> to vector<64x128xf32>
    %cst_141 = arith.constant dense<0.000000e+00> : vector<126x128xf32>
    %138 = tpu.matmul %135, %137, %cst_141 {dimension_numbers = #tpu.dot_dimension_numbers<[1], [0], [0], [1], [0, 0, 1, 1], [], []>} : vector<126x64xf32>, vector<64x128xf32>, vector<126x128xf32> -> vector<126x128xf32>
    %139 = arith.addf %134, %138 : vector<126x128xf32>
    %c22_142 = arith.constant 22 : index
    %c0_143 = arith.constant 0 : index
    %140 = vector.load %arg10[%c22_142, %c0_143] : memref<168x64xf32, #tpu.memory_space<vmem>>, vector<126x64xf32>
    %c5 = arith.constant 5 : index
    %c0_144 = arith.constant 0 : index
    %c0_145 = arith.constant 0 : index
    %141 = vector.load %arg4[%c5, %c0_144, %c0_145] : memref<9x64x128xf32, #tpu.memory_space<vmem>>, vector<1x64x128xf32>
    %142 = vector.shape_cast %141 : vector<1x64x128xf32> to vector<64x128xf32>
    %cst_146 = arith.constant dense<0.000000e+00> : vector<126x128xf32>
    %143 = tpu.matmul %140, %142, %cst_146 {dimension_numbers = #tpu.dot_dimension_numbers<[1], [0], [0], [1], [0, 0, 1, 1], [], []>} : vector<126x64xf32>, vector<64x128xf32>, vector<126x128xf32> -> vector<126x128xf32>
    %144 = arith.addf %139, %143 : vector<126x128xf32>
    %c36 = arith.constant 36 : index
    %c0_147 = arith.constant 0 : index
    %145 = vector.load %arg10[%c36, %c0_147] : memref<168x64xf32, #tpu.memory_space<vmem>>, vector<126x64xf32>
    %c6 = arith.constant 6 : index
    %c0_148 = arith.constant 0 : index
    %c0_149 = arith.constant 0 : index
    %146 = vector.load %arg4[%c6, %c0_148, %c0_149] : memref<9x64x128xf32, #tpu.memory_space<vmem>>, vector<1x64x128xf32>
    %147 = vector.shape_cast %146 : vector<1x64x128xf32> to vector<64x128xf32>
    %cst_150 = arith.constant dense<0.000000e+00> : vector<126x128xf32>
    %148 = tpu.matmul %145, %147, %cst_150 {dimension_numbers = #tpu.dot_dimension_numbers<[1], [0], [0], [1], [0, 0, 1, 1], [], []>} : vector<126x64xf32>, vector<64x128xf32>, vector<126x128xf32> -> vector<126x128xf32>
    %149 = arith.addf %144, %148 : vector<126x128xf32>
    %c38_151 = arith.constant 38 : index
    %c0_152 = arith.constant 0 : index
    %150 = vector.load %arg10[%c38_151, %c0_152] : memref<168x64xf32, #tpu.memory_space<vmem>>, vector<126x64xf32>
    %c7 = arith.constant 7 : index
    %c0_153 = arith.constant 0 : index
    %c0_154 = arith.constant 0 : index
    %151 = vector.load %arg4[%c7, %c0_153, %c0_154] : memref<9x64x128xf32, #tpu.memory_space<vmem>>, vector<1x64x128xf32>
    %152 = vector.shape_cast %151 : vector<1x64x128xf32> to vector<64x128xf32>
    %cst_155 = arith.constant dense<0.000000e+00> : vector<126x128xf32>
    %153 = tpu.matmul %150, %152, %cst_155 {dimension_numbers = #tpu.dot_dimension_numbers<[1], [0], [0], [1], [0, 0, 1, 1], [], []>} : vector<126x64xf32>, vector<64x128xf32>, vector<126x128xf32> -> vector<126x128xf32>
    %154 = arith.addf %149, %153 : vector<126x128xf32>
    %c40_156 = arith.constant 40 : index
    %c0_157 = arith.constant 0 : index
    %155 = vector.load %arg10[%c40_156, %c0_157] : memref<168x64xf32, #tpu.memory_space<vmem>>, vector<126x64xf32>
    %c8 = arith.constant 8 : index
    %c0_158 = arith.constant 0 : index
    %c0_159 = arith.constant 0 : index
    %156 = vector.load %arg4[%c8, %c0_158, %c0_159] : memref<9x64x128xf32, #tpu.memory_space<vmem>>, vector<1x64x128xf32>
    %157 = vector.shape_cast %156 : vector<1x64x128xf32> to vector<64x128xf32>
    %cst_160 = arith.constant dense<0.000000e+00> : vector<126x128xf32>
    %158 = tpu.matmul %155, %157, %cst_160 {dimension_numbers = #tpu.dot_dimension_numbers<[1], [0], [0], [1], [0, 0, 1, 1], [], []>} : vector<126x64xf32>, vector<64x128xf32>, vector<126x128xf32> -> vector<126x128xf32>
    %159 = arith.addf %154, %158 : vector<126x128xf32>
    %c0_161 = arith.constant 0 : index
    %c0_162 = arith.constant 0 : index
    %160 = vector.load %arg5[%c0_161, %c0_162] : memref<1x128xf32, #tpu.memory_space<vmem>>, vector<1x128xf32>
    %161 = vector.broadcast %160 : vector<1x128xf32> to vector<126x128xf32>
    %162 = arith.addf %159, %161 : vector<126x128xf32>
    %cst_163 = arith.constant 0.000000e+00 : f32
    %163 = vector.broadcast %cst_163 : f32 to vector<126x128xf32>
    %164 = arith.cmpf oge, %162, %163 : vector<126x128xf32>
    %cst_164 = arith.constant 2.000000e-01 : f32
    %165 = vector.broadcast %cst_164 : f32 to vector<126x128xf32>
    %166 = arith.mulf %165, %162 : vector<126x128xf32>
    %167 = arith.select %164, %162, %166 : vector<126x128xi1>, vector<126x128xf32>
    %c24_165 = arith.constant 24 : index
    %c0_166 = arith.constant 0 : index
    %168 = vector.load %arg11[%c24_165, %c0_166] : memref<176x128xf32, #tpu.memory_space<vmem>>, vector<126x128xf32>
    tpu.vector_store %arg11[%c24_165, %c0_166], %167 {strides = array<i32>} : memref<176x128xf32, #tpu.memory_space<vmem>>, vector<126x128xf32>,
    %cst_167 = arith.constant 0.000000e+00 : f32
    %169 = vector.broadcast %cst_167 : f32 to vector<4x128xf32>
    %c38_168 = arith.constant 38 : index
    %c0_169 = arith.constant 0 : index
    %170 = vector.load %arg11[%c38_168, %c0_169] : memref<176x128xf32, #tpu.memory_space<vmem>>, vector<4x128xf32>
    tpu.vector_store %arg11[%c38_168, %c0_169], %169 {strides = array<i32>} : memref<176x128xf32, #tpu.memory_space<vmem>>, vector<4x128xf32>,
    %cst_170 = arith.constant 0.000000e+00 : f32
    %171 = vector.broadcast %cst_170 : f32 to vector<4x128xf32>
    %c56_171 = arith.constant 56 : index
    %c0_172 = arith.constant 0 : index
    %172 = vector.load %arg11[%c56_171, %c0_172] : memref<176x128xf32, #tpu.memory_space<vmem>>, vector<4x128xf32>
    tpu.vector_store %arg11[%c56_171, %c0_172], %171 {strides = array<i32>} : memref<176x128xf32, #tpu.memory_space<vmem>>, vector<4x128xf32>,
    %cst_173 = arith.constant 0.000000e+00 : f32
    %173 = vector.broadcast %cst_173 : f32 to vector<4x128xf32>
    %c74_174 = arith.constant 74 : index
    %c0_175 = arith.constant 0 : index
    %174 = vector.load %arg11[%c74_174, %c0_175] : memref<176x128xf32, #tpu.memory_space<vmem>>, vector<4x128xf32>
    tpu.vector_store %arg11[%c74_174, %c0_175], %173 {strides = array<i32>} : memref<176x128xf32, #tpu.memory_space<vmem>>, vector<4x128xf32>,
    %cst_176 = arith.constant 0.000000e+00 : f32
    %175 = vector.broadcast %cst_176 : f32 to vector<4x128xf32>
    %c92_177 = arith.constant 92 : index
    %c0_178 = arith.constant 0 : index
    %176 = vector.load %arg11[%c92_177, %c0_178] : memref<176x128xf32, #tpu.memory_space<vmem>>, vector<4x128xf32>
    tpu.vector_store %arg11[%c92_177, %c0_178], %175 {strides = array<i32>} : memref<176x128xf32, #tpu.memory_space<vmem>>, vector<4x128xf32>,
    %cst_179 = arith.constant 0.000000e+00 : f32
    %177 = vector.broadcast %cst_179 : f32 to vector<4x128xf32>
    %c110_180 = arith.constant 110 : index
    %c0_181 = arith.constant 0 : index
    %178 = vector.load %arg11[%c110_180, %c0_181] : memref<176x128xf32, #tpu.memory_space<vmem>>, vector<4x128xf32>
    tpu.vector_store %arg11[%c110_180, %c0_181], %177 {strides = array<i32>} : memref<176x128xf32, #tpu.memory_space<vmem>>, vector<4x128xf32>,
    %cst_182 = arith.constant 0.000000e+00 : f32
    %179 = vector.broadcast %cst_182 : f32 to vector<4x128xf32>
    %c128_183 = arith.constant 128 : index
    %c0_184 = arith.constant 0 : index
    %180 = vector.load %arg11[%c128_183, %c0_184] : memref<176x128xf32, #tpu.memory_space<vmem>>, vector<4x128xf32>
    tpu.vector_store %arg11[%c128_183, %c0_184], %179 {strides = array<i32>} : memref<176x128xf32, #tpu.memory_space<vmem>>, vector<4x128xf32>,
    %cst_185 = arith.constant 0.000000e+00 : f32
    %181 = vector.broadcast %cst_185 : f32 to vector<4x128xf32>
    %c146 = arith.constant 146 : index
    %c0_186 = arith.constant 0 : index
    %182 = vector.load %arg11[%c146, %c0_186] : memref<176x128xf32, #tpu.memory_space<vmem>>, vector<4x128xf32>
    tpu.vector_store %arg11[%c146, %c0_186], %181 {strides = array<i32>} : memref<176x128xf32, #tpu.memory_space<vmem>>, vector<4x128xf32>,
    %cst_187 = arith.constant 0.000000e+00 : f32
    %183 = vector.broadcast %cst_187 : f32 to vector<126x16xf32>
    %c4_188 = arith.constant 4 : index
    %c0_189 = arith.constant 0 : index
    %184 = vector.load %arg11[%c4_188, %c0_189] : memref<176x128xf32, #tpu.memory_space<vmem>>, vector<126x128xf32>
    %c0_190 = arith.constant 0 : index
    %c0_191 = arith.constant 0 : index
    %c0_192 = arith.constant 0 : index
    %185 = vector.load %arg6[%c0_190, %c0_191, %c0_192] : memref<9x128x16xf32, #tpu.memory_space<vmem>>, vector<1x128x16xf32>
    %186 = vector.shape_cast %185 : vector<1x128x16xf32> to vector<128x16xf32>
    %cst_193 = arith.constant dense<0.000000e+00> : vector<126x16xf32>
    %187 = tpu.matmul %184, %186, %cst_193 {dimension_numbers = #tpu.dot_dimension_numbers<[1], [0], [0], [1], [0, 0, 1, 1], [], []>} : vector<126x128xf32>, vector<128x16xf32>, vector<126x16xf32> -> vector<126x16xf32>
    %188 = arith.addf %183, %187 : vector<126x16xf32>
    %c6_194 = arith.constant 6 : index
    %c0_195 = arith.constant 0 : index
    %189 = vector.load %arg11[%c6_194, %c0_195] : memref<176x128xf32, #tpu.memory_space<vmem>>, vector<126x128xf32>
    %c1_196 = arith.constant 1 : index
    %c0_197 = arith.constant 0 : index
    %c0_198 = arith.constant 0 : index
    %190 = vector.load %arg6[%c1_196, %c0_197, %c0_198] : memref<9x128x16xf32, #tpu.memory_space<vmem>>, vector<1x128x16xf32>
    %191 = vector.shape_cast %190 : vector<1x128x16xf32> to vector<128x16xf32>
    %cst_199 = arith.constant dense<0.000000e+00> : vector<126x16xf32>
    %192 = tpu.matmul %189, %191, %cst_199 {dimension_numbers = #tpu.dot_dimension_numbers<[1], [0], [0], [1], [0, 0, 1, 1], [], []>} : vector<126x128xf32>, vector<128x16xf32>, vector<126x16xf32> -> vector<126x16xf32>
    %193 = arith.addf %188, %192 : vector<126x16xf32>
    %c8_200 = arith.constant 8 : index
    %c0_201 = arith.constant 0 : index
    %194 = vector.load %arg11[%c8_200, %c0_201] : memref<176x128xf32, #tpu.memory_space<vmem>>, vector<126x128xf32>
    %c2_202 = arith.constant 2 : index
    %c0_203 = arith.constant 0 : index
    %c0_204 = arith.constant 0 : index
    %195 = vector.load %arg6[%c2_202, %c0_203, %c0_204] : memref<9x128x16xf32, #tpu.memory_space<vmem>>, vector<1x128x16xf32>
    %196 = vector.shape_cast %195 : vector<1x128x16xf32> to vector<128x16xf32>
    %cst_205 = arith.constant dense<0.000000e+00> : vector<126x16xf32>
    %197 = tpu.matmul %194, %196, %cst_205 {dimension_numbers = #tpu.dot_dimension_numbers<[1], [0], [0], [1], [0, 0, 1, 1], [], []>} : vector<126x128xf32>, vector<128x16xf32>, vector<126x16xf32> -> vector<126x16xf32>
    %198 = arith.addf %193, %197 : vector<126x16xf32>
    %c22_206 = arith.constant 22 : index
    %c0_207 = arith.constant 0 : index
    %199 = vector.load %arg11[%c22_206, %c0_207] : memref<176x128xf32, #tpu.memory_space<vmem>>, vector<126x128xf32>
    %c3_208 = arith.constant 3 : index
    %c0_209 = arith.constant 0 : index
    %c0_210 = arith.constant 0 : index
    %200 = vector.load %arg6[%c3_208, %c0_209, %c0_210] : memref<9x128x16xf32, #tpu.memory_space<vmem>>, vector<1x128x16xf32>
    %201 = vector.shape_cast %200 : vector<1x128x16xf32> to vector<128x16xf32>
    %cst_211 = arith.constant dense<0.000000e+00> : vector<126x16xf32>
    %202 = tpu.matmul %199, %201, %cst_211 {dimension_numbers = #tpu.dot_dimension_numbers<[1], [0], [0], [1], [0, 0, 1, 1], [], []>} : vector<126x128xf32>, vector<128x16xf32>, vector<126x16xf32> -> vector<126x16xf32>
    %203 = arith.addf %198, %202 : vector<126x16xf32>
    %c24_212 = arith.constant 24 : index
    %c0_213 = arith.constant 0 : index
    %204 = vector.load %arg11[%c24_212, %c0_213] : memref<176x128xf32, #tpu.memory_space<vmem>>, vector<126x128xf32>
    %c4_214 = arith.constant 4 : index
    %c0_215 = arith.constant 0 : index
    %c0_216 = arith.constant 0 : index
    %205 = vector.load %arg6[%c4_214, %c0_215, %c0_216] : memref<9x128x16xf32, #tpu.memory_space<vmem>>, vector<1x128x16xf32>
    %206 = vector.shape_cast %205 : vector<1x128x16xf32> to vector<128x16xf32>
    %cst_217 = arith.constant dense<0.000000e+00> : vector<126x16xf32>
    %207 = tpu.matmul %204, %206, %cst_217 {dimension_numbers = #tpu.dot_dimension_numbers<[1], [0], [0], [1], [0, 0, 1, 1], [], []>} : vector<126x128xf32>, vector<128x16xf32>, vector<126x16xf32> -> vector<126x16xf32>
    %208 = arith.addf %203, %207 : vector<126x16xf32>
    %c26_218 = arith.constant 26 : index
    %c0_219 = arith.constant 0 : index
    %209 = vector.load %arg11[%c26_218, %c0_219] : memref<176x128xf32, #tpu.memory_space<vmem>>, vector<126x128xf32>
    %c5_220 = arith.constant 5 : index
    %c0_221 = arith.constant 0 : index
    %c0_222 = arith.constant 0 : index
    %210 = vector.load %arg6[%c5_220, %c0_221, %c0_222] : memref<9x128x16xf32, #tpu.memory_space<vmem>>, vector<1x128x16xf32>
    %211 = vector.shape_cast %210 : vector<1x128x16xf32> to vector<128x16xf32>
    %cst_223 = arith.constant dense<0.000000e+00> : vector<126x16xf32>
    %212 = tpu.matmul %209, %211, %cst_223 {dimension_numbers = #tpu.dot_dimension_numbers<[1], [0], [0], [1], [0, 0, 1, 1], [], []>} : vector<126x128xf32>, vector<128x16xf32>, vector<126x16xf32> -> vector<126x16xf32>
    %213 = arith.addf %208, %212 : vector<126x16xf32>
    %c40_224 = arith.constant 40 : index
    %c0_225 = arith.constant 0 : index
    %214 = vector.load %arg11[%c40_224, %c0_225] : memref<176x128xf32, #tpu.memory_space<vmem>>, vector<126x128xf32>
    %c6_226 = arith.constant 6 : index
    %c0_227 = arith.constant 0 : index
    %c0_228 = arith.constant 0 : index
    %215 = vector.load %arg6[%c6_226, %c0_227, %c0_228] : memref<9x128x16xf32, #tpu.memory_space<vmem>>, vector<1x128x16xf32>
    %216 = vector.shape_cast %215 : vector<1x128x16xf32> to vector<128x16xf32>
    %cst_229 = arith.constant dense<0.000000e+00> : vector<126x16xf32>
    %217 = tpu.matmul %214, %216, %cst_229 {dimension_numbers = #tpu.dot_dimension_numbers<[1], [0], [0], [1], [0, 0, 1, 1], [], []>} : vector<126x128xf32>, vector<128x16xf32>, vector<126x16xf32> -> vector<126x16xf32>
    %218 = arith.addf %213, %217 : vector<126x16xf32>
    %c42_230 = arith.constant 42 : index
    %c0_231 = arith.constant 0 : index
    %219 = vector.load %arg11[%c42_230, %c0_231] : memref<176x128xf32, #tpu.memory_space<vmem>>, vector<126x128xf32>
    %c7_232 = arith.constant 7 : index
    %c0_233 = arith.constant 0 : index
    %c0_234 = arith.constant 0 : index
    %220 = vector.load %arg6[%c7_232, %c0_233, %c0_234] : memref<9x128x16xf32, #tpu.memory_space<vmem>>, vector<1x128x16xf32>
    %221 = vector.shape_cast %220 : vector<1x128x16xf32> to vector<128x16xf32>
    %cst_235 = arith.constant dense<0.000000e+00> : vector<126x16xf32>
    %222 = tpu.matmul %219, %221, %cst_235 {dimension_numbers = #tpu.dot_dimension_numbers<[1], [0], [0], [1], [0, 0, 1, 1], [], []>} : vector<126x128xf32>, vector<128x16xf32>, vector<126x16xf32> -> vector<126x16xf32>
    %223 = arith.addf %218, %222 : vector<126x16xf32>
    %c44_236 = arith.constant 44 : index
    %c0_237 = arith.constant 0 : index
    %224 = vector.load %arg11[%c44_236, %c0_237] : memref<176x128xf32, #tpu.memory_space<vmem>>, vector<126x128xf32>
    %c8_238 = arith.constant 8 : index
    %c0_239 = arith.constant 0 : index
    %c0_240 = arith.constant 0 : index
    %225 = vector.load %arg6[%c8_238, %c0_239, %c0_240] : memref<9x128x16xf32, #tpu.memory_space<vmem>>, vector<1x128x16xf32>
    %226 = vector.shape_cast %225 : vector<1x128x16xf32> to vector<128x16xf32>
    %cst_241 = arith.constant dense<0.000000e+00> : vector<126x16xf32>
    %227 = tpu.matmul %224, %226, %cst_241 {dimension_numbers = #tpu.dot_dimension_numbers<[1], [0], [0], [1], [0, 0, 1, 1], [], []>} : vector<126x128xf32>, vector<128x16xf32>, vector<126x16xf32> -> vector<126x16xf32>
    %228 = arith.addf %223, %227 : vector<126x16xf32>
    %c0_242 = arith.constant 0 : index
    %c0_243 = arith.constant 0 : index
    %229 = vector.load %arg7[%c0_242, %c0_243] : memref<1x16xf32, #tpu.memory_space<vmem>>, vector<1x16xf32>
    %230 = vector.broadcast %229 : vector<1x16xf32> to vector<126x16xf32>
    %231 = arith.addf %228, %230 : vector<126x16xf32>
    %232 = arith.negf %231 : vector<126x16xf32>
    %233 = math.exp %232 : vector<126x16xf32>
    %cst_244 = arith.constant 1.000000e+00 : f32
    %234 = vector.broadcast %cst_244 : f32 to vector<126x16xf32>
    %235 = arith.addf %234, %233 : vector<126x16xf32>
    %236 = arith.divf %234, %235 : vector<126x16xf32>
    %c0_245 = arith.constant 0 : index
    %c0_246 = arith.constant 0 : index
    %237 = vector.load %arg8[%c0_245, %c0_246] : memref<126x16xf32, #tpu.memory_space<vmem>>, vector<126x16xf32>
    tpu.vector_store %arg8[%c0_245, %c0_246], %236 {strides = array<i32>} : memref<126x16xf32, #tpu.memory_space<vmem>>, vector<126x16xf32>,
    return
  }
  func.func @transform_0(%arg0: i32) -> (i32, i32) {
    %c0_i32 = arith.constant 0 : i32
    %c0_i32_0 = arith.constant 0 : i32
    %c0_i32_1 = arith.constant 0 : i32
    return %c0_i32, %c0_i32_0 : i32, i32
  }
  func.func @transform_1(%arg0: i32) -> (i32, i32) {
    %c0_i32 = arith.constant 0 : i32
    %c0_i32_0 = arith.constant 0 : i32
    %c0_i32_1 = arith.constant 0 : i32
    return %c0_i32, %c0_i32_0 : i32, i32
  }
  func.func @transform_2(%arg0: i32) -> (i32, i32) {
    %c0_i32 = arith.constant 0 : i32
    %c0_i32_0 = arith.constant 0 : i32
    %c0_i32_1 = arith.constant 0 : i32
    return %c0_i32, %c0_i32_0 : i32, i32
  }
  func.func @transform_3(%arg0: i32) -> (i32, i32, i32) {
    %c0_i32 = arith.constant 0 : i32
    %c0_i32_0 = arith.constant 0 : i32
    %c0_i32_1 = arith.constant 0 : i32
    %c0_i32_2 = arith.constant 0 : i32
    return %c0_i32, %c0_i32_0, %c0_i32_1 : i32, i32, i32
  }
  func.func @transform_4(%arg0: i32) -> (i32, i32) {
    %c0_i32 = arith.constant 0 : i32
    %c0_i32_0 = arith.constant 0 : i32
    %c0_i32_1 = arith.constant 0 : i32
    return %c0_i32, %c0_i32_0 : i32, i32
  }
  func.func @transform_5(%arg0: i32) -> (i32, i32, i32) {
    %c0_i32 = arith.constant 0 : i32
    %c0_i32_0 = arith.constant 0 : i32
    %c0_i32_1 = arith.constant 0 : i32
    %c0_i32_2 = arith.constant 0 : i32
    return %c0_i32, %c0_i32_0, %c0_i32_1 : i32, i32, i32
  }
  func.func @transform_6(%arg0: i32) -> (i32, i32) {
    %c0_i32 = arith.constant 0 : i32
    %c0_i32_0 = arith.constant 0 : i32
    %c0_i32_1 = arith.constant 0 : i32
    return %c0_i32, %c0_i32_0 : i32, i32
  }
  func.func @transform_7(%arg0: i32) -> (i32, i32) {
    %c0_i32 = arith.constant 0 : i32
    %c0_i32_0 = arith.constant 0 : i32
    %c0_i32_1 = arith.constant 0 : i32
    return %c0_i32, %c0_i32_0 : i32, i32
  }
}

</mosaic_0001>

<llo_original>
// kernel: decoder_forward.1
$region0: #{decoder_forward.1}
  #allocation0 [shape = 'u32[]', space=smem, size = 0x4, offset = 0x4, fixed_abs, tag = 'smem constant byte address 0x4 - core index']
  #allocation1 [shape = 'u32[144,128]{1,0:T(1,128)}', space=vmem, size = 0x12000, scoped, tag = 'internal scratch']
  #allocation2 [shape = 'f32[2,3136]{1,0:T(2,128)}', space=vmem, size = 0x6400, scoped, tag = 'scratch operand']
  #allocation3 [shape = 'f32[168,64]{1,0:T(8,128)}', space=vmem, size = 0x15000, scoped, tag = 'scratch operand']
  #allocation4 [shape = 'f32[176,128]{1,0:T(8,128)}', space=vmem, size = 0x16000, scoped, tag = 'scratch operand']
  %s0 = inlined_call_operand.vmem [shape: f32[2,16], index: 0, kind: input, shape index: {}]
  %s1 = inlined_call_operand.vmem [shape: f32[16,3136], index: 1, kind: input, shape index: {}]
  %s2 = inlined_call_operand.vmem [shape: f32[1,3136], index: 2, kind: input, shape index: {}]
  %s3 = inlined_call_operand.vmem [shape: f32[9,64,128], index: 3, kind: input, shape index: {}]
  %s4 = inlined_call_operand.vmem [shape: f32[1,128], index: 4, kind: input, shape index: {}]
  %s5 = inlined_call_operand.vmem [shape: f32[9,128,16], index: 5, kind: input, shape index: {}]
  %s6 = inlined_call_operand.vmem [shape: f32[1,16], index: 6, kind: input, shape index: {}]
  %s7 = inlined_call_operand.vmem [shape: f32[126,16], index: 7, kind: output, shape index: {}]
  %s8 = sld [smem:[#allocation0]]
  $region38: #{decoder_forward.1} parent=0
    _
  %s10 = ssub.s32 1, %s8
  %s11 = scalar_select 0, %s10, %s8
  // Predicated region
  $region2: #{decoder_forward.1} parent=0 // pred_check
    _
  $region3: #{decoder_forward.1} parent=0 // pred_check_branch
    %13 = sbr.rel (0) target = $region5
  $region4: #{decoder_forward.1} parent=0 // pred_region
    _
  $region5: #{decoder_forward.1} parent=0 // pred_fallthru
    _
  // Predicated region
  $region6: #{decoder_forward.1} parent=0 // pred_check
    _
  $region7: #{decoder_forward.1} parent=0 // pred_check_branch
    %15 = sbr.rel (0) target = $region9
  $region8: #{decoder_forward.1} parent=0 // pred_region
    _
  $region9: #{decoder_forward.1} parent=0 // pred_fallthru
    _
  // Predicated region
  $region10: #{decoder_forward.1} parent=0 // pred_check
    _
  $region11: #{decoder_forward.1} parent=0 // pred_check_branch
    %17 = sbr.rel (0) target = $region13
  $region12: #{decoder_forward.1} parent=0 // pred_region
    _
  $region13: #{decoder_forward.1} parent=0 // pred_fallthru
    _
  // Predicated region
  $region14: #{decoder_forward.1} parent=0 // pred_check
    _
  $region15: #{decoder_forward.1} parent=0 // pred_check_branch
    %19 = sbr.rel (0) target = $region17
  $region16: #{decoder_forward.1} parent=0 // pred_region
    _
  $region17: #{decoder_forward.1} parent=0 // pred_fallthru
    _
  // Predicated region
  $region18: #{decoder_forward.1} parent=0 // pred_check
    _
  $region19: #{decoder_forward.1} parent=0 // pred_check_branch
    %21 = sbr.rel (0) target = $region21
  $region20: #{decoder_forward.1} parent=0 // pred_region
    _
  $region21: #{decoder_forward.1} parent=0 // pred_fallthru
    _
  // Predicated region
  $region22: #{decoder_forward.1} parent=0 // pred_check
    _
  $region23: #{decoder_forward.1} parent=0 // pred_check_branch
    %23 = sbr.rel (0) target = $region25
  $region24: #{decoder_forward.1} parent=0 // pred_region
    _
  $region25: #{decoder_forward.1} parent=0 // pred_fallthru
    _
  // Predicated region
  $region26: #{decoder_forward.1} parent=0 // pred_check
    _
  $region27: #{decoder_forward.1} parent=0 // pred_check_branch
    %25 = sbr.rel (0) target = $region29
  $region28: #{decoder_forward.1} parent=0 // pred_region
    _
  $region29: #{decoder_forward.1} parent=0 // pred_fallthru
    _
  %vm26 = vcmask 523264
  %27 = vst.msk [vmem:[#allocation3] sm:$0xff] %vm26, 0.0
  %28 = vst.msk [vmem:[#allocation3 + $0x8] sm:$0xff] %vm26, 0.0
  %29 = vst.msk [vmem:[#allocation3 + $0x10] sm:$0xff] %vm26, 0.0
  %30 = vst.msk [vmem:[#allocation3 + $0x18] sm:$0xff] %vm26, 0.0
  %31 = vst.msk [vmem:[#allocation3 + $0x20] sm:$0xff] %vm26, 0.0
  %32 = vst.msk [vmem:[#allocation3 + $0x28] sm:$0xff] %vm26, 0.0
  %33 = vst.msk [vmem:[#allocation3 + $0x30] sm:$0xff] %vm26, 0.0
  %34 = vst.msk [vmem:[#allocation3 + $0x38] sm:$0xff] %vm26, 0.0
  %35 = vst.msk [vmem:[#allocation3 + $0x40] sm:$0xff] %vm26, 0.0
  %36 = vst.msk [vmem:[#allocation3 + $0x48] sm:$0xff] %vm26, 0.0
  %37 = vst.msk [vmem:[#allocation3 + $0x50] sm:$0xff] %vm26, 0.0
  %38 = vst.msk [vmem:[#allocation3 + $0x58] sm:$0xff] %vm26, 0.0
  %39 = vst.msk [vmem:[#allocation3 + $0x60] sm:$0xff] %vm26, 0.0
  %40 = vst.msk [vmem:[#allocation3 + $0x68] sm:$0xff] %vm26, 0.0
  %41 = vst.msk [vmem:[#allocation3 + $0x70] sm:$0xff] %vm26, 0.0
  %42 = vst.msk [vmem:[#allocation3 + $0x78] sm:$0xff] %vm26, 0.0
  %43 = vst.msk [vmem:[#allocation3 + $0x80] sm:$0xff] %vm26, 0.0
  %44 = vst.msk [vmem:[#allocation3 + $0x88] sm:$0xff] %vm26, 0.0
  %45 = vst.msk [vmem:[#allocation3 + $0x90] sm:$0xff] %vm26, 0.0
  %46 = vst.msk [vmem:[#allocation3 + $0x98] sm:$0xff] %vm26, 0.0
  %47 = vst.msk [vmem:[#allocation3 + $0xa0] sm:$0xff] %vm26, 0.0
  %48 = vst [vmem:[#allocation4] sm:$0xff] 0.0
  %49 = vst [vmem:[#allocation4 + $0x8] sm:$0xff] 0.0
  %50 = vst [vmem:[#allocation4 + $0x10] sm:$0xff] 0.0
  %51 = vst [vmem:[#allocation4 + $0x18] sm:$0xff] 0.0
  %52 = vst [vmem:[#allocation4 + $0x20] sm:$0xff] 0.0
  %53 = vst [vmem:[#allocation4 + $0x28] sm:$0xff] 0.0
  %54 = vst [vmem:[#allocation4 + $0x30] sm:$0xff] 0.0
  %55 = vst [vmem:[#allocation4 + $0x38] sm:$0xff] 0.0
  %56 = vst [vmem:[#allocation4 + $0x40] sm:$0xff] 0.0
  %57 = vst [vmem:[#allocation4 + $0x48] sm:$0xff] 0.0
  %58 = vst [vmem:[#allocation4 + $0x50] sm:$0xff] 0.0
  %59 = vst [vmem:[#allocation4 + $0x58] sm:$0xff] 0.0
  %60 = vst [vmem:[#allocation4 + $0x60] sm:$0xff] 0.0
  %61 = vst [vmem:[#allocation4 + $0x68] sm:$0xff] 0.0
  %62 = vst [vmem:[#allocation4 + $0x70] sm:$0xff] 0.0
  %63 = vst [vmem:[#allocation4 + $0x78] sm:$0xff] 0.0
  %64 = vst [vmem:[#allocation4 + $0x80] sm:$0xff] 0.0
  %65 = vst [vmem:[#allocation4 + $0x88] sm:$0xff] 0.0
  %66 = vst [vmem:[#allocation4 + $0x90] sm:$0xff] 0.0
  %67 = vst [vmem:[#allocation4 + $0x98] sm:$0xff] 0.0
  %68 = vst [vmem:[#allocation4 + $0xa0] sm:$0xff] 0.0
  %69 = vst [vmem:[#allocation4 + $0xa8] sm:$0xff] 0.0
  %v70 = vld [vmem:[%s0] sm:$0x3]
  %v71 = vld [vmem:[%s1] sm:$0xff]
  %v72 = vld [vmem:[%s1 + $0x8] sm:$0xff]
  %v73 = vld [vmem:[%s1 + $0x10] sm:$0xff]
  %v74 = vld [vmem:[%s1 + $0x18] sm:$0xff]
  %v75 = vld [vmem:[%s1 + $0x20] sm:$0xff]
  %v76 = vld [vmem:[%s1 + $0x28] sm:$0xff]
  %v77 = vld [vmem:[%s1 + $0x30] sm:$0xff]
  %v78 = vld [vmem:[%s1 + $0x38] sm:$0xff]
  %v79 = vld [vmem:[%s1 + $0x40] sm:$0xff]
  %v80 = vld [vmem:[%s1 + $0x48] sm:$0xff]
  %v81 = vld [vmem:[%s1 + $0x50] sm:$0xff]
  %v82 = vld [vmem:[%s1 + $0x58] sm:$0xff]
  %v83 = vld [vmem:[%s1 + $0x60] sm:$0xff]
  %v84 = vld [vmem:[%s1 + $0x68] sm:$0xff]
  %v85 = vld [vmem:[%s1 + $0x70] sm:$0xff]
  %v86 = vld [vmem:[%s1 + $0x78] sm:$0xff]
  %v87 = vld [vmem:[%s1 + $0x80] sm:$0xff]
  %v88 = vld [vmem:[%s1 + $0x88] sm:$0xff]
  %v89 = vld [vmem:[%s1 + $0x90] sm:$0xff]
  %v90 = vld [vmem:[%s1 + $0x98] sm:$0xff]
  %v91 = vld [vmem:[%s1 + $0xa0] sm:$0xff]
  %v92 = vld [vmem:[%s1 + $0xa8] sm:$0xff]
  %v93 = vld [vmem:[%s1 + $0xb0] sm:$0xff]
  %v94 = vld [vmem:[%s1 + $0xb8] sm:$0xff]
  %v95 = vld [vmem:[%s1 + $0xc0] sm:$0xff]
  %v96 = vld [vmem:[%s1 + $0xc8] sm:$0xff]
  %v97 = vld [vmem:[%s1 + $0xd0] sm:$0xff]
  %v98 = vld [vmem:[%s1 + $0xd8] sm:$0xff]
  %v99 = vld [vmem:[%s1 + $0xe0] sm:$0xff]
  %v100 = vld [vmem:[%s1 + $0xe8] sm:$0xff]
  %v101 = vld [vmem:[%s1 + $0xf0] sm:$0xff]
  %v102 = vld [vmem:[%s1 + $0xf8] sm:$0xff]
  %v103 = vld [vmem:[%s1 + $0x100] sm:$0xff]
  %v104 = vld [vmem:[%s1 + $0x108] sm:$0xff]
  %v105 = vld [vmem:[%s1 + $0x110] sm:$0xff]
  %v106 = vld [vmem:[%s1 + $0x118] sm:$0xff]
  %v107 = vld [vmem:[%s1 + $0x120] sm:$0xff]
  %v108 = vld [vmem:[%s1 + $0x128] sm:$0xff]
  %v109 = vld [vmem:[%s1 + $0x130] sm:$0xff]
  %v110 = vld [vmem:[%s1 + $0x138] sm:$0xff]
  %v111 = vld [vmem:[%s1 + $0x140] sm:$0xff]
  %v112 = vld [vmem:[%s1 + $0x148] sm:$0xff]
  %v113 = vld [vmem:[%s1 + $0x150] sm:$0xff]
  %v114 = vld [vmem:[%s1 + $0x158] sm:$0xff]
  %v115 = vld [vmem:[%s1 + $0x160] sm:$0xff]
  %v116 = vld [vmem:[%s1 + $0x168] sm:$0xff]
  %v117 = vld [vmem:[%s1 + $0x170] sm:$0xff]
  %v118 = vld [vmem:[%s1 + $0x178] sm:$0xff]
  %v119 = vld [vmem:[%s1 + $0x180] sm:$0xff]
  %v120 = vld [vmem:[%s1 + $0x188] sm:$0xff]
  %v121 = vld [vmem:[%s2] sm:$0xff]
  %v122 = vld [vmem:[%s2 + $0x8] sm:$0xff]
  %v123 = vld [vmem:[%s2 + $0x10] sm:$0xff]
  %v124 = vld [vmem:[%s2 + $0x18] sm:$0x1]
  %v129 = vlaneseq
  %v130 = vshrl.u32 %v129, 7
  %v131 = vsub.s32 0, %v130
  %v132 = vrot.slane %v121, %v131
  %v133 = vlaneseq
  %v134 = vshrl.u32 %v133, 7
  %v135 = vsub.s32 1, %v134
  %v136 = vrot.slane %v121, %v135
  %v137 = vlaneseq
  %v138 = vshrl.u32 %v137, 7
  %v139 = vsub.s32 2, %v138
  %v140 = vrot.slane %v121, %v139
  %v141 = vlaneseq
  %v142 = vshrl.u32 %v141, 7
  %v143 = vsub.s32 3, %v142
  %v144 = vrot.slane %v121, %v143
  %v145 = vlaneseq
  %v146 = vshrl.u32 %v145, 7
  %v147 = vsub.s32 4, %v146
  %v148 = vrot.slane %v121, %v147
  %v149 = vlaneseq
  %v150 = vshrl.u32 %v149, 7
  %v151 = vsub.s32 5, %v150
  %v152 = vrot.slane %v121, %v151
  %v153 = vlaneseq
  %v154 = vshrl.u32 %v153, 7
  %v155 = vsub.s32 6, %v154
  %v156 = vrot.slane %v121, %v155
  %v157 = vlaneseq
  %v158 = vshrl.u32 %v157, 7
  %v159 = vsub.s32 7, %v158
  %v160 = vrot.slane %v121, %v159
  %v161 = vlaneseq
  %v162 = vshrl.u32 %v161, 7
  %v163 = vsub.s32 0, %v162
  %v164 = vrot.slane %v122, %v163
  %v165 = vlaneseq
  %v166 = vshrl.u32 %v165, 7
  %v167 = vsub.s32 1, %v166
  %v168 = vrot.slane %v122, %v167
  %v169 = vlaneseq
  %v170 = vshrl.u32 %v169, 7
  %v171 = vsub.s32 2, %v170
  %v172 = vrot.slane %v122, %v171
  %v173 = vlaneseq
  %v174 = vshrl.u32 %v173, 7
  %v175 = vsub.s32 3, %v174
  %v176 = vrot.slane %v122, %v175
  %v177 = vlaneseq
  %v178 = vshrl.u32 %v177, 7
  %v179 = vsub.s32 4, %v178
  %v180 = vrot.slane %v122, %v179
  %v181 = vlaneseq
  %v182 = vshrl.u32 %v181, 7
  %v183 = vsub.s32 5, %v182
  %v184 = vrot.slane %v122, %v183
  %v185 = vlaneseq
  %v186 = vshrl.u32 %v185, 7
  %v187 = vsub.s32 6, %v186
  %v188 = vrot.slane %v122, %v187
  %v189 = vlaneseq
  %v190 = vshrl.u32 %v189, 7
  %v191 = vsub.s32 7, %v190
  %v192 = vrot.slane %v122, %v191
  %v193 = vlaneseq
  %v194 = vshrl.u32 %v193, 7
  %v195 = vsub.s32 0, %v194
  %v196 = vrot.slane %v123, %v195
  %v197 = vlaneseq
  %v198 = vshrl.u32 %v197, 7
  %v199 = vsub.s32 1, %v198
  %v200 = vrot.slane %v123, %v199
  %v201 = vlaneseq
  %v202 = vshrl.u32 %v201, 7
  %v203 = vsub.s32 2, %v202
  %v204 = vrot.slane %v123, %v203
  %v205 = vlaneseq
  %v206 = vshrl.u32 %v205, 7
  %v207 = vsub.s32 3, %v206
  %v208 = vrot.slane %v123, %v207
  %v209 = vlaneseq
  %v210 = vshrl.u32 %v209, 7
  %v211 = vsub.s32 4, %v210
  %v212 = vrot.slane %v123, %v211
  %v213 = vlaneseq
  %v214 = vshrl.u32 %v213, 7
  %v215 = vsub.s32 5, %v214
  %v216 = vrot.slane %v123, %v215
  %v217 = vlaneseq
  %v218 = vshrl.u32 %v217, 7
  %v219 = vsub.s32 6, %v218
  %v220 = vrot.slane %v123, %v219
  %v221 = vlaneseq
  %v222 = vshrl.u32 %v221, 7
  %v223 = vsub.s32 7, %v222
  %v224 = vrot.slane %v123, %v223
  %v225 = vlaneseq
  %v226 = vshrl.u32 %v225, 7
  %v227 = vsub.s32 0, %v226
  %v228 = vrot.slane %v124, %v227
  %vm254 = vcmask 130048
  %v256 = vsel %vm254, %v70, 0
  %258 = vmatprep.subr.mxu0 %v72
  %259 = vmatpush1.msra.mxu0 %v71
  %260 = vmatprep.subr.mxu0 %v97
  %261 = vmatpush1.msra.mxu0 %v96
  %262 = vmatprep.subr.mxu0 0.0
  %263 = vmatpush1.msra.mxu0 0.0
  %264 = vmatprep.subr.mxu0 0.0
  %265 = vmatpush1.msra.mxu0 0.0
  %266 = vmatprep.subr.mxu0 0.0
  %267 = vmatpush1.msra.mxu0 0.0
  %268 = vmatprep.subr.mxu0 0.0
  %269 = vmatpush1.msra.mxu0 0.0
  %270 = vmatprep.subr.mxu0 0.0
  %271 = vmatpush1.msra.mxu0 0.0
  %272 = vmatprep.subr.mxu0 0.0
  %273 = vmatpush1.msra.mxu0 0.0
  %274 = vmatprep.subr.mxu0 0.0
  %275 = vmatpush1.msra.mxu0 0.0
  %276 = vmatprep.subr.mxu0 0.0
  %277 = vmatpush1.msra.mxu0 0.0
  %278 = vmatprep.subr.mxu0 0.0
  %279 = vmatpush1.msra.mxu0 0.0
  %280 = vmatprep.subr.mxu0 0.0
  %281 = vmatpush1.msra.mxu0 0.0
  %282 = vmatprep.subr.mxu0 0.0
  %283 = vmatpush1.msra.mxu0 0.0
  %284 = vmatprep.subr.mxu0 0.0
  %285 = vmatpush1.msra.mxu0 0.0
  %286 = vmatprep.subr.mxu0 0.0
  %287 = vmatpush1.msra.mxu0 0.0
  %288 = vmatprep.subr.mxu0 0.0
  %289 = vmatpush1.msra.mxu0 0.0
  %290 = vmatprep.subr.mxu0 0.0
  %291 = vmatpush1.msra.mxu0 0.0
  %292 = vmatprep.subr.mxu0 0.0
  %293 = vmatpush1.msra.mxu0 0.0
  %294 = vmatprep.subr.mxu0 0.0
  %295 = vmatpush1.msra.mxu0 0.0
  %296 = vmatprep.subr.mxu0 0.0
  %297 = vmatpush1.msra.mxu0 0.0
  %298 = vmatprep.subr.mxu0 0.0
  %299 = vmatpush1.msra.mxu0 0.0
  %300 = vmatprep.subr.mxu0 0.0
  %301 = vmatpush1.msra.mxu0 0.0
  %302 = vmatprep.subr.mxu0 0.0
  %303 = vmatpush1.msra.mxu0 0.0
  %304 = vmatprep.subr.mxu0 0.0
  %305 = vmatpush1.msra.mxu0 0.0
  %306 = vmatprep.subr.mxu0 0.0
  %307 = vmatpush1.msra.mxu0 0.0
  %308 = vmatprep.subr.mxu0 0.0
  %309 = vmatpush1.msra.mxu0 0.0
  %310 = vmatprep.subr.mxu0 0.0
  %311 = vmatpush1.msra.mxu0 0.0
  %312 = vmatprep.subr.mxu0 0.0
  %313 = vmatpush1.msra.mxu0 0.0
  %314 = vmatprep.subr.mxu0 0.0
  %315 = vmatpush1.msra.mxu0 0.0
  %316 = vmatprep.subr.mxu0 0.0
  %317 = vmatpush1.msra.mxu0 0.0
  %318 = vmatprep.subr.mxu0 0.0
  %319 = vmatpush1.msra.mxu0 0.0
  %320 = vmatprep.subr.mxu0 0.0
  %321 = vmatpush1.msra.mxu0 0.0
  %322 = vmatprep.mubr.f32.mxu0 0.0
  %323 = vmatmul.mubr.f32.gmra.mrb[0].mxu0 %v256
  %v324 = vpop.f32.mrb[0].mxu0
  %v325 = vadd.f32 %v132, %v324
  %v326 = vpop.f32.mrb[0].mxu0
  %v327 = vadd.f32 %v136, %v326
  %328 = vdwg.mxu0
  %329 = vmatprep.subr.mxu0 %v74
  %330 = vmatpush1.msra.mxu0 %v73
  %331 = vmatprep.subr.mxu0 %v99
  %332 = vmatpush1.msra.mxu0 %v98
  %333 = vmatprep.subr.mxu0 0.0
  %334 = vmatpush1.msra.mxu0 0.0
  %335 = vmatprep.subr.mxu0 0.0
  %336 = vmatpush1.msra.mxu0 0.0
  %337 = vmatprep.subr.mxu0 0.0
  %338 = vmatpush1.msra.mxu0 0.0
  %339 = vmatprep.subr.mxu0 0.0
  %340 = vmatpush1.msra.mxu0 0.0
  %341 = vmatprep.subr.mxu0 0.0
  %342 = vmatpush1.msra.mxu0 0.0
  %343 = vmatprep.subr.mxu0 0.0
  %344 = vmatpush1.msra.mxu0 0.0
  %345 = vmatprep.subr.mxu0 0.0
  %346 = vmatpush1.msra.mxu0 0.0
  %347 = vmatprep.subr.mxu0 0.0
  %348 = vmatpush1.msra.mxu0 0.0
  %349 = vmatprep.subr.mxu0 0.0
  %350 = vmatpush1.msra.mxu0 0.0
  %351 = vmatprep.subr.mxu0 0.0
  %352 = vmatpush1.msra.mxu0 0.0
  %353 = vmatprep.subr.mxu0 0.0
  %354 = vmatpush1.msra.mxu0 0.0
  %355 = vmatprep.subr.mxu0 0.0
  %356 = vmatpush1.msra.mxu0 0.0
  %357 = vmatprep.subr.mxu0 0.0
  %358 = vmatpush1.msra.mxu0 0.0
  %359 = vmatprep.subr.mxu0 0.0
  %360 = vmatpush1.msra.mxu0 0.0
  %361 = vmatprep.subr.mxu0 0.0
  %362 = vmatpush1.msra.mxu0 0.0
  %363 = vmatprep.subr.mxu0 0.0
  %364 = vmatpush1.msra.mxu0 0.0
  %365 = vmatprep.subr.mxu0 0.0
  %366 = vmatpush1.msra.mxu0 0.0
  %367 = vmatprep.subr.mxu0 0.0
  %368 = vmatpush1.msra.mxu0 0.0
  %369 = vmatprep.subr.mxu0 0.0
  %370 = vmatpush1.msra.mxu0 0.0
  %371 = vmatprep.subr.mxu0 0.0
  %372 = vmatpush1.msra.mxu0 0.0
  %373 = vmatprep.subr.mxu0 0.0
  %374 = vmatpush1.msra.mxu0 0.0
  %375 = vmatprep.subr.mxu0 0.0
  %376 = vmatpush1.msra.mxu0 0.0
  %377 = vmatprep.subr.mxu0 0.0
  %378 = vmatpush1.msra.mxu0 0.0
  %379 = vmatprep.subr.mxu0 0.0
  %380 = vmatpush1.msra.mxu0 0.0
  %381 = vmatprep.subr.mxu0 0.0
  %382 = vmatpush1.msra.mxu0 0.0
  %383 = vmatprep.subr.mxu0 0.0
  %384 = vmatpush1.msra.mxu0 0.0
  %385 = vmatprep.subr.mxu0 0.0
  %386 = vmatpush1.msra.mxu0 0.0
  %387 = vmatprep.subr.mxu0 0.0
  %388 = vmatpush1.msra.mxu0 0.0
  %389 = vmatprep.subr.mxu0 0.0
  %390 = vmatpush1.msra.mxu0 0.0
  %391 = vmatprep.subr.mxu0 0.0
  %392 = vmatpush1.msra.mxu0 0.0
  %393 = vmatprep.mubr.f32.mxu0 0.0
  %394 = vmatmul.mubr.f32.gmra.mrb[0].mxu0 %v256
  %v395 = vpop.f32.mrb[0].mxu0
  %v396 = vadd.f32 %v140, %v395
  %v397 = vpop.f32.mrb[0].mxu0
  %v398 = vadd.f32 %v144, %v397
  %399 = vdwg.mxu0
  %400 = vmatprep.subr.mxu0 %v76
  %401 = vmatpush1.msra.mxu0 %v75
  %402 = vmatprep.subr.mxu0 %v101
  %403 = vmatpush1.msra.mxu0 %v100
  %404 = vmatprep.subr.mxu0 0.0
  %405 = vmatpush1.msra.mxu0 0.0
  %406 = vmatprep.subr.mxu0 0.0
  %407 = vmatpush1.msra.mxu0 0.0
  %408 = vmatprep.subr.mxu0 0.0
  %409 = vmatpush1.msra.mxu0 0.0
  %410 = vmatprep.subr.mxu0 0.0
  %411 = vmatpush1.msra.mxu0 0.0
  %412 = vmatprep.subr.mxu0 0.0
  %413 = vmatpush1.msra.mxu0 0.0
  %414 = vmatprep.subr.mxu0 0.0
  %415 = vmatpush1.msra.mxu0 0.0
  %416 = vmatprep.subr.mxu0 0.0
  %417 = vmatpush1.msra.mxu0 0.0
  %418 = vmatprep.subr.mxu0 0.0
  %419 = vmatpush1.msra.mxu0 0.0
  %420 = vmatprep.subr.mxu0 0.0
  %421 = vmatpush1.msra.mxu0 0.0
  %422 = vmatprep.subr.mxu0 0.0
  %423 = vmatpush1.msra.mxu0 0.0
  %424 = vmatprep.subr.mxu0 0.0
  %425 = vmatpush1.msra.mxu0 0.0
  %426 = vmatprep.subr.mxu0 0.0
  %427 = vmatpush1.msra.mxu0 0.0
  %428 = vmatprep.subr.mxu0 0.0
  %429 = vmatpush1.msra.mxu0 0.0
  %430 = vmatprep.subr.mxu0 0.0
  %431 = vmatpush1.msra.mxu0 0.0
  %432 = vmatprep.subr.mxu0 0.0
  %433 = vmatpush1.msra.mxu0 0.0
  %434 = vmatprep.subr.mxu0 0.0
  %435 = vmatpush1.msra.mxu0 0.0
  %436 = vmatprep.subr.mxu0 0.0
  %437 = vmatpush1.msra.mxu0 0.0
  %438 = vmatprep.subr.mxu0 0.0
  %439 = vmatpush1.msra.mxu0 0.0
  %440 = vmatprep.subr.mxu0 0.0
  %441 = vmatpush1.msra.mxu0 0.0
  %442 = vmatprep.subr.mxu0 0.0
  %443 = vmatpush1.msra.mxu0 0.0
  %444 = vmatprep.subr.mxu0 0.0
  %445 = vmatpush1.msra.mxu0 0.0
  %446 = vmatprep.subr.mxu0 0.0
  %447 = vmatpush1.msra.mxu0 0.0
  %448 = vmatprep.subr.mxu0 0.0
  %449 = vmatpush1.msra.mxu0 0.0
  %450 = vmatprep.subr.mxu0 0.0
  %451 = vmatpush1.msra.mxu0 0.0
  %452 = vmatprep.subr.mxu0 0.0
  %453 = vmatpush1.msra.mxu0 0.0
  %454 = vmatprep.subr.mxu0 0.0
  %455 = vmatpush1.msra.mxu0 0.0
  %456 = vmatprep.subr.mxu0 0.0
  %457 = vmatpush1.msra.mxu0 0.0
  %458 = vmatprep.subr.mxu0 0.0
  %459 = vmatpush1.msra.mxu0 0.0
  %460 = vmatprep.subr.mxu0 0.0
  %461 = vmatpush1.msra.mxu0 0.0
  %462 = vmatprep.subr.mxu0 0.0
  %463 = vmatpush1.msra.mxu0 0.0
  %464 = vmatprep.mubr.f32.mxu0 0.0
  %465 = vmatmul.mubr.f32.gmra.mrb[0].mxu0 %v256
  %v466 = vpop.f32.mrb[0].mxu0
  %v467 = vadd.f32 %v148, %v466
  %v468 = vpop.f32.mrb[0].mxu0
  %v469 = vadd.f32 %v152, %v468
  %470 = vdwg.mxu0
  %471 = vmatprep.subr.mxu0 %v78
  %472 = vmatpush1.msra.mxu0 %v77
  %473 = vmatprep.subr.mxu0 %v103
  %474 = vmatpush1.msra.mxu0 %v102
  %475 = vmatprep.subr.mxu0 0.0
  %476 = vmatpush1.msra.mxu0 0.0
  %477 = vmatprep.subr.mxu0 0.0
  %478 = vmatpush1.msra.mxu0 0.0
  %479 = vmatprep.subr.mxu0 0.0
  %480 = vmatpush1.msra.mxu0 0.0
  %481 = vmatprep.subr.mxu0 0.0
  %482 = vmatpush1.msra.mxu0 0.0
  %483 = vmatprep.subr.mxu0 0.0
  %484 = vmatpush1.msra.mxu0 0.0
  %485 = vmatprep.subr.mxu0 0.0
  %486 = vmatpush1.msra.mxu0 0.0
  %487 = vmatprep.subr.mxu0 0.0
  %488 = vmatpush1.msra.mxu0 0.0
  %489 = vmatprep.subr.mxu0 0.0
  %490 = vmatpush1.msra.mxu0 0.0
  %491 = vmatprep.subr.mxu0 0.0
  %492 = vmatpush1.msra.mxu0 0.0
  %493 = vmatprep.subr.mxu0 0.0
  %494 = vmatpush1.msra.mxu0 0.0
  %495 = vmatprep.subr.mxu0 0.0
  %496 = vmatpush1.msra.mxu0 0.0
  %497 = vmatprep.subr.mxu0 0.0
  %498 = vmatpush1.msra.mxu0 0.0
  %499 = vmatprep.subr.mxu0 0.0
  %500 = vmatpush1.msra.mxu0 0.0
  %501 = vmatprep.subr.mxu0 0.0
  %502 = vmatpush1.msra.mxu0 0.0
  %503 = vmatprep.subr.mxu0 0.0
  %504 = vmatpush1.msra.mxu0 0.0
  %505 = vmatprep.subr.mxu0 0.0
  %506 = vmatpush1.msra.mxu0 0.0
  %507 = vmatprep.subr.mxu0 0.0
  %508 = vmatpush1.msra.mxu0 0.0
  %509 = vmatprep.subr.mxu0 0.0
  %510 = vmatpush1.msra.mxu0 0.0
  %511 = vmatprep.subr.mxu0 0.0
  %512 = vmatpush1.msra.mxu0 0.0
  %513 = vmatprep.subr.mxu0 0.0
  %514 = vmatpush1.msra.mxu0 0.0
  %515 = vmatprep.subr.mxu0 0.0
  %516 = vmatpush1.msra.mxu0 0.0
  %517 = vmatprep.subr.mxu0 0.0
  %518 = vmatpush1.msra.mxu0 0.0
  %519 = vmatprep.subr.mxu0 0.0
  %520 = vmatpush1.msra.mxu0 0.0
  %521 = vmatprep.subr.mxu0 0.0
  %522 = vmatpush1.msra.mxu0 0.0
  %523 = vmatprep.subr.mxu0 0.0
  %524 = vmatpush1.msra.mxu0 0.0
  %525 = vmatprep.subr.mxu0 0.0
  %526 = vmatpush1.msra.mxu0 0.0
  %527 = vmatprep.subr.mxu0 0.0
  %528 = vmatpush1.msra.mxu0 0.0
  %529 = vmatprep.subr.mxu0 0.0
  %530 = vmatpush1.msra.mxu0 0.0
  %531 = vmatprep.subr.mxu0 0.0
  %532 = vmatpush1.msra.mxu0 0.0
  %533 = vmatprep.subr.mxu0 0.0
  %534 = vmatpush1.msra.mxu0 0.0
  %535 = vmatprep.mubr.f32.mxu0 0.0
  %536 = vmatmul.mubr.f32.gmra.mrb[0].mxu0 %v256
  %v537 = vpop.f32.mrb[0].mxu0
  %v538 = vadd.f32 %v156, %v537
  %v539 = vpop.f32.mrb[0].mxu0
  %v540 = vadd.f32 %v160, %v539
  %541 = vdwg.mxu0
  %542 = vmatprep.subr.mxu0 %v80
  %543 = vmatpush1.msra.mxu0 %v79
  %544 = vmatprep.subr.mxu0 %v105
  %545 = vmatpush1.msra.mxu0 %v104
  %546 = vmatprep.subr.mxu0 0.0
  %547 = vmatpush1.msra.mxu0 0.0
  %548 = vmatprep.subr.mxu0 0.0
  %549 = vmatpush1.msra.mxu0 0.0
  %550 = vmatprep.subr.mxu0 0.0
  %551 = vmatpush1.msra.mxu0 0.0
  %552 = vmatprep.subr.mxu0 0.0
  %553 = vmatpush1.msra.mxu0 0.0
  %554 = vmatprep.subr.mxu0 0.0
  %555 = vmatpush1.msra.mxu0 0.0
  %556 = vmatprep.subr.mxu0 0.0
  %557 = vmatpush1.msra.mxu0 0.0
  %558 = vmatprep.subr.mxu0 0.0
  %559 = vmatpush1.msra.mxu0 0.0
  %560 = vmatprep.subr.mxu0 0.0
  %561 = vmatpush1.msra.mxu0 0.0
  %562 = vmatprep.subr.mxu0 0.0
  %563 = vmatpush1.msra.mxu0 0.0
  %564 = vmatprep.subr.mxu0 0.0
  %565 = vmatpush1.msra.mxu0 0.0
  %566 = vmatprep.subr.mxu0 0.0
  %567 = vmatpush1.msra.mxu0 0.0
  %568 = vmatprep.subr.mxu0 0.0
  %569 = vmatpush1.msra.mxu0 0.0
  %570 = vmatprep.subr.mxu0 0.0
  %571 = vmatpush1.msra.mxu0 0.0
  %572 = vmatprep.subr.mxu0 0.0
  %573 = vmatpush1.msra.mxu0 0.0
  %574 = vmatprep.subr.mxu0 0.0
  %575 = vmatpush1.msra.mxu0 0.0
  %576 = vmatprep.subr.mxu0 0.0
  %577 = vmatpush1.msra.mxu0 0.0
  %578 = vmatprep.subr.mxu0 0.0
  %579 = vmatpush1.msra.mxu0 0.0
  %580 = vmatprep.subr.mxu0 0.0
  %581 = vmatpush1.msra.mxu0 0.0
  %582 = vmatprep.subr.mxu0 0.0
  %583 = vmatpush1.msra.mxu0 0.0
  %584 = vmatprep.subr.mxu0 0.0
  %585 = vmatpush1.msra.mxu0 0.0
  %586 = vmatprep.subr.mxu0 0.0
  %587 = vmatpush1.msra.mxu0 0.0
  %588 = vmatprep.subr.mxu0 0.0
  %589 = vmatpush1.msra.mxu0 0.0
  %590 = vmatprep.subr.mxu0 0.0
  %591 = vmatpush1.msra.mxu0 0.0
  %592 = vmatprep.subr.mxu0 0.0
  %593 = vmatpush1.msra.mxu0 0.0
  %594 = vmatprep.subr.mxu0 0.0
  %595 = vmatpush1.msra.mxu0 0.0
  %596 = vmatprep.subr.mxu0 0.0
  %597 = vmatpush1.msra.mxu0 0.0
  %598 = vmatprep.subr.mxu0 0.0
  %599 = vmatpush1.msra.mxu0 0.0
  %600 = vmatprep.subr.mxu0 0.0
  %601 = vmatpush1.msra.mxu0 0.0
  %602 = vmatprep.subr.mxu0 0.0
  %603 = vmatpush1.msra.mxu0 0.0
  %604 = vmatprep.subr.mxu0 0.0
  %605 = vmatpush1.msra.mxu0 0.0
  %606 = vmatprep.mubr.f32.mxu0 0.0
  %607 = vmatmul.mubr.f32.gmra.mrb[0].mxu0 %v256
  %v608 = vpop.f32.mrb[0].mxu0
  %v609 = vadd.f32 %v164, %v608
  %v610 = vpop.f32.mrb[0].mxu0
  %v611 = vadd.f32 %v168, %v610
  %612 = vdwg.mxu0
  %613 = vmatprep.subr.mxu0 %v82
  %614 = vmatpush1.msra.mxu0 %v81
  %615 = vmatprep.subr.mxu0 %v107
  %616 = vmatpush1.msra.mxu0 %v106
  %617 = vmatprep.subr.mxu0 0.0
  %618 = vmatpush1.msra.mxu0 0.0
  %619 = vmatprep.subr.mxu0 0.0
  %620 = vmatpush1.msra.mxu0 0.0
  %621 = vmatprep.subr.mxu0 0.0
  %622 = vmatpush1.msra.mxu0 0.0
  %623 = vmatprep.subr.mxu0 0.0
  %624 = vmatpush1.msra.mxu0 0.0
  %625 = vmatprep.subr.mxu0 0.0
  %626 = vmatpush1.msra.mxu0 0.0
  %627 = vmatprep.subr.mxu0 0.0
  %628 = vmatpush1.msra.mxu0 0.0
  %629 = vmatprep.subr.mxu0 0.0
  %630 = vmatpush1.msra.mxu0 0.0
  %631 = vmatprep.subr.mxu0 0.0
  %632 = vmatpush1.msra.mxu0 0.0
  %633 = vmatprep.subr.mxu0 0.0
  %634 = vmatpush1.msra.mxu0 0.0
  %635 = vmatprep.subr.mxu0 0.0
  %636 = vmatpush1.msra.mxu0 0.0
  %637 = vmatprep.subr.mxu0 0.0
  %638 = vmatpush1.msra.mxu0 0.0
  %639 = vmatprep.subr.mxu0 0.0
  %640 = vmatpush1.msra.mxu0 0.0
  %641 = vmatprep.subr.mxu0 0.0
  %642 = vmatpush1.msra.mxu0 0.0
  %643 = vmatprep.subr.mxu0 0.0
  %644 = vmatpush1.msra.mxu0 0.0
  %645 = vmatprep.subr.mxu0 0.0
  %646 = vmatpush1.msra.mxu0 0.0
  %647 = vmatprep.subr.mxu0 0.0
  %648 = vmatpush1.msra.mxu0 0.0
  %649 = vmatprep.subr.mxu0 0.0
  %650 = vmatpush1.msra.mxu0 0.0
  %651 = vmatprep.subr.mxu0 0.0
  %652 = vmatpush1.msra.mxu0 0.0
  %653 = vmatprep.subr.mxu0 0.0
  %654 = vmatpush1.msra.mxu0 0.0
  %655 = vmatprep.subr.mxu0 0.0
  %656 = vmatpush1.msra.mxu0 0.0
  %657 = vmatprep.subr.mxu0 0.0
  %658 = vmatpush1.msra.mxu0 0.0
  %659 = vmatprep.subr.mxu0 0.0
  %660 = vmatpush1.msra.mxu0 0.0
  %661 = vmatprep.subr.mxu0 0.0
  %662 = vmatpush1.msra.mxu0 0.0
  %663 = vmatprep.subr.mxu0 0.0
  %664 = vmatpush1.msra.mxu0 0.0
  %665 = vmatprep.subr.mxu0 0.0
  %666 = vmatpush1.msra.mxu0 0.0
  %667 = vmatprep.subr.mxu0 0.0
  %668 = vmatpush1.msra.mxu0 0.0
  %669 = vmatprep.subr.mxu0 0.0
  %670 = vmatpush1.msra.mxu0 0.0
  %671 = vmatprep.subr.mxu0 0.0
  %672 = vmatpush1.msra.mxu0 0.0
  %673 = vmatprep.subr.mxu0 0.0
  %674 = vmatpush1.msra.mxu0 0.0
  %675 = vmatprep.subr.mxu0 0.0
  %676 = vmatpush1.msra.mxu0 0.0
  %677 = vmatprep.mubr.f32.mxu0 0.0
  %678 = vmatmul.mubr.f32.gmra.mrb[0].mxu0 %v256
  %v679 = vpop.f32.mrb[0].mxu0
  %v680 = vadd.f32 %v172, %v679
  %v681 = vpop.f32.mrb[0].mxu0
  %v682 = vadd.f32 %v176, %v681
  %683 = vdwg.mxu0
  %684 = vmatprep.subr.mxu0 %v84
  %685 = vmatpush1.msra.mxu0 %v83
  %686 = vmatprep.subr.mxu0 %v109
  %687 = vmatpush1.msra.mxu0 %v108
  %688 = vmatprep.subr.mxu0 0.0
  %689 = vmatpush1.msra.mxu0 0.0
  %690 = vmatprep.subr.mxu0 0.0
  %691 = vmatpush1.msra.mxu0 0.0
  %692 = vmatprep.subr.mxu0 0.0
  %693 = vmatpush1.msra.mxu0 0.0
  %694 = vmatprep.subr.mxu0 0.0
  %695 = vmatpush1.msra.mxu0 0.0
  %696 = vmatprep.subr.mxu0 0.0
  %697 = vmatpush1.msra.mxu0 0.0
  %698 = vmatprep.subr.mxu0 0.0
  %699 = vmatpush1.msra.mxu0 0.0
  %700 = vmatprep.subr.mxu0 0.0
  %701 = vmatpush1.msra.mxu0 0.0
  %702 = vmatprep.subr.mxu0 0.0
  %703 = vmatpush1.msra.mxu0 0.0
  %704 = vmatprep.subr.mxu0 0.0
  %705 = vmatpush1.msra.mxu0 0.0
  %706 = vmatprep.subr.mxu0 0.0
  %707 = vmatpush1.msra.mxu0 0.0
  %708 = vmatprep.subr.mxu0 0.0
  %709 = vmatpush1.msra.mxu0 0.0
  %710 = vmatprep.subr.mxu0 0.0
  %711 = vmatpush1.msra.mxu0 0.0
  %712 = vmatprep.subr.mxu0 0.0
  %713 = vmatpush1.msra.mxu0 0.0
  %714 = vmatprep.subr.mxu0 0.0
  %715 = vmatpush1.msra.mxu0 0.0
  %716 = vmatprep.subr.mxu0 0.0
  %717 = vmatpush1.msra.mxu0 0.0
  %718 = vmatprep.subr.mxu0 0.0
  %719 = vmatpush1.msra.mxu0 0.0
  %720 = vmatprep.subr.mxu0 0.0
  %721 = vmatpush1.msra.mxu0 0.0
  %722 = vmatprep.subr.mxu0 0.0
  %723 = vmatpush1.msra.mxu0 0.0
  %724 = vmatprep.subr.mxu0 0.0
  %725 = vmatpush1.msra.mxu0 0.0
  %726 = vmatprep.subr.mxu0 0.0
  %727 = vmatpush1.msra.mxu0 0.0
  %728 = vmatprep.subr.mxu0 0.0
  %729 = vmatpush1.msra.mxu0 0.0
  %730 = vmatprep.subr.mxu0 0.0
  %731 = vmatpush1.msra.mxu0 0.0
  %732 = vmatprep.subr.mxu0 0.0
  %733 = vmatpush1.msra.mxu0 0.0
  %734 = vmatprep.subr.mxu0 0.0
  %735 = vmatpush1.msra.mxu0 0.0
  %736 = vmatprep.subr.mxu0 0.0
  %737 = vmatpush1.msra.mxu0 0.0
  %738 = vmatprep.subr.mxu0 0.0
  %739 = vmatpush1.msra.mxu0 0.0
  %740 = vmatprep.subr.mxu0 0.0
  %741 = vmatpush1.msra.mxu0 0.0
  %742 = vmatprep.subr.mxu0 0.0
  %743 = vmatpush1.msra.mxu0 0.0
  %744 = vmatprep.subr.mxu0 0.0
  %745 = vmatpush1.msra.mxu0 0.0
  %746 = vmatprep.subr.mxu0 0.0
  %747 = vmatpush1.msra.mxu0 0.0
  %748 = vmatprep.mubr.f32.mxu0 0.0
  %749 = vmatmul.mubr.f32.gmra.mrb[0].mxu0 %v256
  %v750 = vpop.f32.mrb[0].mxu0
  %v751 = vadd.f32 %v180, %v750
  %v752 = vpop.f32.mrb[0].mxu0
  %v753 = vadd.f32 %v184, %v752
  %754 = vdwg.mxu0
  %755 = vmatprep.subr.mxu0 %v86
  %756 = vmatpush1.msra.mxu0 %v85
  %757 = vmatprep.subr.mxu0 %v111
  %758 = vmatpush1.msra.mxu0 %v110
  %759 = vmatprep.subr.mxu0 0.0
  %760 = vmatpush1.msra.mxu0 0.0
  %761 = vmatprep.subr.mxu0 0.0
  %762 = vmatpush1.msra.mxu0 0.0
  %763 = vmatprep.subr.mxu0 0.0
  %764 = vmatpush1.msra.mxu0 0.0
  %765 = vmatprep.subr.mxu0 0.0
  %766 = vmatpush1.msra.mxu0 0.0
  %767 = vmatprep.subr.mxu0 0.0
  %768 = vmatpush1.msra.mxu0 0.0
  %769 = vmatprep.subr.mxu0 0.0
  %770 = vmatpush1.msra.mxu0 0.0
  %771 = vmatprep.subr.mxu0 0.0
  %772 = vmatpush1.msra.mxu0 0.0
  %773 = vmatprep.subr.mxu0 0.0
  %774 = vmatpush1.msra.mxu0 0.0
  %775 = vmatprep.subr.mxu0 0.0
  %776 = vmatpush1.msra.mxu0 0.0
  %777 = vmatprep.subr.mxu0 0.0
  %778 = vmatpush1.msra.mxu0 0.0
  %779 = vmatprep.subr.mxu0 0.0
  %780 = vmatpush1.msra.mxu0 0.0
  %781 = vmatprep.subr.mxu0 0.0
  %782 = vmatpush1.msra.mxu0 0.0
  %783 = vmatprep.subr.mxu0 0.0
  %784 = vmatpush1.msra.mxu0 0.0
  %785 = vmatprep.subr.mxu0 0.0
  %786 = vmatpush1.msra.mxu0 0.0
  %787 = vmatprep.subr.mxu0 0.0
  %788 = vmatpush1.msra.mxu0 0.0
  %789 = vmatprep.subr.mxu0 0.0
  %790 = vmatpush1.msra.mxu0 0.0
  %791 = vmatprep.subr.mxu0 0.0
  %792 = vmatpush1.msra.mxu0 0.0
  %793 = vmatprep.subr.mxu0 0.0
  %794 = vmatpush1.msra.mxu0 0.0
  %795 = vmatprep.subr.mxu0 0.0
  %796 = vmatpush1.msra.mxu0 0.0
  %797 = vmatprep.subr.mxu0 0.0
  %798 = vmatpush1.msra.mxu0 0.0
  %799 = vmatprep.subr.mxu0 0.0
  %800 = vmatpush1.msra.mxu0 0.0
  %801 = vmatprep.subr.mxu0 0.0
  %802 = vmatpush1.msra.mxu0 0.0
  %803 = vmatprep.subr.mxu0 0.0
  %804 = vmatpush1.msra.mxu0 0.0
  %805 = vmatprep.subr.mxu0 0.0
  %806 = vmatpush1.msra.mxu0 0.0
  %807 = vmatprep.subr.mxu0 0.0
  %808 = vmatpush1.msra.mxu0 0.0
  %809 = vmatprep.subr.mxu0 0.0
  %810 = vmatpush1.msra.mxu0 0.0
  %811 = vmatprep.subr.mxu0 0.0
  %812 = vmatpush1.msra.mxu0 0.0
  %813 = vmatprep.subr.mxu0 0.0
  %814 = vmatpush1.msra.mxu0 0.0
  %815 = vmatprep.subr.mxu0 0.0
  %816 = vmatpush1.msra.mxu0 0.0
  %817 = vmatprep.subr.mxu0 0.0
  %818 = vmatpush1.msra.mxu0 0.0
  %819 = vmatprep.mubr.f32.mxu0 0.0
  %820 = vmatmul.mubr.f32.gmra.mrb[0].mxu0 %v256
  %v821 = vpop.f32.mrb[0].mxu0
  %v822 = vadd.f32 %v188, %v821
  %v823 = vpop.f32.mrb[0].mxu0
  %v824 = vadd.f32 %v192, %v823
  %825 = vdwg.mxu0
  %826 = vmatprep.subr.mxu0 %v88
  %827 = vmatpush1.msra.mxu0 %v87
  %828 = vmatprep.subr.mxu0 %v113
  %829 = vmatpush1.msra.mxu0 %v112
  %830 = vmatprep.subr.mxu0 0.0
  %831 = vmatpush1.msra.mxu0 0.0
  %832 = vmatprep.subr.mxu0 0.0
  %833 = vmatpush1.msra.mxu0 0.0
  %834 = vmatprep.subr.mxu0 0.0
  %835 = vmatpush1.msra.mxu0 0.0
  %836 = vmatprep.subr.mxu0 0.0
  %837 = vmatpush1.msra.mxu0 0.0
  %838 = vmatprep.subr.mxu0 0.0
  %839 = vmatpush1.msra.mxu0 0.0
  %840 = vmatprep.subr.mxu0 0.0
  %841 = vmatpush1.msra.mxu0 0.0
  %842 = vmatprep.subr.mxu0 0.0
  %843 = vmatpush1.msra.mxu0 0.0
  %844 = vmatprep.subr.mxu0 0.0
  %845 = vmatpush1.msra.mxu0 0.0
  %846 = vmatprep.subr.mxu0 0.0
  %847 = vmatpush1.msra.mxu0 0.0
  %848 = vmatprep.subr.mxu0 0.0
  %849 = vmatpush1.msra.mxu0 0.0
  %850 = vmatprep.subr.mxu0 0.0
  %851 = vmatpush1.msra.mxu0 0.0
  %852 = vmatprep.subr.mxu0 0.0
  %853 = vmatpush1.msra.mxu0 0.0
  %854 = vmatprep.subr.mxu0 0.0
  %855 = vmatpush1.msra.mxu0 0.0
  %856 = vmatprep.subr.mxu0 0.0
  %857 = vmatpush1.msra.mxu0 0.0
  %858 = vmatprep.subr.mxu0 0.0
  %859 = vmatpush1.msra.mxu0 0.0
  %860 = vmatprep.subr.mxu0 0.0
  %861 = vmatpush1.msra.mxu0 0.0
  %862 = vmatprep.subr.mxu0 0.0
  %863 = vmatpush1.msra.mxu0 0.0
  %864 = vmatprep.subr.mxu0 0.0
  %865 = vmatpush1.msra.mxu0 0.0
  %866 = vmatprep.subr.mxu0 0.0
  %867 = vmatpush1.msra.mxu0 0.0
  %868 = vmatprep.subr.mxu0 0.0
  %869 = vmatpush1.msra.mxu0 0.0
  %870 = vmatprep.subr.mxu0 0.0
  %871 = vmatpush1.msra.mxu0 0.0
  %872 = vmatprep.subr.mxu0 0.0
  %873 = vmatpush1.msra.mxu0 0.0
  %874 = vmatprep.subr.mxu0 0.0
  %875 = vmatpush1.msra.mxu0 0.0
  %876 = vmatprep.subr.mxu0 0.0
  %877 = vmatpush1.msra.mxu0 0.0
  %878 = vmatprep.subr.mxu0 0.0
  %879 = vmatpush1.msra.mxu0 0.0
  %880 = vmatprep.subr.mxu0 0.0
  %881 = vmatpush1.msra.mxu0 0.0
  %882 = vmatprep.subr.mxu0 0.0
  %883 = vmatpush1.msra.mxu0 0.0
  %884 = vmatprep.subr.mxu0 0.0
  %885 = vmatpush1.msra.mxu0 0.0
  %886 = vmatprep.subr.mxu0 0.0
  %887 = vmatpush1.msra.mxu0 0.0
  %888 = vmatprep.subr.mxu0 0.0
  %889 = vmatpush1.msra.mxu0 0.0
  %890 = vmatprep.mubr.f32.mxu0 0.0
  %891 = vmatmul.mubr.f32.gmra.mrb[0].mxu0 %v256
  %v892 = vpop.f32.mrb[0].mxu0
  %v893 = vadd.f32 %v196, %v892
  %v894 = vpop.f32.mrb[0].mxu0
  %v895 = vadd.f32 %v200, %v894
  %896 = vdwg.mxu0
  %897 = vmatprep.subr.mxu0 %v90
  %898 = vmatpush1.msra.mxu0 %v89
  %899 = vmatprep.subr.mxu0 %v115
  %900 = vmatpush1.msra.mxu0 %v114
  %901 = vmatprep.subr.mxu0 0.0
  %902 = vmatpush1.msra.mxu0 0.0
  %903 = vmatprep.subr.mxu0 0.0
  %904 = vmatpush1.msra.mxu0 0.0
  %905 = vmatprep.subr.mxu0 0.0
  %906 = vmatpush1.msra.mxu0 0.0
  %907 = vmatprep.subr.mxu0 0.0
  %908 = vmatpush1.msra.mxu0 0.0
  %909 = vmatprep.subr.mxu0 0.0
  %910 = vmatpush1.msra.mxu0 0.0
  %911 = vmatprep.subr.mxu0 0.0
  %912 = vmatpush1.msra.mxu0 0.0
  %913 = vmatprep.subr.mxu0 0.0
  %914 = vmatpush1.msra.mxu0 0.0
  %915 = vmatprep.subr.mxu0 0.0
  %916 = vmatpush1.msra.mxu0 0.0
  %917 = vmatprep.subr.mxu0 0.0
  %918 = vmatpush1.msra.mxu0 0.0
  %919 = vmatprep.subr.mxu0 0.0
  %920 = vmatpush1.msra.mxu0 0.0
  %921 = vmatprep.subr.mxu0 0.0
  %922 = vmatpush1.msra.mxu0 0.0
  %923 = vmatprep.subr.mxu0 0.0
  %924 = vmatpush1.msra.mxu0 0.0
  %925 = vmatprep.subr.mxu0 0.0
  %926 = vmatpush1.msra.mxu0 0.0
  %927 = vmatprep.subr.mxu0 0.0
  %928 = vmatpush1.msra.mxu0 0.0
  %929 = vmatprep.subr.mxu0 0.0
  %930 = vmatpush1.msra.mxu0 0.0
  %931 = vmatprep.subr.mxu0 0.0
  %932 = vmatpush1.msra.mxu0 0.0
  %933 = vmatprep.subr.mxu0 0.0
  %934 = vmatpush1.msra.mxu0 0.0
  %935 = vmatprep.subr.mxu0 0.0
  %936 = vmatpush1.msra.mxu0 0.0
  %937 = vmatprep.subr.mxu0 0.0
  %938 = vmatpush1.msra.mxu0 0.0
  %939 = vmatprep.subr.mxu0 0.0
  %940 = vmatpush1.msra.mxu0 0.0
  %941 = vmatprep.subr.mxu0 0.0
  %942 = vmatpush1.msra.mxu0 0.0
  %943 = vmatprep.subr.mxu0 0.0
  %944 = vmatpush1.msra.mxu0 0.0
  %945 = vmatprep.subr.mxu0 0.0
  %946 = vmatpush1.msra.mxu0 0.0
  %947 = vmatprep.subr.mxu0 0.0
  %948 = vmatpush1.msra.mxu0 0.0
  %949 = vmatprep.subr.mxu0 0.0
  %950 = vmatpush1.msra.mxu0 0.0
  %951 = vmatprep.subr.mxu0 0.0
  %952 = vmatpush1.msra.mxu0 0.0
  %953 = vmatprep.subr.mxu0 0.0
  %954 = vmatpush1.msra.mxu0 0.0
  %955 = vmatprep.subr.mxu0 0.0
  %956 = vmatpush1.msra.mxu0 0.0
  %957 = vmatprep.subr.mxu0 0.0
  %958 = vmatpush1.msra.mxu0 0.0
  %959 = vmatprep.subr.mxu0 0.0
  %960 = vmatpush1.msra.mxu0 0.0
  %961 = vmatprep.mubr.f32.mxu0 0.0
  %962 = vmatmul.mubr.f32.gmra.mrb[0].mxu0 %v256
  %v963 = vpop.f32.mrb[0].mxu0
  %v964 = vadd.f32 %v204, %v963
  %v965 = vpop.f32.mrb[0].mxu0
  %v966 = vadd.f32 %v208, %v965
  %967 = vdwg.mxu0
  %968 = vmatprep.subr.mxu0 %v92
  %969 = vmatpush1.msra.mxu0 %v91
  %970 = vmatprep.subr.mxu0 %v117
  %971 = vmatpush1.msra.mxu0 %v116
  %972 = vmatprep.subr.mxu0 0.0
  %973 = vmatpush1.msra.mxu0 0.0
  %974 = vmatprep.subr.mxu0 0.0
  %975 = vmatpush1.msra.mxu0 0.0
  %976 = vmatprep.subr.mxu0 0.0
  %977 = vmatpush1.msra.mxu0 0.0
  %978 = vmatprep.subr.mxu0 0.0
  %979 = vmatpush1.msra.mxu0 0.0
  %980 = vmatprep.subr.mxu0 0.0
  %981 = vmatpush1.msra.mxu0 0.0
  %982 = vmatprep.subr.mxu0 0.0
  %983 = vmatpush1.msra.mxu0 0.0
  %984 = vmatprep.subr.mxu0 0.0
  %985 = vmatpush1.msra.mxu0 0.0
  %986 = vmatprep.subr.mxu0 0.0
  %987 = vmatpush1.msra.mxu0 0.0
  %988 = vmatprep.subr.mxu0 0.0
  %989 = vmatpush1.msra.mxu0 0.0
  %990 = vmatprep.subr.mxu0 0.0
  %991 = vmatpush1.msra.mxu0 0.0
  %992 = vmatprep.subr.mxu0 0.0
  %993 = vmatpush1.msra.mxu0 0.0
  %994 = vmatprep.subr.mxu0 0.0
  %995 = vmatpush1.msra.mxu0 0.0
  %996 = vmatprep.subr.mxu0 0.0
  %997 = vmatpush1.msra.mxu0 0.0
  %998 = vmatprep.subr.mxu0 0.0
  %999 = vmatpush1.msra.mxu0 0.0
  %1000 = vmatprep.subr.mxu0 0.0
  %1001 = vmatpush1.msra.mxu0 0.0
  %1002 = vmatprep.subr.mxu0 0.0
  %1003 = vmatpush1.msra.mxu0 0.0
  %1004 = vmatprep.subr.mxu0 0.0
  %1005 = vmatpush1.msra.mxu0 0.0
  %1006 = vmatprep.subr.mxu0 0.0
  %1007 = vmatpush1.msra.mxu0 0.0
  %1008 = vmatprep.subr.mxu0 0.0
  %1009 = vmatpush1.msra.mxu0 0.0
  %1010 = vmatprep.subr.mxu0 0.0
  %1011 = vmatpush1.msra.mxu0 0.0
  %1012 = vmatprep.subr.mxu0 0.0
  %1013 = vmatpush1.msra.mxu0 0.0
  %1014 = vmatprep.subr.mxu0 0.0
  %1015 = vmatpush1.msra.mxu0 0.0
  %1016 = vmatprep.subr.mxu0 0.0
  %1017 = vmatpush1.msra.mxu0 0.0
  %1018 = vmatprep.subr.mxu0 0.0
  %1019 = vmatpush1.msra.mxu0 0.0
  %1020 = vmatprep.subr.mxu0 0.0
  %1021 = vmatpush1.msra.mxu0 0.0
  %1022 = vmatprep.subr.mxu0 0.0
  %1023 = vmatpush1.msra.mxu0 0.0
  %1024 = vmatprep.subr.mxu0 0.0
  %1025 = vmatpush1.msra.mxu0 0.0
  %1026 = vmatprep.subr.mxu0 0.0
  %1027 = vmatpush1.msra.mxu0 0.0
  %1028 = vmatprep.subr.mxu0 0.0
  %1029 = vmatpush1.msra.mxu0 0.0
  %1030 = vmatprep.subr.mxu0 0.0
  %1031 = vmatpush1.msra.mxu0 0.0
  %1032 = vmatprep.mubr.f32.mxu0 0.0
  %1033 = vmatmul.mubr.f32.gmra.mrb[0].mxu0 %v256
  %v1034 = vpop.f32.mrb[0].mxu0
  %v1035 = vadd.f32 %v212, %v1034
  %v1036 = vpop.f32.mrb[0].mxu0
  %v1037 = vadd.f32 %v216, %v1036
  %1038 = vdwg.mxu0
  %1039 = vmatprep.subr.mxu0 %v94
  %1040 = vmatpush1.msra.mxu0 %v93
  %1041 = vmatprep.subr.mxu0 %v119
  %1042 = vmatpush1.msra.mxu0 %v118
  %1043 = vmatprep.subr.mxu0 0.0
  %1044 = vmatpush1.msra.mxu0 0.0
  %1045 = vmatprep.subr.mxu0 0.0
  %1046 = vmatpush1.msra.mxu0 0.0
  %1047 = vmatprep.subr.mxu0 0.0
  %1048 = vmatpush1.msra.mxu0 0.0
  %1049 = vmatprep.subr.mxu0 0.0
  %1050 = vmatpush1.msra.mxu0 0.0
  %1051 = vmatprep.subr.mxu0 0.0
  %1052 = vmatpush1.msra.mxu0 0.0
  %1053 = vmatprep.subr.mxu0 0.0
  %1054 = vmatpush1.msra.mxu0 0.0
  %1055 = vmatprep.subr.mxu0 0.0
  %1056 = vmatpush1.msra.mxu0 0.0
  %1057 = vmatprep.subr.mxu0 0.0
  %1058 = vmatpush1.msra.mxu0 0.0
  %1059 = vmatprep.subr.mxu0 0.0
  %1060 = vmatpush1.msra.mxu0 0.0
  %1061 = vmatprep.subr.mxu0 0.0
  %1062 = vmatpush1.msra.mxu0 0.0
  %1063 = vmatprep.subr.mxu0 0.0
  %1064 = vmatpush1.msra.mxu0 0.0
  %1065 = vmatprep.subr.mxu0 0.0
  %1066 = vmatpush1.msra.mxu0 0.0
  %1067 = vmatprep.subr.mxu0 0.0
  %1068 = vmatpush1.msra.mxu0 0.0
  %1069 = vmatprep.subr.mxu0 0.0
  %1070 = vmatpush1.msra.mxu0 0.0
  %1071 = vmatprep.subr.mxu0 0.0
  %1072 = vmatpush1.msra.mxu0 0.0
  %1073 = vmatprep.subr.mxu0 0.0
  %1074 = vmatpush1.msra.mxu0 0.0
  %1075 = vmatprep.subr.mxu0 0.0
  %1076 = vmatpush1.msra.mxu0 0.0
  %1077 = vmatprep.subr.mxu0 0.0
  %1078 = vmatpush1.msra.mxu0 0.0
  %1079 = vmatprep.subr.mxu0 0.0
  %1080 = vmatpush1.msra.mxu0 0.0
  %1081 = vmatprep.subr.mxu0 0.0
  %1082 = vmatpush1.msra.mxu0 0.0
  %1083 = vmatprep.subr.mxu0 0.0
  %1084 = vmatpush1.msra.mxu0 0.0
  %1085 = vmatprep.subr.mxu0 0.0
  %1086 = vmatpush1.msra.mxu0 0.0
  %1087 = vmatprep.subr.mxu0 0.0
  %1088 = vmatpush1.msra.mxu0 0.0
  %1089 = vmatprep.subr.mxu0 0.0
  %1090 = vmatpush1.msra.mxu0 0.0
  %1091 = vmatprep.subr.mxu0 0.0
  %1092 = vmatpush1.msra.mxu0 0.0
  %1093 = vmatprep.subr.mxu0 0.0
  %1094 = vmatpush1.msra.mxu0 0.0
  %1095 = vmatprep.subr.mxu0 0.0
  %1096 = vmatpush1.msra.mxu0 0.0
  %1097 = vmatprep.subr.mxu0 0.0
  %1098 = vmatpush1.msra.mxu0 0.0
  %1099 = vmatprep.subr.mxu0 0.0
  %1100 = vmatpush1.msra.mxu0 0.0
  %1101 = vmatprep.subr.mxu0 0.0
  %1102 = vmatpush1.msra.mxu0 0.0
  %1103 = vmatprep.mubr.f32.mxu0 0.0
  %1104 = vmatmul.mubr.f32.gmra.mrb[0].mxu0 %v256
  %v1105 = vpop.f32.mrb[0].mxu0
  %v1106 = vadd.f32 %v220, %v1105
  %v1107 = vpop.f32.mrb[0].mxu0
  %v1108 = vadd.f32 %v224, %v1107
  %1109 = vdwg.mxu0
  %1110 = vmatprep.subr.mxu0 0.0
  %1111 = vmatpush1.msra.mxu0 %v95
  %1112 = vmatprep.subr.mxu0 0.0
  %1113 = vmatpush1.msra.mxu0 %v120
  %1114 = vmatprep.subr.mxu0 0.0
  %1115 = vmatpush1.msra.mxu0 0.0
  %1116 = vmatprep.subr.mxu0 0.0
  %1117 = vmatpush1.msra.mxu0 0.0
  %1118 = vmatprep.subr.mxu0 0.0
  %1119 = vmatpush1.msra.mxu0 0.0
  %1120 = vmatprep.subr.mxu0 0.0
  %1121 = vmatpush1.msra.mxu0 0.0
  %1122 = vmatprep.subr.mxu0 0.0
  %1123 = vmatpush1.msra.mxu0 0.0
  %1124 = vmatprep.subr.mxu0 0.0
  %1125 = vmatpush1.msra.mxu0 0.0
  %1126 = vmatprep.subr.mxu0 0.0
  %1127 = vmatpush1.msra.mxu0 0.0
  %1128 = vmatprep.subr.mxu0 0.0
  %1129 = vmatpush1.msra.mxu0 0.0
  %1130 = vmatprep.subr.mxu0 0.0
  %1131 = vmatpush1.msra.mxu0 0.0
  %1132 = vmatprep.subr.mxu0 0.0
  %1133 = vmatpush1.msra.mxu0 0.0
  %1134 = vmatprep.subr.mxu0 0.0
  %1135 = vmatpush1.msra.mxu0 0.0
  %1136 = vmatprep.subr.mxu0 0.0
  %1137 = vmatpush1.msra.mxu0 0.0
  %1138 = vmatprep.subr.mxu0 0.0
  %1139 = vmatpush1.msra.mxu0 0.0
  %1140 = vmatprep.subr.mxu0 0.0
  %1141 = vmatpush1.msra.mxu0 0.0
  %1142 = vmatprep.subr.mxu0 0.0
  %1143 = vmatpush1.msra.mxu0 0.0
  %1144 = vmatprep.subr.mxu0 0.0
  %1145 = vmatpush1.msra.mxu0 0.0
  %1146 = vmatprep.subr.mxu0 0.0
  %1147 = vmatpush1.msra.mxu0 0.0
  %1148 = vmatprep.subr.mxu0 0.0
  %1149 = vmatpush1.msra.mxu0 0.0
  %1150 = vmatprep.subr.mxu0 0.0
  %1151 = vmatpush1.msra.mxu0 0.0
  %1152 = vmatprep.subr.mxu0 0.0
  %1153 = vmatpush1.msra.mxu0 0.0
  %1154 = vmatprep.subr.mxu0 0.0
  %1155 = vmatpush1.msra.mxu0 0.0
  %1156 = vmatprep.subr.mxu0 0.0
  %1157 = vmatpush1.msra.mxu0 0.0
  %1158 = vmatprep.subr.mxu0 0.0
  %1159 = vmatpush1.msra.mxu0 0.0
  %1160 = vmatprep.subr.mxu0 0.0
  %1161 = vmatpush1.msra.mxu0 0.0
  %1162 = vmatprep.subr.mxu0 0.0
  %1163 = vmatpush1.msra.mxu0 0.0
  %1164 = vmatprep.subr.mxu0 0.0
  %1165 = vmatpush1.msra.mxu0 0.0
  %1166 = vmatprep.subr.mxu0 0.0
  %1167 = vmatpush1.msra.mxu0 0.0
  %1168 = vmatprep.subr.mxu0 0.0
  %1169 = vmatpush1.msra.mxu0 0.0
  %1170 = vmatprep.subr.mxu0 0.0
  %1171 = vmatpush1.msra.mxu0 0.0
  %1172 = vmatprep.subr.mxu0 0.0
  %1173 = vmatpush1.msra.mxu0 0.0
  %1174 = vmatprep.mubr.f32.mxu0 0.0
  %1175 = vmatmul.mubr.f32.gmra.mrb[0].mxu0 %v256
  %v1176 = vpop.f32.mrb[0].mxu0
  %v1177 = vadd.f32 %v228, %v1176
  %v1178 = vpop.f32.mrb[0].mxu0
  %1179 = vdwg.mxu0
  %vm1180 = vcmp.ge.f32.partialorder %v325, 0.0
  %vm1181 = vcmp.ge.f32.partialorder %v327, 0.0
  %vm1182 = vcmp.ge.f32.partialorder %v396, 0.0
  %vm1183 = vcmp.ge.f32.partialorder %v398, 0.0
  %vm1184 = vcmp.ge.f32.partialorder %v467, 0.0
  %vm1185 = vcmp.ge.f32.partialorder %v469, 0.0
  %vm1186 = vcmp.ge.f32.partialorder %v538, 0.0
  %vm1187 = vcmp.ge.f32.partialorder %v540, 0.0
  %vm1188 = vcmp.ge.f32.partialorder %v609, 0.0
  %vm1189 = vcmp.ge.f32.partialorder %v611, 0.0
  %vm1190 = vcmp.ge.f32.partialorder %v680, 0.0
  %vm1191 = vcmp.ge.f32.partialorder %v682, 0.0
  %vm1192 = vcmp.ge.f32.partialorder %v751, 0.0
  %vm1193 = vcmp.ge.f32.partialorder %v753, 0.0
  %vm1194 = vcmp.ge.f32.partialorder %v822, 0.0
  %vm1195 = vcmp.ge.f32.partialorder %v824, 0.0
  %vm1196 = vcmp.ge.f32.partialorder %v893, 0.0
  %vm1197 = vcmp.ge.f32.partialorder %v895, 0.0
  %vm1198 = vcmp.ge.f32.partialorder %v964, 0.0
  %vm1199 = vcmp.ge.f32.partialorder %v966, 0.0
  %vm1200 = vcmp.ge.f32.partialorder %v1035, 0.0
  %vm1201 = vcmp.ge.f32.partialorder %v1037, 0.0
  %vm1202 = vcmp.ge.f32.partialorder %v1106, 0.0
  %vm1203 = vcmp.ge.f32.partialorder %v1108, 0.0
  %vm1204 = vcmp.ge.f32.partialorder %v1177, 0.0
  %v1205 = vmul.f32 %v325, 0.2
  %v1206 = vmul.f32 %v327, 0.2
  %v1207 = vmul.f32 %v396, 0.2
  %v1208 = vmul.f32 %v398, 0.2
  %v1209 = vmul.f32 %v467, 0.2
  %v1210 = vmul.f32 %v469, 0.2
  %v1211 = vmul.f32 %v538, 0.2
  %v1212 = vmul.f32 %v540, 0.2
  %v1213 = vmul.f32 %v609, 0.2
  %v1214 = vmul.f32 %v611, 0.2
  %v1215 = vmul.f32 %v680, 0.2
  %v1216 = vmul.f32 %v682, 0.2
  %v1217 = vmul.f32 %v751, 0.2
  %v1218 = vmul.f32 %v753, 0.2
  %v1219 = vmul.f32 %v822, 0.2
  %v1220 = vmul.f32 %v824, 0.2
  %v1221 = vmul.f32 %v893, 0.2
  %v1222 = vmul.f32 %v895, 0.2
  %v1223 = vmul.f32 %v964, 0.2
  %v1224 = vmul.f32 %v966, 0.2
  %v1225 = vmul.f32 %v1035, 0.2
  %v1226 = vmul.f32 %v1037, 0.2
  %v1227 = vmul.f32 %v1106, 0.2
  %v1228 = vmul.f32 %v1108, 0.2
  %v1229 = vmul.f32 %v1177, 0.2
  %v1230 = vsel %vm1180, %v325, %v1205
  %v1231 = vsel %vm1181, %v327, %v1206
  %v1232 = vsel %vm1182, %v396, %v1207
  %v1233 = vsel %vm1183, %v398, %v1208
  %v1234 = vsel %vm1184, %v467, %v1209
  %v1235 = vsel %vm1185, %v469, %v1210
  %v1236 = vsel %vm1186, %v538, %v1211
  %v1237 = vsel %vm1187, %v540, %v1212
  %v1238 = vsel %vm1188, %v609, %v1213
  %v1239 = vsel %vm1189, %v611, %v1214
  %v1240 = vsel %vm1190, %v680, %v1215
  %v1241 = vsel %vm1191, %v682, %v1216
  %v1242 = vsel %vm1192, %v751, %v1217
  %v1243 = vsel %vm1193, %v753, %v1218
  %v1244 = vsel %vm1194, %v822, %v1219
  %v1245 = vsel %vm1195, %v824, %v1220
  %v1246 = vsel %vm1196, %v893, %v1221
  %v1247 = vsel %vm1197, %v895, %v1222
  %v1248 = vsel %vm1198, %v964, %v1223
  %v1249 = vsel %vm1199, %v966, %v1224
  %v1250 = vsel %vm1200, %v1035, %v1225
  %v1251 = vsel %vm1201, %v1037, %v1226
  %v1252 = vsel %vm1202, %v1106, %v1227
  %v1253 = vsel %vm1203, %v1108, %v1228
  %v1254 = vsel %vm1204, %v1177, %v1229
  %v1280 = vcombine.low %v1230, %v1231
  %v1281 = vcombine.low %v1232, %v1233
  %v1283 = vunpack.c.l.s4 1983009808
  %v1284 = vunpack.c.0.s8 %v1283
  %v1285 = vlaneseq
  %v1286 = vshrl.u32 %v1285, 7
  %v1287 = vsub.s32 %v1284, %v1286
  %v1288 = vrot.slane %v1280, %v1287
  %v1290 = vunpack.c.l.s4 1983009808
  %v1291 = vunpack.c.0.s8 %v1290
  %v1292 = vlaneseq
  %v1293 = vshrl.u32 %v1292, 7
  %v1294 = vsub.s32 %v1291, %v1293
  %v1295 = vrot.slane %v1281, %v1294
  %v1296 = vcombine.low %v1288, %v1295
  %v1297 = vcombine.low %v1234, %v1235
  %v1298 = vcombine.low %v1236, %v1237
  %v1300 = vunpack.c.l.s4 1983009808
  %v1301 = vunpack.c.0.s8 %v1300
  %v1302 = vlaneseq
  %v1303 = vshrl.u32 %v1302, 7
  %v1304 = vsub.s32 %v1301, %v1303
  %v1305 = vrot.slane %v1297, %v1304
  %v1307 = vunpack.c.l.s4 1983009808
  %v1308 = vunpack.c.0.s8 %v1307
  %v1309 = vlaneseq
  %v1310 = vshrl.u32 %v1309, 7
  %v1311 = vsub.s32 %v1308, %v1310
  %v1312 = vrot.slane %v1298, %v1311
  %v1313 = vcombine.low %v1305, %v1312
  %v1314 = vcombine.low %v1238, %v1239
  %v1315 = vcombine.low %v1240, %v1241
  %v1317 = vunpack.c.l.s4 1983009808
  %v1318 = vunpack.c.0.s8 %v1317
  %v1319 = vlaneseq
  %v1320 = vshrl.u32 %v1319, 7
  %v1321 = vsub.s32 %v1318, %v1320
  %v1322 = vrot.slane %v1314, %v1321
  %v1324 = vunpack.c.l.s4 1983009808
  %v1325 = vunpack.c.0.s8 %v1324
  %v1326 = vlaneseq
  %v1327 = vshrl.u32 %v1326, 7
  %v1328 = vsub.s32 %v1325, %v1327
  %v1329 = vrot.slane %v1315, %v1328
  %v1330 = vcombine.low %v1322, %v1329
  %v1331 = vcombine.low %v1242, %v1243
  %v1332 = vcombine.low %v1244, %v1245
  %v1334 = vunpack.c.l.s4 1983009808
  %v1335 = vunpack.c.0.s8 %v1334
  %v1336 = vlaneseq
  %v1337 = vshrl.u32 %v1336, 7
  %v1338 = vsub.s32 %v1335, %v1337
  %v1339 = vrot.slane %v1331, %v1338
  %v1341 = vunpack.c.l.s4 1983009808
  %v1342 = vunpack.c.0.s8 %v1341
  %v1343 = vlaneseq
  %v1344 = vshrl.u32 %v1343, 7
  %v1345 = vsub.s32 %v1342, %v1344
  %v1346 = vrot.slane %v1332, %v1345
  %v1347 = vcombine.low %v1339, %v1346
  %v1348 = vcombine.low %v1246, %v1247
  %v1349 = vcombine.low %v1248, %v1249
  %v1351 = vunpack.c.l.s4 1983009808
  %v1352 = vunpack.c.0.s8 %v1351
  %v1353 = vlaneseq
  %v1354 = vshrl.u32 %v1353, 7
  %v1355 = vsub.s32 %v1352, %v1354
  %v1356 = vrot.slane %v1348, %v1355
  %v1358 = vunpack.c.l.s4 1983009808
  %v1359 = vunpack.c.0.s8 %v1358
  %v1360 = vlaneseq
  %v1361 = vshrl.u32 %v1360, 7
  %v1362 = vsub.s32 %v1359, %v1361
  %v1363 = vrot.slane %v1349, %v1362
  %v1364 = vcombine.low %v1356, %v1363
  %v1365 = vcombine.low %v1250, %v1251
  %v1366 = vcombine.low %v1252, %v1253
  %v1368 = vunpack.c.l.s4 1983009808
  %v1369 = vunpack.c.0.s8 %v1368
  %v1370 = vlaneseq
  %v1371 = vshrl.u32 %v1370, 7
  %v1372 = vsub.s32 %v1369, %v1371
  %v1373 = vrot.slane %v1365, %v1372
  %v1375 = vunpack.c.l.s4 1983009808
  %v1376 = vunpack.c.0.s8 %v1375
  %v1377 = vlaneseq
  %v1378 = vshrl.u32 %v1377, 7
  %v1379 = vsub.s32 %v1376, %v1378
  %v1380 = vrot.slane %v1366, %v1379
  %v1381 = vcombine.low %v1373, %v1380
  %v1383 = vunpack.c.l.s4 1983009808
  %v1384 = vunpack.c.0.s8 %v1383
  %v1385 = vlaneseq
  %v1386 = vshrl.u32 %v1385, 7
  %v1387 = vsub.s32 %v1384, %v1386
  %v1388 = vrot.slane %v1254, %v1387
  %1396 = vst [vmem:[#allocation2] sm:$0xff] %v1296
  %1397 = vst [vmem:[#allocation2 + $0x8] sm:$0xff] %v1313
  %1398 = vst [vmem:[#allocation2 + $0x10] sm:$0xff] %v1330
  %1399 = vst [vmem:[#allocation2 + $0x18] sm:$0xff] %v1347
  %1400 = vst [vmem:[#allocation2 + $0x20] sm:$0xff] %v1364
  %1401 = vst [vmem:[#allocation2 + $0x28] sm:$0xff] %v1381
  %vm1402 = vcmask 517120
  %1403 = vst.msk [vmem:[#allocation2 + $0x30] sm:$0x3] %vm1402, %v1388
  %v1404 = vld [vmem:[#allocation2] sm:$0x3]
  %1405 = vst.msk [vmem:[#allocation3 + $0x14] sm:$0x3] %vm1402, %v1404
  %v1406 = vld [vmem:[#allocation2] sm:$0x3]
  %v1409 = vunpack.c.l.s4 1983009808
  %v1410 = vunpack.c.0.s8 %v1409
  %v1411 = vlaneseq
  %v1412 = vshrl.u32 %v1411, 7
  %v1413 = vsub.s32 %v1410, %v1412
  %v1414 = vrot.slane %v1406, %v1413
  %1415 = vrot.lane.b32.xlu0 %v1414, 64
  %v1416 = vpop.permute.xlu0 %1415
  %1418 = vst.msk [vmem:[#allocation3 + $0x16] sm:$0x3] %vm1402, %v1416
  %v1419 = vld [vmem:[#allocation2 + $0x2] sm:$0x3]
  %1420 = vst.msk [vmem:[#allocation3 + $0x18] sm:$0x3] %vm1402, %v1419
  %v1421 = vld [vmem:[#allocation2 + $0x2] sm:$0x3]
  %v1424 = vunpack.c.l.s4 1983009808
  %v1425 = vunpack.c.0.s8 %v1424
  %v1426 = vlaneseq
  %v1427 = vshrl.u32 %v1426, 7
  %v1428 = vsub.s32 %v1425, %v1427
  %v1429 = vrot.slane %v1421, %v1428
  %1430 = vrot.lane.b32.xlu0 %v1429, 64
  %v1431 = vpop.permute.xlu0 %1430
  %1433 = vst.msk [vmem:[#allocation3 + $0x1a] sm:$0x3] %vm1402, %v1431
  %v1434 = vld [vmem:[#allocation2 + $0x4] sm:$0x3]
  %1435 = vst.msk [vmem:[#allocation3 + $0x1c] sm:$0x3] %vm1402, %v1434
  %v1436 = vld [vmem:[#allocation2 + $0x4] sm:$0x3]
  %v1439 = vunpack.c.l.s4 1983009808
  %v1440 = vunpack.c.0.s8 %v1439
  %v1441 = vlaneseq
  %v1442 = vshrl.u32 %v1441, 7
  %v1443 = vsub.s32 %v1440, %v1442
  %v1444 = vrot.slane %v1436, %v1443
  %1445 = vrot.lane.b32.xlu0 %v1444, 64
  %v1446 = vpop.permute.xlu0 %1445
  %1448 = vst.msk [vmem:[#allocation3 + $0x1e] sm:$0x3] %vm1402, %v1446
  %v1449 = vld [vmem:[#allocation2 + $0x6] sm:$0x3]
  %1450 = vst.msk [vmem:[#allocation3 + $0x20] sm:$0x3] %vm1402, %v1449
  %v1451 = vld [vmem:[#allocation2 + $0x6] sm:$0x3]
  %v1454 = vunpack.c.l.s4 1983009808
  %v1455 = vunpack.c.0.s8 %v1454
  %v1456 = vlaneseq
  %v1457 = vshrl.u32 %v1456, 7
  %v1458 = vsub.s32 %v1455, %v1457
  %v1459 = vrot.slane %v1451, %v1458
  %1460 = vrot.lane.b32.xlu0 %v1459, 64
  %v1461 = vpop.permute.xlu0 %1460
  %1463 = vst.msk [vmem:[#allocation3 + $0x26] sm:$0x3] %vm1402, %v1461
  %v1464 = vld [vmem:[#allocation2 + $0x8] sm:$0x3]
  %1465 = vst.msk [vmem:[#allocation3 + $0x28] sm:$0x3] %vm1402, %v1464
  %v1466 = vld [vmem:[#allocation2 + $0x8] sm:$0x3]
  %v1469 = vunpack.c.l.s4 1983009808
  %v1470 = vunpack.c.0.s8 %v1469
  %v1471 = vlaneseq
  %v1472 = vshrl.u32 %v1471, 7
  %v1473 = vsub.s32 %v1470, %v1472
  %v1474 = vrot.slane %v1466, %v1473
  %1475 = vrot.lane.b32.xlu0 %v1474, 64
  %v1476 = vpop.permute.xlu0 %1475
  %1478 = vst.msk [vmem:[#allocation3 + $0x2a] sm:$0x3] %vm1402, %v1476
  %v1479 = vld [vmem:[#allocation2 + $0xa] sm:$0x3]
  %1480 = vst.msk [vmem:[#allocation3 + $0x2c] sm:$0x3] %vm1402, %v1479
  %v1481 = vld [vmem:[#allocation2 + $0xa] sm:$0x3]
  %v1484 = vunpack.c.l.s4 1983009808
  %v1485 = vunpack.c.0.s8 %v1484
  %v1486 = vlaneseq
  %v1487 = vshrl.u32 %v1486, 7
  %v1488 = vsub.s32 %v1485, %v1487
  %v1489 = vrot.slane %v1481, %v1488
  %1490 = vrot.lane.b32.xlu0 %v1489, 64
  %v1491 = vpop.permute.xlu0 %1490
  %1493 = vst.msk [vmem:[#allocation3 + $0x2e] sm:$0x3] %vm1402, %v1491
  %v1494 = vld [vmem:[#allocation2 + $0xc] sm:$0x3]
  %1495 = vst.msk [vmem:[#allocation3 + $0x30] sm:$0x3] %vm1402, %v1494
  %v1496 = vld [vmem:[#allocation2 + $0xc] sm:$0x3]
  %v1499 = vunpack.c.l.s4 1983009808
  %v1500 = vunpack.c.0.s8 %v1499
  %v1501 = vlaneseq
  %v1502 = vshrl.u32 %v1501, 7
  %v1503 = vsub.s32 %v1500, %v1502
  %v1504 = vrot.slane %v1496, %v1503
  %1505 = vrot.lane.b32.xlu0 %v1504, 64
  %v1506 = vpop.permute.xlu0 %1505
  %1508 = vst.msk [vmem:[#allocation3 + $0x32] sm:$0x3] %vm1402, %v1506
  %v1509 = vld [vmem:[#allocation2 + $0xe] sm:$0x3]
  %1510 = vst.msk [vmem:[#allocation3 + $0x38] sm:$0x3] %vm1402, %v1509
  %v1511 = vld [vmem:[#allocation2 + $0xe] sm:$0x3]
  %v1514 = vunpack.c.l.s4 1983009808
  %v1515 = vunpack.c.0.s8 %v1514
  %v1516 = vlaneseq
  %v1517 = vshrl.u32 %v1516, 7
  %v1518 = vsub.s32 %v1515, %v1517
  %v1519 = vrot.slane %v1511, %v1518
  %1520 = vrot.lane.b32.xlu0 %v1519, 64
  %v1521 = vpop.permute.xlu0 %1520
  %1523 = vst.msk [vmem:[#allocation3 + $0x3a] sm:$0x3] %vm1402, %v1521
  %v1524 = vld [vmem:[#allocation2 + $0x10] sm:$0x3]
  %1525 = vst.msk [vmem:[#allocation3 + $0x3c] sm:$0x3] %vm1402, %v1524
  %v1526 = vld [vmem:[#allocation2 + $0x10] sm:$0x3]
  %v1529 = vunpack.c.l.s4 1983009808
  %v1530 = vunpack.c.0.s8 %v1529
  %v1531 = vlaneseq
  %v1532 = vshrl.u32 %v1531, 7
  %v1533 = vsub.s32 %v1530, %v1532
  %v1534 = vrot.slane %v1526, %v1533
  %1535 = vrot.lane.b32.xlu0 %v1534, 64
  %v1536 = vpop.permute.xlu0 %1535
  %1538 = vst.msk [vmem:[#allocation3 + $0x3e] sm:$0x3] %vm1402, %v1536
  %v1539 = vld [vmem:[#allocation2 + $0x12] sm:$0x3]
  %1540 = vst.msk [vmem:[#allocation3 + $0x40] sm:$0x3] %vm1402, %v1539
  %v1541 = vld [vmem:[#allocation2 + $0x12] sm:$0x3]
  %v1544 = vunpack.c.l.s4 1983009808
  %v1545 = vunpack.c.0.s8 %v1544
  %v1546 = vlaneseq
  %v1547 = vshrl.u32 %v1546, 7
  %v1548 = vsub.s32 %v1545, %v1547
  %v1549 = vrot.slane %v1541, %v1548
  %1550 = vrot.lane.b32.xlu0 %v1549, 64
  %v1551 = vpop.permute.xlu0 %1550
  %1553 = vst.msk [vmem:[#allocation3 + $0x42] sm:$0x3] %vm1402, %v1551
  %v1554 = vld [vmem:[#allocation2 + $0x14] sm:$0x3]
  %1555 = vst.msk [vmem:[#allocation3 + $0x44] sm:$0x3] %vm1402, %v1554
  %v1556 = vld [vmem:[#allocation2 + $0x14] sm:$0x3]
  %v1559 = vunpack.c.l.s4 1983009808
  %v1560 = vunpack.c.0.s8 %v1559
  %v1561 = vlaneseq
  %v1562 = vshrl.u32 %v1561, 7
  %v1563 = vsub.s32 %v1560, %v1562
  %v1564 = vrot.slane %v1556, %v1563
  %1565 = vrot.lane.b32.xlu0 %v1564, 64
  %v1566 = vpop.permute.xlu0 %1565
  %1568 = vst.msk [vmem:[#allocation3 + $0x4a] sm:$0x3] %vm1402, %v1566
  %v1569 = vld [vmem:[#allocation2 + $0x16] sm:$0x3]
  %1570 = vst.msk [vmem:[#allocation3 + $0x4c] sm:$0x3] %vm1402, %v1569
  %v1571 = vld [vmem:[#allocation2 + $0x16] sm:$0x3]
  %v1574 = vunpack.c.l.s4 1983009808
  %v1575 = vunpack.c.0.s8 %v1574
  %v1576 = vlaneseq
  %v1577 = vshrl.u32 %v1576, 7
  %v1578 = vsub.s32 %v1575, %v1577
  %v1579 = vrot.slane %v1571, %v1578
  %1580 = vrot.lane.b32.xlu0 %v1579, 64
  %v1581 = vpop.permute.xlu0 %1580
  %1583 = vst.msk [vmem:[#allocation3 + $0x4e] sm:$0x3] %vm1402, %v1581
  %v1584 = vld [vmem:[#allocation2 + $0x18] sm:$0x3]
  %1585 = vst.msk [vmem:[#allocation3 + $0x50] sm:$0x3] %vm1402, %v1584
  %v1586 = vld [vmem:[#allocation2 + $0x18] sm:$0x3]
  %v1589 = vunpack.c.l.s4 1983009808
  %v1590 = vunpack.c.0.s8 %v1589
  %v1591 = vlaneseq
  %v1592 = vshrl.u32 %v1591, 7
  %v1593 = vsub.s32 %v1590, %v1592
  %v1594 = vrot.slane %v1586, %v1593
  %1595 = vrot.lane.b32.xlu0 %v1594, 64
  %v1596 = vpop.permute.xlu0 %1595
  %1598 = vst.msk [vmem:[#allocation3 + $0x52] sm:$0x3] %vm1402, %v1596
  %v1599 = vld [vmem:[#allocation2 + $0x1a] sm:$0x3]
  %1600 = vst.msk [vmem:[#allocation3 + $0x54] sm:$0x3] %vm1402, %v1599
  %v1601 = vld [vmem:[#allocation2 + $0x1a] sm:$0x3]
  %v1604 = vunpack.c.l.s4 1983009808
  %v1605 = vunpack.c.0.s8 %v1604
  %v1606 = vlaneseq
  %v1607 = vshrl.u32 %v1606, 7
  %v1608 = vsub.s32 %v1605, %v1607
  %v1609 = vrot.slane %v1601, %v1608
  %1610 = vrot.lane.b32.xlu0 %v1609, 64
  %v1611 = vpop.permute.xlu0 %1610
  %1613 = vst.msk [vmem:[#allocation3 + $0x56] sm:$0x3] %vm1402, %v1611
  %v1614 = vld [vmem:[#allocation2 + $0x1c] sm:$0x3]
  %1615 = vst.msk [vmem:[#allocation3 + $0x5c] sm:$0x3] %vm1402, %v1614
  %v1616 = vld [vmem:[#allocation2 + $0x1c] sm:$0x3]
  %v1619 = vunpack.c.l.s4 1983009808
  %v1620 = vunpack.c.0.s8 %v1619
  %v1621 = vlaneseq
  %v1622 = vshrl.u32 %v1621, 7
  %v1623 = vsub.s32 %v1620, %v1622
  %v1624 = vrot.slane %v1616, %v1623
  %1625 = vrot.lane.b32.xlu0 %v1624, 64
  %v1626 = vpop.permute.xlu0 %1625
  %1628 = vst.msk [vmem:[#allocation3 + $0x5e] sm:$0x3] %vm1402, %v1626
  %v1629 = vld [vmem:[#allocation2 + $0x1e] sm:$0x3]
  %1630 = vst.msk [vmem:[#allocation3 + $0x60] sm:$0x3] %vm1402, %v1629
  %v1631 = vld [vmem:[#allocation2 + $0x1e] sm:$0x3]
  %v1634 = vunpack.c.l.s4 1983009808
  %v1635 = vunpack.c.0.s8 %v1634
  %v1636 = vlaneseq
  %v1637 = vshrl.u32 %v1636, 7
  %v1638 = vsub.s32 %v1635, %v1637
  %v1639 = vrot.slane %v1631, %v1638
  %1640 = vrot.lane.b32.xlu0 %v1639, 64
  %v1641 = vpop.permute.xlu0 %1640
  %1643 = vst.msk [vmem:[#allocation3 + $0x62] sm:$0x3] %vm1402, %v1641
  %v1644 = vld [vmem:[#allocation2 + $0x20] sm:$0x3]
  %1645 = vst.msk [vmem:[#allocation3 + $0x64] sm:$0x3] %vm1402, %v1644
  %v1646 = vld [vmem:[#allocation2 + $0x20] sm:$0x3]
  %v1649 = vunpack.c.l.s4 1983009808
  %v1650 = vunpack.c.0.s8 %v1649
  %v1651 = vlaneseq
  %v1652 = vshrl.u32 %v1651, 7
  %v1653 = vsub.s32 %v1650, %v1652
  %v1654 = vrot.slane %v1646, %v1653
  %1655 = vrot.lane.b32.xlu0 %v1654, 64
  %v1656 = vpop.permute.xlu0 %1655
  %1658 = vst.msk [vmem:[#allocation3 + $0x66] sm:$0x3] %vm1402, %v1656
  %v1659 = vld [vmem:[#allocation2 + $0x22] sm:$0x3]
  %1660 = vst.msk [vmem:[#allocation3 + $0x68] sm:$0x3] %vm1402, %v1659
  %v1661 = vld [vmem:[#allocation2 + $0x22] sm:$0x3]
  %v1664 = vunpack.c.l.s4 1983009808
  %v1665 = vunpack.c.0.s8 %v1664
  %v1666 = vlaneseq
  %v1667 = vshrl.u32 %v1666, 7
  %v1668 = vsub.s32 %v1665, %v1667
  %v1669 = vrot.slane %v1661, %v1668
  %1670 = vrot.lane.b32.xlu0 %v1669, 64
  %v1671 = vpop.permute.xlu0 %1670
  %1673 = vst.msk [vmem:[#allocation3 + $0x6e] sm:$0x3] %vm1402, %v1671
  %v1674 = vld [vmem:[#allocation2 + $0x24] sm:$0x3]
  %1675 = vst.msk [vmem:[#allocation3 + $0x70] sm:$0x3] %vm1402, %v1674
  %v1676 = vld [vmem:[#allocation2 + $0x24] sm:$0x3]
  %v1679 = vunpack.c.l.s4 1983009808
  %v1680 = vunpack.c.0.s8 %v1679
  %v1681 = vlaneseq
  %v1682 = vshrl.u32 %v1681, 7
  %v1683 = vsub.s32 %v1680, %v1682
  %v1684 = vrot.slane %v1676, %v1683
  %1685 = vrot.lane.b32.xlu0 %v1684, 64
  %v1686 = vpop.permute.xlu0 %1685
  %1688 = vst.msk [vmem:[#allocation3 + $0x72] sm:$0x3] %vm1402, %v1686
  %v1689 = vld [vmem:[#allocation2 + $0x26] sm:$0x3]
  %1690 = vst.msk [vmem:[#allocation3 + $0x74] sm:$0x3] %vm1402, %v1689
  %v1691 = vld [vmem:[#allocation2 + $0x26] sm:$0x3]
  %v1694 = vunpack.c.l.s4 1983009808
  %v1695 = vunpack.c.0.s8 %v1694
  %v1696 = vlaneseq
  %v1697 = vshrl.u32 %v1696, 7
  %v1698 = vsub.s32 %v1695, %v1697
  %v1699 = vrot.slane %v1691, %v1698
  %1700 = vrot.lane.b32.xlu0 %v1699, 64
  %v1701 = vpop.permute.xlu0 %1700
  %1703 = vst.msk [vmem:[#allocation3 + $0x76] sm:$0x3] %vm1402, %v1701
  %v1704 = vld [vmem:[#allocation2 + $0x28] sm:$0x3]
  %1705 = vst.msk [vmem:[#allocation3 + $0x78] sm:$0x3] %vm1402, %v1704
  %v1706 = vld [vmem:[#allocation2 + $0x28] sm:$0x3]
  %v1709 = vunpack.c.l.s4 1983009808
  %v1710 = vunpack.c.0.s8 %v1709
  %v1711 = vlaneseq
  %v1712 = vshrl.u32 %v1711, 7
  %v1713 = vsub.s32 %v1710, %v1712
  %v1714 = vrot.slane %v1706, %v1713
  %1715 = vrot.lane.b32.xlu0 %v1714, 64
  %v1716 = vpop.permute.xlu0 %1715
  %1718 = vst.msk [vmem:[#allocation3 + $0x7a] sm:$0x3] %vm1402, %v1716
  %v1719 = vld [vmem:[#allocation2 + $0x2a] sm:$0x3]
  %1720 = vst.msk [vmem:[#allocation3 + $0x80] sm:$0x3] %vm1402, %v1719
  %v1721 = vld [vmem:[#allocation2 + $0x2a] sm:$0x3]
  %v1724 = vunpack.c.l.s4 1983009808
  %v1725 = vunpack.c.0.s8 %v1724
  %v1726 = vlaneseq
  %v1727 = vshrl.u32 %v1726, 7
  %v1728 = vsub.s32 %v1725, %v1727
  %v1729 = vrot.slane %v1721, %v1728
  %1730 = vrot.lane.b32.xlu0 %v1729, 64
  %v1731 = vpop.permute.xlu0 %1730
  %1733 = vst.msk [vmem:[#allocation3 + $0x82] sm:$0x3] %vm1402, %v1731
  %v1734 = vld [vmem:[#allocation2 + $0x2c] sm:$0x3]
  %1735 = vst.msk [vmem:[#allocation3 + $0x84] sm:$0x3] %vm1402, %v1734
  %v1736 = vld [vmem:[#allocation2 + $0x2c] sm:$0x3]
  %v1739 = vunpack.c.l.s4 1983009808
  %v1740 = vunpack.c.0.s8 %v1739
  %v1741 = vlaneseq
  %v1742 = vshrl.u32 %v1741, 7
  %v1743 = vsub.s32 %v1740, %v1742
  %v1744 = vrot.slane %v1736, %v1743
  %1745 = vrot.lane.b32.xlu0 %v1744, 64
  %v1746 = vpop.permute.xlu0 %1745
  %1748 = vst.msk [vmem:[#allocation3 + $0x86] sm:$0x3] %vm1402, %v1746
  %v1749 = vld [vmem:[#allocation2 + $0x2e] sm:$0x3]
  %1750 = vst.msk [vmem:[#allocation3 + $0x88] sm:$0x3] %vm1402, %v1749
  %v1751 = vld [vmem:[#allocation2 + $0x2e] sm:$0x3]
  %v1754 = vunpack.c.l.s4 1983009808
  %v1755 = vunpack.c.0.s8 %v1754
  %v1756 = vlaneseq
  %v1757 = vshrl.u32 %v1756, 7
  %v1758 = vsub.s32 %v1755, %v1757
  %v1759 = vrot.slane %v1751, %v1758
  %1760 = vrot.lane.b32.xlu0 %v1759, 64
  %v1761 = vpop.permute.xlu0 %1760
  %1763 = vst.msk [vmem:[#allocation3 + $0x8a] sm:$0x3] %vm1402, %v1761
  %v1764 = vld [vmem:[#allocation2 + $0x30] sm:$0x3]
  %1765 = vst.msk [vmem:[#allocation3 + $0x8c] sm:$0x3] %vm1402, %v1764
  %v1766 = vld [vmem:[#allocation3] sm:$0xff]
  %v1767 = vld [vmem:[#allocation3 + $0x8] sm:$0xff]
  %v1768 = vld [vmem:[#allocation3 + $0x10] sm:$0xff]
  %v1769 = vld [vmem:[#allocation3 + $0x18] sm:$0xff]
  %v1770 = vld [vmem:[#allocation3 + $0x20] sm:$0xff]
  %v1771 = vld [vmem:[#allocation3 + $0x28] sm:$0xff]
  %v1772 = vld [vmem:[#allocation3 + $0x30] sm:$0xff]
  %v1773 = vld [vmem:[#allocation3 + $0x38] sm:$0xff]
  %v1774 = vld [vmem:[#allocation3 + $0x40] sm:$0xff]
  %v1775 = vld [vmem:[#allocation3 + $0x48] sm:$0xff]
  %v1776 = vld [vmem:[#allocation3 + $0x50] sm:$0xff]
  %v1777 = vld [vmem:[#allocation3 + $0x58] sm:$0xff]
  %v1778 = vld [vmem:[#allocation3 + $0x60] sm:$0xff]
  %v1779 = vld [vmem:[#allocation3 + $0x68] sm:$0xff]
  %v1780 = vld [vmem:[#allocation3 + $0x70] sm:$0xff]
  %v1781 = vld [vmem:[#allocation3 + $0x78] sm:$0x3f]
  %v1782 = vld [vmem:[%s3] sm:$0xff]
  %v1783 = vld [vmem:[%s3 + $0x8] sm:$0xff]
  %v1784 = vld [vmem:[%s3 + $0x10] sm:$0xff]
  %v1785 = vld [vmem:[%s3 + $0x18] sm:$0xff]
  %v1786 = vld [vmem:[%s3 + $0x20] sm:$0xff]
  %v1787 = vld [vmem:[%s3 + $0x28] sm:$0xff]
  %v1788 = vld [vmem:[%s3 + $0x30] sm:$0xff]
  %v1789 = vld [vmem:[%s3 + $0x38] sm:$0xff]
  %v1790 = vld [vmem:[#allocation3 + $0x2] sm:$0xff]
  %v1791 = vld [vmem:[#allocation3 + $0xa] sm:$0xff]
  %v1792 = vld [vmem:[#allocation3 + $0x12] sm:$0xff]
  %v1793 = vld [vmem:[#allocation3 + $0x1a] sm:$0xff]
  %v1794 = vld [vmem:[#allocation3 + $0x22] sm:$0xff]
  %v1795 = vld [vmem:[#allocation3 + $0x2a] sm:$0xff]
  %v1796 = vld [vmem:[#allocation3 + $0x32] sm:$0xff]
  %v1797 = vld [vmem:[#allocation3 + $0x3a] sm:$0xff]
  %v1798 = vld [vmem:[#allocation3 + $0x42] sm:$0xff]
  %v1799 = vld [vmem:[#allocation3 + $0x4a] sm:$0xff]
  %v1800 = vld [vmem:[#allocation3 + $0x52] sm:$0xff]
  %v1801 = vld [vmem:[#allocation3 + $0x5a] sm:$0xff]
  %v1802 = vld [vmem:[#allocation3 + $0x62] sm:$0xff]
  %v1803 = vld [vmem:[#allocation3 + $0x6a] sm:$0xff]
  %v1804 = vld [vmem:[#allocation3 + $0x72] sm:$0xff]
  %v1805 = vld [vmem:[#allocation3 + $0x7a] sm:$0x3f]
  %s1806 = scalar_lea.vmem %s3, 64
  %v1807 = vld [vmem:[%s1806] sm:$0xff]
  %v1808 = vld [vmem:[%s1806 + $0x8] sm:$0xff]
  %v1809 = vld [vmem:[%s1806 + $0x10] sm:$0xff]
  %v1810 = vld [vmem:[%s1806 + $0x18] sm:$0xff]
  %v1811 = vld [vmem:[%s1806 + $0x20] sm:$0xff]
  %v1812 = vld [vmem:[%s1806 + $0x28] sm:$0xff]
  %v1813 = vld [vmem:[%s1806 + $0x30] sm:$0xff]
  %v1814 = vld [vmem:[%s1806 + $0x38] sm:$0xff]
  %v1816 = vsel %vm26, %v1790, 0
  %v1819 = vsel %vm26, %v1791, 0
  %v1822 = vsel %vm26, %v1792, 0
  %v1825 = vsel %vm26, %v1793, 0
  %v1828 = vsel %vm26, %v1794, 0
  %v1831 = vsel %vm26, %v1795, 0
  %v1834 = vsel %vm26, %v1796, 0
  %v1837 = vsel %vm26, %v1797, 0
  %v1840 = vsel %vm26, %v1798, 0
  %v1843 = vsel %vm26, %v1799, 0
  %v1846 = vsel %vm26, %v1800, 0
  %v1849 = vsel %vm26, %v1801, 0
  %v1852 = vsel %vm26, %v1802, 0
  %v1855 = vsel %vm26, %v1803, 0
  %v1858 = vsel %vm26, %v1804, 0
  %v1861 = vsel %vm26, %v1805, 0
  %1863 = vmatprep.subr.mxu0 0.0
  %1864 = vmatpush1.msra.mxu0 %v1807
  %1865 = vmatprep.subr.mxu0 0.0
  %1866 = vmatpush1.msra.mxu0 %v1808
  %1867 = vmatprep.subr.mxu0 0.0
  %1868 = vmatpush1.msra.mxu0 %v1809
  %1869 = vmatprep.subr.mxu0 0.0
  %1870 = vmatpush1.msra.mxu0 %v1810
  %1871 = vmatprep.subr.mxu0 0.0
  %1872 = vmatpush1.msra.mxu0 %v1811
  %1873 = vmatprep.subr.mxu0 0.0
  %1874 = vmatpush1.msra.mxu0 %v1812
  %1875 = vmatprep.subr.mxu0 0.0
  %1876 = vmatpush1.msra.mxu0 %v1813
  %1877 = vmatprep.subr.mxu0 0.0
  %1878 = vmatpush1.msra.mxu0 %v1814
  %1879 = vmatprep.subr.mxu0 0.0
  %1880 = vmatpush1.msra.mxu0 0.0
  %1881 = vmatprep.subr.mxu0 0.0
  %1882 = vmatpush1.msra.mxu0 0.0
  %1883 = vmatprep.subr.mxu0 0.0
  %1884 = vmatpush1.msra.mxu0 0.0
  %1885 = vmatprep.subr.mxu0 0.0
  %1886 = vmatpush1.msra.mxu0 0.0
  %1887 = vmatprep.subr.mxu0 0.0
  %1888 = vmatpush1.msra.mxu0 0.0
  %1889 = vmatprep.subr.mxu0 0.0
  %1890 = vmatpush1.msra.mxu0 0.0
  %1891 = vmatprep.subr.mxu0 0.0
  %1892 = vmatpush1.msra.mxu0 0.0
  %1893 = vmatprep.subr.mxu0 0.0
  %1894 = vmatpush1.msra.mxu0 0.0
  %1895 = vmatprep.subr.mxu0 0.0
  %1896 = vmatpush1.msra.mxu0 0.0
  %1897 = vmatprep.subr.mxu0 0.0
  %1898 = vmatpush1.msra.mxu0 0.0
  %1899 = vmatprep.subr.mxu0 0.0
  %1900 = vmatpush1.msra.mxu0 0.0
  %1901 = vmatprep.subr.mxu0 0.0
  %1902 = vmatpush1.msra.mxu0 0.0
  %1903 = vmatprep.subr.mxu0 0.0
  %1904 = vmatpush1.msra.mxu0 0.0
  %1905 = vmatprep.subr.mxu0 0.0
  %1906 = vmatpush1.msra.mxu0 0.0
  %1907 = vmatprep.subr.mxu0 0.0
  %1908 = vmatpush1.msra.mxu0 0.0
  %1909 = vmatprep.subr.mxu0 0.0
  %1910 = vmatpush1.msra.mxu0 0.0
  %1911 = vmatprep.subr.mxu0 0.0
  %1912 = vmatpush1.msra.mxu0 0.0
  %1913 = vmatprep.subr.mxu0 0.0
  %1914 = vmatpush1.msra.mxu0 0.0
  %1915 = vmatprep.subr.mxu0 0.0
  %1916 = vmatpush1.msra.mxu0 0.0
  %1917 = vmatprep.subr.mxu0 0.0
  %1918 = vmatpush1.msra.mxu0 0.0
  %1919 = vmatprep.subr.mxu0 0.0
  %1920 = vmatpush1.msra.mxu0 0.0
  %1921 = vmatprep.subr.mxu0 0.0
  %1922 = vmatpush1.msra.mxu0 0.0
  %1923 = vmatprep.subr.mxu0 0.0
  %1924 = vmatpush1.msra.mxu0 0.0
  %1925 = vmatprep.subr.mxu0 0.0
  %1926 = vmatpush1.msra.mxu0 0.0
  %1927 = vmatprep.mubr.f32.mxu0 0.0
  %1928 = vmatmul.mubr.f32.gmra.mrb[0].mxu0 %v1816
  %v1929 = vpop.f32.mrb[0].mxu0
  %v1930 = vadd.f32 0.0, %v1929
  %v1931 = vpop.f32.mrb[0].mxu0
  %1932 = vmatprep.mubr.f32.mxu0 0.0
  %1933 = vmatmul.mubr.f32.gmra.mrb[0].mxu0 %v1819
  %v1934 = vpop.f32.mrb[0].mxu0
  %v1935 = vadd.f32 0.0, %v1934
  %v1936 = vpop.f32.mrb[0].mxu0
  %1937 = vmatprep.mubr.f32.mxu0 0.0
  %1938 = vmatmul.mubr.f32.gmra.mrb[0].mxu0 %v1822
  %v1939 = vpop.f32.mrb[0].mxu0
  %v1940 = vadd.f32 0.0, %v1939
  %v1941 = vpop.f32.mrb[0].mxu0
  %1942 = vmatprep.mubr.f32.mxu0 0.0
  %1943 = vmatmul.mubr.f32.gmra.mrb[0].mxu0 %v1825
  %v1944 = vpop.f32.mrb[0].mxu0
  %v1945 = vadd.f32 0.0, %v1944
  %v1946 = vpop.f32.mrb[0].mxu0
  %1947 = vmatprep.mubr.f32.mxu0 0.0
  %1948 = vmatmul.mubr.f32.gmra.mrb[0].mxu0 %v1828
  %v1949 = vpop.f32.mrb[0].mxu0
  %v1950 = vadd.f32 0.0, %v1949
  %v1951 = vpop.f32.mrb[0].mxu0
  %1952 = vmatprep.mubr.f32.mxu0 0.0
  %1953 = vmatmul.mubr.f32.gmra.mrb[0].mxu0 %v1831
  %v1954 = vpop.f32.mrb[0].mxu0
  %v1955 = vadd.f32 0.0, %v1954
  %v1956 = vpop.f32.mrb[0].mxu0
  %1957 = vmatprep.mubr.f32.mxu0 0.0
  %1958 = vmatmul.mubr.f32.gmra.mrb[0].mxu0 %v1834
  %v1959 = vpop.f32.mrb[0].mxu0
  %v1960 = vadd.f32 0.0, %v1959
  %v1961 = vpop.f32.mrb[0].mxu0
  %1962 = vmatprep.mubr.f32.mxu0 0.0
  %1963 = vmatmul.mubr.f32.gmra.mrb[0].mxu0 %v1837
  %v1964 = vpop.f32.mrb[0].mxu0
  %v1965 = vadd.f32 0.0, %v1964
  %v1966 = vpop.f32.mrb[0].mxu0
  %1967 = vmatprep.mubr.f32.mxu0 0.0
  %1968 = vmatmul.mubr.f32.gmra.mrb[0].mxu0 %v1840
  %v1969 = vpop.f32.mrb[0].mxu0
  %v1970 = vadd.f32 0.0, %v1969
  %v1971 = vpop.f32.mrb[0].mxu0
  %1972 = vmatprep.mubr.f32.mxu0 0.0
  %1973 = vmatmul.mubr.f32.gmra.mrb[0].mxu0 %v1843
  %v1974 = vpop.f32.mrb[0].mxu0
  %v1975 = vadd.f32 0.0, %v1974
  %v1976 = vpop.f32.mrb[0].mxu0
  %1977 = vmatprep.mubr.f32.mxu0 0.0
  %1978 = vmatmul.mubr.f32.gmra.mrb[0].mxu0 %v1846
  %v1979 = vpop.f32.mrb[0].mxu0
  %v1980 = vadd.f32 0.0, %v1979
  %v1981 = vpop.f32.mrb[0].mxu0
  %1982 = vmatprep.mubr.f32.mxu0 0.0
  %1983 = vmatmul.mubr.f32.gmra.mrb[0].mxu0 %v1849
  %v1984 = vpop.f32.mrb[0].mxu0
  %v1985 = vadd.f32 0.0, %v1984
  %v1986 = vpop.f32.mrb[0].mxu0
  %1987 = vmatprep.mubr.f32.mxu0 0.0
  %1988 = vmatmul.mubr.f32.gmra.mrb[0].mxu0 %v1852
  %v1989 = vpop.f32.mrb[0].mxu0
  %v1990 = vadd.f32 0.0, %v1989
  %v1991 = vpop.f32.mrb[0].mxu0
  %1992 = vmatprep.mubr.f32.mxu0 0.0
  %1993 = vmatmul.mubr.f32.gmra.mrb[0].mxu0 %v1855
  %v1994 = vpop.f32.mrb[0].mxu0
  %v1995 = vadd.f32 0.0, %v1994
  %v1996 = vpop.f32.mrb[0].mxu0
  %1997 = vmatprep.mubr.f32.mxu0 0.0
  %1998 = vmatmul.mubr.f32.gmra.mrb[0].mxu0 %v1858
  %v1999 = vpop.f32.mrb[0].mxu0
  %v2000 = vadd.f32 0.0, %v1999
  %v2001 = vpop.f32.mrb[0].mxu0
  %2002 = vmatprep.mubr.f32.mxu0 0.0
  %2003 = vmatmul.mubr.f32.gmra.mrb[0].mxu0 %v1861
  %v2004 = vpop.f32.mrb[0].mxu0
  %v2005 = vadd.f32 0.0, %v2004
  %v2006 = vpop.f32.mrb[0].mxu0
  %2007 = vdwg.mxu0
  %v2009 = vsel %vm26, %v1766, 0
  %v2012 = vsel %vm26, %v1767, 0
  %v2015 = vsel %vm26, %v1768, 0
  %v2018 = vsel %vm26, %v1769, 0
  %v2021 = vsel %vm26, %v1770, 0
  %v2024 = vsel %vm26, %v1771, 0
  %v2027 = vsel %vm26, %v1772, 0
  %v2030 = vsel %vm26, %v1773, 0
  %v2033 = vsel %vm26, %v1774, 0
  %v2036 = vsel %vm26, %v1775, 0
  %v2039 = vsel %vm26, %v1776, 0
  %v2042 = vsel %vm26, %v1777, 0
  %v2045 = vsel %vm26, %v1778, 0
  %v2048 = vsel %vm26, %v1779, 0
  %v2051 = vsel %vm26, %v1780, 0
  %v2054 = vsel %vm26, %v1781, 0
  %2056 = vmatprep.subr.mxu0 0.0
  %2057 = vmatpush1.msra.mxu0 %v1782
  %2058 = vmatprep.subr.mxu0 0.0
  %2059 = vmatpush1.msra.mxu0 %v1783
  %2060 = vmatprep.subr.mxu0 0.0
  %2061 = vmatpush1.msra.mxu0 %v1784
  %2062 = vmatprep.subr.mxu0 0.0
  %2063 = vmatpush1.msra.mxu0 %v1785
  %2064 = vmatprep.subr.mxu0 0.0
  %2065 = vmatpush1.msra.mxu0 %v1786
  %2066 = vmatprep.subr.mxu0 0.0
  %2067 = vmatpush1.msra.mxu0 %v1787
  %2068 = vmatprep.subr.mxu0 0.0
  %2069 = vmatpush1.msra.mxu0 %v1788
  %2070 = vmatprep.subr.mxu0 0.0
  %2071 = vmatpush1.msra.mxu0 %v1789
  %2072 = vmatprep.subr.mxu0 0.0
  %2073 = vmatpush1.msra.mxu0 0.0
  %2074 = vmatprep.subr.mxu0 0.0
  %2075 = vmatpush1.msra.mxu0 0.0
  %2076 = vmatprep.subr.mxu0 0.0
  %2077 = vmatpush1.msra.mxu0 0.0
  %2078 = vmatprep.subr.mxu0 0.0
  %2079 = vmatpush1.msra.mxu0 0.0
  %2080 = vmatprep.subr.mxu0 0.0
  %2081 = vmatpush1.msra.mxu0 0.0
  %2082 = vmatprep.subr.mxu0 0.0
  %2083 = vmatpush1.msra.mxu0 0.0
  %2084 = vmatprep.subr.mxu0 0.0
  %2085 = vmatpush1.msra.mxu0 0.0
  %2086 = vmatprep.subr.mxu0 0.0
  %2087 = vmatpush1.msra.mxu0 0.0
  %2088 = vmatprep.subr.mxu0 0.0
  %2089 = vmatpush1.msra.mxu0 0.0
  %2090 = vmatprep.subr.mxu0 0.0
  %2091 = vmatpush1.msra.mxu0 0.0
  %2092 = vmatprep.subr.mxu0 0.0
  %2093 = vmatpush1.msra.mxu0 0.0
  %2094 = vmatprep.subr.mxu0 0.0
  %2095 = vmatpush1.msra.mxu0 0.0
  %2096 = vmatprep.subr.mxu0 0.0
  %2097 = vmatpush1.msra.mxu0 0.0
  %2098 = vmatprep.subr.mxu0 0.0
  %2099 = vmatpush1.msra.mxu0 0.0
  %2100 = vmatprep.subr.mxu0 0.0
  %2101 = vmatpush1.msra.mxu0 0.0
  %2102 = vmatprep.subr.mxu0 0.0
  %2103 = vmatpush1.msra.mxu0 0.0
  %2104 = vmatprep.subr.mxu0 0.0
  %2105 = vmatpush1.msra.mxu0 0.0
  %2106 = vmatprep.subr.mxu0 0.0
  %2107 = vmatpush1.msra.mxu0 0.0
  %2108 = vmatprep.subr.mxu0 0.0
  %2109 = vmatpush1.msra.mxu0 0.0
  %2110 = vmatprep.subr.mxu0 0.0
  %2111 = vmatpush1.msra.mxu0 0.0
  %2112 = vmatprep.subr.mxu0 0.0
  %2113 = vmatpush1.msra.mxu0 0.0
  %2114 = vmatprep.subr.mxu0 0.0
  %2115 = vmatpush1.msra.mxu0 0.0
  %2116 = vmatprep.subr.mxu0 0.0
  %2117 = vmatpush1.msra.mxu0 0.0
  %2118 = vmatprep.subr.mxu0 0.0
  %2119 = vmatpush1.msra.mxu0 0.0
  %2120 = vmatprep.mubr.f32.mxu0 0.0
  %2121 = vmatmul.mubr.f32.gmra.mrb[0].mxu0 %v2009
  %v2122 = vpop.f32.mrb[0].mxu0
  %v2123 = vadd.f32 %v1930, %v2122
  %v2124 = vpop.f32.mrb[0].mxu0
  %2125 = vmatprep.mubr.f32.mxu0 0.0
  %2126 = vmatmul.mubr.f32.gmra.mrb[0].mxu0 %v2012
  %v2127 = vpop.f32.mrb[0].mxu0
  %v2128 = vadd.f32 %v1935, %v2127
  %v2129 = vpop.f32.mrb[0].mxu0
  %2130 = vmatprep.mubr.f32.mxu0 0.0
  %2131 = vmatmul.mubr.f32.gmra.mrb[0].mxu0 %v2015
  %v2132 = vpop.f32.mrb[0].mxu0
  %v2133 = vadd.f32 %v1940, %v2132
  %v2134 = vpop.f32.mrb[0].mxu0
  %2135 = vmatprep.mubr.f32.mxu0 0.0
  %2136 = vmatmul.mubr.f32.gmra.mrb[0].mxu0 %v2018
  %v2137 = vpop.f32.mrb[0].mxu0
  %v2138 = vadd.f32 %v1945, %v2137
  %v2139 = vpop.f32.mrb[0].mxu0
  %2140 = vmatprep.mubr.f32.mxu0 0.0
  %2141 = vmatmul.mubr.f32.gmra.mrb[0].mxu0 %v2021
  %v2142 = vpop.f32.mrb[0].mxu0
  %v2143 = vadd.f32 %v1950, %v2142
  %v2144 = vpop.f32.mrb[0].mxu0
  %2145 = vmatprep.mubr.f32.mxu0 0.0
  %2146 = vmatmul.mubr.f32.gmra.mrb[0].mxu0 %v2024
  %v2147 = vpop.f32.mrb[0].mxu0
  %v2148 = vadd.f32 %v1955, %v2147
  %v2149 = vpop.f32.mrb[0].mxu0
  %2150 = vmatprep.mubr.f32.mxu0 0.0
  %2151 = vmatmul.mubr.f32.gmra.mrb[0].mxu0 %v2027
  %v2152 = vpop.f32.mrb[0].mxu0
  %v2153 = vadd.f32 %v1960, %v2152
  %v2154 = vpop.f32.mrb[0].mxu0
  %2155 = vmatprep.mubr.f32.mxu0 0.0
  %2156 = vmatmul.mubr.f32.gmra.mrb[0].mxu0 %v2030
  %v2157 = vpop.f32.mrb[0].mxu0
  %v2158 = vadd.f32 %v1965, %v2157
  %v2159 = vpop.f32.mrb[0].mxu0
  %2160 = vmatprep.mubr.f32.mxu0 0.0
  %2161 = vmatmul.mubr.f32.gmra.mrb[0].mxu0 %v2033
  %v2162 = vpop.f32.mrb[0].mxu0
  %v2163 = vadd.f32 %v1970, %v2162
  %v2164 = vpop.f32.mrb[0].mxu0
  %2165 = vmatprep.mubr.f32.mxu0 0.0
  %2166 = vmatmul.mubr.f32.gmra.mrb[0].mxu0 %v2036
  %v2167 = vpop.f32.mrb[0].mxu0
  %v2168 = vadd.f32 %v1975, %v2167
  %v2169 = vpop.f32.mrb[0].mxu0
  %2170 = vmatprep.mubr.f32.mxu0 0.0
  %2171 = vmatmul.mubr.f32.gmra.mrb[0].mxu0 %v2039
  %v2172 = vpop.f32.mrb[0].mxu0
  %v2173 = vadd.f32 %v1980, %v2172
  %v2174 = vpop.f32.mrb[0].mxu0
  %2175 = vmatprep.mubr.f32.mxu0 0.0
  %2176 = vmatmul.mubr.f32.gmra.mrb[0].mxu0 %v2042
  %v2177 = vpop.f32.mrb[0].mxu0
  %v2178 = vadd.f32 %v1985, %v2177
  %v2179 = vpop.f32.mrb[0].mxu0
  %2180 = vmatprep.mubr.f32.mxu0 0.0
  %2181 = vmatmul.mubr.f32.gmra.mrb[0].mxu0 %v2045
  %v2182 = vpop.f32.mrb[0].mxu0
  %v2183 = vadd.f32 %v1990, %v2182
  %v2184 = vpop.f32.mrb[0].mxu0
  %2185 = vmatprep.mubr.f32.mxu0 0.0
  %2186 = vmatmul.mubr.f32.gmra.mrb[0].mxu0 %v2048
  %v2187 = vpop.f32.mrb[0].mxu0
  %v2188 = vadd.f32 %v1995, %v2187
  %v2189 = vpop.f32.mrb[0].mxu0
  %2190 = vmatprep.mubr.f32.mxu0 0.0
  %2191 = vmatmul.mubr.f32.gmra.mrb[0].mxu0 %v2051
  %v2192 = vpop.f32.mrb[0].mxu0
  %v2193 = vadd.f32 %v2000, %v2192
  %v2194 = vpop.f32.mrb[0].mxu0
  %2195 = vmatprep.mubr.f32.mxu0 0.0
  %2196 = vmatmul.mubr.f32.gmra.mrb[0].mxu0 %v2054
  %v2197 = vpop.f32.mrb[0].mxu0
  %v2198 = vadd.f32 %v2005, %v2197
  %v2199 = vpop.f32.mrb[0].mxu0
  %2200 = vdwg.mxu0
  %v2201 = vld [vmem:[#allocation3 + $0x4] sm:$0xff]
  %v2202 = vld [vmem:[#allocation3 + $0xc] sm:$0xff]
  %v2203 = vld [vmem:[#allocation3 + $0x14] sm:$0xff]
  %v2204 = vld [vmem:[#allocation3 + $0x1c] sm:$0xff]
  %v2205 = vld [vmem:[#allocation3 + $0x24] sm:$0xff]
  %v2206 = vld [vmem:[#allocation3 + $0x2c] sm:$0xff]
  %v2207 = vld [vmem:[#allocation3 + $0x34] sm:$0xff]
  %v2208 = vld [vmem:[#allocation3 + $0x3c] sm:$0xff]
  %v2209 = vld [vmem:[#allocation3 + $0x44] sm:$0xff]
  %v2210 = vld [vmem:[#allocation3 + $0x4c] sm:$0xff]
  %v2211 = vld [vmem:[#allocation3 + $0x54] sm:$0xff]
  %v2212 = vld [vmem:[#allocation3 + $0x5c] sm:$0xff]
  %v2213 = vld [vmem:[#allocation3 + $0x64] sm:$0xff]
  %v2214 = vld [vmem:[#allocation3 + $0x6c] sm:$0xff]
  %v2215 = vld [vmem:[#allocation3 + $0x74] sm:$0xff]
  %v2216 = vld [vmem:[#allocation3 + $0x7c] sm:$0x3f]
  %s2217 = scalar_lea.vmem %s3, 128
  %v2218 = vld [vmem:[%s2217] sm:$0xff]
  %v2219 = vld [vmem:[%s2217 + $0x8] sm:$0xff]
  %v2220 = vld [vmem:[%s2217 + $0x10] sm:$0xff]
  %v2221 = vld [vmem:[%s2217 + $0x18] sm:$0xff]
  %v2222 = vld [vmem:[%s2217 + $0x20] sm:$0xff]
  %v2223 = vld [vmem:[%s2217 + $0x28] sm:$0xff]
  %v2224 = vld [vmem:[%s2217 + $0x30] sm:$0xff]
  %v2225 = vld [vmem:[%s2217 + $0x38] sm:$0xff]
  %v2227 = vsel %vm26, %v2201, 0
  %v2230 = vsel %vm26, %v2202, 0
  %v2233 = vsel %vm26, %v2203, 0
  %v2236 = vsel %vm26, %v2204, 0
  %v2239 = vsel %vm26, %v2205, 0
  %v2242 = vsel %vm26, %v2206, 0
  %v2245 = vsel %vm26, %v2207, 0
  %v2248 = vsel %vm26, %v2208, 0
  %v2251 = vsel %vm26, %v2209, 0
  %v2254 = vsel %vm26, %v2210, 0
  %v2257 = vsel %vm26, %v2211, 0
  %v2260 = vsel %vm26, %v2212, 0
  %v2263 = vsel %vm26, %v2213, 0
  %v2266 = vsel %vm26, %v2214, 0
  %v2269 = vsel %vm26, %v2215, 0
  %v2272 = vsel %vm26, %v2216, 0
  %2274 = vmatprep.subr.mxu0 0.0
  %2275 = vmatpush1.msra.mxu0 %v2218
  %2276 = vmatprep.subr.mxu0 0.0
  %2277 = vmatpush1.msra.mxu0 %v2219
  %2278 = vmatprep.subr.mxu0 0.0
  %2279 = vmatpush1.msra.mxu0 %v2220
  %2280 = vmatprep.subr.mxu0 0.0
  %2281 = vmatpush1.msra.mxu0 %v2221
  %2282 = vmatprep.subr.mxu0 0.0
  %2283 = vmatpush1.msra.mxu0 %v2222
  %2284 = vmatprep.subr.mxu0 0.0
  %2285 = vmatpush1.msra.mxu0 %v2223
  %2286 = vmatprep.subr.mxu0 0.0
  %2287 = vmatpush1.msra.mxu0 %v2224
  %2288 = vmatprep.subr.mxu0 0.0
  %2289 = vmatpush1.msra.mxu0 %v2225
  %2290 = vmatprep.subr.mxu0 0.0
  %2291 = vmatpush1.msra.mxu0 0.0
  %2292 = vmatprep.subr.mxu0 0.0
  %2293 = vmatpush1.msra.mxu0 0.0
  %2294 = vmatprep.subr.mxu0 0.0
  %2295 = vmatpush1.msra.mxu0 0.0
  %2296 = vmatprep.subr.mxu0 0.0
  %2297 = vmatpush1.msra.mxu0 0.0
  %2298 = vmatprep.subr.mxu0 0.0
  %2299 = vmatpush1.msra.mxu0 0.0
  %2300 = vmatprep.subr.mxu0 0.0
  %2301 = vmatpush1.msra.mxu0 0.0
  %2302 = vmatprep.subr.mxu0 0.0
  %2303 = vmatpush1.msra.mxu0 0.0
  %2304 = vmatprep.subr.mxu0 0.0
  %2305 = vmatpush1.msra.mxu0 0.0
  %2306 = vmatprep.subr.mxu0 0.0
  %2307 = vmatpush1.msra.mxu0 0.0
  %2308 = vmatprep.subr.mxu0 0.0
  %2309 = vmatpush1.msra.mxu0 0.0
  %2310 = vmatprep.subr.mxu0 0.0
  %2311 = vmatpush1.msra.mxu0 0.0
  %2312 = vmatprep.subr.mxu0 0.0
  %2313 = vmatpush1.msra.mxu0 0.0
  %2314 = vmatprep.subr.mxu0 0.0
  %2315 = vmatpush1.msra.mxu0 0.0
  %2316 = vmatprep.subr.mxu0 0.0
  %2317 = vmatpush1.msra.mxu0 0.0
  %2318 = vmatprep.subr.mxu0 0.0
  %2319 = vmatpush1.msra.mxu0 0.0
  %2320 = vmatprep.subr.mxu0 0.0
  %2321 = vmatpush1.msra.mxu0 0.0
  %2322 = vmatprep.subr.mxu0 0.0
  %2323 = vmatpush1.msra.mxu0 0.0
  %2324 = vmatprep.subr.mxu0 0.0
  %2325 = vmatpush1.msra.mxu0 0.0
  %2326 = vmatprep.subr.mxu0 0.0
  %2327 = vmatpush1.msra.mxu0 0.0
  %2328 = vmatprep.subr.mxu0 0.0
  %2329 = vmatpush1.msra.mxu0 0.0
  %2330 = vmatprep.subr.mxu0 0.0
  %2331 = vmatpush1.msra.mxu0 0.0
  %2332 = vmatprep.subr.mxu0 0.0
  %2333 = vmatpush1.msra.mxu0 0.0
  %2334 = vmatprep.subr.mxu0 0.0
  %2335 = vmatpush1.msra.mxu0 0.0
  %2336 = vmatprep.subr.mxu0 0.0
  %2337 = vmatpush1.msra.mxu0 0.0
  %2338 = vmatprep.mubr.f32.mxu0 0.0
  %2339 = vmatmul.mubr.f32.gmra.mrb[0].mxu0 %v2227
  %v2340 = vpop.f32.mrb[0].mxu0
  %v2341 = vadd.f32 0.0, %v2340
  %v2342 = vpop.f32.mrb[0].mxu0
  %2343 = vmatprep.mubr.f32.mxu0 0.0
  %2344 = vmatmul.mubr.f32.gmra.mrb[0].mxu0 %v2230
  %v2345 = vpop.f32.mrb[0].mxu0
  %v2346 = vadd.f32 0.0, %v2345
  %v2347 = vpop.f32.mrb[0].mxu0
  %2348 = vmatprep.mubr.f32.mxu0 0.0
  %2349 = vmatmul.mubr.f32.gmra.mrb[0].mxu0 %v2233
  %v2350 = vpop.f32.mrb[0].mxu0
  %v2351 = vadd.f32 0.0, %v2350
  %v2352 = vpop.f32.mrb[0].mxu0
  %2353 = vmatprep.mubr.f32.mxu0 0.0
  %2354 = vmatmul.mubr.f32.gmra.mrb[0].mxu0 %v2236
  %v2355 = vpop.f32.mrb[0].mxu0
  %v2356 = vadd.f32 0.0, %v2355
  %v2357 = vpop.f32.mrb[0].mxu0
  %2358 = vmatprep.mubr.f32.mxu0 0.0
  %2359 = vmatmul.mubr.f32.gmra.mrb[0].mxu0 %v2239
  %v2360 = vpop.f32.mrb[0].mxu0
  %v2361 = vadd.f32 0.0, %v2360
  %v2362 = vpop.f32.mrb[0].mxu0
  %2363 = vmatprep.mubr.f32.mxu0 0.0
  %2364 = vmatmul.mubr.f32.gmra.mrb[0].mxu0 %v2242
  %v2365 = vpop.f32.mrb[0].mxu0
  %v2366 = vadd.f32 0.0, %v2365
  %v2367 = vpop.f32.mrb[0].mxu0
  %2368 = vmatprep.mubr.f32.mxu0 0.0
  %2369 = vmatmul.mubr.f32.gmra.mrb[0].mxu0 %v2245
  %v2370 = vpop.f32.mrb[0].mxu0
  %v2371 = vadd.f32 0.0, %v2370
  %v2372 = vpop.f32.mrb[0].mxu0
  %2373 = vmatprep.mubr.f32.mxu0 0.0
  %2374 = vmatmul.mubr.f32.gmra.mrb[0].mxu0 %v2248
  %v2375 = vpop.f32.mrb[0].mxu0
  %v2376 = vadd.f32 0.0, %v2375
  %v2377 = vpop.f32.mrb[0].mxu0
  %2378 = vmatprep.mubr.f32.mxu0 0.0
  %2379 = vmatmul.mubr.f32.gmra.mrb[0].mxu0 %v2251
  %v2380 = vpop.f32.mrb[0].mxu0
  %v2381 = vadd.f32 0.0, %v2380
  %v2382 = vpop.f32.mrb[0].mxu0
  %2383 = vmatprep.mubr.f32.mxu0 0.0
  %2384 = vmatmul.mubr.f32.gmra.mrb[0].mxu0 %v2254
  %v2385 = vpop.f32.mrb[0].mxu0
  %v2386 = vadd.f32 0.0, %v2385
  %v2387 = vpop.f32.mrb[0].mxu0
  %2388 = vmatprep.mubr.f32.mxu0 0.0
  %2389 = vmatmul.mubr.f32.gmra.mrb[0].mxu0 %v2257
  %v2390 = vpop.f32.mrb[0].mxu0
  %v2391 = vadd.f32 0.0, %v2390
  %v2392 = vpop.f32.mrb[0].mxu0
  %2393 = vmatprep.mubr.f32.mxu0 0.0
  %2394 = vmatmul.mubr.f32.gmra.mrb[0].mxu0 %v2260
  %v2395 = vpop.f32.mrb[0].mxu0
  %v2396 = vadd.f32 0.0, %v2395
  %v2397 = vpop.f32.mrb[0].mxu0
  %2398 = vmatprep.mubr.f32.mxu0 0.0
  %2399 = vmatmul.mubr.f32.gmra.mrb[0].mxu0 %v2263
  %v2400 = vpop.f32.mrb[0].mxu0
  %v2401 = vadd.f32 0.0, %v2400
  %v2402 = vpop.f32.mrb[0].mxu0
  %2403 = vmatprep.mubr.f32.mxu0 0.0
  %2404 = vmatmul.mubr.f32.gmra.mrb[0].mxu0 %v2266
  %v2405 = vpop.f32.mrb[0].mxu0
  %v2406 = vadd.f32 0.0, %v2405
  %v2407 = vpop.f32.mrb[0].mxu0
  %2408 = vmatprep.mubr.f32.mxu0 0.0
  %2409 = vmatmul.mubr.f32.gmra.mrb[0].mxu0 %v2269
  %v2410 = vpop.f32.mrb[0].mxu0
  %v2411 = vadd.f32 0.0, %v2410
  %v2412 = vpop.f32.mrb[0].mxu0
  %2413 = vmatprep.mubr.f32.mxu0 0.0
  %2414 = vmatmul.mubr.f32.gmra.mrb[0].mxu0 %v2272
  %v2415 = vpop.f32.mrb[0].mxu0
  %v2416 = vadd.f32 0.0, %v2415
  %v2417 = vpop.f32.mrb[0].mxu0
  %2418 = vdwg.mxu0
  %v2419 = vadd.f32 %v2123, %v2341
  %v2420 = vadd.f32 %v2128, %v2346
  %v2421 = vadd.f32 %v2133, %v2351
  %v2422 = vadd.f32 %v2138, %v2356
  %v2423 = vadd.f32 %v2143, %v2361
  %v2424 = vadd.f32 %v2148, %v2366
  %v2425 = vadd.f32 %v2153, %v2371
  %v2426 = vadd.f32 %v2158, %v2376
  %v2427 = vadd.f32 %v2163, %v2381
  %v2428 = vadd.f32 %v2168, %v2386
  %v2429 = vadd.f32 %v2173, %v2391
  %v2430 = vadd.f32 %v2178, %v2396
  %v2431 = vadd.f32 %v2183, %v2401
  %v2432 = vadd.f32 %v2188, %v2406
  %v2433 = vadd.f32 %v2193, %v2411
  %v2434 = vadd.f32 %v2198, %v2416
  %v2435 = vld [vmem:[#allocation3 + $0x12] sm:$0xff]
  %v2436 = vld [vmem:[#allocation3 + $0x1a] sm:$0xff]
  %v2437 = vld [vmem:[#allocation3 + $0x22] sm:$0xff]
  %v2438 = vld [vmem:[#allocation3 + $0x2a] sm:$0xff]
  %v2439 = vld [vmem:[#allocation3 + $0x32] sm:$0xff]
  %v2440 = vld [vmem:[#allocation3 + $0x3a] sm:$0xff]
  %v2441 = vld [vmem:[#allocation3 + $0x42] sm:$0xff]
  %v2442 = vld [vmem:[#allocation3 + $0x4a] sm:$0xff]
  %v2443 = vld [vmem:[#allocation3 + $0x52] sm:$0xff]
  %v2444 = vld [vmem:[#allocation3 + $0x5a] sm:$0xff]
  %v2445 = vld [vmem:[#allocation3 + $0x62] sm:$0xff]
  %v2446 = vld [vmem:[#allocation3 + $0x6a] sm:$0xff]
  %v2447 = vld [vmem:[#allocation3 + $0x72] sm:$0xff]
  %v2448 = vld [vmem:[#allocation3 + $0x7a] sm:$0xff]
  %v2449 = vld [vmem:[#allocation3 + $0x82] sm:$0xff]
  %v2450 = vld [vmem:[#allocation3 + $0x8a] sm:$0x3f]
  %s2451 = scalar_lea.vmem %s3, 192
  %v2452 = vld [vmem:[%s2451] sm:$0xff]
  %v2453 = vld [vmem:[%s2451 + $0x8] sm:$0xff]
  %v2454 = vld [vmem:[%s2451 + $0x10] sm:$0xff]
  %v2455 = vld [vmem:[%s2451 + $0x18] sm:$0xff]
  %v2456 = vld [vmem:[%s2451 + $0x20] sm:$0xff]
  %v2457 = vld [vmem:[%s2451 + $0x28] sm:$0xff]
  %v2458 = vld [vmem:[%s2451 + $0x30] sm:$0xff]
  %v2459 = vld [vmem:[%s2451 + $0x38] sm:$0xff]
  %v2461 = vsel %vm26, %v2435, 0
  %v2464 = vsel %vm26, %v2436, 0
  %v2467 = vsel %vm26, %v2437, 0
  %v2470 = vsel %vm26, %v2438, 0
  %v2473 = vsel %vm26, %v2439, 0
  %v2476 = vsel %vm26, %v2440, 0
  %v2479 = vsel %vm26, %v2441, 0
  %v2482 = vsel %vm26, %v2442, 0
  %v2485 = vsel %vm26, %v2443, 0
  %v2488 = vsel %vm26, %v2444, 0
  %v2491 = vsel %vm26, %v2445, 0
  %v2494 = vsel %vm26, %v2446, 0
  %v2497 = vsel %vm26, %v2447, 0
  %v2500 = vsel %vm26, %v2448, 0
  %v2503 = vsel %vm26, %v2449, 0
  %v2506 = vsel %vm26, %v2450, 0
  %2508 = vmatprep.subr.mxu0 0.0
  %2509 = vmatpush1.msra.mxu0 %v2452
  %2510 = vmatprep.subr.mxu0 0.0
  %2511 = vmatpush1.msra.mxu0 %v2453
  %2512 = vmatprep.subr.mxu0 0.0
  %2513 = vmatpush1.msra.mxu0 %v2454
  %2514 = vmatprep.subr.mxu0 0.0
  %2515 = vmatpush1.msra.mxu0 %v2455
  %2516 = vmatprep.subr.mxu0 0.0
  %2517 = vmatpush1.msra.mxu0 %v2456
  %2518 = vmatprep.subr.mxu0 0.0
  %2519 = vmatpush1.msra.mxu0 %v2457
  %2520 = vmatprep.subr.mxu0 0.0
  %2521 = vmatpush1.msra.mxu0 %v2458
  %2522 = vmatprep.subr.mxu0 0.0
  %2523 = vmatpush1.msra.mxu0 %v2459
  %2524 = vmatprep.subr.mxu0 0.0
  %2525 = vmatpush1.msra.mxu0 0.0
  %2526 = vmatprep.subr.mxu0 0.0
  %2527 = vmatpush1.msra.mxu0 0.0
  %2528 = vmatprep.subr.mxu0 0.0
  %2529 = vmatpush1.msra.mxu0 0.0
  %2530 = vmatprep.subr.mxu0 0.0
  %2531 = vmatpush1.msra.mxu0 0.0
  %2532 = vmatprep.subr.mxu0 0.0
  %2533 = vmatpush1.msra.mxu0 0.0
  %2534 = vmatprep.subr.mxu0 0.0
  %2535 = vmatpush1.msra.mxu0 0.0
  %2536 = vmatprep.subr.mxu0 0.0
  %2537 = vmatpush1.msra.mxu0 0.0
  %2538 = vmatprep.subr.mxu0 0.0
  %2539 = vmatpush1.msra.mxu0 0.0
  %2540 = vmatprep.subr.mxu0 0.0
  %2541 = vmatpush1.msra.mxu0 0.0
  %2542 = vmatprep.subr.mxu0 0.0
  %2543 = vmatpush1.msra.mxu0 0.0
  %2544 = vmatprep.subr.mxu0 0.0
  %2545 = vmatpush1.msra.mxu0 0.0
  %2546 = vmatprep.subr.mxu0 0.0
  %2547 = vmatpush1.msra.mxu0 0.0
  %2548 = vmatprep.subr.mxu0 0.0
  %2549 = vmatpush1.msra.mxu0 0.0
  %2550 = vmatprep.subr.mxu0 0.0
  %2551 = vmatpush1.msra.mxu0 0.0
  %2552 = vmatprep.subr.mxu0 0.0
  %2553 = vmatpush1.msra.mxu0 0.0
  %2554 = vmatprep.subr.mxu0 0.0
  %2555 = vmatpush1.msra.mxu0 0.0
  %2556 = vmatprep.subr.mxu0 0.0
  %2557 = vmatpush1.msra.mxu0 0.0
  %2558 = vmatprep.subr.mxu0 0.0
  %2559 = vmatpush1.msra.mxu0 0.0
  %2560 = vmatprep.subr.mxu0 0.0
  %2561 = vmatpush1.msra.mxu0 0.0
  %2562 = vmatprep.subr.mxu0 0.0
  %2563 = vmatpush1.msra.mxu0 0.0
  %2564 = vmatprep.subr.mxu0 0.0
  %2565 = vmatpush1.msra.mxu0 0.0
  %2566 = vmatprep.subr.mxu0 0.0
  %2567 = vmatpush1.msra.mxu0 0.0
  %2568 = vmatprep.subr.mxu0 0.0
  %2569 = vmatpush1.msra.mxu0 0.0
  %2570 = vmatprep.subr.mxu0 0.0
  %2571 = vmatpush1.msra.mxu0 0.0
  %2572 = vmatprep.mubr.f32.mxu0 0.0
  %2573 = vmatmul.mubr.f32.gmra.mrb[0].mxu0 %v2461
  %v2574 = vpop.f32.mrb[0].mxu0
  %v2575 = vadd.f32 0.0, %v2574
  %v2576 = vpop.f32.mrb[0].mxu0
  %2577 = vmatprep.mubr.f32.mxu0 0.0
  %2578 = vmatmul.mubr.f32.gmra.mrb[0].mxu0 %v2464
  %v2579 = vpop.f32.mrb[0].mxu0
  %v2580 = vadd.f32 0.0, %v2579
  %v2581 = vpop.f32.mrb[0].mxu0
  %2582 = vmatprep.mubr.f32.mxu0 0.0
  %2583 = vmatmul.mubr.f32.gmra.mrb[0].mxu0 %v2467
  %v2584 = vpop.f32.mrb[0].mxu0
  %v2585 = vadd.f32 0.0, %v2584
  %v2586 = vpop.f32.mrb[0].mxu0
  %2587 = vmatprep.mubr.f32.mxu0 0.0
  %2588 = vmatmul.mubr.f32.gmra.mrb[0].mxu0 %v2470
  %v2589 = vpop.f32.mrb[0].mxu0
  %v2590 = vadd.f32 0.0, %v2589
  %v2591 = vpop.f32.mrb[0].mxu0
  %2592 = vmatprep.mubr.f32.mxu0 0.0
  %2593 = vmatmul.mubr.f32.gmra.mrb[0].mxu0 %v2473
  %v2594 = vpop.f32.mrb[0].mxu0
  %v2595 = vadd.f32 0.0, %v2594
  %v2596 = vpop.f32.mrb[0].mxu0
  %2597 = vmatprep.mubr.f32.mxu0 0.0
  %2598 = vmatmul.mubr.f32.gmra.mrb[0].mxu0 %v2476
  %v2599 = vpop.f32.mrb[0].mxu0
  %v2600 = vadd.f32 0.0, %v2599
  %v2601 = vpop.f32.mrb[0].mxu0
  %2602 = vmatprep.mubr.f32.mxu0 0.0
  %2603 = vmatmul.mubr.f32.gmra.mrb[0].mxu0 %v2479
  %v2604 = vpop.f32.mrb[0].mxu0
  %v2605 = vadd.f32 0.0, %v2604
  %v2606 = vpop.f32.mrb[0].mxu0
  %2607 = vmatprep.mubr.f32.mxu0 0.0
  %2608 = vmatmul.mubr.f32.gmra.mrb[0].mxu0 %v2482
  %v2609 = vpop.f32.mrb[0].mxu0
  %v2610 = vadd.f32 0.0, %v2609
  %v2611 = vpop.f32.mrb[0].mxu0
  %2612 = vmatprep.mubr.f32.mxu0 0.0
  %2613 = vmatmul.mubr.f32.gmra.mrb[0].mxu0 %v2485
  %v2614 = vpop.f32.mrb[0].mxu0
  %v2615 = vadd.f32 0.0, %v2614
  %v2616 = vpop.f32.mrb[0].mxu0
  %2617 = vmatprep.mubr.f32.mxu0 0.0
  %2618 = vmatmul.mubr.f32.gmra.mrb[0].mxu0 %v2488
  %v2619 = vpop.f32.mrb[0].mxu0
  %v2620 = vadd.f32 0.0, %v2619
  %v2621 = vpop.f32.mrb[0].mxu0
  %2622 = vmatprep.mubr.f32.mxu0 0.0
  %2623 = vmatmul.mubr.f32.gmra.mrb[0].mxu0 %v2491
  %v2624 = vpop.f32.mrb[0].mxu0
  %v2625 = vadd.f32 0.0, %v2624
  %v2626 = vpop.f32.mrb[0].mxu0
  %2627 = vmatprep.mubr.f32.mxu0 0.0
  %2628 = vmatmul.mubr.f32.gmra.mrb[0].mxu0 %v2494
  %v2629 = vpop.f32.mrb[0].mxu0
  %v2630 = vadd.f32 0.0, %v2629
  %v2631 = vpop.f32.mrb[0].mxu0
  %2632 = vmatprep.mubr.f32.mxu0 0.0
  %2633 = vmatmul.mubr.f32.gmra.mrb[0].mxu0 %v2497
  %v2634 = vpop.f32.mrb[0].mxu0
  %v2635 = vadd.f32 0.0, %v2634
  %v2636 = vpop.f32.mrb[0].mxu0
  %2637 = vmatprep.mubr.f32.mxu0 0.0
  %2638 = vmatmul.mubr.f32.gmra.mrb[0].mxu0 %v2500
  %v2639 = vpop.f32.mrb[0].mxu0
  %v2640 = vadd.f32 0.0, %v2639
  %v2641 = vpop.f32.mrb[0].mxu0
  %2642 = vmatprep.mubr.f32.mxu0 0.0
  %2643 = vmatmul.mubr.f32.gmra.mrb[0].mxu0 %v2503
  %v2644 = vpop.f32.mrb[0].mxu0
  %v2645 = vadd.f32 0.0, %v2644
  %v2646 = vpop.f32.mrb[0].mxu0
  %2647 = vmatprep.mubr.f32.mxu0 0.0
  %2648 = vmatmul.mubr.f32.gmra.mrb[0].mxu0 %v2506
  %v2649 = vpop.f32.mrb[0].mxu0
  %v2650 = vadd.f32 0.0, %v2649
  %v2651 = vpop.f32.mrb[0].mxu0
  %2652 = vdwg.mxu0
  %v2653 = vadd.f32 %v2419, %v2575
  %v2654 = vadd.f32 %v2420, %v2580
  %v2655 = vadd.f32 %v2421, %v2585
  %v2656 = vadd.f32 %v2422, %v2590
  %v2657 = vadd.f32 %v2423, %v2595
  %v2658 = vadd.f32 %v2424, %v2600
  %v2659 = vadd.f32 %v2425, %v2605
  %v2660 = vadd.f32 %v2426, %v2610
  %v2661 = vadd.f32 %v2427, %v2615
  %v2662 = vadd.f32 %v2428, %v2620
  %v2663 = vadd.f32 %v2429, %v2625
  %v2664 = vadd.f32 %v2430, %v2630
  %v2665 = vadd.f32 %v2431, %v2635
  %v2666 = vadd.f32 %v2432, %v2640
  %v2667 = vadd.f32 %v2433, %v2645
  %v2668 = vadd.f32 %v2434, %v2650
  %v2669 = vld [vmem:[#allocation3 + $0x14] sm:$0xff]
  %v2670 = vld [vmem:[#allocation3 + $0x1c] sm:$0xff]
  %v2671 = vld [vmem:[#allocation3 + $0x24] sm:$0xff]
  %v2672 = vld [vmem:[#allocation3 + $0x2c] sm:$0xff]
  %v2673 = vld [vmem:[#allocation3 + $0x34] sm:$0xff]
  %v2674 = vld [vmem:[#allocation3 + $0x3c] sm:$0xff]
  %v2675 = vld [vmem:[#allocation3 + $0x44] sm:$0xff]
  %v2676 = vld [vmem:[#allocation3 + $0x4c] sm:$0xff]
  %v2677 = vld [vmem:[#allocation3 + $0x54] sm:$0xff]
  %v2678 = vld [vmem:[#allocation3 + $0x5c] sm:$0xff]
  %v2679 = vld [vmem:[#allocation3 + $0x64] sm:$0xff]
  %v2680 = vld [vmem:[#allocation3 + $0x6c] sm:$0xff]
  %v2681 = vld [vmem:[#allocation3 + $0x74] sm:$0xff]
  %v2682 = vld [vmem:[#allocation3 + $0x7c] sm:$0xff]
  %v2683 = vld [vmem:[#allocation3 + $0x84] sm:$0xff]
  %v2684 = vld [vmem:[#allocation3 + $0x8c] sm:$0x3f]
  %s2685 = scalar_lea.vmem %s3, 256
  %v2686 = vld [vmem:[%s2685] sm:$0xff]
  %v2687 = vld [vmem:[%s2685 + $0x8] sm:$0xff]
  %v2688 = vld [vmem:[%s2685 + $0x10] sm:$0xff]
  %v2689 = vld [vmem:[%s2685 + $0x18] sm:$0xff]
  %v2690 = vld [vmem:[%s2685 + $0x20] sm:$0xff]
  %v2691 = vld [vmem:[%s2685 + $0x28] sm:$0xff]
  %v2692 = vld [vmem:[%s2685 + $0x30] sm:$0xff]
  %v2693 = vld [vmem:[%s2685 + $0x38] sm:$0xff]
  %v2695 = vsel %vm26, %v2669, 0
  %v2698 = vsel %vm26, %v2670, 0
  %v2701 = vsel %vm26, %v2671, 0
  %v2704 = vsel %vm26, %v2672, 0
  %v2707 = vsel %vm26, %v2673, 0
  %v2710 = vsel %vm26, %v2674, 0
  %v2713 = vsel %vm26, %v2675, 0
  %v2716 = vsel %vm26, %v2676, 0
  %v2719 = vsel %vm26, %v2677, 0
  %v2722 = vsel %vm26, %v2678, 0
  %v2725 = vsel %vm26, %v2679, 0
  %v2728 = vsel %vm26, %v2680, 0
  %v2731 = vsel %vm26, %v2681, 0
  %v2734 = vsel %vm26, %v2682, 0
  %v2737 = vsel %vm26, %v2683, 0
  %v2740 = vsel %vm26, %v2684, 0
  %2742 = vmatprep.subr.mxu0 0.0
  %2743 = vmatpush1.msra.mxu0 %v2686
  %2744 = vmatprep.subr.mxu0 0.0
  %2745 = vmatpush1.msra.mxu0 %v2687
  %2746 = vmatprep.subr.mxu0 0.0
  %2747 = vmatpush1.msra.mxu0 %v2688
  %2748 = vmatprep.subr.mxu0 0.0
  %2749 = vmatpush1.msra.mxu0 %v2689
  %2750 = vmatprep.subr.mxu0 0.0
  %2751 = vmatpush1.msra.mxu0 %v2690
  %2752 = vmatprep.subr.mxu0 0.0
  %2753 = vmatpush1.msra.mxu0 %v2691
  %2754 = vmatprep.subr.mxu0 0.0
  %2755 = vmatpush1.msra.mxu0 %v2692
  %2756 = vmatprep.subr.mxu0 0.0
  %2757 = vmatpush1.msra.mxu0 %v2693
  %2758 = vmatprep.subr.mxu0 0.0
  %2759 = vmatpush1.msra.mxu0 0.0
  %2760 = vmatprep.subr.mxu0 0.0
  %2761 = vmatpush1.msra.mxu0 0.0
  %2762 = vmatprep.subr.mxu0 0.0
  %2763 = vmatpush1.msra.mxu0 0.0
  %2764 = vmatprep.subr.mxu0 0.0
  %2765 = vmatpush1.msra.mxu0 0.0
  %2766 = vmatprep.subr.mxu0 0.0
  %2767 = vmatpush1.msra.mxu0 0.0
  %2768 = vmatprep.subr.mxu0 0.0
  %2769 = vmatpush1.msra.mxu0 0.0
  %2770 = vmatprep.subr.mxu0 0.0
  %2771 = vmatpush1.msra.mxu0 0.0
  %2772 = vmatprep.subr.mxu0 0.0
  %2773 = vmatpush1.msra.mxu0 0.0
  %2774 = vmatprep.subr.mxu0 0.0
  %2775 = vmatpush1.msra.mxu0 0.0
  %2776 = vmatprep.subr.mxu0 0.0
  %2777 = vmatpush1.msra.mxu0 0.0
  %2778 = vmatprep.subr.mxu0 0.0
  %2779 = vmatpush1.msra.mxu0 0.0
  %2780 = vmatprep.subr.mxu0 0.0
  %2781 = vmatpush1.msra.mxu0 0.0
  %2782 = vmatprep.subr.mxu0 0.0
  %2783 = vmatpush1.msra.mxu0 0.0
  %2784 = vmatprep.subr.mxu0 0.0
  %2785 = vmatpush1.msra.mxu0 0.0
  %2786 = vmatprep.subr.mxu0 0.0
  %2787 = vmatpush1.msra.mxu0 0.0
  %2788 = vmatprep.subr.mxu0 0.0
  %2789 = vmatpush1.msra.mxu0 0.0
  %2790 = vmatprep.subr.mxu0 0.0
  %2791 = vmatpush1.msra.mxu0 0.0
  %2792 = vmatprep.subr.mxu0 0.0
  %2793 = vmatpush1.msra.mxu0 0.0
  %2794 = vmatprep.subr.mxu0 0.0
  %2795 = vmatpush1.msra.mxu0 0.0
  %2796 = vmatprep.subr.mxu0 0.0
  %2797 = vmatpush1.msra.mxu0 0.0
  %2798 = vmatprep.subr.mxu0 0.0
  %2799 = vmatpush1.msra.mxu0 0.0
  %2800 = vmatprep.subr.mxu0 0.0
  %2801 = vmatpush1.msra.mxu0 0.0
  %2802 = vmatprep.subr.mxu0 0.0
  %2803 = vmatpush1.msra.mxu0 0.0
  %2804 = vmatprep.subr.mxu0 0.0
  %2805 = vmatpush1.msra.mxu0 0.0
  %2806 = vmatprep.mubr.f32.mxu0 0.0
  %2807 = vmatmul.mubr.f32.gmra.mrb[0].mxu0 %v2695
  %v2808 = vpop.f32.mrb[0].mxu0
  %v2809 = vadd.f32 0.0, %v2808
  %v2810 = vpop.f32.mrb[0].mxu0
  %2811 = vmatprep.mubr.f32.mxu0 0.0
  %2812 = vmatmul.mubr.f32.gmra.mrb[0].mxu0 %v2698
  %v2813 = vpop.f32.mrb[0].mxu0
  %v2814 = vadd.f32 0.0, %v2813
  %v2815 = vpop.f32.mrb[0].mxu0
  %2816 = vmatprep.mubr.f32.mxu0 0.0
  %2817 = vmatmul.mubr.f32.gmra.mrb[0].mxu0 %v2701
  %v2818 = vpop.f32.mrb[0].mxu0
  %v2819 = vadd.f32 0.0, %v2818
  %v2820 = vpop.f32.mrb[0].mxu0
  %2821 = vmatprep.mubr.f32.mxu0 0.0
  %2822 = vmatmul.mubr.f32.gmra.mrb[0].mxu0 %v2704
  %v2823 = vpop.f32.mrb[0].mxu0
  %v2824 = vadd.f32 0.0, %v2823
  %v2825 = vpop.f32.mrb[0].mxu0
  %2826 = vmatprep.mubr.f32.mxu0 0.0
  %2827 = vmatmul.mubr.f32.gmra.mrb[0].mxu0 %v2707
  %v2828 = vpop.f32.mrb[0].mxu0
  %v2829 = vadd.f32 0.0, %v2828
  %v2830 = vpop.f32.mrb[0].mxu0
  %2831 = vmatprep.mubr.f32.mxu0 0.0
  %2832 = vmatmul.mubr.f32.gmra.mrb[0].mxu0 %v2710
  %v2833 = vpop.f32.mrb[0].mxu0
  %v2834 = vadd.f32 0.0, %v2833
  %v2835 = vpop.f32.mrb[0].mxu0
  %2836 = vmatprep.mubr.f32.mxu0 0.0
  %2837 = vmatmul.mubr.f32.gmra.mrb[0].mxu0 %v2713
  %v2838 = vpop.f32.mrb[0].mxu0
  %v2839 = vadd.f32 0.0, %v2838
  %v2840 = vpop.f32.mrb[0].mxu0
  %2841 = vmatprep.mubr.f32.mxu0 0.0
  %2842 = vmatmul.mubr.f32.gmra.mrb[0].mxu0 %v2716
  %v2843 = vpop.f32.mrb[0].mxu0
  %v2844 = vadd.f32 0.0, %v2843
  %v2845 = vpop.f32.mrb[0].mxu0
  %2846 = vmatprep.mubr.f32.mxu0 0.0
  %2847 = vmatmul.mubr.f32.gmra.mrb[0].mxu0 %v2719
  %v2848 = vpop.f32.mrb[0].mxu0
  %v2849 = vadd.f32 0.0, %v2848
  %v2850 = vpop.f32.mrb[0].mxu0
  %2851 = vmatprep.mubr.f32.mxu0 0.0
  %2852 = vmatmul.mubr.f32.gmra.mrb[0].mxu0 %v2722
  %v2853 = vpop.f32.mrb[0].mxu0
  %v2854 = vadd.f32 0.0, %v2853
  %v2855 = vpop.f32.mrb[0].mxu0
  %2856 = vmatprep.mubr.f32.mxu0 0.0
  %2857 = vmatmul.mubr.f32.gmra.mrb[0].mxu0 %v2725
  %v2858 = vpop.f32.mrb[0].mxu0
  %v2859 = vadd.f32 0.0, %v2858
  %v2860 = vpop.f32.mrb[0].mxu0
  %2861 = vmatprep.mubr.f32.mxu0 0.0
  %2862 = vmatmul.mubr.f32.gmra.mrb[0].mxu0 %v2728
  %v2863 = vpop.f32.mrb[0].mxu0
  %v2864 = vadd.f32 0.0, %v2863
  %v2865 = vpop.f32.mrb[0].mxu0
  %2866 = vmatprep.mubr.f32.mxu0 0.0
  %2867 = vmatmul.mubr.f32.gmra.mrb[0].mxu0 %v2731
  %v2868 = vpop.f32.mrb[0].mxu0
  %v2869 = vadd.f32 0.0, %v2868
  %v2870 = vpop.f32.mrb[0].mxu0
  %2871 = vmatprep.mubr.f32.mxu0 0.0
  %2872 = vmatmul.mubr.f32.gmra.mrb[0].mxu0 %v2734
  %v2873 = vpop.f32.mrb[0].mxu0
  %v2874 = vadd.f32 0.0, %v2873
  %v2875 = vpop.f32.mrb[0].mxu0
  %2876 = vmatprep.mubr.f32.mxu0 0.0
  %2877 = vmatmul.mubr.f32.gmra.mrb[0].mxu0 %v2737
  %v2878 = vpop.f32.mrb[0].mxu0
  %v2879 = vadd.f32 0.0, %v2878
  %v2880 = vpop.f32.mrb[0].mxu0
  %2881 = vmatprep.mubr.f32.mxu0 0.0
  %2882 = vmatmul.mubr.f32.gmra.mrb[0].mxu0 %v2740
  %v2883 = vpop.f32.mrb[0].mxu0
  %v2884 = vadd.f32 0.0, %v2883
  %v2885 = vpop.f32.mrb[0].mxu0
  %2886 = vdwg.mxu0
  %v2887 = vadd.f32 %v2653, %v2809
  %v2888 = vadd.f32 %v2654, %v2814
  %v2889 = vadd.f32 %v2655, %v2819
  %v2890 = vadd.f32 %v2656, %v2824
  %v2891 = vadd.f32 %v2657, %v2829
  %v2892 = vadd.f32 %v2658, %v2834
  %v2893 = vadd.f32 %v2659, %v2839
  %v2894 = vadd.f32 %v2660, %v2844
  %v2895 = vadd.f32 %v2661, %v2849
  %v2896 = vadd.f32 %v2662, %v2854
  %v2897 = vadd.f32 %v2663, %v2859
  %v2898 = vadd.f32 %v2664, %v2864
  %v2899 = vadd.f32 %v2665, %v2869
  %v2900 = vadd.f32 %v2666, %v2874
  %v2901 = vadd.f32 %v2667, %v2879
  %v2902 = vadd.f32 %v2668, %v2884
  %v2903 = vld [vmem:[#allocation3 + $0x16] sm:$0xff]
  %v2904 = vld [vmem:[#allocation3 + $0x1e] sm:$0xff]
  %v2905 = vld [vmem:[#allocation3 + $0x26] sm:$0xff]
  %v2906 = vld [vmem:[#allocation3 + $0x2e] sm:$0xff]
  %v2907 = vld [vmem:[#allocation3 + $0x36] sm:$0xff]
  %v2908 = vld [vmem:[#allocation3 + $0x3e] sm:$0xff]
  %v2909 = vld [vmem:[#allocation3 + $0x46] sm:$0xff]
  %v2910 = vld [vmem:[#allocation3 + $0x4e] sm:$0xff]
  %v2911 = vld [vmem:[#allocation3 + $0x56] sm:$0xff]
  %v2912 = vld [vmem:[#allocation3 + $0x5e] sm:$0xff]
  %v2913 = vld [vmem:[#allocation3 + $0x66] sm:$0xff]
  %v2914 = vld [vmem:[#allocation3 + $0x6e] sm:$0xff]
  %v2915 = vld [vmem:[#allocation3 + $0x76] sm:$0xff]
  %v2916 = vld [vmem:[#allocation3 + $0x7e] sm:$0xff]
  %v2917 = vld [vmem:[#allocation3 + $0x86] sm:$0xff]
  %v2918 = vld [vmem:[#allocation3 + $0x8e] sm:$0x3f]
  %s2919 = scalar_lea.vmem %s3, 320
  %v2920 = vld [vmem:[%s2919] sm:$0xff]
  %v2921 = vld [vmem:[%s2919 + $0x8] sm:$0xff]
  %v2922 = vld [vmem:[%s2919 + $0x10] sm:$0xff]
  %v2923 = vld [vmem:[%s2919 + $0x18] sm:$0xff]
  %v2924 = vld [vmem:[%s2919 + $0x20] sm:$0xff]
  %v2925 = vld [vmem:[%s2919 + $0x28] sm:$0xff]
  %v2926 = vld [vmem:[%s2919 + $0x30] sm:$0xff]
  %v2927 = vld [vmem:[%s2919 + $0x38] sm:$0xff]
  %v2929 = vsel %vm26, %v2903, 0
  %v2932 = vsel %vm26, %v2904, 0
  %v2935 = vsel %vm26, %v2905, 0
  %v2938 = vsel %vm26, %v2906, 0
  %v2941 = vsel %vm26, %v2907, 0
  %v2944 = vsel %vm26, %v2908, 0
  %v2947 = vsel %vm26, %v2909, 0
  %v2950 = vsel %vm26, %v2910, 0
  %v2953 = vsel %vm26, %v2911, 0
  %v2956 = vsel %vm26, %v2912, 0
  %v2959 = vsel %vm26, %v2913, 0
  %v2962 = vsel %vm26, %v2914, 0
  %v2965 = vsel %vm26, %v2915, 0
  %v2968 = vsel %vm26, %v2916, 0
  %v2971 = vsel %vm26, %v2917, 0
  %v2974 = vsel %vm26, %v2918, 0
  %2976 = vmatprep.subr.mxu0 0.0
  %2977 = vmatpush1.msra.mxu0 %v2920
  %2978 = vmatprep.subr.mxu0 0.0
  %2979 = vmatpush1.msra.mxu0 %v2921
  %2980 = vmatprep.subr.mxu0 0.0
  %2981 = vmatpush1.msra.mxu0 %v2922
  %2982 = vmatprep.subr.mxu0 0.0
  %2983 = vmatpush1.msra.mxu0 %v2923
  %2984 = vmatprep.subr.mxu0 0.0
  %2985 = vmatpush1.msra.mxu0 %v2924
  %2986 = vmatprep.subr.mxu0 0.0
  %2987 = vmatpush1.msra.mxu0 %v2925
  %2988 = vmatprep.subr.mxu0 0.0
  %2989 = vmatpush1.msra.mxu0 %v2926
  %2990 = vmatprep.subr.mxu0 0.0
  %2991 = vmatpush1.msra.mxu0 %v2927
  %2992 = vmatprep.subr.mxu0 0.0
  %2993 = vmatpush1.msra.mxu0 0.0
  %2994 = vmatprep.subr.mxu0 0.0
  %2995 = vmatpush1.msra.mxu0 0.0
  %2996 = vmatprep.subr.mxu0 0.0
  %2997 = vmatpush1.msra.mxu0 0.0
  %2998 = vmatprep.subr.mxu0 0.0
  %2999 = vmatpush1.msra.mxu0 0.0
  %3000 = vmatprep.subr.mxu0 0.0
  %3001 = vmatpush1.msra.mxu0 0.0
  %3002 = vmatprep.subr.mxu0 0.0
  %3003 = vmatpush1.msra.mxu0 0.0
  %3004 = vmatprep.subr.mxu0 0.0
  %3005 = vmatpush1.msra.mxu0 0.0
  %3006 = vmatprep.subr.mxu0 0.0
  %3007 = vmatpush1.msra.mxu0 0.0
  %3008 = vmatprep.subr.mxu0 0.0
  %3009 = vmatpush1.msra.mxu0 0.0
  %3010 = vmatprep.subr.mxu0 0.0
  %3011 = vmatpush1.msra.mxu0 0.0
  %3012 = vmatprep.subr.mxu0 0.0
  %3013 = vmatpush1.msra.mxu0 0.0
  %3014 = vmatprep.subr.mxu0 0.0
  %3015 = vmatpush1.msra.mxu0 0.0
  %3016 = vmatprep.subr.mxu0 0.0
  %3017 = vmatpush1.msra.mxu0 0.0
  %3018 = vmatprep.subr.mxu0 0.0
  %3019 = vmatpush1.msra.mxu0 0.0
  %3020 = vmatprep.subr.mxu0 0.0
  %3021 = vmatpush1.msra.mxu0 0.0
  %3022 = vmatprep.subr.mxu0 0.0
  %3023 = vmatpush1.msra.mxu0 0.0
  %3024 = vmatprep.subr.mxu0 0.0
  %3025 = vmatpush1.msra.mxu0 0.0
  %3026 = vmatprep.subr.mxu0 0.0
  %3027 = vmatpush1.msra.mxu0 0.0
  %3028 = vmatprep.subr.mxu0 0.0
  %3029 = vmatpush1.msra.mxu0 0.0
  %3030 = vmatprep.subr.mxu0 0.0
  %3031 = vmatpush1.msra.mxu0 0.0
  %3032 = vmatprep.subr.mxu0 0.0
  %3033 = vmatpush1.msra.mxu0 0.0
  %3034 = vmatprep.subr.mxu0 0.0
  %3035 = vmatpush1.msra.mxu0 0.0
  %3036 = vmatprep.subr.mxu0 0.0
  %3037 = vmatpush1.msra.mxu0 0.0
  %3038 = vmatprep.subr.mxu0 0.0
  %3039 = vmatpush1.msra.mxu0 0.0
  %3040 = vmatprep.mubr.f32.mxu0 0.0
  %3041 = vmatmul.mubr.f32.gmra.mrb[0].mxu0 %v2929
  %v3042 = vpop.f32.mrb[0].mxu0
  %v3043 = vadd.f32 0.0, %v3042
  %v3044 = vpop.f32.mrb[0].mxu0
  %3045 = vmatprep.mubr.f32.mxu0 0.0
  %3046 = vmatmul.mubr.f32.gmra.mrb[0].mxu0 %v2932
  %v3047 = vpop.f32.mrb[0].mxu0
  %v3048 = vadd.f32 0.0, %v3047
  %v3049 = vpop.f32.mrb[0].mxu0
  %3050 = vmatprep.mubr.f32.mxu0 0.0
  %3051 = vmatmul.mubr.f32.gmra.mrb[0].mxu0 %v2935
  %v3052 = vpop.f32.mrb[0].mxu0
  %v3053 = vadd.f32 0.0, %v3052
  %v3054 = vpop.f32.mrb[0].mxu0
  %3055 = vmatprep.mubr.f32.mxu0 0.0
  %3056 = vmatmul.mubr.f32.gmra.mrb[0].mxu0 %v2938
  %v3057 = vpop.f32.mrb[0].mxu0
  %v3058 = vadd.f32 0.0, %v3057
  %v3059 = vpop.f32.mrb[0].mxu0
  %3060 = vmatprep.mubr.f32.mxu0 0.0
  %3061 = vmatmul.mubr.f32.gmra.mrb[0].mxu0 %v2941
  %v3062 = vpop.f32.mrb[0].mxu0
  %v3063 = vadd.f32 0.0, %v3062
  %v3064 = vpop.f32.mrb[0].mxu0
  %3065 = vmatprep.mubr.f32.mxu0 0.0
  %3066 = vmatmul.mubr.f32.gmra.mrb[0].mxu0 %v2944
  %v3067 = vpop.f32.mrb[0].mxu0
  %v3068 = vadd.f32 0.0, %v3067
  %v3069 = vpop.f32.mrb[0].mxu0
  %3070 = vmatprep.mubr.f32.mxu0 0.0
  %3071 = vmatmul.mubr.f32.gmra.mrb[0].mxu0 %v2947
  %v3072 = vpop.f32.mrb[0].mxu0
  %v3073 = vadd.f32 0.0, %v3072
  %v3074 = vpop.f32.mrb[0].mxu0
  %3075 = vmatprep.mubr.f32.mxu0 0.0
  %3076 = vmatmul.mubr.f32.gmra.mrb[0].mxu0 %v2950
  %v3077 = vpop.f32.mrb[0].mxu0
  %v3078 = vadd.f32 0.0, %v3077
  %v3079 = vpop.f32.mrb[0].mxu0
  %3080 = vmatprep.mubr.f32.mxu0 0.0
  %3081 = vmatmul.mubr.f32.gmra.mrb[0].mxu0 %v2953
  %v3082 = vpop.f32.mrb[0].mxu0
  %v3083 = vadd.f32 0.0, %v3082
  %v3084 = vpop.f32.mrb[0].mxu0
  %3085 = vmatprep.mubr.f32.mxu0 0.0
  %3086 = vmatmul.mubr.f32.gmra.mrb[0].mxu0 %v2956
  %v3087 = vpop.f32.mrb[0].mxu0
  %v3088 = vadd.f32 0.0, %v3087
  %v3089 = vpop.f32.mrb[0].mxu0
  %3090 = vmatprep.mubr.f32.mxu0 0.0
  %3091 = vmatmul.mubr.f32.gmra.mrb[0].mxu0 %v2959
  %v3092 = vpop.f32.mrb[0].mxu0
  %v3093 = vadd.f32 0.0, %v3092
  %v3094 = vpop.f32.mrb[0].mxu0
  %3095 = vmatprep.mubr.f32.mxu0 0.0
  %3096 = vmatmul.mubr.f32.gmra.mrb[0].mxu0 %v2962
  %v3097 = vpop.f32.mrb[0].mxu0
  %v3098 = vadd.f32 0.0, %v3097
  %v3099 = vpop.f32.mrb[0].mxu0
  %3100 = vmatprep.mubr.f32.mxu0 0.0
  %3101 = vmatmul.mubr.f32.gmra.mrb[0].mxu0 %v2965
  %v3102 = vpop.f32.mrb[0].mxu0
  %v3103 = vadd.f32 0.0, %v3102
  %v3104 = vpop.f32.mrb[0].mxu0
  %3105 = vmatprep.mubr.f32.mxu0 0.0
  %3106 = vmatmul.mubr.f32.gmra.mrb[0].mxu0 %v2968
  %v3107 = vpop.f32.mrb[0].mxu0
  %v3108 = vadd.f32 0.0, %v3107
  %v3109 = vpop.f32.mrb[0].mxu0
  %3110 = vmatprep.mubr.f32.mxu0 0.0
  %3111 = vmatmul.mubr.f32.gmra.mrb[0].mxu0 %v2971
  %v3112 = vpop.f32.mrb[0].mxu0
  %v3113 = vadd.f32 0.0, %v3112
  %v3114 = vpop.f32.mrb[0].mxu0
  %3115 = vmatprep.mubr.f32.mxu0 0.0
  %3116 = vmatmul.mubr.f32.gmra.mrb[0].mxu0 %v2974
  %v3117 = vpop.f32.mrb[0].mxu0
  %v3118 = vadd.f32 0.0, %v3117
  %v3119 = vpop.f32.mrb[0].mxu0
  %3120 = vdwg.mxu0
  %v3121 = vadd.f32 %v2887, %v3043
  %v3122 = vadd.f32 %v2888, %v3048
  %v3123 = vadd.f32 %v2889, %v3053
  %v3124 = vadd.f32 %v2890, %v3058
  %v3125 = vadd.f32 %v2891, %v3063
  %v3126 = vadd.f32 %v2892, %v3068
  %v3127 = vadd.f32 %v2893, %v3073
  %v3128 = vadd.f32 %v2894, %v3078
  %v3129 = vadd.f32 %v2895, %v3083
  %v3130 = vadd.f32 %v2896, %v3088
  %v3131 = vadd.f32 %v2897, %v3093
  %v3132 = vadd.f32 %v2898, %v3098
  %v3133 = vadd.f32 %v2899, %v3103
  %v3134 = vadd.f32 %v2900, %v3108
  %v3135 = vadd.f32 %v2901, %v3113
  %v3136 = vadd.f32 %v2902, %v3118
  %v3137 = vld [vmem:[#allocation3 + $0x24] sm:$0xff]
  %v3138 = vld [vmem:[#allocation3 + $0x2c] sm:$0xff]
  %v3139 = vld [vmem:[#allocation3 + $0x34] sm:$0xff]
  %v3140 = vld [vmem:[#allocation3 + $0x3c] sm:$0xff]
  %v3141 = vld [vmem:[#allocation3 + $0x44] sm:$0xff]
  %v3142 = vld [vmem:[#allocation3 + $0x4c] sm:$0xff]
  %v3143 = vld [vmem:[#allocation3 + $0x54] sm:$0xff]
  %v3144 = vld [vmem:[#allocation3 + $0x5c] sm:$0xff]
  %v3145 = vld [vmem:[#allocation3 + $0x64] sm:$0xff]
  %v3146 = vld [vmem:[#allocation3 + $0x6c] sm:$0xff]
  %v3147 = vld [vmem:[#allocation3 + $0x74] sm:$0xff]
  %v3148 = vld [vmem:[#allocation3 + $0x7c] sm:$0xff]
  %v3149 = vld [vmem:[#allocation3 + $0x84] sm:$0xff]
  %v3150 = vld [vmem:[#allocation3 + $0x8c] sm:$0xff]
  %v3151 = vld [vmem:[#allocation3 + $0x94] sm:$0xff]
  %v3152 = vld [vmem:[#allocation3 + $0x9c] sm:$0x3f]
  %s3153 = scalar_lea.vmem %s3, 384
  %v3154 = vld [vmem:[%s3153] sm:$0xff]
  %v3155 = vld [vmem:[%s3153 + $0x8] sm:$0xff]
  %v3156 = vld [vmem:[%s3153 + $0x10] sm:$0xff]
  %v3157 = vld [vmem:[%s3153 + $0x18] sm:$0xff]
  %v3158 = vld [vmem:[%s3153 + $0x20] sm:$0xff]
  %v3159 = vld [vmem:[%s3153 + $0x28] sm:$0xff]
  %v3160 = vld [vmem:[%s3153 + $0x30] sm:$0xff]
  %v3161 = vld [vmem:[%s3153 + $0x38] sm:$0xff]
  %v3163 = vsel %vm26, %v3137, 0
  %v3166 = vsel %vm26, %v3138, 0
  %v3169 = vsel %vm26, %v3139, 0
  %v3172 = vsel %vm26, %v3140, 0
  %v3175 = vsel %vm26, %v3141, 0
  %v3178 = vsel %vm26, %v3142, 0
  %v3181 = vsel %vm26, %v3143, 0
  %v3184 = vsel %vm26, %v3144, 0
  %v3187 = vsel %vm26, %v3145, 0
  %v3190 = vsel %vm26, %v3146, 0
  %v3193 = vsel %vm26, %v3147, 0
  %v3196 = vsel %vm26, %v3148, 0
  %v3199 = vsel %vm26, %v3149, 0
  %v3202 = vsel %vm26, %v3150, 0
  %v3205 = vsel %vm26, %v3151, 0
  %v3208 = vsel %vm26, %v3152, 0
  %3210 = vmatprep.subr.mxu0 0.0
  %3211 = vmatpush1.msra.mxu0 %v3154
  %3212 = vmatprep.subr.mxu0 0.0
  %3213 = vmatpush1.msra.mxu0 %v3155
  %3214 = vmatprep.subr.mxu0 0.0
  %3215 = vmatpush1.msra.mxu0 %v3156
  %3216 = vmatprep.subr.mxu0 0.0
  %3217 = vmatpush1.msra.mxu0 %v3157
  %3218 = vmatprep.subr.mxu0 0.0
  %3219 = vmatpush1.msra.mxu0 %v3158
  %3220 = vmatprep.subr.mxu0 0.0
  %3221 = vmatpush1.msra.mxu0 %v3159
  %3222 = vmatprep.subr.mxu0 0.0
  %3223 = vmatpush1.msra.mxu0 %v3160
  %3224 = vmatprep.subr.mxu0 0.0
  %3225 = vmatpush1.msra.mxu0 %v3161
  %3226 = vmatprep.subr.mxu0 0.0
  %3227 = vmatpush1.msra.mxu0 0.0
  %3228 = vmatprep.subr.mxu0 0.0
  %3229 = vmatpush1.msra.mxu0 0.0
  %3230 = vmatprep.subr.mxu0 0.0
  %3231 = vmatpush1.msra.mxu0 0.0
  %3232 = vmatprep.subr.mxu0 0.0
  %3233 = vmatpush1.msra.mxu0 0.0
  %3234 = vmatprep.subr.mxu0 0.0
  %3235 = vmatpush1.msra.mxu0 0.0
  %3236 = vmatprep.subr.mxu0 0.0
  %3237 = vmatpush1.msra.mxu0 0.0
  %3238 = vmatprep.subr.mxu0 0.0
  %3239 = vmatpush1.msra.mxu0 0.0
  %3240 = vmatprep.subr.mxu0 0.0
  %3241 = vmatpush1.msra.mxu0 0.0
  %3242 = vmatprep.subr.mxu0 0.0
  %3243 = vmatpush1.msra.mxu0 0.0
  %3244 = vmatprep.subr.mxu0 0.0
  %3245 = vmatpush1.msra.mxu0 0.0
  %3246 = vmatprep.subr.mxu0 0.0
  %3247 = vmatpush1.msra.mxu0 0.0
  %3248 = vmatprep.subr.mxu0 0.0
  %3249 = vmatpush1.msra.mxu0 0.0
  %3250 = vmatprep.subr.mxu0 0.0
  %3251 = vmatpush1.msra.mxu0 0.0
  %3252 = vmatprep.subr.mxu0 0.0
  %3253 = vmatpush1.msra.mxu0 0.0
  %3254 = vmatprep.subr.mxu0 0.0
  %3255 = vmatpush1.msra.mxu0 0.0
  %3256 = vmatprep.subr.mxu0 0.0
  %3257 = vmatpush1.msra.mxu0 0.0
  %3258 = vmatprep.subr.mxu0 0.0
  %3259 = vmatpush1.msra.mxu0 0.0
  %3260 = vmatprep.subr.mxu0 0.0
  %3261 = vmatpush1.msra.mxu0 0.0
  %3262 = vmatprep.subr.mxu0 0.0
  %3263 = vmatpush1.msra.mxu0 0.0
  %3264 = vmatprep.subr.mxu0 0.0
  %3265 = vmatpush1.msra.mxu0 0.0
  %3266 = vmatprep.subr.mxu0 0.0
  %3267 = vmatpush1.msra.mxu0 0.0
  %3268 = vmatprep.subr.mxu0 0.0
  %3269 = vmatpush1.msra.mxu0 0.0
  %3270 = vmatprep.subr.mxu0 0.0
  %3271 = vmatpush1.msra.mxu0 0.0
  %3272 = vmatprep.subr.mxu0 0.0
  %3273 = vmatpush1.msra.mxu0 0.0
  %3274 = vmatprep.mubr.f32.mxu0 0.0
  %3275 = vmatmul.mubr.f32.gmra.mrb[0].mxu0 %v3163
  %v3276 = vpop.f32.mrb[0].mxu0
  %v3277 = vadd.f32 0.0, %v3276
  %v3278 = vpop.f32.mrb[0].mxu0
  %3279 = vmatprep.mubr.f32.mxu0 0.0
  %3280 = vmatmul.mubr.f32.gmra.mrb[0].mxu0 %v3166
  %v3281 = vpop.f32.mrb[0].mxu0
  %v3282 = vadd.f32 0.0, %v3281
  %v3283 = vpop.f32.mrb[0].mxu0
  %3284 = vmatprep.mubr.f32.mxu0 0.0
  %3285 = vmatmul.mubr.f32.gmra.mrb[0].mxu0 %v3169
  %v3286 = vpop.f32.mrb[0].mxu0
  %v3287 = vadd.f32 0.0, %v3286
  %v3288 = vpop.f32.mrb[0].mxu0
  %3289 = vmatprep.mubr.f32.mxu0 0.0
  %3290 = vmatmul.mubr.f32.gmra.mrb[0].mxu0 %v3172
  %v3291 = vpop.f32.mrb[0].mxu0
  %v3292 = vadd.f32 0.0, %v3291
  %v3293 = vpop.f32.mrb[0].mxu0
  %3294 = vmatprep.mubr.f32.mxu0 0.0
  %3295 = vmatmul.mubr.f32.gmra.mrb[0].mxu0 %v3175
  %v3296 = vpop.f32.mrb[0].mxu0
  %v3297 = vadd.f32 0.0, %v3296
  %v3298 = vpop.f32.mrb[0].mxu0
  %3299 = vmatprep.mubr.f32.mxu0 0.0
  %3300 = vmatmul.mubr.f32.gmra.mrb[0].mxu0 %v3178
  %v3301 = vpop.f32.mrb[0].mxu0
  %v3302 = vadd.f32 0.0, %v3301
  %v3303 = vpop.f32.mrb[0].mxu0
  %3304 = vmatprep.mubr.f32.mxu0 0.0
  %3305 = vmatmul.mubr.f32.gmra.mrb[0].mxu0 %v3181
  %v3306 = vpop.f32.mrb[0].mxu0
  %v3307 = vadd.f32 0.0, %v3306
  %v3308 = vpop.f32.mrb[0].mxu0
  %3309 = vmatprep.mubr.f32.mxu0 0.0
  %3310 = vmatmul.mubr.f32.gmra.mrb[0].mxu0 %v3184
  %v3311 = vpop.f32.mrb[0].mxu0
  %v3312 = vadd.f32 0.0, %v3311
  %v3313 = vpop.f32.mrb[0].mxu0
  %3314 = vmatprep.mubr.f32.mxu0 0.0
  %3315 = vmatmul.mubr.f32.gmra.mrb[0].mxu0 %v3187
  %v3316 = vpop.f32.mrb[0].mxu0
  %v3317 = vadd.f32 0.0, %v3316
  %v3318 = vpop.f32.mrb[0].mxu0
  %3319 = vmatprep.mubr.f32.mxu0 0.0
  %3320 = vmatmul.mubr.f32.gmra.mrb[0].mxu0 %v3190
  %v3321 = vpop.f32.mrb[0].mxu0
  %v3322 = vadd.f32 0.0, %v3321
  %v3323 = vpop.f32.mrb[0].mxu0
  %3324 = vmatprep.mubr.f32.mxu0 0.0
  %3325 = vmatmul.mubr.f32.gmra.mrb[0].mxu0 %v3193
  %v3326 = vpop.f32.mrb[0].mxu0
  %v3327 = vadd.f32 0.0, %v3326
  %v3328 = vpop.f32.mrb[0].mxu0
  %3329 = vmatprep.mubr.f32.mxu0 0.0
  %3330 = vmatmul.mubr.f32.gmra.mrb[0].mxu0 %v3196
  %v3331 = vpop.f32.mrb[0].mxu0
  %v3332 = vadd.f32 0.0, %v3331
  %v3333 = vpop.f32.mrb[0].mxu0
  %3334 = vmatprep.mubr.f32.mxu0 0.0
  %3335 = vmatmul.mubr.f32.gmra.mrb[0].mxu0 %v3199
  %v3336 = vpop.f32.mrb[0].mxu0
  %v3337 = vadd.f32 0.0, %v3336
  %v3338 = vpop.f32.mrb[0].mxu0
  %3339 = vmatprep.mubr.f32.mxu0 0.0
  %3340 = vmatmul.mubr.f32.gmra.mrb[0].mxu0 %v3202
  %v3341 = vpop.f32.mrb[0].mxu0
  %v3342 = vadd.f32 0.0, %v3341
  %v3343 = vpop.f32.mrb[0].mxu0
  %3344 = vmatprep.mubr.f32.mxu0 0.0
  %3345 = vmatmul.mubr.f32.gmra.mrb[0].mxu0 %v3205
  %v3346 = vpop.f32.mrb[0].mxu0
  %v3347 = vadd.f32 0.0, %v3346
  %v3348 = vpop.f32.mrb[0].mxu0
  %3349 = vmatprep.mubr.f32.mxu0 0.0
  %3350 = vmatmul.mubr.f32.gmra.mrb[0].mxu0 %v3208
  %v3351 = vpop.f32.mrb[0].mxu0
  %v3352 = vadd.f32 0.0, %v3351
  %v3353 = vpop.f32.mrb[0].mxu0
  %3354 = vdwg.mxu0
  %v3355 = vadd.f32 %v3121, %v3277
  %v3356 = vadd.f32 %v3122, %v3282
  %v3357 = vadd.f32 %v3123, %v3287
  %v3358 = vadd.f32 %v3124, %v3292
  %v3359 = vadd.f32 %v3125, %v3297
  %v3360 = vadd.f32 %v3126, %v3302
  %v3361 = vadd.f32 %v3127, %v3307
  %v3362 = vadd.f32 %v3128, %v3312
  %v3363 = vadd.f32 %v3129, %v3317
  %v3364 = vadd.f32 %v3130, %v3322
  %v3365 = vadd.f32 %v3131, %v3327
  %v3366 = vadd.f32 %v3132, %v3332
  %v3367 = vadd.f32 %v3133, %v3337
  %v3368 = vadd.f32 %v3134, %v3342
  %v3369 = vadd.f32 %v3135, %v3347
  %v3370 = vadd.f32 %v3136, %v3352
  %v3371 = vld [vmem:[#allocation3 + $0x26] sm:$0xff]
  %v3372 = vld [vmem:[#allocation3 + $0x2e] sm:$0xff]
  %v3373 = vld [vmem:[#allocation3 + $0x36] sm:$0xff]
  %v3374 = vld [vmem:[#allocation3 + $0x3e] sm:$0xff]
  %v3375 = vld [vmem:[#allocation3 + $0x46] sm:$0xff]
  %v3376 = vld [vmem:[#allocation3 + $0x4e] sm:$0xff]
  %v3377 = vld [vmem:[#allocation3 + $0x56] sm:$0xff]
  %v3378 = vld [vmem:[#allocation3 + $0x5e] sm:$0xff]
  %v3379 = vld [vmem:[#allocation3 + $0x66] sm:$0xff]
  %v3380 = vld [vmem:[#allocation3 + $0x6e] sm:$0xff]
  %v3381 = vld [vmem:[#allocation3 + $0x76] sm:$0xff]
  %v3382 = vld [vmem:[#allocation3 + $0x7e] sm:$0xff]
  %v3383 = vld [vmem:[#allocation3 + $0x86] sm:$0xff]
  %v3384 = vld [vmem:[#allocation3 + $0x8e] sm:$0xff]
  %v3385 = vld [vmem:[#allocation3 + $0x96] sm:$0xff]
  %v3386 = vld [vmem:[#allocation3 + $0x9e] sm:$0x3f]
  %s3387 = scalar_lea.vmem %s3, 448
  %v3388 = vld [vmem:[%s3387] sm:$0xff]
  %v3389 = vld [vmem:[%s3387 + $0x8] sm:$0xff]
  %v3390 = vld [vmem:[%s3387 + $0x10] sm:$0xff]
  %v3391 = vld [vmem:[%s3387 + $0x18] sm:$0xff]
  %v3392 = vld [vmem:[%s3387 + $0x20] sm:$0xff]
  %v3393 = vld [vmem:[%s3387 + $0x28] sm:$0xff]
  %v3394 = vld [vmem:[%s3387 + $0x30] sm:$0xff]
  %v3395 = vld [vmem:[%s3387 + $0x38] sm:$0xff]
  %v3397 = vsel %vm26, %v3371, 0
  %v3400 = vsel %vm26, %v3372, 0
  %v3403 = vsel %vm26, %v3373, 0
  %v3406 = vsel %vm26, %v3374, 0
  %v3409 = vsel %vm26, %v3375, 0
  %v3412 = vsel %vm26, %v3376, 0
  %v3415 = vsel %vm26, %v3377, 0
  %v3418 = vsel %vm26, %v3378, 0
  %v3421 = vsel %vm26, %v3379, 0
  %v3424 = vsel %vm26, %v3380, 0
  %v3427 = vsel %vm26, %v3381, 0
  %v3430 = vsel %vm26, %v3382, 0
  %v3433 = vsel %vm26, %v3383, 0
  %v3436 = vsel %vm26, %v3384, 0
  %v3439 = vsel %vm26, %v3385, 0
  %v3442 = vsel %vm26, %v3386, 0
  %3444 = vmatprep.subr.mxu0 0.0
  %3445 = vmatpush1.msra.mxu0 %v3388
  %3446 = vmatprep.subr.mxu0 0.0
  %3447 = vmatpush1.msra.mxu0 %v3389
  %3448 = vmatprep.subr.mxu0 0.0
  %3449 = vmatpush1.msra.mxu0 %v3390
  %3450 = vmatprep.subr.mxu0 0.0
  %3451 = vmatpush1.msra.mxu0 %v3391
  %3452 = vmatprep.subr.mxu0 0.0
  %3453 = vmatpush1.msra.mxu0 %v3392
  %3454 = vmatprep.subr.mxu0 0.0
  %3455 = vmatpush1.msra.mxu0 %v3393
  %3456 = vmatprep.subr.mxu0 0.0
  %3457 = vmatpush1.msra.mxu0 %v3394
  %3458 = vmatprep.subr.mxu0 0.0
  %3459 = vmatpush1.msra.mxu0 %v3395
  %3460 = vmatprep.subr.mxu0 0.0
  %3461 = vmatpush1.msra.mxu0 0.0
  %3462 = vmatprep.subr.mxu0 0.0
  %3463 = vmatpush1.msra.mxu0 0.0
  %3464 = vmatprep.subr.mxu0 0.0
  %3465 = vmatpush1.msra.mxu0 0.0
  %3466 = vmatprep.subr.mxu0 0.0
  %3467 = vmatpush1.msra.mxu0 0.0
  %3468 = vmatprep.subr.mxu0 0.0
  %3469 = vmatpush1.msra.mxu0 0.0
  %3470 = vmatprep.subr.mxu0 0.0
  %3471 = vmatpush1.msra.mxu0 0.0
  %3472 = vmatprep.subr.mxu0 0.0
  %3473 = vmatpush1.msra.mxu0 0.0
  %3474 = vmatprep.subr.mxu0 0.0
  %3475 = vmatpush1.msra.mxu0 0.0
  %3476 = vmatprep.subr.mxu0 0.0
  %3477 = vmatpush1.msra.mxu0 0.0
  %3478 = vmatprep.subr.mxu0 0.0
  %3479 = vmatpush1.msra.mxu0 0.0
  %3480 = vmatprep.subr.mxu0 0.0
  %3481 = vmatpush1.msra.mxu0 0.0
  %3482 = vmatprep.subr.mxu0 0.0
  %3483 = vmatpush1.msra.mxu0 0.0
  %3484 = vmatprep.subr.mxu0 0.0
  %3485 = vmatpush1.msra.mxu0 0.0
  %3486 = vmatprep.subr.mxu0 0.0
  %3487 = vmatpush1.msra.mxu0 0.0
  %3488 = vmatprep.subr.mxu0 0.0
  %3489 = vmatpush1.msra.mxu0 0.0
  %3490 = vmatprep.subr.mxu0 0.0
  %3491 = vmatpush1.msra.mxu0 0.0
  %3492 = vmatprep.subr.mxu0 0.0
  %3493 = vmatpush1.msra.mxu0 0.0
  %3494 = vmatprep.subr.mxu0 0.0
  %3495 = vmatpush1.msra.mxu0 0.0
  %3496 = vmatprep.subr.mxu0 0.0
  %3497 = vmatpush1.msra.mxu0 0.0
  %3498 = vmatprep.subr.mxu0 0.0
  %3499 = vmatpush1.msra.mxu0 0.0
  %3500 = vmatprep.subr.mxu0 0.0
  %3501 = vmatpush1.msra.mxu0 0.0
  %3502 = vmatprep.subr.mxu0 0.0
  %3503 = vmatpush1.msra.mxu0 0.0
  %3504 = vmatprep.subr.mxu0 0.0
  %3505 = vmatpush1.msra.mxu0 0.0
  %3506 = vmatprep.subr.mxu0 0.0
  %3507 = vmatpush1.msra.mxu0 0.0
  %3508 = vmatprep.mubr.f32.mxu0 0.0
  %3509 = vmatmul.mubr.f32.gmra.mrb[0].mxu0 %v3397
  %v3510 = vpop.f32.mrb[0].mxu0
  %v3511 = vadd.f32 0.0, %v3510
  %v3512 = vpop.f32.mrb[0].mxu0
  %3513 = vmatprep.mubr.f32.mxu0 0.0
  %3514 = vmatmul.mubr.f32.gmra.mrb[0].mxu0 %v3400
  %v3515 = vpop.f32.mrb[0].mxu0
  %v3516 = vadd.f32 0.0, %v3515
  %v3517 = vpop.f32.mrb[0].mxu0
  %3518 = vmatprep.mubr.f32.mxu0 0.0
  %3519 = vmatmul.mubr.f32.gmra.mrb[0].mxu0 %v3403
  %v3520 = vpop.f32.mrb[0].mxu0
  %v3521 = vadd.f32 0.0, %v3520
  %v3522 = vpop.f32.mrb[0].mxu0
  %3523 = vmatprep.mubr.f32.mxu0 0.0
  %3524 = vmatmul.mubr.f32.gmra.mrb[0].mxu0 %v3406
  %v3525 = vpop.f32.mrb[0].mxu0
  %v3526 = vadd.f32 0.0, %v3525
  %v3527 = vpop.f32.mrb[0].mxu0
  %3528 = vmatprep.mubr.f32.mxu0 0.0
  %3529 = vmatmul.mubr.f32.gmra.mrb[0].mxu0 %v3409
  %v3530 = vpop.f32.mrb[0].mxu0
  %v3531 = vadd.f32 0.0, %v3530
  %v3532 = vpop.f32.mrb[0].mxu0
  %3533 = vmatprep.mubr.f32.mxu0 0.0
  %3534 = vmatmul.mubr.f32.gmra.mrb[0].mxu0 %v3412
  %v3535 = vpop.f32.mrb[0].mxu0
  %v3536 = vadd.f32 0.0, %v3535
  %v3537 = vpop.f32.mrb[0].mxu0
  %3538 = vmatprep.mubr.f32.mxu0 0.0
  %3539 = vmatmul.mubr.f32.gmra.mrb[0].mxu0 %v3415
  %v3540 = vpop.f32.mrb[0].mxu0
  %v3541 = vadd.f32 0.0, %v3540
  %v3542 = vpop.f32.mrb[0].mxu0
  %3543 = vmatprep.mubr.f32.mxu0 0.0
  %3544 = vmatmul.mubr.f32.gmra.mrb[0].mxu0 %v3418
  %v3545 = vpop.f32.mrb[0].mxu0
  %v3546 = vadd.f32 0.0, %v3545
  %v3547 = vpop.f32.mrb[0].mxu0
  %3548 = vmatprep.mubr.f32.mxu0 0.0
  %3549 = vmatmul.mubr.f32.gmra.mrb[0].mxu0 %v3421
  %v3550 = vpop.f32.mrb[0].mxu0
  %v3551 = vadd.f32 0.0, %v3550
  %v3552 = vpop.f32.mrb[0].mxu0
  %3553 = vmatprep.mubr.f32.mxu0 0.0
  %3554 = vmatmul.mubr.f32.gmra.mrb[0].mxu0 %v3424
  %v3555 = vpop.f32.mrb[0].mxu0
  %v3556 = vadd.f32 0.0, %v3555
  %v3557 = vpop.f32.mrb[0].mxu0
  %3558 = vmatprep.mubr.f32.mxu0 0.0
  %3559 = vmatmul.mubr.f32.gmra.mrb[0].mxu0 %v3427
  %v3560 = vpop.f32.mrb[0].mxu0
  %v3561 = vadd.f32 0.0, %v3560
  %v3562 = vpop.f32.mrb[0].mxu0
  %3563 = vmatprep.mubr.f32.mxu0 0.0
  %3564 = vmatmul.mubr.f32.gmra.mrb[0].mxu0 %v3430
  %v3565 = vpop.f32.mrb[0].mxu0
  %v3566 = vadd.f32 0.0, %v3565
  %v3567 = vpop.f32.mrb[0].mxu0
  %3568 = vmatprep.mubr.f32.mxu0 0.0
  %3569 = vmatmul.mubr.f32.gmra.mrb[0].mxu0 %v3433
  %v3570 = vpop.f32.mrb[0].mxu0
  %v3571 = vadd.f32 0.0, %v3570
  %v3572 = vpop.f32.mrb[0].mxu0
  %3573 = vmatprep.mubr.f32.mxu0 0.0
  %3574 = vmatmul.mubr.f32.gmra.mrb[0].mxu0 %v3436
  %v3575 = vpop.f32.mrb[0].mxu0
  %v3576 = vadd.f32 0.0, %v3575
  %v3577 = vpop.f32.mrb[0].mxu0
  %3578 = vmatprep.mubr.f32.mxu0 0.0
  %3579 = vmatmul.mubr.f32.gmra.mrb[0].mxu0 %v3439
  %v3580 = vpop.f32.mrb[0].mxu0
  %v3581 = vadd.f32 0.0, %v3580
  %v3582 = vpop.f32.mrb[0].mxu0
  %3583 = vmatprep.mubr.f32.mxu0 0.0
  %3584 = vmatmul.mubr.f32.gmra.mrb[0].mxu0 %v3442
  %v3585 = vpop.f32.mrb[0].mxu0
  %v3586 = vadd.f32 0.0, %v3585
  %v3587 = vpop.f32.mrb[0].mxu0
  %3588 = vdwg.mxu0
  %v3589 = vadd.f32 %v3355, %v3511
  %v3590 = vadd.f32 %v3356, %v3516
  %v3591 = vadd.f32 %v3357, %v3521
  %v3592 = vadd.f32 %v3358, %v3526
  %v3593 = vadd.f32 %v3359, %v3531
  %v3594 = vadd.f32 %v3360, %v3536
  %v3595 = vadd.f32 %v3361, %v3541
  %v3596 = vadd.f32 %v3362, %v3546
  %v3597 = vadd.f32 %v3363, %v3551
  %v3598 = vadd.f32 %v3364, %v3556
  %v3599 = vadd.f32 %v3365, %v3561
  %v3600 = vadd.f32 %v3366, %v3566
  %v3601 = vadd.f32 %v3367, %v3571
  %v3602 = vadd.f32 %v3368, %v3576
  %v3603 = vadd.f32 %v3369, %v3581
  %v3604 = vadd.f32 %v3370, %v3586
  %v3605 = vld [vmem:[#allocation3 + $0x28] sm:$0xff]
  %v3606 = vld [vmem:[#allocation3 + $0x30] sm:$0xff]
  %v3607 = vld [vmem:[#allocation3 + $0x38] sm:$0xff]
  %v3608 = vld [vmem:[#allocation3 + $0x40] sm:$0xff]
  %v3609 = vld [vmem:[#allocation3 + $0x48] sm:$0xff]
  %v3610 = vld [vmem:[#allocation3 + $0x50] sm:$0xff]
  %v3611 = vld [vmem:[#allocation3 + $0x58] sm:$0xff]
  %v3612 = vld [vmem:[#allocation3 + $0x60] sm:$0xff]
  %v3613 = vld [vmem:[#allocation3 + $0x68] sm:$0xff]
  %v3614 = vld [vmem:[#allocation3 + $0x70] sm:$0xff]
  %v3615 = vld [vmem:[#allocation3 + $0x78] sm:$0xff]
  %v3616 = vld [vmem:[#allocation3 + $0x80] sm:$0xff]
  %v3617 = vld [vmem:[#allocation3 + $0x88] sm:$0xff]
  %v3618 = vld [vmem:[#allocation3 + $0x90] sm:$0xff]
  %v3619 = vld [vmem:[#allocation3 + $0x98] sm:$0xff]
  %v3620 = vld [vmem:[#allocation3 + $0xa0] sm:$0x3f]
  %s3621 = scalar_lea.vmem %s3, 512
  %v3622 = vld [vmem:[%s3621] sm:$0xff]
  %v3623 = vld [vmem:[%s3621 + $0x8] sm:$0xff]
  %v3624 = vld [vmem:[%s3621 + $0x10] sm:$0xff]
  %v3625 = vld [vmem:[%s3621 + $0x18] sm:$0xff]
  %v3626 = vld [vmem:[%s3621 + $0x20] sm:$0xff]
  %v3627 = vld [vmem:[%s3621 + $0x28] sm:$0xff]
  %v3628 = vld [vmem:[%s3621 + $0x30] sm:$0xff]
  %v3629 = vld [vmem:[%s3621 + $0x38] sm:$0xff]
  %v3631 = vsel %vm26, %v3605, 0
  %v3634 = vsel %vm26, %v3606, 0
  %v3637 = vsel %vm26, %v3607, 0
  %v3640 = vsel %vm26, %v3608, 0
  %v3643 = vsel %vm26, %v3609, 0
  %v3646 = vsel %vm26, %v3610, 0
  %v3649 = vsel %vm26, %v3611, 0
  %v3652 = vsel %vm26, %v3612, 0
  %v3655 = vsel %vm26, %v3613, 0
  %v3658 = vsel %vm26, %v3614, 0
  %v3661 = vsel %vm26, %v3615, 0
  %v3664 = vsel %vm26, %v3616, 0
  %v3667 = vsel %vm26, %v3617, 0
  %v3670 = vsel %vm26, %v3618, 0
  %v3673 = vsel %vm26, %v3619, 0
  %v3676 = vsel %vm26, %v3620, 0
  %3678 = vmatprep.subr.mxu0 0.0
  %3679 = vmatpush1.msra.mxu0 %v3622
  %3680 = vmatprep.subr.mxu0 0.0
  %3681 = vmatpush1.msra.mxu0 %v3623
  %3682 = vmatprep.subr.mxu0 0.0
  %3683 = vmatpush1.msra.mxu0 %v3624
  %3684 = vmatprep.subr.mxu0 0.0
  %3685 = vmatpush1.msra.mxu0 %v3625
  %3686 = vmatprep.subr.mxu0 0.0
  %3687 = vmatpush1.msra.mxu0 %v3626
  %3688 = vmatprep.subr.mxu0 0.0
  %3689 = vmatpush1.msra.mxu0 %v3627
  %3690 = vmatprep.subr.mxu0 0.0
  %3691 = vmatpush1.msra.mxu0 %v3628
  %3692 = vmatprep.subr.mxu0 0.0
  %3693 = vmatpush1.msra.mxu0 %v3629
  %3694 = vmatprep.subr.mxu0 0.0
  %3695 = vmatpush1.msra.mxu0 0.0
  %3696 = vmatprep.subr.mxu0 0.0
  %3697 = vmatpush1.msra.mxu0 0.0
  %3698 = vmatprep.subr.mxu0 0.0
  %3699 = vmatpush1.msra.mxu0 0.0
  %3700 = vmatprep.subr.mxu0 0.0
  %3701 = vmatpush1.msra.mxu0 0.0
  %3702 = vmatprep.subr.mxu0 0.0
  %3703 = vmatpush1.msra.mxu0 0.0
  %3704 = vmatprep.subr.mxu0 0.0
  %3705 = vmatpush1.msra.mxu0 0.0
  %3706 = vmatprep.subr.mxu0 0.0
  %3707 = vmatpush1.msra.mxu0 0.0
  %3708 = vmatprep.subr.mxu0 0.0
  %3709 = vmatpush1.msra.mxu0 0.0
  %3710 = vmatprep.subr.mxu0 0.0
  %3711 = vmatpush1.msra.mxu0 0.0
  %3712 = vmatprep.subr.mxu0 0.0
  %3713 = vmatpush1.msra.mxu0 0.0
  %3714 = vmatprep.subr.mxu0 0.0
  %3715 = vmatpush1.msra.mxu0 0.0
  %3716 = vmatprep.subr.mxu0 0.0
  %3717 = vmatpush1.msra.mxu0 0.0
  %3718 = vmatprep.subr.mxu0 0.0
  %3719 = vmatpush1.msra.mxu0 0.0
  %3720 = vmatprep.subr.mxu0 0.0
  %3721 = vmatpush1.msra.mxu0 0.0
  %3722 = vmatprep.subr.mxu0 0.0
  %3723 = vmatpush1.msra.mxu0 0.0
  %3724 = vmatprep.subr.mxu0 0.0
  %3725 = vmatpush1.msra.mxu0 0.0
  %3726 = vmatprep.subr.mxu0 0.0
  %3727 = vmatpush1.msra.mxu0 0.0
  %3728 = vmatprep.subr.mxu0 0.0
  %3729 = vmatpush1.msra.mxu0 0.0
  %3730 = vmatprep.subr.mxu0 0.0
  %3731 = vmatpush1.msra.mxu0 0.0
  %3732 = vmatprep.subr.mxu0 0.0
  %3733 = vmatpush1.msra.mxu0 0.0
  %3734 = vmatprep.subr.mxu0 0.0
  %3735 = vmatpush1.msra.mxu0 0.0
  %3736 = vmatprep.subr.mxu0 0.0
  %3737 = vmatpush1.msra.mxu0 0.0
  %3738 = vmatprep.subr.mxu0 0.0
  %3739 = vmatpush1.msra.mxu0 0.0
  %3740 = vmatprep.subr.mxu0 0.0
  %3741 = vmatpush1.msra.mxu0 0.0
  %3742 = vmatprep.mubr.f32.mxu0 0.0
  %3743 = vmatmul.mubr.f32.gmra.mrb[0].mxu0 %v3631
  %v3744 = vpop.f32.mrb[0].mxu0
  %v3745 = vadd.f32 0.0, %v3744
  %v3746 = vpop.f32.mrb[0].mxu0
  %3747 = vmatprep.mubr.f32.mxu0 0.0
  %3748 = vmatmul.mubr.f32.gmra.mrb[0].mxu0 %v3634
  %v3749 = vpop.f32.mrb[0].mxu0
  %v3750 = vadd.f32 0.0, %v3749
  %v3751 = vpop.f32.mrb[0].mxu0
  %3752 = vmatprep.mubr.f32.mxu0 0.0
  %3753 = vmatmul.mubr.f32.gmra.mrb[0].mxu0 %v3637
  %v3754 = vpop.f32.mrb[0].mxu0
  %v3755 = vadd.f32 0.0, %v3754
  %v3756 = vpop.f32.mrb[0].mxu0
  %3757 = vmatprep.mubr.f32.mxu0 0.0
  %3758 = vmatmul.mubr.f32.gmra.mrb[0].mxu0 %v3640
  %v3759 = vpop.f32.mrb[0].mxu0
  %v3760 = vadd.f32 0.0, %v3759
  %v3761 = vpop.f32.mrb[0].mxu0
  %3762 = vmatprep.mubr.f32.mxu0 0.0
  %3763 = vmatmul.mubr.f32.gmra.mrb[0].mxu0 %v3643
  %v3764 = vpop.f32.mrb[0].mxu0
  %v3765 = vadd.f32 0.0, %v3764
  %v3766 = vpop.f32.mrb[0].mxu0
  %3767 = vmatprep.mubr.f32.mxu0 0.0
  %3768 = vmatmul.mubr.f32.gmra.mrb[0].mxu0 %v3646
  %v3769 = vpop.f32.mrb[0].mxu0
  %v3770 = vadd.f32 0.0, %v3769
  %v3771 = vpop.f32.mrb[0].mxu0
  %3772 = vmatprep.mubr.f32.mxu0 0.0
  %3773 = vmatmul.mubr.f32.gmra.mrb[0].mxu0 %v3649
  %v3774 = vpop.f32.mrb[0].mxu0
  %v3775 = vadd.f32 0.0, %v3774
  %v3776 = vpop.f32.mrb[0].mxu0
  %3777 = vmatprep.mubr.f32.mxu0 0.0
  %3778 = vmatmul.mubr.f32.gmra.mrb[0].mxu0 %v3652
  %v3779 = vpop.f32.mrb[0].mxu0
  %v3780 = vadd.f32 0.0, %v3779
  %v3781 = vpop.f32.mrb[0].mxu0
  %3782 = vmatprep.mubr.f32.mxu0 0.0
  %3783 = vmatmul.mubr.f32.gmra.mrb[0].mxu0 %v3655
  %v3784 = vpop.f32.mrb[0].mxu0
  %v3785 = vadd.f32 0.0, %v3784
  %v3786 = vpop.f32.mrb[0].mxu0
  %3787 = vmatprep.mubr.f32.mxu0 0.0
  %3788 = vmatmul.mubr.f32.gmra.mrb[0].mxu0 %v3658
  %v3789 = vpop.f32.mrb[0].mxu0
  %v3790 = vadd.f32 0.0, %v3789
  %v3791 = vpop.f32.mrb[0].mxu0
  %3792 = vmatprep.mubr.f32.mxu0 0.0
  %3793 = vmatmul.mubr.f32.gmra.mrb[0].mxu0 %v3661
  %v3794 = vpop.f32.mrb[0].mxu0
  %v3795 = vadd.f32 0.0, %v3794
  %v3796 = vpop.f32.mrb[0].mxu0
  %3797 = vmatprep.mubr.f32.mxu0 0.0
  %3798 = vmatmul.mubr.f32.gmra.mrb[0].mxu0 %v3664
  %v3799 = vpop.f32.mrb[0].mxu0
  %v3800 = vadd.f32 0.0, %v3799
  %v3801 = vpop.f32.mrb[0].mxu0
  %3802 = vmatprep.mubr.f32.mxu0 0.0
  %3803 = vmatmul.mubr.f32.gmra.mrb[0].mxu0 %v3667
  %v3804 = vpop.f32.mrb[0].mxu0
  %v3805 = vadd.f32 0.0, %v3804
  %v3806 = vpop.f32.mrb[0].mxu0
  %3807 = vmatprep.mubr.f32.mxu0 0.0
  %3808 = vmatmul.mubr.f32.gmra.mrb[0].mxu0 %v3670
  %v3809 = vpop.f32.mrb[0].mxu0
  %v3810 = vadd.f32 0.0, %v3809
  %v3811 = vpop.f32.mrb[0].mxu0
  %3812 = vmatprep.mubr.f32.mxu0 0.0
  %3813 = vmatmul.mubr.f32.gmra.mrb[0].mxu0 %v3673
  %v3814 = vpop.f32.mrb[0].mxu0
  %v3815 = vadd.f32 0.0, %v3814
  %v3816 = vpop.f32.mrb[0].mxu0
  %3817 = vmatprep.mubr.f32.mxu0 0.0
  %3818 = vmatmul.mubr.f32.gmra.mrb[0].mxu0 %v3676
  %v3819 = vpop.f32.mrb[0].mxu0
  %v3820 = vadd.f32 0.0, %v3819
  %v3821 = vpop.f32.mrb[0].mxu0
  %3822 = vdwg.mxu0
  %v3823 = vadd.f32 %v3589, %v3745
  %v3824 = vadd.f32 %v3590, %v3750
  %v3825 = vadd.f32 %v3591, %v3755
  %v3826 = vadd.f32 %v3592, %v3760
  %v3827 = vadd.f32 %v3593, %v3765
  %v3828 = vadd.f32 %v3594, %v3770
  %v3829 = vadd.f32 %v3595, %v3775
  %v3830 = vadd.f32 %v3596, %v3780
  %v3831 = vadd.f32 %v3597, %v3785
  %v3832 = vadd.f32 %v3598, %v3790
  %v3833 = vadd.f32 %v3599, %v3795
  %v3834 = vadd.f32 %v3600, %v3800
  %v3835 = vadd.f32 %v3601, %v3805
  %v3836 = vadd.f32 %v3602, %v3810
  %v3837 = vadd.f32 %v3603, %v3815
  %v3838 = vadd.f32 %v3604, %v3820
  %v3839 = vld [vmem:[%s4] sm:$0x1]
  %v3841 = vlaneseq
  %v3842 = vshrl.u32 %v3841, 7
  %v3843 = vsub.s32 0, %v3842
  %v3844 = vrot.slane %v3839, %v3843
  %v3846 = vadd.f32 %v3823, %v3844
  %v3847 = vadd.f32 %v3824, %v3844
  %v3848 = vadd.f32 %v3825, %v3844
  %v3849 = vadd.f32 %v3826, %v3844
  %v3850 = vadd.f32 %v3827, %v3844
  %v3851 = vadd.f32 %v3828, %v3844
  %v3852 = vadd.f32 %v3829, %v3844
  %v3853 = vadd.f32 %v3830, %v3844
  %v3854 = vadd.f32 %v3831, %v3844
  %v3855 = vadd.f32 %v3832, %v3844
  %v3856 = vadd.f32 %v3833, %v3844
  %v3857 = vadd.f32 %v3834, %v3844
  %v3858 = vadd.f32 %v3835, %v3844
  %v3859 = vadd.f32 %v3836, %v3844
  %v3860 = vadd.f32 %v3837, %v3844
  %v3861 = vadd.f32 %v3838, %v3844
  %vm3862 = vcmp.ge.f32.partialorder %v3846, 0.0
  %vm3863 = vcmp.ge.f32.partialorder %v3847, 0.0
  %vm3864 = vcmp.ge.f32.partialorder %v3848, 0.0
  %vm3865 = vcmp.ge.f32.partialorder %v3849, 0.0
  %vm3866 = vcmp.ge.f32.partialorder %v3850, 0.0
  %vm3867 = vcmp.ge.f32.partialorder %v3851, 0.0
  %vm3868 = vcmp.ge.f32.partialorder %v3852, 0.0
  %vm3869 = vcmp.ge.f32.partialorder %v3853, 0.0
  %vm3870 = vcmp.ge.f32.partialorder %v3854, 0.0
  %vm3871 = vcmp.ge.f32.partialorder %v3855, 0.0
  %vm3872 = vcmp.ge.f32.partialorder %v3856, 0.0
  %vm3873 = vcmp.ge.f32.partialorder %v3857, 0.0
  %vm3874 = vcmp.ge.f32.partialorder %v3858, 0.0
  %vm3875 = vcmp.ge.f32.partialorder %v3859, 0.0
  %vm3876 = vcmp.ge.f32.partialorder %v3860, 0.0
  %vm3877 = vcmp.ge.f32.partialorder %v3861, 0.0
  %v3878 = vmul.f32 %v3846, 0.2
  %v3879 = vmul.f32 %v3847, 0.2
  %v3880 = vmul.f32 %v3848, 0.2
  %v3881 = vmul.f32 %v3849, 0.2
  %v3882 = vmul.f32 %v3850, 0.2
  %v3883 = vmul.f32 %v3851, 0.2
  %v3884 = vmul.f32 %v3852, 0.2
  %v3885 = vmul.f32 %v3853, 0.2
  %v3886 = vmul.f32 %v3854, 0.2
  %v3887 = vmul.f32 %v3855, 0.2
  %v3888 = vmul.f32 %v3856, 0.2
  %v3889 = vmul.f32 %v3857, 0.2
  %v3890 = vmul.f32 %v3858, 0.2
  %v3891 = vmul.f32 %v3859, 0.2
  %v3892 = vmul.f32 %v3860, 0.2
  %v3893 = vmul.f32 %v3861, 0.2
  %v3894 = vsel %vm3862, %v3846, %v3878
  %v3895 = vsel %vm3863, %v3847, %v3879
  %v3896 = vsel %vm3864, %v3848, %v3880
  %v3897 = vsel %vm3865, %v3849, %v3881
  %v3898 = vsel %vm3866, %v3850, %v3882
  %v3899 = vsel %vm3867, %v3851, %v3883
  %v3900 = vsel %vm3868, %v3852, %v3884
  %v3901 = vsel %vm3869, %v3853, %v3885
  %v3902 = vsel %vm3870, %v3854, %v3886
  %v3903 = vsel %vm3871, %v3855, %v3887
  %v3904 = vsel %vm3872, %v3856, %v3888
  %v3905 = vsel %vm3873, %v3857, %v3889
  %v3906 = vsel %vm3874, %v3858, %v3890
  %v3907 = vsel %vm3875, %v3859, %v3891
  %v3908 = vsel %vm3876, %v3860, %v3892
  %v3909 = vsel %vm3877, %v3861, %v3893
  %3910 = vst [vmem:[#allocation4 + $0x18] sm:$0xff] %v3894
  %3911 = vst [vmem:[#allocation4 + $0x20] sm:$0xff] %v3895
  %3912 = vst [vmem:[#allocation4 + $0x28] sm:$0xff] %v3896
  %3913 = vst [vmem:[#allocation4 + $0x30] sm:$0xff] %v3897
  %3914 = vst [vmem:[#allocation4 + $0x38] sm:$0xff] %v3898
  %3915 = vst [vmem:[#allocation4 + $0x40] sm:$0xff] %v3899
  %3916 = vst [vmem:[#allocation4 + $0x48] sm:$0xff] %v3900
  %3917 = vst [vmem:[#allocation4 + $0x50] sm:$0xff] %v3901
  %3918 = vst [vmem:[#allocation4 + $0x58] sm:$0xff] %v3902
  %3919 = vst [vmem:[#allocation4 + $0x60] sm:$0xff] %v3903
  %3920 = vst [vmem:[#allocation4 + $0x68] sm:$0xff] %v3904
  %3921 = vst [vmem:[#allocation4 + $0x70] sm:$0xff] %v3905
  %3922 = vst [vmem:[#allocation4 + $0x78] sm:$0xff] %v3906
  %3923 = vst [vmem:[#allocation4 + $0x80] sm:$0xff] %v3907
  %3924 = vst [vmem:[#allocation4 + $0x88] sm:$0xff] %v3908
  %3925 = vst [vmem:[#allocation4 + $0x90] sm:$0x3f] %v3909
  %3926 = vst [vmem:[#allocation4 + $0x26] sm:$0xf] 0.0
  %3927 = vst [vmem:[#allocation4 + $0x38] sm:$0xf] 0.0
  %3928 = vst [vmem:[#allocation4 + $0x4a] sm:$0xf] 0.0
  %3929 = vst [vmem:[#allocation4 + $0x5c] sm:$0xf] 0.0
  %3930 = vst [vmem:[#allocation4 + $0x6e] sm:$0xf] 0.0
  %3931 = vst [vmem:[#allocation4 + $0x80] sm:$0xf] 0.0
  %3932 = vst [vmem:[#allocation4 + $0x92] sm:$0xf] 0.0
  %v3933 = vld [vmem:[#allocation4 + $0x4] sm:$0xff]
  %v3934 = vld [vmem:[#allocation4 + $0xc] sm:$0xff]
  %v3935 = vld [vmem:[#allocation4 + $0x14] sm:$0xff]
  %v3936 = vld [vmem:[#allocation4 + $0x1c] sm:$0xff]
  %v3937 = vld [vmem:[#allocation4 + $0x24] sm:$0xff]
  %v3938 = vld [vmem:[#allocation4 + $0x2c] sm:$0xff]
  %v3939 = vld [vmem:[#allocation4 + $0x34] sm:$0xff]
  %v3940 = vld [vmem:[#allocation4 + $0x3c] sm:$0xff]
  %v3941 = vld [vmem:[#allocation4 + $0x44] sm:$0xff]
  %v3942 = vld [vmem:[#allocation4 + $0x4c] sm:$0xff]
  %v3943 = vld [vmem:[#allocation4 + $0x54] sm:$0xff]
  %v3944 = vld [vmem:[#allocation4 + $0x5c] sm:$0xff]
  %v3945 = vld [vmem:[#allocation4 + $0x64] sm:$0xff]
  %v3946 = vld [vmem:[#allocation4 + $0x6c] sm:$0xff]
  %v3947 = vld [vmem:[#allocation4 + $0x74] sm:$0xff]
  %v3948 = vld [vmem:[#allocation4 + $0x7c] sm:$0x3f]
  %v3949 = vld [vmem:[%s5] sm:$0xff]
  %v3950 = vld [vmem:[%s5 + $0x8] sm:$0xff]
  %v3951 = vld [vmem:[%s5 + $0x10] sm:$0xff]
  %v3952 = vld [vmem:[%s5 + $0x18] sm:$0xff]
  %v3953 = vld [vmem:[%s5 + $0x20] sm:$0xff]
  %v3954 = vld [vmem:[%s5 + $0x28] sm:$0xff]
  %v3955 = vld [vmem:[%s5 + $0x30] sm:$0xff]
  %v3956 = vld [vmem:[%s5 + $0x38] sm:$0xff]
  %v3957 = vld [vmem:[%s5 + $0x40] sm:$0xff]
  %v3958 = vld [vmem:[%s5 + $0x48] sm:$0xff]
  %v3959 = vld [vmem:[%s5 + $0x50] sm:$0xff]
  %v3960 = vld [vmem:[%s5 + $0x58] sm:$0xff]
  %v3961 = vld [vmem:[%s5 + $0x60] sm:$0xff]
  %v3962 = vld [vmem:[%s5 + $0x68] sm:$0xff]
  %v3963 = vld [vmem:[%s5 + $0x70] sm:$0xff]
  %v3964 = vld [vmem:[%s5 + $0x78] sm:$0xff]
  %v3965 = vld [vmem:[#allocation4 + $0x6] sm:$0xff]
  %v3966 = vld [vmem:[#allocation4 + $0xe] sm:$0xff]
  %v3967 = vld [vmem:[#allocation4 + $0x16] sm:$0xff]
  %v3968 = vld [vmem:[#allocation4 + $0x1e] sm:$0xff]
  %v3969 = vld [vmem:[#allocation4 + $0x26] sm:$0xff]
  %v3970 = vld [vmem:[#allocation4 + $0x2e] sm:$0xff]
  %v3971 = vld [vmem:[#allocation4 + $0x36] sm:$0xff]
  %v3972 = vld [vmem:[#allocation4 + $0x3e] sm:$0xff]
  %v3973 = vld [vmem:[#allocation4 + $0x46] sm:$0xff]
  %v3974 = vld [vmem:[#allocation4 + $0x4e] sm:$0xff]
  %v3975 = vld [vmem:[#allocation4 + $0x56] sm:$0xff]
  %v3976 = vld [vmem:[#allocation4 + $0x5e] sm:$0xff]
  %v3977 = vld [vmem:[#allocation4 + $0x66] sm:$0xff]
  %v3978 = vld [vmem:[#allocation4 + $0x6e] sm:$0xff]
  %v3979 = vld [vmem:[#allocation4 + $0x76] sm:$0xff]
  %v3980 = vld [vmem:[#allocation4 + $0x7e] sm:$0x3f]
  %s3981 = scalar_lea.vmem %s5, 128
  %v3982 = vld [vmem:[%s3981] sm:$0xff]
  %v3983 = vld [vmem:[%s3981 + $0x8] sm:$0xff]
  %v3984 = vld [vmem:[%s3981 + $0x10] sm:$0xff]
  %v3985 = vld [vmem:[%s3981 + $0x18] sm:$0xff]
  %v3986 = vld [vmem:[%s3981 + $0x20] sm:$0xff]
  %v3987 = vld [vmem:[%s3981 + $0x28] sm:$0xff]
  %v3988 = vld [vmem:[%s3981 + $0x30] sm:$0xff]
  %v3989 = vld [vmem:[%s3981 + $0x38] sm:$0xff]
  %v3990 = vld [vmem:[%s3981 + $0x40] sm:$0xff]
  %v3991 = vld [vmem:[%s3981 + $0x48] sm:$0xff]
  %v3992 = vld [vmem:[%s3981 + $0x50] sm:$0xff]
  %v3993 = vld [vmem:[%s3981 + $0x58] sm:$0xff]
  %v3994 = vld [vmem:[%s3981 + $0x60] sm:$0xff]
  %v3995 = vld [vmem:[%s3981 + $0x68] sm:$0xff]
  %v3996 = vld [vmem:[%s3981 + $0x70] sm:$0xff]
  %v3997 = vld [vmem:[%s3981 + $0x78] sm:$0xff]
  %3998 = vmatprep.subr.mxu0 0.0
  %3999 = vmatpush1.msra.mxu0 %v3982
  %4000 = vmatprep.subr.mxu0 0.0
  %4001 = vmatpush1.msra.mxu0 %v3983
  %4002 = vmatprep.subr.mxu0 0.0
  %4003 = vmatpush1.msra.mxu0 %v3984
  %4004 = vmatprep.subr.mxu0 0.0
  %4005 = vmatpush1.msra.mxu0 %v3985
  %4006 = vmatprep.subr.mxu0 0.0
  %4007 = vmatpush1.msra.mxu0 %v3986
  %4008 = vmatprep.subr.mxu0 0.0
  %4009 = vmatpush1.msra.mxu0 %v3987
  %4010 = vmatprep.subr.mxu0 0.0
  %4011 = vmatpush1.msra.mxu0 %v3988
  %4012 = vmatprep.subr.mxu0 0.0
  %4013 = vmatpush1.msra.mxu0 %v3989
  %4014 = vmatprep.subr.mxu0 0.0
  %4015 = vmatpush1.msra.mxu0 %v3990
  %4016 = vmatprep.subr.mxu0 0.0
  %4017 = vmatpush1.msra.mxu0 %v3991
  %4018 = vmatprep.subr.mxu0 0.0
  %4019 = vmatpush1.msra.mxu0 %v3992
  %4020 = vmatprep.subr.mxu0 0.0
  %4021 = vmatpush1.msra.mxu0 %v3993
  %4022 = vmatprep.subr.mxu0 0.0
  %4023 = vmatpush1.msra.mxu0 %v3994
  %4024 = vmatprep.subr.mxu0 0.0
  %4025 = vmatpush1.msra.mxu0 %v3995
  %4026 = vmatprep.subr.mxu0 0.0
  %4027 = vmatpush1.msra.mxu0 %v3996
  %4028 = vmatprep.subr.mxu0 0.0
  %4029 = vmatpush1.msra.mxu0 %v3997
  %4030 = vmatprep.subr.mxu0 0.0
  %4031 = vmatpush1.msra.mxu0 0.0
  %4032 = vmatprep.subr.mxu0 0.0
  %4033 = vmatpush1.msra.mxu0 0.0
  %4034 = vmatprep.subr.mxu0 0.0
  %4035 = vmatpush1.msra.mxu0 0.0
  %4036 = vmatprep.subr.mxu0 0.0
  %4037 = vmatpush1.msra.mxu0 0.0
  %4038 = vmatprep.subr.mxu0 0.0
  %4039 = vmatpush1.msra.mxu0 0.0
  %4040 = vmatprep.subr.mxu0 0.0
  %4041 = vmatpush1.msra.mxu0 0.0
  %4042 = vmatprep.subr.mxu0 0.0
  %4043 = vmatpush1.msra.mxu0 0.0
  %4044 = vmatprep.subr.mxu0 0.0
  %4045 = vmatpush1.msra.mxu0 0.0
  %4046 = vmatprep.subr.mxu0 0.0
  %4047 = vmatpush1.msra.mxu0 0.0
  %4048 = vmatprep.subr.mxu0 0.0
  %4049 = vmatpush1.msra.mxu0 0.0
  %4050 = vmatprep.subr.mxu0 0.0
  %4051 = vmatpush1.msra.mxu0 0.0
  %4052 = vmatprep.subr.mxu0 0.0
  %4053 = vmatpush1.msra.mxu0 0.0
  %4054 = vmatprep.subr.mxu0 0.0
  %4055 = vmatpush1.msra.mxu0 0.0
  %4056 = vmatprep.subr.mxu0 0.0
  %4057 = vmatpush1.msra.mxu0 0.0
  %4058 = vmatprep.subr.mxu0 0.0
  %4059 = vmatpush1.msra.mxu0 0.0
  %4060 = vmatprep.subr.mxu0 0.0
  %4061 = vmatpush1.msra.mxu0 0.0
  %4062 = vmatprep.mubr.f32.mxu0 0.0
  %4063 = vmatmul.mubr.f32.gmra.mrb[0].mxu0 %v3965
  %v4064 = vpop.f32.mrb[0].mxu0
  %v4065 = vadd.f32 0.0, %v4064
  %v4066 = vpop.f32.mrb[0].mxu0
  %4067 = vmatprep.mubr.f32.mxu0 0.0
  %4068 = vmatmul.mubr.f32.gmra.mrb[0].mxu0 %v3966
  %v4069 = vpop.f32.mrb[0].mxu0
  %v4070 = vadd.f32 0.0, %v4069
  %v4071 = vpop.f32.mrb[0].mxu0
  %4072 = vmatprep.mubr.f32.mxu0 0.0
  %4073 = vmatmul.mubr.f32.gmra.mrb[0].mxu0 %v3967
  %v4074 = vpop.f32.mrb[0].mxu0
  %v4075 = vadd.f32 0.0, %v4074
  %v4076 = vpop.f32.mrb[0].mxu0
  %4077 = vmatprep.mubr.f32.mxu0 0.0
  %4078 = vmatmul.mubr.f32.gmra.mrb[0].mxu0 %v3968
  %v4079 = vpop.f32.mrb[0].mxu0
  %v4080 = vadd.f32 0.0, %v4079
  %v4081 = vpop.f32.mrb[0].mxu0
  %4082 = vmatprep.mubr.f32.mxu0 0.0
  %4083 = vmatmul.mubr.f32.gmra.mrb[0].mxu0 %v3969
  %v4084 = vpop.f32.mrb[0].mxu0
  %v4085 = vadd.f32 0.0, %v4084
  %v4086 = vpop.f32.mrb[0].mxu0
  %4087 = vmatprep.mubr.f32.mxu0 0.0
  %4088 = vmatmul.mubr.f32.gmra.mrb[0].mxu0 %v3970
  %v4089 = vpop.f32.mrb[0].mxu0
  %v4090 = vadd.f32 0.0, %v4089
  %v4091 = vpop.f32.mrb[0].mxu0
  %4092 = vmatprep.mubr.f32.mxu0 0.0
  %4093 = vmatmul.mubr.f32.gmra.mrb[0].mxu0 %v3971
  %v4094 = vpop.f32.mrb[0].mxu0
  %v4095 = vadd.f32 0.0, %v4094
  %v4096 = vpop.f32.mrb[0].mxu0
  %4097 = vmatprep.mubr.f32.mxu0 0.0
  %4098 = vmatmul.mubr.f32.gmra.mrb[0].mxu0 %v3972
  %v4099 = vpop.f32.mrb[0].mxu0
  %v4100 = vadd.f32 0.0, %v4099
  %v4101 = vpop.f32.mrb[0].mxu0
  %4102 = vmatprep.mubr.f32.mxu0 0.0
  %4103 = vmatmul.mubr.f32.gmra.mrb[0].mxu0 %v3973
  %v4104 = vpop.f32.mrb[0].mxu0
  %v4105 = vadd.f32 0.0, %v4104
  %v4106 = vpop.f32.mrb[0].mxu0
  %4107 = vmatprep.mubr.f32.mxu0 0.0
  %4108 = vmatmul.mubr.f32.gmra.mrb[0].mxu0 %v3974
  %v4109 = vpop.f32.mrb[0].mxu0
  %v4110 = vadd.f32 0.0, %v4109
  %v4111 = vpop.f32.mrb[0].mxu0
  %4112 = vmatprep.mubr.f32.mxu0 0.0
  %4113 = vmatmul.mubr.f32.gmra.mrb[0].mxu0 %v3975
  %v4114 = vpop.f32.mrb[0].mxu0
  %v4115 = vadd.f32 0.0, %v4114
  %v4116 = vpop.f32.mrb[0].mxu0
  %4117 = vmatprep.mubr.f32.mxu0 0.0
  %4118 = vmatmul.mubr.f32.gmra.mrb[0].mxu0 %v3976
  %v4119 = vpop.f32.mrb[0].mxu0
  %v4120 = vadd.f32 0.0, %v4119
  %v4121 = vpop.f32.mrb[0].mxu0
  %4122 = vmatprep.mubr.f32.mxu0 0.0
  %4123 = vmatmul.mubr.f32.gmra.mrb[0].mxu0 %v3977
  %v4124 = vpop.f32.mrb[0].mxu0
  %v4125 = vadd.f32 0.0, %v4124
  %v4126 = vpop.f32.mrb[0].mxu0
  %4127 = vmatprep.mubr.f32.mxu0 0.0
  %4128 = vmatmul.mubr.f32.gmra.mrb[0].mxu0 %v3978
  %v4129 = vpop.f32.mrb[0].mxu0
  %v4130 = vadd.f32 0.0, %v4129
  %v4131 = vpop.f32.mrb[0].mxu0
  %4132 = vmatprep.mubr.f32.mxu0 0.0
  %4133 = vmatmul.mubr.f32.gmra.mrb[0].mxu0 %v3979
  %v4134 = vpop.f32.mrb[0].mxu0
  %v4135 = vadd.f32 0.0, %v4134
  %v4136 = vpop.f32.mrb[0].mxu0
  %4137 = vmatprep.mubr.f32.mxu0 0.0
  %4138 = vmatmul.mubr.f32.gmra.mrb[0].mxu0 %v3980
  %v4139 = vpop.f32.mrb[0].mxu0
  %v4140 = vadd.f32 0.0, %v4139
  %v4141 = vpop.f32.mrb[0].mxu0
  %4142 = vdwg.mxu0
  %4143 = vmatprep.subr.mxu0 0.0
  %4144 = vmatpush1.msra.mxu0 %v3949
  %4145 = vmatprep.subr.mxu0 0.0
  %4146 = vmatpush1.msra.mxu0 %v3950
  %4147 = vmatprep.subr.mxu0 0.0
  %4148 = vmatpush1.msra.mxu0 %v3951
  %4149 = vmatprep.subr.mxu0 0.0
  %4150 = vmatpush1.msra.mxu0 %v3952
  %4151 = vmatprep.subr.mxu0 0.0
  %4152 = vmatpush1.msra.mxu0 %v3953
  %4153 = vmatprep.subr.mxu0 0.0
  %4154 = vmatpush1.msra.mxu0 %v3954
  %4155 = vmatprep.subr.mxu0 0.0
  %4156 = vmatpush1.msra.mxu0 %v3955
  %4157 = vmatprep.subr.mxu0 0.0
  %4158 = vmatpush1.msra.mxu0 %v3956
  %4159 = vmatprep.subr.mxu0 0.0
  %4160 = vmatpush1.msra.mxu0 %v3957
  %4161 = vmatprep.subr.mxu0 0.0
  %4162 = vmatpush1.msra.mxu0 %v3958
  %4163 = vmatprep.subr.mxu0 0.0
  %4164 = vmatpush1.msra.mxu0 %v3959
  %4165 = vmatprep.subr.mxu0 0.0
  %4166 = vmatpush1.msra.mxu0 %v3960
  %4167 = vmatprep.subr.mxu0 0.0
  %4168 = vmatpush1.msra.mxu0 %v3961
  %4169 = vmatprep.subr.mxu0 0.0
  %4170 = vmatpush1.msra.mxu0 %v3962
  %4171 = vmatprep.subr.mxu0 0.0
  %4172 = vmatpush1.msra.mxu0 %v3963
  %4173 = vmatprep.subr.mxu0 0.0
  %4174 = vmatpush1.msra.mxu0 %v3964
  %4175 = vmatprep.subr.mxu0 0.0
  %4176 = vmatpush1.msra.mxu0 0.0
  %4177 = vmatprep.subr.mxu0 0.0
  %4178 = vmatpush1.msra.mxu0 0.0
  %4179 = vmatprep.subr.mxu0 0.0
  %4180 = vmatpush1.msra.mxu0 0.0
  %4181 = vmatprep.subr.mxu0 0.0
  %4182 = vmatpush1.msra.mxu0 0.0
  %4183 = vmatprep.subr.mxu0 0.0
  %4184 = vmatpush1.msra.mxu0 0.0
  %4185 = vmatprep.subr.mxu0 0.0
  %4186 = vmatpush1.msra.mxu0 0.0
  %4187 = vmatprep.subr.mxu0 0.0
  %4188 = vmatpush1.msra.mxu0 0.0
  %4189 = vmatprep.subr.mxu0 0.0
  %4190 = vmatpush1.msra.mxu0 0.0
  %4191 = vmatprep.subr.mxu0 0.0
  %4192 = vmatpush1.msra.mxu0 0.0
  %4193 = vmatprep.subr.mxu0 0.0
  %4194 = vmatpush1.msra.mxu0 0.0
  %4195 = vmatprep.subr.mxu0 0.0
  %4196 = vmatpush1.msra.mxu0 0.0
  %4197 = vmatprep.subr.mxu0 0.0
  %4198 = vmatpush1.msra.mxu0 0.0
  %4199 = vmatprep.subr.mxu0 0.0
  %4200 = vmatpush1.msra.mxu0 0.0
  %4201 = vmatprep.subr.mxu0 0.0
  %4202 = vmatpush1.msra.mxu0 0.0
  %4203 = vmatprep.subr.mxu0 0.0
  %4204 = vmatpush1.msra.mxu0 0.0
  %4205 = vmatprep.subr.mxu0 0.0
  %4206 = vmatpush1.msra.mxu0 0.0
  %4207 = vmatprep.mubr.f32.mxu0 0.0
  %4208 = vmatmul.mubr.f32.gmra.mrb[0].mxu0 %v3933
  %v4209 = vpop.f32.mrb[0].mxu0
  %v4210 = vadd.f32 %v4065, %v4209
  %v4211 = vpop.f32.mrb[0].mxu0
  %4212 = vmatprep.mubr.f32.mxu0 0.0
  %4213 = vmatmul.mubr.f32.gmra.mrb[0].mxu0 %v3934
  %v4214 = vpop.f32.mrb[0].mxu0
  %v4215 = vadd.f32 %v4070, %v4214
  %v4216 = vpop.f32.mrb[0].mxu0
  %4217 = vmatprep.mubr.f32.mxu0 0.0
  %4218 = vmatmul.mubr.f32.gmra.mrb[0].mxu0 %v3935
  %v4219 = vpop.f32.mrb[0].mxu0
  %v4220 = vadd.f32 %v4075, %v4219
  %v4221 = vpop.f32.mrb[0].mxu0
  %4222 = vmatprep.mubr.f32.mxu0 0.0
  %4223 = vmatmul.mubr.f32.gmra.mrb[0].mxu0 %v3936
  %v4224 = vpop.f32.mrb[0].mxu0
  %v4225 = vadd.f32 %v4080, %v4224
  %v4226 = vpop.f32.mrb[0].mxu0
  %4227 = vmatprep.mubr.f32.mxu0 0.0
  %4228 = vmatmul.mubr.f32.gmra.mrb[0].mxu0 %v3937
  %v4229 = vpop.f32.mrb[0].mxu0
  %v4230 = vadd.f32 %v4085, %v4229
  %v4231 = vpop.f32.mrb[0].mxu0
  %4232 = vmatprep.mubr.f32.mxu0 0.0
  %4233 = vmatmul.mubr.f32.gmra.mrb[0].mxu0 %v3938
  %v4234 = vpop.f32.mrb[0].mxu0
  %v4235 = vadd.f32 %v4090, %v4234
  %v4236 = vpop.f32.mrb[0].mxu0
  %4237 = vmatprep.mubr.f32.mxu0 0.0
  %4238 = vmatmul.mubr.f32.gmra.mrb[0].mxu0 %v3939
  %v4239 = vpop.f32.mrb[0].mxu0
  %v4240 = vadd.f32 %v4095, %v4239
  %v4241 = vpop.f32.mrb[0].mxu0
  %4242 = vmatprep.mubr.f32.mxu0 0.0
  %4243 = vmatmul.mubr.f32.gmra.mrb[0].mxu0 %v3940
  %v4244 = vpop.f32.mrb[0].mxu0
  %v4245 = vadd.f32 %v4100, %v4244
  %v4246 = vpop.f32.mrb[0].mxu0
  %4247 = vmatprep.mubr.f32.mxu0 0.0
  %4248 = vmatmul.mubr.f32.gmra.mrb[0].mxu0 %v3941
  %v4249 = vpop.f32.mrb[0].mxu0
  %v4250 = vadd.f32 %v4105, %v4249
  %v4251 = vpop.f32.mrb[0].mxu0
  %4252 = vmatprep.mubr.f32.mxu0 0.0
  %4253 = vmatmul.mubr.f32.gmra.mrb[0].mxu0 %v3942
  %v4254 = vpop.f32.mrb[0].mxu0
  %v4255 = vadd.f32 %v4110, %v4254
  %v4256 = vpop.f32.mrb[0].mxu0
  %4257 = vmatprep.mubr.f32.mxu0 0.0
  %4258 = vmatmul.mubr.f32.gmra.mrb[0].mxu0 %v3943
  %v4259 = vpop.f32.mrb[0].mxu0
  %v4260 = vadd.f32 %v4115, %v4259
  %v4261 = vpop.f32.mrb[0].mxu0
  %4262 = vmatprep.mubr.f32.mxu0 0.0
  %4263 = vmatmul.mubr.f32.gmra.mrb[0].mxu0 %v3944
  %v4264 = vpop.f32.mrb[0].mxu0
  %v4265 = vadd.f32 %v4120, %v4264
  %v4266 = vpop.f32.mrb[0].mxu0
  %4267 = vmatprep.mubr.f32.mxu0 0.0
  %4268 = vmatmul.mubr.f32.gmra.mrb[0].mxu0 %v3945
  %v4269 = vpop.f32.mrb[0].mxu0
  %v4270 = vadd.f32 %v4125, %v4269
  %v4271 = vpop.f32.mrb[0].mxu0
  %4272 = vmatprep.mubr.f32.mxu0 0.0
  %4273 = vmatmul.mubr.f32.gmra.mrb[0].mxu0 %v3946
  %v4274 = vpop.f32.mrb[0].mxu0
  %v4275 = vadd.f32 %v4130, %v4274
  %v4276 = vpop.f32.mrb[0].mxu0
  %4277 = vmatprep.mubr.f32.mxu0 0.0
  %4278 = vmatmul.mubr.f32.gmra.mrb[0].mxu0 %v3947
  %v4279 = vpop.f32.mrb[0].mxu0
  %v4280 = vadd.f32 %v4135, %v4279
  %v4281 = vpop.f32.mrb[0].mxu0
  %4282 = vmatprep.mubr.f32.mxu0 0.0
  %4283 = vmatmul.mubr.f32.gmra.mrb[0].mxu0 %v3948
  %v4284 = vpop.f32.mrb[0].mxu0
  %v4285 = vadd.f32 %v4140, %v4284
  %v4286 = vpop.f32.mrb[0].mxu0
  %4287 = vdwg.mxu0
  %v4288 = vld [vmem:[#allocation4 + $0x8] sm:$0xff]
  %v4289 = vld [vmem:[#allocation4 + $0x10] sm:$0xff]
  %v4290 = vld [vmem:[#allocation4 + $0x18] sm:$0xff]
  %v4291 = vld [vmem:[#allocation4 + $0x20] sm:$0xff]
  %v4292 = vld [vmem:[#allocation4 + $0x28] sm:$0xff]
  %v4293 = vld [vmem:[#allocation4 + $0x30] sm:$0xff]
  %v4294 = vld [vmem:[#allocation4 + $0x38] sm:$0xff]
  %v4295 = vld [vmem:[#allocation4 + $0x40] sm:$0xff]
  %v4296 = vld [vmem:[#allocation4 + $0x48] sm:$0xff]
  %v4297 = vld [vmem:[#allocation4 + $0x50] sm:$0xff]
  %v4298 = vld [vmem:[#allocation4 + $0x58] sm:$0xff]
  %v4299 = vld [vmem:[#allocation4 + $0x60] sm:$0xff]
  %v4300 = vld [vmem:[#allocation4 + $0x68] sm:$0xff]
  %v4301 = vld [vmem:[#allocation4 + $0x70] sm:$0xff]
  %v4302 = vld [vmem:[#allocation4 + $0x78] sm:$0xff]
  %v4303 = vld [vmem:[#allocation4 + $0x80] sm:$0x3f]
  %s4304 = scalar_lea.vmem %s5, 256
  %v4305 = vld [vmem:[%s4304] sm:$0xff]
  %v4306 = vld [vmem:[%s4304 + $0x8] sm:$0xff]
  %v4307 = vld [vmem:[%s4304 + $0x10] sm:$0xff]
  %v4308 = vld [vmem:[%s4304 + $0x18] sm:$0xff]
  %v4309 = vld [vmem:[%s4304 + $0x20] sm:$0xff]
  %v4310 = vld [vmem:[%s4304 + $0x28] sm:$0xff]
  %v4311 = vld [vmem:[%s4304 + $0x30] sm:$0xff]
  %v4312 = vld [vmem:[%s4304 + $0x38] sm:$0xff]
  %v4313 = vld [vmem:[%s4304 + $0x40] sm:$0xff]
  %v4314 = vld [vmem:[%s4304 + $0x48] sm:$0xff]
  %v4315 = vld [vmem:[%s4304 + $0x50] sm:$0xff]
  %v4316 = vld [vmem:[%s4304 + $0x58] sm:$0xff]
  %v4317 = vld [vmem:[%s4304 + $0x60] sm:$0xff]
  %v4318 = vld [vmem:[%s4304 + $0x68] sm:$0xff]
  %v4319 = vld [vmem:[%s4304 + $0x70] sm:$0xff]
  %v4320 = vld [vmem:[%s4304 + $0x78] sm:$0xff]
  %4321 = vmatprep.subr.mxu0 0.0
  %4322 = vmatpush1.msra.mxu0 %v4305
  %4323 = vmatprep.subr.mxu0 0.0
  %4324 = vmatpush1.msra.mxu0 %v4306
  %4325 = vmatprep.subr.mxu0 0.0
  %4326 = vmatpush1.msra.mxu0 %v4307
  %4327 = vmatprep.subr.mxu0 0.0
  %4328 = vmatpush1.msra.mxu0 %v4308
  %4329 = vmatprep.subr.mxu0 0.0
  %4330 = vmatpush1.msra.mxu0 %v4309
  %4331 = vmatprep.subr.mxu0 0.0
  %4332 = vmatpush1.msra.mxu0 %v4310
  %4333 = vmatprep.subr.mxu0 0.0
  %4334 = vmatpush1.msra.mxu0 %v4311
  %4335 = vmatprep.subr.mxu0 0.0
  %4336 = vmatpush1.msra.mxu0 %v4312
  %4337 = vmatprep.subr.mxu0 0.0
  %4338 = vmatpush1.msra.mxu0 %v4313
  %4339 = vmatprep.subr.mxu0 0.0
  %4340 = vmatpush1.msra.mxu0 %v4314
  %4341 = vmatprep.subr.mxu0 0.0
  %4342 = vmatpush1.msra.mxu0 %v4315
  %4343 = vmatprep.subr.mxu0 0.0
  %4344 = vmatpush1.msra.mxu0 %v4316
  %4345 = vmatprep.subr.mxu0 0.0
  %4346 = vmatpush1.msra.mxu0 %v4317
  %4347 = vmatprep.subr.mxu0 0.0
  %4348 = vmatpush1.msra.mxu0 %v4318
  %4349 = vmatprep.subr.mxu0 0.0
  %4350 = vmatpush1.msra.mxu0 %v4319
  %4351 = vmatprep.subr.mxu0 0.0
  %4352 = vmatpush1.msra.mxu0 %v4320
  %4353 = vmatprep.subr.mxu0 0.0
  %4354 = vmatpush1.msra.mxu0 0.0
  %4355 = vmatprep.subr.mxu0 0.0
  %4356 = vmatpush1.msra.mxu0 0.0
  %4357 = vmatprep.subr.mxu0 0.0
  %4358 = vmatpush1.msra.mxu0 0.0
  %4359 = vmatprep.subr.mxu0 0.0
  %4360 = vmatpush1.msra.mxu0 0.0
  %4361 = vmatprep.subr.mxu0 0.0
  %4362 = vmatpush1.msra.mxu0 0.0
  %4363 = vmatprep.subr.mxu0 0.0
  %4364 = vmatpush1.msra.mxu0 0.0
  %4365 = vmatprep.subr.mxu0 0.0
  %4366 = vmatpush1.msra.mxu0 0.0
  %4367 = vmatprep.subr.mxu0 0.0
  %4368 = vmatpush1.msra.mxu0 0.0
  %4369 = vmatprep.subr.mxu0 0.0
  %4370 = vmatpush1.msra.mxu0 0.0
  %4371 = vmatprep.subr.mxu0 0.0
  %4372 = vmatpush1.msra.mxu0 0.0
  %4373 = vmatprep.subr.mxu0 0.0
  %4374 = vmatpush1.msra.mxu0 0.0
  %4375 = vmatprep.subr.mxu0 0.0
  %4376 = vmatpush1.msra.mxu0 0.0
  %4377 = vmatprep.subr.mxu0 0.0
  %4378 = vmatpush1.msra.mxu0 0.0
  %4379 = vmatprep.subr.mxu0 0.0
  %4380 = vmatpush1.msra.mxu0 0.0
  %4381 = vmatprep.subr.mxu0 0.0
  %4382 = vmatpush1.msra.mxu0 0.0
  %4383 = vmatprep.subr.mxu0 0.0
  %4384 = vmatpush1.msra.mxu0 0.0
  %4385 = vmatprep.mubr.f32.mxu0 0.0
  %4386 = vmatmul.mubr.f32.gmra.mrb[0].mxu0 %v4288
  %v4387 = vpop.f32.mrb[0].mxu0
  %v4388 = vadd.f32 0.0, %v4387
  %v4389 = vpop.f32.mrb[0].mxu0
  %4390 = vmatprep.mubr.f32.mxu0 0.0
  %4391 = vmatmul.mubr.f32.gmra.mrb[0].mxu0 %v4289
  %v4392 = vpop.f32.mrb[0].mxu0
  %v4393 = vadd.f32 0.0, %v4392
  %v4394 = vpop.f32.mrb[0].mxu0
  %4395 = vmatprep.mubr.f32.mxu0 0.0
  %4396 = vmatmul.mubr.f32.gmra.mrb[0].mxu0 %v4290
  %v4397 = vpop.f32.mrb[0].mxu0
  %v4398 = vadd.f32 0.0, %v4397
  %v4399 = vpop.f32.mrb[0].mxu0
  %4400 = vmatprep.mubr.f32.mxu0 0.0
  %4401 = vmatmul.mubr.f32.gmra.mrb[0].mxu0 %v4291
  %v4402 = vpop.f32.mrb[0].mxu0
  %v4403 = vadd.f32 0.0, %v4402
  %v4404 = vpop.f32.mrb[0].mxu0
  %4405 = vmatprep.mubr.f32.mxu0 0.0
  %4406 = vmatmul.mubr.f32.gmra.mrb[0].mxu0 %v4292
  %v4407 = vpop.f32.mrb[0].mxu0
  %v4408 = vadd.f32 0.0, %v4407
  %v4409 = vpop.f32.mrb[0].mxu0
  %4410 = vmatprep.mubr.f32.mxu0 0.0
  %4411 = vmatmul.mubr.f32.gmra.mrb[0].mxu0 %v4293
  %v4412 = vpop.f32.mrb[0].mxu0
  %v4413 = vadd.f32 0.0, %v4412
  %v4414 = vpop.f32.mrb[0].mxu0
  %4415 = vmatprep.mubr.f32.mxu0 0.0
  %4416 = vmatmul.mubr.f32.gmra.mrb[0].mxu0 %v4294
  %v4417 = vpop.f32.mrb[0].mxu0
  %v4418 = vadd.f32 0.0, %v4417
  %v4419 = vpop.f32.mrb[0].mxu0
  %4420 = vmatprep.mubr.f32.mxu0 0.0
  %4421 = vmatmul.mubr.f32.gmra.mrb[0].mxu0 %v4295
  %v4422 = vpop.f32.mrb[0].mxu0
  %v4423 = vadd.f32 0.0, %v4422
  %v4424 = vpop.f32.mrb[0].mxu0
  %4425 = vmatprep.mubr.f32.mxu0 0.0
  %4426 = vmatmul.mubr.f32.gmra.mrb[0].mxu0 %v4296
  %v4427 = vpop.f32.mrb[0].mxu0
  %v4428 = vadd.f32 0.0, %v4427
  %v4429 = vpop.f32.mrb[0].mxu0
  %4430 = vmatprep.mubr.f32.mxu0 0.0
  %4431 = vmatmul.mubr.f32.gmra.mrb[0].mxu0 %v4297
  %v4432 = vpop.f32.mrb[0].mxu0
  %v4433 = vadd.f32 0.0, %v4432
  %v4434 = vpop.f32.mrb[0].mxu0
  %4435 = vmatprep.mubr.f32.mxu0 0.0
  %4436 = vmatmul.mubr.f32.gmra.mrb[0].mxu0 %v4298
  %v4437 = vpop.f32.mrb[0].mxu0
  %v4438 = vadd.f32 0.0, %v4437
  %v4439 = vpop.f32.mrb[0].mxu0
  %4440 = vmatprep.mubr.f32.mxu0 0.0
  %4441 = vmatmul.mubr.f32.gmra.mrb[0].mxu0 %v4299
  %v4442 = vpop.f32.mrb[0].mxu0
  %v4443 = vadd.f32 0.0, %v4442
  %v4444 = vpop.f32.mrb[0].mxu0
  %4445 = vmatprep.mubr.f32.mxu0 0.0
  %4446 = vmatmul.mubr.f32.gmra.mrb[0].mxu0 %v4300
  %v4447 = vpop.f32.mrb[0].mxu0
  %v4448 = vadd.f32 0.0, %v4447
  %v4449 = vpop.f32.mrb[0].mxu0
  %4450 = vmatprep.mubr.f32.mxu0 0.0
  %4451 = vmatmul.mubr.f32.gmra.mrb[0].mxu0 %v4301
  %v4452 = vpop.f32.mrb[0].mxu0
  %v4453 = vadd.f32 0.0, %v4452
  %v4454 = vpop.f32.mrb[0].mxu0
  %4455 = vmatprep.mubr.f32.mxu0 0.0
  %4456 = vmatmul.mubr.f32.gmra.mrb[0].mxu0 %v4302
  %v4457 = vpop.f32.mrb[0].mxu0
  %v4458 = vadd.f32 0.0, %v4457
  %v4459 = vpop.f32.mrb[0].mxu0
  %4460 = vmatprep.mubr.f32.mxu0 0.0
  %4461 = vmatmul.mubr.f32.gmra.mrb[0].mxu0 %v4303
  %v4462 = vpop.f32.mrb[0].mxu0
  %v4463 = vadd.f32 0.0, %v4462
  %v4464 = vpop.f32.mrb[0].mxu0
  %4465 = vdwg.mxu0
  %v4466 = vadd.f32 %v4210, %v4388
  %v4467 = vadd.f32 %v4215, %v4393
  %v4468 = vadd.f32 %v4220, %v4398
  %v4469 = vadd.f32 %v4225, %v4403
  %v4470 = vadd.f32 %v4230, %v4408
  %v4471 = vadd.f32 %v4235, %v4413
  %v4472 = vadd.f32 %v4240, %v4418
  %v4473 = vadd.f32 %v4245, %v4423
  %v4474 = vadd.f32 %v4250, %v4428
  %v4475 = vadd.f32 %v4255, %v4433
  %v4476 = vadd.f32 %v4260, %v4438
  %v4477 = vadd.f32 %v4265, %v4443
  %v4478 = vadd.f32 %v4270, %v4448
  %v4479 = vadd.f32 %v4275, %v4453
  %v4480 = vadd.f32 %v4280, %v4458
  %v4481 = vadd.f32 %v4285, %v4463
  %v4482 = vld [vmem:[#allocation4 + $0x16] sm:$0xff]
  %v4483 = vld [vmem:[#allocation4 + $0x1e] sm:$0xff]
  %v4484 = vld [vmem:[#allocation4 + $0x26] sm:$0xff]
  %v4485 = vld [vmem:[#allocation4 + $0x2e] sm:$0xff]
  %v4486 = vld [vmem:[#allocation4 + $0x36] sm:$0xff]
  %v4487 = vld [vmem:[#allocation4 + $0x3e] sm:$0xff]
  %v4488 = vld [vmem:[#allocation4 + $0x46] sm:$0xff]
  %v4489 = vld [vmem:[#allocation4 + $0x4e] sm:$0xff]
  %v4490 = vld [vmem:[#allocation4 + $0x56] sm:$0xff]
  %v4491 = vld [vmem:[#allocation4 + $0x5e] sm:$0xff]
  %v4492 = vld [vmem:[#allocation4 + $0x66] sm:$0xff]
  %v4493 = vld [vmem:[#allocation4 + $0x6e] sm:$0xff]
  %v4494 = vld [vmem:[#allocation4 + $0x76] sm:$0xff]
  %v4495 = vld [vmem:[#allocation4 + $0x7e] sm:$0xff]
  %v4496 = vld [vmem:[#allocation4 + $0x86] sm:$0xff]
  %v4497 = vld [vmem:[#allocation4 + $0x8e] sm:$0x3f]
  %s4498 = scalar_lea.vmem %s5, 384
  %v4499 = vld [vmem:[%s4498] sm:$0xff]
  %v4500 = vld [vmem:[%s4498 + $0x8] sm:$0xff]
  %v4501 = vld [vmem:[%s4498 + $0x10] sm:$0xff]
  %v4502 = vld [vmem:[%s4498 + $0x18] sm:$0xff]
  %v4503 = vld [vmem:[%s4498 + $0x20] sm:$0xff]
  %v4504 = vld [vmem:[%s4498 + $0x28] sm:$0xff]
  %v4505 = vld [vmem:[%s4498 + $0x30] sm:$0xff]
  %v4506 = vld [vmem:[%s4498 + $0x38] sm:$0xff]
  %v4507 = vld [vmem:[%s4498 + $0x40] sm:$0xff]
  %v4508 = vld [vmem:[%s4498 + $0x48] sm:$0xff]
  %v4509 = vld [vmem:[%s4498 + $0x50] sm:$0xff]
  %v4510 = vld [vmem:[%s4498 + $0x58] sm:$0xff]
  %v4511 = vld [vmem:[%s4498 + $0x60] sm:$0xff]
  %v4512 = vld [vmem:[%s4498 + $0x68] sm:$0xff]
  %v4513 = vld [vmem:[%s4498 + $0x70] sm:$0xff]
  %v4514 = vld [vmem:[%s4498 + $0x78] sm:$0xff]
  %4515 = vmatprep.subr.mxu0 0.0
  %4516 = vmatpush1.msra.mxu0 %v4499
  %4517 = vmatprep.subr.mxu0 0.0
  %4518 = vmatpush1.msra.mxu0 %v4500
  %4519 = vmatprep.subr.mxu0 0.0
  %4520 = vmatpush1.msra.mxu0 %v4501
  %4521 = vmatprep.subr.mxu0 0.0
  %4522 = vmatpush1.msra.mxu0 %v4502
  %4523 = vmatprep.subr.mxu0 0.0
  %4524 = vmatpush1.msra.mxu0 %v4503
  %4525 = vmatprep.subr.mxu0 0.0
  %4526 = vmatpush1.msra.mxu0 %v4504
  %4527 = vmatprep.subr.mxu0 0.0
  %4528 = vmatpush1.msra.mxu0 %v4505
  %4529 = vmatprep.subr.mxu0 0.0
  %4530 = vmatpush1.msra.mxu0 %v4506
  %4531 = vmatprep.subr.mxu0 0.0
  %4532 = vmatpush1.msra.mxu0 %v4507
  %4533 = vmatprep.subr.mxu0 0.0
  %4534 = vmatpush1.msra.mxu0 %v4508
  %4535 = vmatprep.subr.mxu0 0.0
  %4536 = vmatpush1.msra.mxu0 %v4509
  %4537 = vmatprep.subr.mxu0 0.0
  %4538 = vmatpush1.msra.mxu0 %v4510
  %4539 = vmatprep.subr.mxu0 0.0
  %4540 = vmatpush1.msra.mxu0 %v4511
  %4541 = vmatprep.subr.mxu0 0.0
  %4542 = vmatpush1.msra.mxu0 %v4512
  %4543 = vmatprep.subr.mxu0 0.0
  %4544 = vmatpush1.msra.mxu0 %v4513
  %4545 = vmatprep.subr.mxu0 0.0
  %4546 = vmatpush1.msra.mxu0 %v4514
  %4547 = vmatprep.subr.mxu0 0.0
  %4548 = vmatpush1.msra.mxu0 0.0
  %4549 = vmatprep.subr.mxu0 0.0
  %4550 = vmatpush1.msra.mxu0 0.0
  %4551 = vmatprep.subr.mxu0 0.0
  %4552 = vmatpush1.msra.mxu0 0.0
  %4553 = vmatprep.subr.mxu0 0.0
  %4554 = vmatpush1.msra.mxu0 0.0
  %4555 = vmatprep.subr.mxu0 0.0
  %4556 = vmatpush1.msra.mxu0 0.0
  %4557 = vmatprep.subr.mxu0 0.0
  %4558 = vmatpush1.msra.mxu0 0.0
  %4559 = vmatprep.subr.mxu0 0.0
  %4560 = vmatpush1.msra.mxu0 0.0
  %4561 = vmatprep.subr.mxu0 0.0
  %4562 = vmatpush1.msra.mxu0 0.0
  %4563 = vmatprep.subr.mxu0 0.0
  %4564 = vmatpush1.msra.mxu0 0.0
  %4565 = vmatprep.subr.mxu0 0.0
  %4566 = vmatpush1.msra.mxu0 0.0
  %4567 = vmatprep.subr.mxu0 0.0
  %4568 = vmatpush1.msra.mxu0 0.0
  %4569 = vmatprep.subr.mxu0 0.0
  %4570 = vmatpush1.msra.mxu0 0.0
  %4571 = vmatprep.subr.mxu0 0.0
  %4572 = vmatpush1.msra.mxu0 0.0
  %4573 = vmatprep.subr.mxu0 0.0
  %4574 = vmatpush1.msra.mxu0 0.0
  %4575 = vmatprep.subr.mxu0 0.0
  %4576 = vmatpush1.msra.mxu0 0.0
  %4577 = vmatprep.subr.mxu0 0.0
  %4578 = vmatpush1.msra.mxu0 0.0
  %4579 = vmatprep.mubr.f32.mxu0 0.0
  %4580 = vmatmul.mubr.f32.gmra.mrb[0].mxu0 %v4482
  %v4581 = vpop.f32.mrb[0].mxu0
  %v4582 = vadd.f32 0.0, %v4581
  %v4583 = vpop.f32.mrb[0].mxu0
  %4584 = vmatprep.mubr.f32.mxu0 0.0
  %4585 = vmatmul.mubr.f32.gmra.mrb[0].mxu0 %v4483
  %v4586 = vpop.f32.mrb[0].mxu0
  %v4587 = vadd.f32 0.0, %v4586
  %v4588 = vpop.f32.mrb[0].mxu0
  %4589 = vmatprep.mubr.f32.mxu0 0.0
  %4590 = vmatmul.mubr.f32.gmra.mrb[0].mxu0 %v4484
  %v4591 = vpop.f32.mrb[0].mxu0
  %v4592 = vadd.f32 0.0, %v4591
  %v4593 = vpop.f32.mrb[0].mxu0
  %4594 = vmatprep.mubr.f32.mxu0 0.0
  %4595 = vmatmul.mubr.f32.gmra.mrb[0].mxu0 %v4485
  %v4596 = vpop.f32.mrb[0].mxu0
  %v4597 = vadd.f32 0.0, %v4596
  %v4598 = vpop.f32.mrb[0].mxu0
  %4599 = vmatprep.mubr.f32.mxu0 0.0
  %4600 = vmatmul.mubr.f32.gmra.mrb[0].mxu0 %v4486
  %v4601 = vpop.f32.mrb[0].mxu0
  %v4602 = vadd.f32 0.0, %v4601
  %v4603 = vpop.f32.mrb[0].mxu0
  %4604 = vmatprep.mubr.f32.mxu0 0.0
  %4605 = vmatmul.mubr.f32.gmra.mrb[0].mxu0 %v4487
  %v4606 = vpop.f32.mrb[0].mxu0
  %v4607 = vadd.f32 0.0, %v4606
  %v4608 = vpop.f32.mrb[0].mxu0
  %4609 = vmatprep.mubr.f32.mxu0 0.0
  %4610 = vmatmul.mubr.f32.gmra.mrb[0].mxu0 %v4488
  %v4611 = vpop.f32.mrb[0].mxu0
  %v4612 = vadd.f32 0.0, %v4611
  %v4613 = vpop.f32.mrb[0].mxu0
  %4614 = vmatprep.mubr.f32.mxu0 0.0
  %4615 = vmatmul.mubr.f32.gmra.mrb[0].mxu0 %v4489
  %v4616 = vpop.f32.mrb[0].mxu0
  %v4617 = vadd.f32 0.0, %v4616
  %v4618 = vpop.f32.mrb[0].mxu0
  %4619 = vmatprep.mubr.f32.mxu0 0.0
  %4620 = vmatmul.mubr.f32.gmra.mrb[0].mxu0 %v4490
  %v4621 = vpop.f32.mrb[0].mxu0
  %v4622 = vadd.f32 0.0, %v4621
  %v4623 = vpop.f32.mrb[0].mxu0
  %4624 = vmatprep.mubr.f32.mxu0 0.0
  %4625 = vmatmul.mubr.f32.gmra.mrb[0].mxu0 %v4491
  %v4626 = vpop.f32.mrb[0].mxu0
  %v4627 = vadd.f32 0.0, %v4626
  %v4628 = vpop.f32.mrb[0].mxu0
  %4629 = vmatprep.mubr.f32.mxu0 0.0
  %4630 = vmatmul.mubr.f32.gmra.mrb[0].mxu0 %v4492
  %v4631 = vpop.f32.mrb[0].mxu0
  %v4632 = vadd.f32 0.0, %v4631
  %v4633 = vpop.f32.mrb[0].mxu0
  %4634 = vmatprep.mubr.f32.mxu0 0.0
  %4635 = vmatmul.mubr.f32.gmra.mrb[0].mxu0 %v4493
  %v4636 = vpop.f32.mrb[0].mxu0
  %v4637 = vadd.f32 0.0, %v4636
  %v4638 = vpop.f32.mrb[0].mxu0
  %4639 = vmatprep.mubr.f32.mxu0 0.0
  %4640 = vmatmul.mubr.f32.gmra.mrb[0].mxu0 %v4494
  %v4641 = vpop.f32.mrb[0].mxu0
  %v4642 = vadd.f32 0.0, %v4641
  %v4643 = vpop.f32.mrb[0].mxu0
  %4644 = vmatprep.mubr.f32.mxu0 0.0
  %4645 = vmatmul.mubr.f32.gmra.mrb[0].mxu0 %v4495
  %v4646 = vpop.f32.mrb[0].mxu0
  %v4647 = vadd.f32 0.0, %v4646
  %v4648 = vpop.f32.mrb[0].mxu0
  %4649 = vmatprep.mubr.f32.mxu0 0.0
  %4650 = vmatmul.mubr.f32.gmra.mrb[0].mxu0 %v4496
  %v4651 = vpop.f32.mrb[0].mxu0
  %v4652 = vadd.f32 0.0, %v4651
  %v4653 = vpop.f32.mrb[0].mxu0
  %4654 = vmatprep.mubr.f32.mxu0 0.0
  %4655 = vmatmul.mubr.f32.gmra.mrb[0].mxu0 %v4497
  %v4656 = vpop.f32.mrb[0].mxu0
  %v4657 = vadd.f32 0.0, %v4656
  %v4658 = vpop.f32.mrb[0].mxu0
  %4659 = vdwg.mxu0
  %v4660 = vadd.f32 %v4466, %v4582
  %v4661 = vadd.f32 %v4467, %v4587
  %v4662 = vadd.f32 %v4468, %v4592
  %v4663 = vadd.f32 %v4469, %v4597
  %v4664 = vadd.f32 %v4470, %v4602
  %v4665 = vadd.f32 %v4471, %v4607
  %v4666 = vadd.f32 %v4472, %v4612
  %v4667 = vadd.f32 %v4473, %v4617
  %v4668 = vadd.f32 %v4474, %v4622
  %v4669 = vadd.f32 %v4475, %v4627
  %v4670 = vadd.f32 %v4476, %v4632
  %v4671 = vadd.f32 %v4477, %v4637
  %v4672 = vadd.f32 %v4478, %v4642
  %v4673 = vadd.f32 %v4479, %v4647
  %v4674 = vadd.f32 %v4480, %v4652
  %v4675 = vadd.f32 %v4481, %v4657
  %v4676 = vld [vmem:[#allocation4 + $0x18] sm:$0xff]
  %v4677 = vld [vmem:[#allocation4 + $0x20] sm:$0xff]
  %v4678 = vld [vmem:[#allocation4 + $0x28] sm:$0xff]
  %v4679 = vld [vmem:[#allocation4 + $0x30] sm:$0xff]
  %v4680 = vld [vmem:[#allocation4 + $0x38] sm:$0xff]
  %v4681 = vld [vmem:[#allocation4 + $0x40] sm:$0xff]
  %v4682 = vld [vmem:[#allocation4 + $0x48] sm:$0xff]
  %v4683 = vld [vmem:[#allocation4 + $0x50] sm:$0xff]
  %v4684 = vld [vmem:[#allocation4 + $0x58] sm:$0xff]
  %v4685 = vld [vmem:[#allocation4 + $0x60] sm:$0xff]
  %v4686 = vld [vmem:[#allocation4 + $0x68] sm:$0xff]
  %v4687 = vld [vmem:[#allocation4 + $0x70] sm:$0xff]
  %v4688 = vld [vmem:[#allocation4 + $0x78] sm:$0xff]
  %v4689 = vld [vmem:[#allocation4 + $0x80] sm:$0xff]
  %v4690 = vld [vmem:[#allocation4 + $0x88] sm:$0xff]
  %v4691 = vld [vmem:[#allocation4 + $0x90] sm:$0x3f]
  %s4692 = scalar_lea.vmem %s5, 512
  %v4693 = vld [vmem:[%s4692] sm:$0xff]
  %v4694 = vld [vmem:[%s4692 + $0x8] sm:$0xff]
  %v4695 = vld [vmem:[%s4692 + $0x10] sm:$0xff]
  %v4696 = vld [vmem:[%s4692 + $0x18] sm:$0xff]
  %v4697 = vld [vmem:[%s4692 + $0x20] sm:$0xff]
  %v4698 = vld [vmem:[%s4692 + $0x28] sm:$0xff]
  %v4699 = vld [vmem:[%s4692 + $0x30] sm:$0xff]
  %v4700 = vld [vmem:[%s4692 + $0x38] sm:$0xff]
  %v4701 = vld [vmem:[%s4692 + $0x40] sm:$0xff]
  %v4702 = vld [vmem:[%s4692 + $0x48] sm:$0xff]
  %v4703 = vld [vmem:[%s4692 + $0x50] sm:$0xff]
  %v4704 = vld [vmem:[%s4692 + $0x58] sm:$0xff]
  %v4705 = vld [vmem:[%s4692 + $0x60] sm:$0xff]
  %v4706 = vld [vmem:[%s4692 + $0x68] sm:$0xff]
  %v4707 = vld [vmem:[%s4692 + $0x70] sm:$0xff]
  %v4708 = vld [vmem:[%s4692 + $0x78] sm:$0xff]
  %4709 = vmatprep.subr.mxu0 0.0
  %4710 = vmatpush1.msra.mxu0 %v4693
  %4711 = vmatprep.subr.mxu0 0.0
  %4712 = vmatpush1.msra.mxu0 %v4694
  %4713 = vmatprep.subr.mxu0 0.0
  %4714 = vmatpush1.msra.mxu0 %v4695
  %4715 = vmatprep.subr.mxu0 0.0
  %4716 = vmatpush1.msra.mxu0 %v4696
  %4717 = vmatprep.subr.mxu0 0.0
  %4718 = vmatpush1.msra.mxu0 %v4697
  %4719 = vmatprep.subr.mxu0 0.0
  %4720 = vmatpush1.msra.mxu0 %v4698
  %4721 = vmatprep.subr.mxu0 0.0
  %4722 = vmatpush1.msra.mxu0 %v4699
  %4723 = vmatprep.subr.mxu0 0.0
  %4724 = vmatpush1.msra.mxu0 %v4700
  %4725 = vmatprep.subr.mxu0 0.0
  %4726 = vmatpush1.msra.mxu0 %v4701
  %4727 = vmatprep.subr.mxu0 0.0
  %4728 = vmatpush1.msra.mxu0 %v4702
  %4729 = vmatprep.subr.mxu0 0.0
  %4730 = vmatpush1.msra.mxu0 %v4703
  %4731 = vmatprep.subr.mxu0 0.0
  %4732 = vmatpush1.msra.mxu0 %v4704
  %4733 = vmatprep.subr.mxu0 0.0
  %4734 = vmatpush1.msra.mxu0 %v4705
  %4735 = vmatprep.subr.mxu0 0.0
  %4736 = vmatpush1.msra.mxu0 %v4706
  %4737 = vmatprep.subr.mxu0 0.0
  %4738 = vmatpush1.msra.mxu0 %v4707
  %4739 = vmatprep.subr.mxu0 0.0
  %4740 = vmatpush1.msra.mxu0 %v4708
  %4741 = vmatprep.subr.mxu0 0.0
  %4742 = vmatpush1.msra.mxu0 0.0
  %4743 = vmatprep.subr.mxu0 0.0
  %4744 = vmatpush1.msra.mxu0 0.0
  %4745 = vmatprep.subr.mxu0 0.0
  %4746 = vmatpush1.msra.mxu0 0.0
  %4747 = vmatprep.subr.mxu0 0.0
  %4748 = vmatpush1.msra.mxu0 0.0
  %4749 = vmatprep.subr.mxu0 0.0
  %4750 = vmatpush1.msra.mxu0 0.0
  %4751 = vmatprep.subr.mxu0 0.0
  %4752 = vmatpush1.msra.mxu0 0.0
  %4753 = vmatprep.subr.mxu0 0.0
  %4754 = vmatpush1.msra.mxu0 0.0
  %4755 = vmatprep.subr.mxu0 0.0
  %4756 = vmatpush1.msra.mxu0 0.0
  %4757 = vmatprep.subr.mxu0 0.0
  %4758 = vmatpush1.msra.mxu0 0.0
  %4759 = vmatprep.subr.mxu0 0.0
  %4760 = vmatpush1.msra.mxu0 0.0
  %4761 = vmatprep.subr.mxu0 0.0
  %4762 = vmatpush1.msra.mxu0 0.0
  %4763 = vmatprep.subr.mxu0 0.0
  %4764 = vmatpush1.msra.mxu0 0.0
  %4765 = vmatprep.subr.mxu0 0.0
  %4766 = vmatpush1.msra.mxu0 0.0
  %4767 = vmatprep.subr.mxu0 0.0
  %4768 = vmatpush1.msra.mxu0 0.0
  %4769 = vmatprep.subr.mxu0 0.0
  %4770 = vmatpush1.msra.mxu0 0.0
  %4771 = vmatprep.subr.mxu0 0.0
  %4772 = vmatpush1.msra.mxu0 0.0
  %4773 = vmatprep.mubr.f32.mxu0 0.0
  %4774 = vmatmul.mubr.f32.gmra.mrb[0].mxu0 %v4676
  %v4775 = vpop.f32.mrb[0].mxu0
  %v4776 = vadd.f32 0.0, %v4775
  %v4777 = vpop.f32.mrb[0].mxu0
  %4778 = vmatprep.mubr.f32.mxu0 0.0
  %4779 = vmatmul.mubr.f32.gmra.mrb[0].mxu0 %v4677
  %v4780 = vpop.f32.mrb[0].mxu0
  %v4781 = vadd.f32 0.0, %v4780
  %v4782 = vpop.f32.mrb[0].mxu0
  %4783 = vmatprep.mubr.f32.mxu0 0.0
  %4784 = vmatmul.mubr.f32.gmra.mrb[0].mxu0 %v4678
  %v4785 = vpop.f32.mrb[0].mxu0
  %v4786 = vadd.f32 0.0, %v4785
  %v4787 = vpop.f32.mrb[0].mxu0
  %4788 = vmatprep.mubr.f32.mxu0 0.0
  %4789 = vmatmul.mubr.f32.gmra.mrb[0].mxu0 %v4679
  %v4790 = vpop.f32.mrb[0].mxu0
  %v4791 = vadd.f32 0.0, %v4790
  %v4792 = vpop.f32.mrb[0].mxu0
  %4793 = vmatprep.mubr.f32.mxu0 0.0
  %4794 = vmatmul.mubr.f32.gmra.mrb[0].mxu0 %v4680
  %v4795 = vpop.f32.mrb[0].mxu0
  %v4796 = vadd.f32 0.0, %v4795
  %v4797 = vpop.f32.mrb[0].mxu0
  %4798 = vmatprep.mubr.f32.mxu0 0.0
  %4799 = vmatmul.mubr.f32.gmra.mrb[0].mxu0 %v4681
  %v4800 = vpop.f32.mrb[0].mxu0
  %v4801 = vadd.f32 0.0, %v4800
  %v4802 = vpop.f32.mrb[0].mxu0
  %4803 = vmatprep.mubr.f32.mxu0 0.0
  %4804 = vmatmul.mubr.f32.gmra.mrb[0].mxu0 %v4682
  %v4805 = vpop.f32.mrb[0].mxu0
  %v4806 = vadd.f32 0.0, %v4805
  %v4807 = vpop.f32.mrb[0].mxu0
  %4808 = vmatprep.mubr.f32.mxu0 0.0
  %4809 = vmatmul.mubr.f32.gmra.mrb[0].mxu0 %v4683
  %v4810 = vpop.f32.mrb[0].mxu0
  %v4811 = vadd.f32 0.0, %v4810
  %v4812 = vpop.f32.mrb[0].mxu0
  %4813 = vmatprep.mubr.f32.mxu0 0.0
  %4814 = vmatmul.mubr.f32.gmra.mrb[0].mxu0 %v4684
  %v4815 = vpop.f32.mrb[0].mxu0
  %v4816 = vadd.f32 0.0, %v4815
  %v4817 = vpop.f32.mrb[0].mxu0
  %4818 = vmatprep.mubr.f32.mxu0 0.0
  %4819 = vmatmul.mubr.f32.gmra.mrb[0].mxu0 %v4685
  %v4820 = vpop.f32.mrb[0].mxu0
  %v4821 = vadd.f32 0.0, %v4820
  %v4822 = vpop.f32.mrb[0].mxu0
  %4823 = vmatprep.mubr.f32.mxu0 0.0
  %4824 = vmatmul.mubr.f32.gmra.mrb[0].mxu0 %v4686
  %v4825 = vpop.f32.mrb[0].mxu0
  %v4826 = vadd.f32 0.0, %v4825
  %v4827 = vpop.f32.mrb[0].mxu0
  %4828 = vmatprep.mubr.f32.mxu0 0.0
  %4829 = vmatmul.mubr.f32.gmra.mrb[0].mxu0 %v4687
  %v4830 = vpop.f32.mrb[0].mxu0
  %v4831 = vadd.f32 0.0, %v4830
  %v4832 = vpop.f32.mrb[0].mxu0
  %4833 = vmatprep.mubr.f32.mxu0 0.0
  %4834 = vmatmul.mubr.f32.gmra.mrb[0].mxu0 %v4688
  %v4835 = vpop.f32.mrb[0].mxu0
  %v4836 = vadd.f32 0.0, %v4835
  %v4837 = vpop.f32.mrb[0].mxu0
  %4838 = vmatprep.mubr.f32.mxu0 0.0
  %4839 = vmatmul.mubr.f32.gmra.mrb[0].mxu0 %v4689
  %v4840 = vpop.f32.mrb[0].mxu0
  %v4841 = vadd.f32 0.0, %v4840
  %v4842 = vpop.f32.mrb[0].mxu0
  %4843 = vmatprep.mubr.f32.mxu0 0.0
  %4844 = vmatmul.mubr.f32.gmra.mrb[0].mxu0 %v4690
  %v4845 = vpop.f32.mrb[0].mxu0
  %v4846 = vadd.f32 0.0, %v4845
  %v4847 = vpop.f32.mrb[0].mxu0
  %4848 = vmatprep.mubr.f32.mxu0 0.0
  %4849 = vmatmul.mubr.f32.gmra.mrb[0].mxu0 %v4691
  %v4850 = vpop.f32.mrb[0].mxu0
  %v4851 = vadd.f32 0.0, %v4850
  %v4852 = vpop.f32.mrb[0].mxu0
  %4853 = vdwg.mxu0
  %v4854 = vadd.f32 %v4660, %v4776
  %v4855 = vadd.f32 %v4661, %v4781
  %v4856 = vadd.f32 %v4662, %v4786
  %v4857 = vadd.f32 %v4663, %v4791
  %v4858 = vadd.f32 %v4664, %v4796
  %v4859 = vadd.f32 %v4665, %v4801
  %v4860 = vadd.f32 %v4666, %v4806
  %v4861 = vadd.f32 %v4667, %v4811
  %v4862 = vadd.f32 %v4668, %v4816
  %v4863 = vadd.f32 %v4669, %v4821
  %v4864 = vadd.f32 %v4670, %v4826
  %v4865 = vadd.f32 %v4671, %v4831
  %v4866 = vadd.f32 %v4672, %v4836
  %v4867 = vadd.f32 %v4673, %v4841
  %v4868 = vadd.f32 %v4674, %v4846
  %v4869 = vadd.f32 %v4675, %v4851
  %v4870 = vld [vmem:[#allocation4 + $0x1a] sm:$0xff]
  %v4871 = vld [vmem:[#allocation4 + $0x22] sm:$0xff]
  %v4872 = vld [vmem:[#allocation4 + $0x2a] sm:$0xff]
  %v4873 = vld [vmem:[#allocation4 + $0x32] sm:$0xff]
  %v4874 = vld [vmem:[#allocation4 + $0x3a] sm:$0xff]
  %v4875 = vld [vmem:[#allocation4 + $0x42] sm:$0xff]
  %v4876 = vld [vmem:[#allocation4 + $0x4a] sm:$0xff]
  %v4877 = vld [vmem:[#allocation4 + $0x52] sm:$0xff]
  %v4878 = vld [vmem:[#allocation4 + $0x5a] sm:$0xff]
  %v4879 = vld [vmem:[#allocation4 + $0x62] sm:$0xff]
  %v4880 = vld [vmem:[#allocation4 + $0x6a] sm:$0xff]
  %v4881 = vld [vmem:[#allocation4 + $0x72] sm:$0xff]
  %v4882 = vld [vmem:[#allocation4 + $0x7a] sm:$0xff]
  %v4883 = vld [vmem:[#allocation4 + $0x82] sm:$0xff]
  %v4884 = vld [vmem:[#allocation4 + $0x8a] sm:$0xff]
  %v4885 = vld [vmem:[#allocation4 + $0x92] sm:$0x3f]
  %s4886 = scalar_lea.vmem %s5, 640
  %v4887 = vld [vmem:[%s4886] sm:$0xff]
  %v4888 = vld [vmem:[%s4886 + $0x8] sm:$0xff]
  %v4889 = vld [vmem:[%s4886 + $0x10] sm:$0xff]
  %v4890 = vld [vmem:[%s4886 + $0x18] sm:$0xff]
  %v4891 = vld [vmem:[%s4886 + $0x20] sm:$0xff]
  %v4892 = vld [vmem:[%s4886 + $0x28] sm:$0xff]
  %v4893 = vld [vmem:[%s4886 + $0x30] sm:$0xff]
  %v4894 = vld [vmem:[%s4886 + $0x38] sm:$0xff]
  %v4895 = vld [vmem:[%s4886 + $0x40] sm:$0xff]
  %v4896 = vld [vmem:[%s4886 + $0x48] sm:$0xff]
  %v4897 = vld [vmem:[%s4886 + $0x50] sm:$0xff]
  %v4898 = vld [vmem:[%s4886 + $0x58] sm:$0xff]
  %v4899 = vld [vmem:[%s4886 + $0x60] sm:$0xff]
  %v4900 = vld [vmem:[%s4886 + $0x68] sm:$0xff]
  %v4901 = vld [vmem:[%s4886 + $0x70] sm:$0xff]
  %v4902 = vld [vmem:[%s4886 + $0x78] sm:$0xff]
  %4903 = vmatprep.subr.mxu0 0.0
  %4904 = vmatpush1.msra.mxu0 %v4887
  %4905 = vmatprep.subr.mxu0 0.0
  %4906 = vmatpush1.msra.mxu0 %v4888
  %4907 = vmatprep.subr.mxu0 0.0
  %4908 = vmatpush1.msra.mxu0 %v4889
  %4909 = vmatprep.subr.mxu0 0.0
  %4910 = vmatpush1.msra.mxu0 %v4890
  %4911 = vmatprep.subr.mxu0 0.0
  %4912 = vmatpush1.msra.mxu0 %v4891
  %4913 = vmatprep.subr.mxu0 0.0
  %4914 = vmatpush1.msra.mxu0 %v4892
  %4915 = vmatprep.subr.mxu0 0.0
  %4916 = vmatpush1.msra.mxu0 %v4893
  %4917 = vmatprep.subr.mxu0 0.0
  %4918 = vmatpush1.msra.mxu0 %v4894
  %4919 = vmatprep.subr.mxu0 0.0
  %4920 = vmatpush1.msra.mxu0 %v4895
  %4921 = vmatprep.subr.mxu0 0.0
  %4922 = vmatpush1.msra.mxu0 %v4896
  %4923 = vmatprep.subr.mxu0 0.0
  %4924 = vmatpush1.msra.mxu0 %v4897
  %4925 = vmatprep.subr.mxu0 0.0
  %4926 = vmatpush1.msra.mxu0 %v4898
  %4927 = vmatprep.subr.mxu0 0.0
  %4928 = vmatpush1.msra.mxu0 %v4899
  %4929 = vmatprep.subr.mxu0 0.0
  %4930 = vmatpush1.msra.mxu0 %v4900
  %4931 = vmatprep.subr.mxu0 0.0
  %4932 = vmatpush1.msra.mxu0 %v4901
  %4933 = vmatprep.subr.mxu0 0.0
  %4934 = vmatpush1.msra.mxu0 %v4902
  %4935 = vmatprep.subr.mxu0 0.0
  %4936 = vmatpush1.msra.mxu0 0.0
  %4937 = vmatprep.subr.mxu0 0.0
  %4938 = vmatpush1.msra.mxu0 0.0
  %4939 = vmatprep.subr.mxu0 0.0
  %4940 = vmatpush1.msra.mxu0 0.0
  %4941 = vmatprep.subr.mxu0 0.0
  %4942 = vmatpush1.msra.mxu0 0.0
  %4943 = vmatprep.subr.mxu0 0.0
  %4944 = vmatpush1.msra.mxu0 0.0
  %4945 = vmatprep.subr.mxu0 0.0
  %4946 = vmatpush1.msra.mxu0 0.0
  %4947 = vmatprep.subr.mxu0 0.0
  %4948 = vmatpush1.msra.mxu0 0.0
  %4949 = vmatprep.subr.mxu0 0.0
  %4950 = vmatpush1.msra.mxu0 0.0
  %4951 = vmatprep.subr.mxu0 0.0
  %4952 = vmatpush1.msra.mxu0 0.0
  %4953 = vmatprep.subr.mxu0 0.0
  %4954 = vmatpush1.msra.mxu0 0.0
  %4955 = vmatprep.subr.mxu0 0.0
  %4956 = vmatpush1.msra.mxu0 0.0
  %4957 = vmatprep.subr.mxu0 0.0
  %4958 = vmatpush1.msra.mxu0 0.0
  %4959 = vmatprep.subr.mxu0 0.0
  %4960 = vmatpush1.msra.mxu0 0.0
  %4961 = vmatprep.subr.mxu0 0.0
  %4962 = vmatpush1.msra.mxu0 0.0
  %4963 = vmatprep.subr.mxu0 0.0
  %4964 = vmatpush1.msra.mxu0 0.0
  %4965 = vmatprep.subr.mxu0 0.0
  %4966 = vmatpush1.msra.mxu0 0.0
  %4967 = vmatprep.mubr.f32.mxu0 0.0
  %4968 = vmatmul.mubr.f32.gmra.mrb[0].mxu0 %v4870
  %v4969 = vpop.f32.mrb[0].mxu0
  %v4970 = vadd.f32 0.0, %v4969
  %v4971 = vpop.f32.mrb[0].mxu0
  %4972 = vmatprep.mubr.f32.mxu0 0.0
  %4973 = vmatmul.mubr.f32.gmra.mrb[0].mxu0 %v4871
  %v4974 = vpop.f32.mrb[0].mxu0
  %v4975 = vadd.f32 0.0, %v4974
  %v4976 = vpop.f32.mrb[0].mxu0
  %4977 = vmatprep.mubr.f32.mxu0 0.0
  %4978 = vmatmul.mubr.f32.gmra.mrb[0].mxu0 %v4872
  %v4979 = vpop.f32.mrb[0].mxu0
  %v4980 = vadd.f32 0.0, %v4979
  %v4981 = vpop.f32.mrb[0].mxu0
  %4982 = vmatprep.mubr.f32.mxu0 0.0
  %4983 = vmatmul.mubr.f32.gmra.mrb[0].mxu0 %v4873
  %v4984 = vpop.f32.mrb[0].mxu0
  %v4985 = vadd.f32 0.0, %v4984
  %v4986 = vpop.f32.mrb[0].mxu0
  %4987 = vmatprep.mubr.f32.mxu0 0.0
  %4988 = vmatmul.mubr.f32.gmra.mrb[0].mxu0 %v4874
  %v4989 = vpop.f32.mrb[0].mxu0
  %v4990 = vadd.f32 0.0, %v4989
  %v4991 = vpop.f32.mrb[0].mxu0
  %4992 = vmatprep.mubr.f32.mxu0 0.0
  %4993 = vmatmul.mubr.f32.gmra.mrb[0].mxu0 %v4875
  %v4994 = vpop.f32.mrb[0].mxu0
  %v4995 = vadd.f32 0.0, %v4994
  %v4996 = vpop.f32.mrb[0].mxu0
  %4997 = vmatprep.mubr.f32.mxu0 0.0
  %4998 = vmatmul.mubr.f32.gmra.mrb[0].mxu0 %v4876
  %v4999 = vpop.f32.mrb[0].mxu0
  %v5000 = vadd.f32 0.0, %v4999
  %v5001 = vpop.f32.mrb[0].mxu0
  %5002 = vmatprep.mubr.f32.mxu0 0.0
  %5003 = vmatmul.mubr.f32.gmra.mrb[0].mxu0 %v4877
  %v5004 = vpop.f32.mrb[0].mxu0
  %v5005 = vadd.f32 0.0, %v5004
  %v5006 = vpop.f32.mrb[0].mxu0
  %5007 = vmatprep.mubr.f32.mxu0 0.0
  %5008 = vmatmul.mubr.f32.gmra.mrb[0].mxu0 %v4878
  %v5009 = vpop.f32.mrb[0].mxu0
  %v5010 = vadd.f32 0.0, %v5009
  %v5011 = vpop.f32.mrb[0].mxu0
  %5012 = vmatprep.mubr.f32.mxu0 0.0
  %5013 = vmatmul.mubr.f32.gmra.mrb[0].mxu0 %v4879
  %v5014 = vpop.f32.mrb[0].mxu0
  %v5015 = vadd.f32 0.0, %v5014
  %v5016 = vpop.f32.mrb[0].mxu0
  %5017 = vmatprep.mubr.f32.mxu0 0.0
  %5018 = vmatmul.mubr.f32.gmra.mrb[0].mxu0 %v4880
  %v5019 = vpop.f32.mrb[0].mxu0
  %v5020 = vadd.f32 0.0, %v5019
  %v5021 = vpop.f32.mrb[0].mxu0
  %5022 = vmatprep.mubr.f32.mxu0 0.0
  %5023 = vmatmul.mubr.f32.gmra.mrb[0].mxu0 %v4881
  %v5024 = vpop.f32.mrb[0].mxu0
  %v5025 = vadd.f32 0.0, %v5024
  %v5026 = vpop.f32.mrb[0].mxu0
  %5027 = vmatprep.mubr.f32.mxu0 0.0
  %5028 = vmatmul.mubr.f32.gmra.mrb[0].mxu0 %v4882
  %v5029 = vpop.f32.mrb[0].mxu0
  %v5030 = vadd.f32 0.0, %v5029
  %v5031 = vpop.f32.mrb[0].mxu0
  %5032 = vmatprep.mubr.f32.mxu0 0.0
  %5033 = vmatmul.mubr.f32.gmra.mrb[0].mxu0 %v4883
  %v5034 = vpop.f32.mrb[0].mxu0
  %v5035 = vadd.f32 0.0, %v5034
  %v5036 = vpop.f32.mrb[0].mxu0
  %5037 = vmatprep.mubr.f32.mxu0 0.0
  %5038 = vmatmul.mubr.f32.gmra.mrb[0].mxu0 %v4884
  %v5039 = vpop.f32.mrb[0].mxu0
  %v5040 = vadd.f32 0.0, %v5039
  %v5041 = vpop.f32.mrb[0].mxu0
  %5042 = vmatprep.mubr.f32.mxu0 0.0
  %5043 = vmatmul.mubr.f32.gmra.mrb[0].mxu0 %v4885
  %v5044 = vpop.f32.mrb[0].mxu0
  %v5045 = vadd.f32 0.0, %v5044
  %v5046 = vpop.f32.mrb[0].mxu0
  %5047 = vdwg.mxu0
  %v5048 = vadd.f32 %v4854, %v4970
  %v5049 = vadd.f32 %v4855, %v4975
  %v5050 = vadd.f32 %v4856, %v4980
  %v5051 = vadd.f32 %v4857, %v4985
  %v5052 = vadd.f32 %v4858, %v4990
  %v5053 = vadd.f32 %v4859, %v4995
  %v5054 = vadd.f32 %v4860, %v5000
  %v5055 = vadd.f32 %v4861, %v5005
  %v5056 = vadd.f32 %v4862, %v5010
  %v5057 = vadd.f32 %v4863, %v5015
  %v5058 = vadd.f32 %v4864, %v5020
  %v5059 = vadd.f32 %v4865, %v5025
  %v5060 = vadd.f32 %v4866, %v5030
  %v5061 = vadd.f32 %v4867, %v5035
  %v5062 = vadd.f32 %v4868, %v5040
  %v5063 = vadd.f32 %v4869, %v5045
  %v5064 = vld [vmem:[#allocation4 + $0x28] sm:$0xff]
  %v5065 = vld [vmem:[#allocation4 + $0x30] sm:$0xff]
  %v5066 = vld [vmem:[#allocation4 + $0x38] sm:$0xff]
  %v5067 = vld [vmem:[#allocation4 + $0x40] sm:$0xff]
  %v5068 = vld [vmem:[#allocation4 + $0x48] sm:$0xff]
  %v5069 = vld [vmem:[#allocation4 + $0x50] sm:$0xff]
  %v5070 = vld [vmem:[#allocation4 + $0x58] sm:$0xff]
  %v5071 = vld [vmem:[#allocation4 + $0x60] sm:$0xff]
  %v5072 = vld [vmem:[#allocation4 + $0x68] sm:$0xff]
  %v5073 = vld [vmem:[#allocation4 + $0x70] sm:$0xff]
  %v5074 = vld [vmem:[#allocation4 + $0x78] sm:$0xff]
  %v5075 = vld [vmem:[#allocation4 + $0x80] sm:$0xff]
  %v5076 = vld [vmem:[#allocation4 + $0x88] sm:$0xff]
  %v5077 = vld [vmem:[#allocation4 + $0x90] sm:$0xff]
  %v5078 = vld [vmem:[#allocation4 + $0x98] sm:$0xff]
  %v5079 = vld [vmem:[#allocation4 + $0xa0] sm:$0x3f]
  %s5080 = scalar_lea.vmem %s5, 768
  %v5081 = vld [vmem:[%s5080] sm:$0xff]
  %v5082 = vld [vmem:[%s5080 + $0x8] sm:$0xff]
  %v5083 = vld [vmem:[%s5080 + $0x10] sm:$0xff]
  %v5084 = vld [vmem:[%s5080 + $0x18] sm:$0xff]
  %v5085 = vld [vmem:[%s5080 + $0x20] sm:$0xff]
  %v5086 = vld [vmem:[%s5080 + $0x28] sm:$0xff]
  %v5087 = vld [vmem:[%s5080 + $0x30] sm:$0xff]
  %v5088 = vld [vmem:[%s5080 + $0x38] sm:$0xff]
  %v5089 = vld [vmem:[%s5080 + $0x40] sm:$0xff]
  %v5090 = vld [vmem:[%s5080 + $0x48] sm:$0xff]
  %v5091 = vld [vmem:[%s5080 + $0x50] sm:$0xff]
  %v5092 = vld [vmem:[%s5080 + $0x58] sm:$0xff]
  %v5093 = vld [vmem:[%s5080 + $0x60] sm:$0xff]
  %v5094 = vld [vmem:[%s5080 + $0x68] sm:$0xff]
  %v5095 = vld [vmem:[%s5080 + $0x70] sm:$0xff]
  %v5096 = vld [vmem:[%s5080 + $0x78] sm:$0xff]
  %5097 = vmatprep.subr.mxu0 0.0
  %5098 = vmatpush1.msra.mxu0 %v5081
  %5099 = vmatprep.subr.mxu0 0.0
  %5100 = vmatpush1.msra.mxu0 %v5082
  %5101 = vmatprep.subr.mxu0 0.0
  %5102 = vmatpush1.msra.mxu0 %v5083
  %5103 = vmatprep.subr.mxu0 0.0
  %5104 = vmatpush1.msra.mxu0 %v5084
  %5105 = vmatprep.subr.mxu0 0.0
  %5106 = vmatpush1.msra.mxu0 %v5085
  %5107 = vmatprep.subr.mxu0 0.0
  %5108 = vmatpush1.msra.mxu0 %v5086
  %5109 = vmatprep.subr.mxu0 0.0
  %5110 = vmatpush1.msra.mxu0 %v5087
  %5111 = vmatprep.subr.mxu0 0.0
  %5112 = vmatpush1.msra.mxu0 %v5088
  %5113 = vmatprep.subr.mxu0 0.0
  %5114 = vmatpush1.msra.mxu0 %v5089
  %5115 = vmatprep.subr.mxu0 0.0
  %5116 = vmatpush1.msra.mxu0 %v5090
  %5117 = vmatprep.subr.mxu0 0.0
  %5118 = vmatpush1.msra.mxu0 %v5091
  %5119 = vmatprep.subr.mxu0 0.0
  %5120 = vmatpush1.msra.mxu0 %v5092
  %5121 = vmatprep.subr.mxu0 0.0
  %5122 = vmatpush1.msra.mxu0 %v5093
  %5123 = vmatprep.subr.mxu0 0.0
  %5124 = vmatpush1.msra.mxu0 %v5094
  %5125 = vmatprep.subr.mxu0 0.0
  %5126 = vmatpush1.msra.mxu0 %v5095
  %5127 = vmatprep.subr.mxu0 0.0
  %5128 = vmatpush1.msra.mxu0 %v5096
  %5129 = vmatprep.subr.mxu0 0.0
  %5130 = vmatpush1.msra.mxu0 0.0
  %5131 = vmatprep.subr.mxu0 0.0
  %5132 = vmatpush1.msra.mxu0 0.0
  %5133 = vmatprep.subr.mxu0 0.0
  %5134 = vmatpush1.msra.mxu0 0.0
  %5135 = vmatprep.subr.mxu0 0.0
  %5136 = vmatpush1.msra.mxu0 0.0
  %5137 = vmatprep.subr.mxu0 0.0
  %5138 = vmatpush1.msra.mxu0 0.0
  %5139 = vmatprep.subr.mxu0 0.0
  %5140 = vmatpush1.msra.mxu0 0.0
  %5141 = vmatprep.subr.mxu0 0.0
  %5142 = vmatpush1.msra.mxu0 0.0
  %5143 = vmatprep.subr.mxu0 0.0
  %5144 = vmatpush1.msra.mxu0 0.0
  %5145 = vmatprep.subr.mxu0 0.0
  %5146 = vmatpush1.msra.mxu0 0.0
  %5147 = vmatprep.subr.mxu0 0.0
  %5148 = vmatpush1.msra.mxu0 0.0
  %5149 = vmatprep.subr.mxu0 0.0
  %5150 = vmatpush1.msra.mxu0 0.0
  %5151 = vmatprep.subr.mxu0 0.0
  %5152 = vmatpush1.msra.mxu0 0.0
  %5153 = vmatprep.subr.mxu0 0.0
  %5154 = vmatpush1.msra.mxu0 0.0
  %5155 = vmatprep.subr.mxu0 0.0
  %5156 = vmatpush1.msra.mxu0 0.0
  %5157 = vmatprep.subr.mxu0 0.0
  %5158 = vmatpush1.msra.mxu0 0.0
  %5159 = vmatprep.subr.mxu0 0.0
  %5160 = vmatpush1.msra.mxu0 0.0
  %5161 = vmatprep.mubr.f32.mxu0 0.0
  %5162 = vmatmul.mubr.f32.gmra.mrb[0].mxu0 %v5064
  %v5163 = vpop.f32.mrb[0].mxu0
  %v5164 = vadd.f32 0.0, %v5163
  %v5165 = vpop.f32.mrb[0].mxu0
  %5166 = vmatprep.mubr.f32.mxu0 0.0
  %5167 = vmatmul.mubr.f32.gmra.mrb[0].mxu0 %v5065
  %v5168 = vpop.f32.mrb[0].mxu0
  %v5169 = vadd.f32 0.0, %v5168
  %v5170 = vpop.f32.mrb[0].mxu0
  %5171 = vmatprep.mubr.f32.mxu0 0.0
  %5172 = vmatmul.mubr.f32.gmra.mrb[0].mxu0 %v5066
  %v5173 = vpop.f32.mrb[0].mxu0
  %v5174 = vadd.f32 0.0, %v5173
  %v5175 = vpop.f32.mrb[0].mxu0
  %5176 = vmatprep.mubr.f32.mxu0 0.0
  %5177 = vmatmul.mubr.f32.gmra.mrb[0].mxu0 %v5067
  %v5178 = vpop.f32.mrb[0].mxu0
  %v5179 = vadd.f32 0.0, %v5178
  %v5180 = vpop.f32.mrb[0].mxu0
  %5181 = vmatprep.mubr.f32.mxu0 0.0
  %5182 = vmatmul.mubr.f32.gmra.mrb[0].mxu0 %v5068
  %v5183 = vpop.f32.mrb[0].mxu0
  %v5184 = vadd.f32 0.0, %v5183
  %v5185 = vpop.f32.mrb[0].mxu0
  %5186 = vmatprep.mubr.f32.mxu0 0.0
  %5187 = vmatmul.mubr.f32.gmra.mrb[0].mxu0 %v5069
  %v5188 = vpop.f32.mrb[0].mxu0
  %v5189 = vadd.f32 0.0, %v5188
  %v5190 = vpop.f32.mrb[0].mxu0
  %5191 = vmatprep.mubr.f32.mxu0 0.0
  %5192 = vmatmul.mubr.f32.gmra.mrb[0].mxu0 %v5070
  %v5193 = vpop.f32.mrb[0].mxu0
  %v5194 = vadd.f32 0.0, %v5193
  %v5195 = vpop.f32.mrb[0].mxu0
  %5196 = vmatprep.mubr.f32.mxu0 0.0
  %5197 = vmatmul.mubr.f32.gmra.mrb[0].mxu0 %v5071
  %v5198 = vpop.f32.mrb[0].mxu0
  %v5199 = vadd.f32 0.0, %v5198
  %v5200 = vpop.f32.mrb[0].mxu0
  %5201 = vmatprep.mubr.f32.mxu0 0.0
  %5202 = vmatmul.mubr.f32.gmra.mrb[0].mxu0 %v5072
  %v5203 = vpop.f32.mrb[0].mxu0
  %v5204 = vadd.f32 0.0, %v5203
  %v5205 = vpop.f32.mrb[0].mxu0
  %5206 = vmatprep.mubr.f32.mxu0 0.0
  %5207 = vmatmul.mubr.f32.gmra.mrb[0].mxu0 %v5073
  %v5208 = vpop.f32.mrb[0].mxu0
  %v5209 = vadd.f32 0.0, %v5208
  %v5210 = vpop.f32.mrb[0].mxu0
  %5211 = vmatprep.mubr.f32.mxu0 0.0
  %5212 = vmatmul.mubr.f32.gmra.mrb[0].mxu0 %v5074
  %v5213 = vpop.f32.mrb[0].mxu0
  %v5214 = vadd.f32 0.0, %v5213
  %v5215 = vpop.f32.mrb[0].mxu0
  %5216 = vmatprep.mubr.f32.mxu0 0.0
  %5217 = vmatmul.mubr.f32.gmra.mrb[0].mxu0 %v5075
  %v5218 = vpop.f32.mrb[0].mxu0
  %v5219 = vadd.f32 0.0, %v5218
  %v5220 = vpop.f32.mrb[0].mxu0
  %5221 = vmatprep.mubr.f32.mxu0 0.0
  %5222 = vmatmul.mubr.f32.gmra.mrb[0].mxu0 %v5076
  %v5223 = vpop.f32.mrb[0].mxu0
  %v5224 = vadd.f32 0.0, %v5223
  %v5225 = vpop.f32.mrb[0].mxu0
  %5226 = vmatprep.mubr.f32.mxu0 0.0
  %5227 = vmatmul.mubr.f32.gmra.mrb[0].mxu0 %v5077
  %v5228 = vpop.f32.mrb[0].mxu0
  %v5229 = vadd.f32 0.0, %v5228
  %v5230 = vpop.f32.mrb[0].mxu0
  %5231 = vmatprep.mubr.f32.mxu0 0.0
  %5232 = vmatmul.mubr.f32.gmra.mrb[0].mxu0 %v5078
  %v5233 = vpop.f32.mrb[0].mxu0
  %v5234 = vadd.f32 0.0, %v5233
  %v5235 = vpop.f32.mrb[0].mxu0
  %5236 = vmatprep.mubr.f32.mxu0 0.0
  %5237 = vmatmul.mubr.f32.gmra.mrb[0].mxu0 %v5079
  %v5238 = vpop.f32.mrb[0].mxu0
  %v5239 = vadd.f32 0.0, %v5238
  %v5240 = vpop.f32.mrb[0].mxu0
  %5241 = vdwg.mxu0
  %v5242 = vadd.f32 %v5048, %v5164
  %v5243 = vadd.f32 %v5049, %v5169
  %v5244 = vadd.f32 %v5050, %v5174
  %v5245 = vadd.f32 %v5051, %v5179
  %v5246 = vadd.f32 %v5052, %v5184
  %v5247 = vadd.f32 %v5053, %v5189
  %v5248 = vadd.f32 %v5054, %v5194
  %v5249 = vadd.f32 %v5055, %v5199
  %v5250 = vadd.f32 %v5056, %v5204
  %v5251 = vadd.f32 %v5057, %v5209
  %v5252 = vadd.f32 %v5058, %v5214
  %v5253 = vadd.f32 %v5059, %v5219
  %v5254 = vadd.f32 %v5060, %v5224
  %v5255 = vadd.f32 %v5061, %v5229
  %v5256 = vadd.f32 %v5062, %v5234
  %v5257 = vadd.f32 %v5063, %v5239
  %v5258 = vld [vmem:[#allocation4 + $0x2a] sm:$0xff]
  %v5259 = vld [vmem:[#allocation4 + $0x32] sm:$0xff]
  %v5260 = vld [vmem:[#allocation4 + $0x3a] sm:$0xff]
  %v5261 = vld [vmem:[#allocation4 + $0x42] sm:$0xff]
  %v5262 = vld [vmem:[#allocation4 + $0x4a] sm:$0xff]
  %v5263 = vld [vmem:[#allocation4 + $0x52] sm:$0xff]
  %v5264 = vld [vmem:[#allocation4 + $0x5a] sm:$0xff]
  %v5265 = vld [vmem:[#allocation4 + $0x62] sm:$0xff]
  %v5266 = vld [vmem:[#allocation4 + $0x6a] sm:$0xff]
  %v5267 = vld [vmem:[#allocation4 + $0x72] sm:$0xff]
  %v5268 = vld [vmem:[#allocation4 + $0x7a] sm:$0xff]
  %v5269 = vld [vmem:[#allocation4 + $0x82] sm:$0xff]
  %v5270 = vld [vmem:[#allocation4 + $0x8a] sm:$0xff]
  %v5271 = vld [vmem:[#allocation4 + $0x92] sm:$0xff]
  %v5272 = vld [vmem:[#allocation4 + $0x9a] sm:$0xff]
  %v5273 = vld [vmem:[#allocation4 + $0xa2] sm:$0x3f]
  %s5274 = scalar_lea.vmem %s5, 896
  %v5275 = vld [vmem:[%s5274] sm:$0xff]
  %v5276 = vld [vmem:[%s5274 + $0x8] sm:$0xff]
  %v5277 = vld [vmem:[%s5274 + $0x10] sm:$0xff]
  %v5278 = vld [vmem:[%s5274 + $0x18] sm:$0xff]
  %v5279 = vld [vmem:[%s5274 + $0x20] sm:$0xff]
  %v5280 = vld [vmem:[%s5274 + $0x28] sm:$0xff]
  %v5281 = vld [vmem:[%s5274 + $0x30] sm:$0xff]
  %v5282 = vld [vmem:[%s5274 + $0x38] sm:$0xff]
  %v5283 = vld [vmem:[%s5274 + $0x40] sm:$0xff]
  %v5284 = vld [vmem:[%s5274 + $0x48] sm:$0xff]
  %v5285 = vld [vmem:[%s5274 + $0x50] sm:$0xff]
  %v5286 = vld [vmem:[%s5274 + $0x58] sm:$0xff]
  %v5287 = vld [vmem:[%s5274 + $0x60] sm:$0xff]
  %v5288 = vld [vmem:[%s5274 + $0x68] sm:$0xff]
  %v5289 = vld [vmem:[%s5274 + $0x70] sm:$0xff]
  %v5290 = vld [vmem:[%s5274 + $0x78] sm:$0xff]
  %5291 = vmatprep.subr.mxu0 0.0
  %5292 = vmatpush1.msra.mxu0 %v5275
  %5293 = vmatprep.subr.mxu0 0.0
  %5294 = vmatpush1.msra.mxu0 %v5276
  %5295 = vmatprep.subr.mxu0 0.0
  %5296 = vmatpush1.msra.mxu0 %v5277
  %5297 = vmatprep.subr.mxu0 0.0
  %5298 = vmatpush1.msra.mxu0 %v5278
  %5299 = vmatprep.subr.mxu0 0.0
  %5300 = vmatpush1.msra.mxu0 %v5279
  %5301 = vmatprep.subr.mxu0 0.0
  %5302 = vmatpush1.msra.mxu0 %v5280
  %5303 = vmatprep.subr.mxu0 0.0
  %5304 = vmatpush1.msra.mxu0 %v5281
  %5305 = vmatprep.subr.mxu0 0.0
  %5306 = vmatpush1.msra.mxu0 %v5282
  %5307 = vmatprep.subr.mxu0 0.0
  %5308 = vmatpush1.msra.mxu0 %v5283
  %5309 = vmatprep.subr.mxu0 0.0
  %5310 = vmatpush1.msra.mxu0 %v5284
  %5311 = vmatprep.subr.mxu0 0.0
  %5312 = vmatpush1.msra.mxu0 %v5285
  %5313 = vmatprep.subr.mxu0 0.0
  %5314 = vmatpush1.msra.mxu0 %v5286
  %5315 = vmatprep.subr.mxu0 0.0
  %5316 = vmatpush1.msra.mxu0 %v5287
  %5317 = vmatprep.subr.mxu0 0.0
  %5318 = vmatpush1.msra.mxu0 %v5288
  %5319 = vmatprep.subr.mxu0 0.0
  %5320 = vmatpush1.msra.mxu0 %v5289
  %5321 = vmatprep.subr.mxu0 0.0
  %5322 = vmatpush1.msra.mxu0 %v5290
  %5323 = vmatprep.subr.mxu0 0.0
  %5324 = vmatpush1.msra.mxu0 0.0
  %5325 = vmatprep.subr.mxu0 0.0
  %5326 = vmatpush1.msra.mxu0 0.0
  %5327 = vmatprep.subr.mxu0 0.0
  %5328 = vmatpush1.msra.mxu0 0.0
  %5329 = vmatprep.subr.mxu0 0.0
  %5330 = vmatpush1.msra.mxu0 0.0
  %5331 = vmatprep.subr.mxu0 0.0
  %5332 = vmatpush1.msra.mxu0 0.0
  %5333 = vmatprep.subr.mxu0 0.0
  %5334 = vmatpush1.msra.mxu0 0.0
  %5335 = vmatprep.subr.mxu0 0.0
  %5336 = vmatpush1.msra.mxu0 0.0
  %5337 = vmatprep.subr.mxu0 0.0
  %5338 = vmatpush1.msra.mxu0 0.0
  %5339 = vmatprep.subr.mxu0 0.0
  %5340 = vmatpush1.msra.mxu0 0.0
  %5341 = vmatprep.subr.mxu0 0.0
  %5342 = vmatpush1.msra.mxu0 0.0
  %5343 = vmatprep.subr.mxu0 0.0
  %5344 = vmatpush1.msra.mxu0 0.0
  %5345 = vmatprep.subr.mxu0 0.0
  %5346 = vmatpush1.msra.mxu0 0.0
  %5347 = vmatprep.subr.mxu0 0.0
  %5348 = vmatpush1.msra.mxu0 0.0
  %5349 = vmatprep.subr.mxu0 0.0
  %5350 = vmatpush1.msra.mxu0 0.0
  %5351 = vmatprep.subr.mxu0 0.0
  %5352 = vmatpush1.msra.mxu0 0.0
  %5353 = vmatprep.subr.mxu0 0.0
  %5354 = vmatpush1.msra.mxu0 0.0
  %5355 = vmatprep.mubr.f32.mxu0 0.0
  %5356 = vmatmul.mubr.f32.gmra.mrb[0].mxu0 %v5258
  %v5357 = vpop.f32.mrb[0].mxu0
  %v5358 = vadd.f32 0.0, %v5357
  %v5359 = vpop.f32.mrb[0].mxu0
  %5360 = vmatprep.mubr.f32.mxu0 0.0
  %5361 = vmatmul.mubr.f32.gmra.mrb[0].mxu0 %v5259
  %v5362 = vpop.f32.mrb[0].mxu0
  %v5363 = vadd.f32 0.0, %v5362
  %v5364 = vpop.f32.mrb[0].mxu0
  %5365 = vmatprep.mubr.f32.mxu0 0.0
  %5366 = vmatmul.mubr.f32.gmra.mrb[0].mxu0 %v5260
  %v5367 = vpop.f32.mrb[0].mxu0
  %v5368 = vadd.f32 0.0, %v5367
  %v5369 = vpop.f32.mrb[0].mxu0
  %5370 = vmatprep.mubr.f32.mxu0 0.0
  %5371 = vmatmul.mubr.f32.gmra.mrb[0].mxu0 %v5261
  %v5372 = vpop.f32.mrb[0].mxu0
  %v5373 = vadd.f32 0.0, %v5372
  %v5374 = vpop.f32.mrb[0].mxu0
  %5375 = vmatprep.mubr.f32.mxu0 0.0
  %5376 = vmatmul.mubr.f32.gmra.mrb[0].mxu0 %v5262
  %v5377 = vpop.f32.mrb[0].mxu0
  %v5378 = vadd.f32 0.0, %v5377
  %v5379 = vpop.f32.mrb[0].mxu0
  %5380 = vmatprep.mubr.f32.mxu0 0.0
  %5381 = vmatmul.mubr.f32.gmra.mrb[0].mxu0 %v5263
  %v5382 = vpop.f32.mrb[0].mxu0
  %v5383 = vadd.f32 0.0, %v5382
  %v5384 = vpop.f32.mrb[0].mxu0
  %5385 = vmatprep.mubr.f32.mxu0 0.0
  %5386 = vmatmul.mubr.f32.gmra.mrb[0].mxu0 %v5264
  %v5387 = vpop.f32.mrb[0].mxu0
  %v5388 = vadd.f32 0.0, %v5387
  %v5389 = vpop.f32.mrb[0].mxu0
  %5390 = vmatprep.mubr.f32.mxu0 0.0
  %5391 = vmatmul.mubr.f32.gmra.mrb[0].mxu0 %v5265
  %v5392 = vpop.f32.mrb[0].mxu0
  %v5393 = vadd.f32 0.0, %v5392
  %v5394 = vpop.f32.mrb[0].mxu0
  %5395 = vmatprep.mubr.f32.mxu0 0.0
  %5396 = vmatmul.mubr.f32.gmra.mrb[0].mxu0 %v5266
  %v5397 = vpop.f32.mrb[0].mxu0
  %v5398 = vadd.f32 0.0, %v5397
  %v5399 = vpop.f32.mrb[0].mxu0
  %5400 = vmatprep.mubr.f32.mxu0 0.0
  %5401 = vmatmul.mubr.f32.gmra.mrb[0].mxu0 %v5267
  %v5402 = vpop.f32.mrb[0].mxu0
  %v5403 = vadd.f32 0.0, %v5402
  %v5404 = vpop.f32.mrb[0].mxu0
  %5405 = vmatprep.mubr.f32.mxu0 0.0
  %5406 = vmatmul.mubr.f32.gmra.mrb[0].mxu0 %v5268
  %v5407 = vpop.f32.mrb[0].mxu0
  %v5408 = vadd.f32 0.0, %v5407
  %v5409 = vpop.f32.mrb[0].mxu0
  %5410 = vmatprep.mubr.f32.mxu0 0.0
  %5411 = vmatmul.mubr.f32.gmra.mrb[0].mxu0 %v5269
  %v5412 = vpop.f32.mrb[0].mxu0
  %v5413 = vadd.f32 0.0, %v5412
  %v5414 = vpop.f32.mrb[0].mxu0
  %5415 = vmatprep.mubr.f32.mxu0 0.0
  %5416 = vmatmul.mubr.f32.gmra.mrb[0].mxu0 %v5270
  %v5417 = vpop.f32.mrb[0].mxu0
  %v5418 = vadd.f32 0.0, %v5417
  %v5419 = vpop.f32.mrb[0].mxu0
  %5420 = vmatprep.mubr.f32.mxu0 0.0
  %5421 = vmatmul.mubr.f32.gmra.mrb[0].mxu0 %v5271
  %v5422 = vpop.f32.mrb[0].mxu0
  %v5423 = vadd.f32 0.0, %v5422
  %v5424 = vpop.f32.mrb[0].mxu0
  %5425 = vmatprep.mubr.f32.mxu0 0.0
  %5426 = vmatmul.mubr.f32.gmra.mrb[0].mxu0 %v5272
  %v5427 = vpop.f32.mrb[0].mxu0
  %v5428 = vadd.f32 0.0, %v5427
  %v5429 = vpop.f32.mrb[0].mxu0
  %5430 = vmatprep.mubr.f32.mxu0 0.0
  %5431 = vmatmul.mubr.f32.gmra.mrb[0].mxu0 %v5273
  %v5432 = vpop.f32.mrb[0].mxu0
  %v5433 = vadd.f32 0.0, %v5432
  %v5434 = vpop.f32.mrb[0].mxu0
  %5435 = vdwg.mxu0
  %v5436 = vadd.f32 %v5242, %v5358
  %v5437 = vadd.f32 %v5243, %v5363
  %v5438 = vadd.f32 %v5244, %v5368
  %v5439 = vadd.f32 %v5245, %v5373
  %v5440 = vadd.f32 %v5246, %v5378
  %v5441 = vadd.f32 %v5247, %v5383
  %v5442 = vadd.f32 %v5248, %v5388
  %v5443 = vadd.f32 %v5249, %v5393
  %v5444 = vadd.f32 %v5250, %v5398
  %v5445 = vadd.f32 %v5251, %v5403
  %v5446 = vadd.f32 %v5252, %v5408
  %v5447 = vadd.f32 %v5253, %v5413
  %v5448 = vadd.f32 %v5254, %v5418
  %v5449 = vadd.f32 %v5255, %v5423
  %v5450 = vadd.f32 %v5256, %v5428
  %v5451 = vadd.f32 %v5257, %v5433
  %v5452 = vld [vmem:[#allocation4 + $0x2c] sm:$0xff]
  %v5453 = vld [vmem:[#allocation4 + $0x34] sm:$0xff]
  %v5454 = vld [vmem:[#allocation4 + $0x3c] sm:$0xff]
  %v5455 = vld [vmem:[#allocation4 + $0x44] sm:$0xff]
  %v5456 = vld [vmem:[#allocation4 + $0x4c] sm:$0xff]
  %v5457 = vld [vmem:[#allocation4 + $0x54] sm:$0xff]
  %v5458 = vld [vmem:[#allocation4 + $0x5c] sm:$0xff]
  %v5459 = vld [vmem:[#allocation4 + $0x64] sm:$0xff]
  %v5460 = vld [vmem:[#allocation4 + $0x6c] sm:$0xff]
  %v5461 = vld [vmem:[#allocation4 + $0x74] sm:$0xff]
  %v5462 = vld [vmem:[#allocation4 + $0x7c] sm:$0xff]
  %v5463 = vld [vmem:[#allocation4 + $0x84] sm:$0xff]
  %v5464 = vld [vmem:[#allocation4 + $0x8c] sm:$0xff]
  %v5465 = vld [vmem:[#allocation4 + $0x94] sm:$0xff]
  %v5466 = vld [vmem:[#allocation4 + $0x9c] sm:$0xff]
  %v5467 = vld [vmem:[#allocation4 + $0xa4] sm:$0x3f]
  %s5468 = scalar_lea.vmem %s5, 1024
  %v5469 = vld [vmem:[%s5468] sm:$0xff]
  %v5470 = vld [vmem:[%s5468 + $0x8] sm:$0xff]
  %v5471 = vld [vmem:[%s5468 + $0x10] sm:$0xff]
  %v5472 = vld [vmem:[%s5468 + $0x18] sm:$0xff]
  %v5473 = vld [vmem:[%s5468 + $0x20] sm:$0xff]
  %v5474 = vld [vmem:[%s5468 + $0x28] sm:$0xff]
  %v5475 = vld [vmem:[%s5468 + $0x30] sm:$0xff]
  %v5476 = vld [vmem:[%s5468 + $0x38] sm:$0xff]
  %v5477 = vld [vmem:[%s5468 + $0x40] sm:$0xff]
  %v5478 = vld [vmem:[%s5468 + $0x48] sm:$0xff]
  %v5479 = vld [vmem:[%s5468 + $0x50] sm:$0xff]
  %v5480 = vld [vmem:[%s5468 + $0x58] sm:$0xff]
  %v5481 = vld [vmem:[%s5468 + $0x60] sm:$0xff]
  %v5482 = vld [vmem:[%s5468 + $0x68] sm:$0xff]
  %v5483 = vld [vmem:[%s5468 + $0x70] sm:$0xff]
  %v5484 = vld [vmem:[%s5468 + $0x78] sm:$0xff]
  %5485 = vmatprep.subr.mxu0 0.0
  %5486 = vmatpush1.msra.mxu0 %v5469
  %5487 = vmatprep.subr.mxu0 0.0
  %5488 = vmatpush1.msra.mxu0 %v5470
  %5489 = vmatprep.subr.mxu0 0.0
  %5490 = vmatpush1.msra.mxu0 %v5471
  %5491 = vmatprep.subr.mxu0 0.0
  %5492 = vmatpush1.msra.mxu0 %v5472
  %5493 = vmatprep.subr.mxu0 0.0
  %5494 = vmatpush1.msra.mxu0 %v5473
  %5495 = vmatprep.subr.mxu0 0.0
  %5496 = vmatpush1.msra.mxu0 %v5474
  %5497 = vmatprep.subr.mxu0 0.0
  %5498 = vmatpush1.msra.mxu0 %v5475
  %5499 = vmatprep.subr.mxu0 0.0
  %5500 = vmatpush1.msra.mxu0 %v5476
  %5501 = vmatprep.subr.mxu0 0.0
  %5502 = vmatpush1.msra.mxu0 %v5477
  %5503 = vmatprep.subr.mxu0 0.0
  %5504 = vmatpush1.msra.mxu0 %v5478
  %5505 = vmatprep.subr.mxu0 0.0
  %5506 = vmatpush1.msra.mxu0 %v5479
  %5507 = vmatprep.subr.mxu0 0.0
  %5508 = vmatpush1.msra.mxu0 %v5480
  %5509 = vmatprep.subr.mxu0 0.0
  %5510 = vmatpush1.msra.mxu0 %v5481
  %5511 = vmatprep.subr.mxu0 0.0
  %5512 = vmatpush1.msra.mxu0 %v5482
  %5513 = vmatprep.subr.mxu0 0.0
  %5514 = vmatpush1.msra.mxu0 %v5483
  %5515 = vmatprep.subr.mxu0 0.0
  %5516 = vmatpush1.msra.mxu0 %v5484
  %5517 = vmatprep.subr.mxu0 0.0
  %5518 = vmatpush1.msra.mxu0 0.0
  %5519 = vmatprep.subr.mxu0 0.0
  %5520 = vmatpush1.msra.mxu0 0.0
  %5521 = vmatprep.subr.mxu0 0.0
  %5522 = vmatpush1.msra.mxu0 0.0
  %5523 = vmatprep.subr.mxu0 0.0
  %5524 = vmatpush1.msra.mxu0 0.0
  %5525 = vmatprep.subr.mxu0 0.0
  %5526 = vmatpush1.msra.mxu0 0.0
  %5527 = vmatprep.subr.mxu0 0.0
  %5528 = vmatpush1.msra.mxu0 0.0
  %5529 = vmatprep.subr.mxu0 0.0
  %5530 = vmatpush1.msra.mxu0 0.0
  %5531 = vmatprep.subr.mxu0 0.0
  %5532 = vmatpush1.msra.mxu0 0.0
  %5533 = vmatprep.subr.mxu0 0.0
  %5534 = vmatpush1.msra.mxu0 0.0
  %5535 = vmatprep.subr.mxu0 0.0
  %5536 = vmatpush1.msra.mxu0 0.0
  %5537 = vmatprep.subr.mxu0 0.0
  %5538 = vmatpush1.msra.mxu0 0.0
  %5539 = vmatprep.subr.mxu0 0.0
  %5540 = vmatpush1.msra.mxu0 0.0
  %5541 = vmatprep.subr.mxu0 0.0
  %5542 = vmatpush1.msra.mxu0 0.0
  %5543 = vmatprep.subr.mxu0 0.0
  %5544 = vmatpush1.msra.mxu0 0.0
  %5545 = vmatprep.subr.mxu0 0.0
  %5546 = vmatpush1.msra.mxu0 0.0
  %5547 = vmatprep.subr.mxu0 0.0
  %5548 = vmatpush1.msra.mxu0 0.0
  %5549 = vmatprep.mubr.f32.mxu0 0.0
  %5550 = vmatmul.mubr.f32.gmra.mrb[0].mxu0 %v5452
  %v5551 = vpop.f32.mrb[0].mxu0
  %v5552 = vadd.f32 0.0, %v5551
  %v5553 = vpop.f32.mrb[0].mxu0
  %5554 = vmatprep.mubr.f32.mxu0 0.0
  %5555 = vmatmul.mubr.f32.gmra.mrb[0].mxu0 %v5453
  %v5556 = vpop.f32.mrb[0].mxu0
  %v5557 = vadd.f32 0.0, %v5556
  %v5558 = vpop.f32.mrb[0].mxu0
  %5559 = vmatprep.mubr.f32.mxu0 0.0
  %5560 = vmatmul.mubr.f32.gmra.mrb[0].mxu0 %v5454
  %v5561 = vpop.f32.mrb[0].mxu0
  %v5562 = vadd.f32 0.0, %v5561
  %v5563 = vpop.f32.mrb[0].mxu0
  %5564 = vmatprep.mubr.f32.mxu0 0.0
  %5565 = vmatmul.mubr.f32.gmra.mrb[0].mxu0 %v5455
  %v5566 = vpop.f32.mrb[0].mxu0
  %v5567 = vadd.f32 0.0, %v5566
  %v5568 = vpop.f32.mrb[0].mxu0
  %5569 = vmatprep.mubr.f32.mxu0 0.0
  %5570 = vmatmul.mubr.f32.gmra.mrb[0].mxu0 %v5456
  %v5571 = vpop.f32.mrb[0].mxu0
  %v5572 = vadd.f32 0.0, %v5571
  %v5573 = vpop.f32.mrb[0].mxu0
  %5574 = vmatprep.mubr.f32.mxu0 0.0
  %5575 = vmatmul.mubr.f32.gmra.mrb[0].mxu0 %v5457
  %v5576 = vpop.f32.mrb[0].mxu0
  %v5577 = vadd.f32 0.0, %v5576
  %v5578 = vpop.f32.mrb[0].mxu0
  %5579 = vmatprep.mubr.f32.mxu0 0.0
  %5580 = vmatmul.mubr.f32.gmra.mrb[0].mxu0 %v5458
  %v5581 = vpop.f32.mrb[0].mxu0
  %v5582 = vadd.f32 0.0, %v5581
  %v5583 = vpop.f32.mrb[0].mxu0
  %5584 = vmatprep.mubr.f32.mxu0 0.0
  %5585 = vmatmul.mubr.f32.gmra.mrb[0].mxu0 %v5459
  %v5586 = vpop.f32.mrb[0].mxu0
  %v5587 = vadd.f32 0.0, %v5586
  %v5588 = vpop.f32.mrb[0].mxu0
  %5589 = vmatprep.mubr.f32.mxu0 0.0
  %5590 = vmatmul.mubr.f32.gmra.mrb[0].mxu0 %v5460
  %v5591 = vpop.f32.mrb[0].mxu0
  %v5592 = vadd.f32 0.0, %v5591
  %v5593 = vpop.f32.mrb[0].mxu0
  %5594 = vmatprep.mubr.f32.mxu0 0.0
  %5595 = vmatmul.mubr.f32.gmra.mrb[0].mxu0 %v5461
  %v5596 = vpop.f32.mrb[0].mxu0
  %v5597 = vadd.f32 0.0, %v5596
  %v5598 = vpop.f32.mrb[0].mxu0
  %5599 = vmatprep.mubr.f32.mxu0 0.0
  %5600 = vmatmul.mubr.f32.gmra.mrb[0].mxu0 %v5462
  %v5601 = vpop.f32.mrb[0].mxu0
  %v5602 = vadd.f32 0.0, %v5601
  %v5603 = vpop.f32.mrb[0].mxu0
  %5604 = vmatprep.mubr.f32.mxu0 0.0
  %5605 = vmatmul.mubr.f32.gmra.mrb[0].mxu0 %v5463
  %v5606 = vpop.f32.mrb[0].mxu0
  %v5607 = vadd.f32 0.0, %v5606
  %v5608 = vpop.f32.mrb[0].mxu0
  %5609 = vmatprep.mubr.f32.mxu0 0.0
  %5610 = vmatmul.mubr.f32.gmra.mrb[0].mxu0 %v5464
  %v5611 = vpop.f32.mrb[0].mxu0
  %v5612 = vadd.f32 0.0, %v5611
  %v5613 = vpop.f32.mrb[0].mxu0
  %5614 = vmatprep.mubr.f32.mxu0 0.0
  %5615 = vmatmul.mubr.f32.gmra.mrb[0].mxu0 %v5465
  %v5616 = vpop.f32.mrb[0].mxu0
  %v5617 = vadd.f32 0.0, %v5616
  %v5618 = vpop.f32.mrb[0].mxu0
  %5619 = vmatprep.mubr.f32.mxu0 0.0
  %5620 = vmatmul.mubr.f32.gmra.mrb[0].mxu0 %v5466
  %v5621 = vpop.f32.mrb[0].mxu0
  %v5622 = vadd.f32 0.0, %v5621
  %v5623 = vpop.f32.mrb[0].mxu0
  %5624 = vmatprep.mubr.f32.mxu0 0.0
  %5625 = vmatmul.mubr.f32.gmra.mrb[0].mxu0 %v5467
  %v5626 = vpop.f32.mrb[0].mxu0
  %v5627 = vadd.f32 0.0, %v5626
  %v5628 = vpop.f32.mrb[0].mxu0
  %5629 = vdwg.mxu0
  %v5630 = vadd.f32 %v5436, %v5552
  %v5631 = vadd.f32 %v5437, %v5557
  %v5632 = vadd.f32 %v5438, %v5562
  %v5633 = vadd.f32 %v5439, %v5567
  %v5634 = vadd.f32 %v5440, %v5572
  %v5635 = vadd.f32 %v5441, %v5577
  %v5636 = vadd.f32 %v5442, %v5582
  %v5637 = vadd.f32 %v5443, %v5587
  %v5638 = vadd.f32 %v5444, %v5592
  %v5639 = vadd.f32 %v5445, %v5597
  %v5640 = vadd.f32 %v5446, %v5602
  %v5641 = vadd.f32 %v5447, %v5607
  %v5642 = vadd.f32 %v5448, %v5612
  %v5643 = vadd.f32 %v5449, %v5617
  %v5644 = vadd.f32 %v5450, %v5622
  %v5645 = vadd.f32 %v5451, %v5627
  %v5646 = vld [vmem:[%s6] sm:$0x1]
  %v5648 = vlaneseq
  %v5649 = vshrl.u32 %v5648, 7
  %v5650 = vsub.s32 0, %v5649
  %v5651 = vrot.slane %v5646, %v5650
  %v5653 = vadd.f32 %v5630, %v5651
  %v5654 = vadd.f32 %v5631, %v5651
  %v5655 = vadd.f32 %v5632, %v5651
  %v5656 = vadd.f32 %v5633, %v5651
  %v5657 = vadd.f32 %v5634, %v5651
  %v5658 = vadd.f32 %v5635, %v5651
  %v5659 = vadd.f32 %v5636, %v5651
  %v5660 = vadd.f32 %v5637, %v5651
  %v5661 = vadd.f32 %v5638, %v5651
  %v5662 = vadd.f32 %v5639, %v5651
  %v5663 = vadd.f32 %v5640, %v5651
  %v5664 = vadd.f32 %v5641, %v5651
  %v5665 = vadd.f32 %v5642, %v5651
  %v5666 = vadd.f32 %v5643, %v5651
  %v5667 = vadd.f32 %v5644, %v5651
  %v5668 = vadd.f32 %v5645, %v5651
  %v5669 = vxor.u32 %v5653, 2147483648
  %v5670 = vxor.u32 %v5654, 2147483648
  %v5671 = vxor.u32 %v5655, 2147483648
  %v5672 = vxor.u32 %v5656, 2147483648
  %v5673 = vxor.u32 %v5657, 2147483648
  %v5674 = vxor.u32 %v5658, 2147483648
  %v5675 = vxor.u32 %v5659, 2147483648
  %v5676 = vxor.u32 %v5660, 2147483648
  %v5677 = vxor.u32 %v5661, 2147483648
  %v5678 = vxor.u32 %v5662, 2147483648
  %v5679 = vxor.u32 %v5663, 2147483648
  %v5680 = vxor.u32 %v5664, 2147483648
  %v5681 = vxor.u32 %v5665, 2147483648
  %v5682 = vxor.u32 %v5666, 2147483648
  %v5683 = vxor.u32 %v5667, 2147483648
  %v5684 = vxor.u32 %v5668, 2147483648
  %v5685 = vmul.f32 %v5669, 1.442695
  %v5686 = vpow.pop %v5685
  %v5687 = vmul.f32 %v5670, 1.442695
  %v5688 = vpow.pop %v5687
  %v5689 = vmul.f32 %v5671, 1.442695
  %v5690 = vpow.pop %v5689
  %v5691 = vmul.f32 %v5672, 1.442695
  %v5692 = vpow.pop %v5691
  %v5693 = vmul.f32 %v5673, 1.442695
  %v5694 = vpow.pop %v5693
  %v5695 = vmul.f32 %v5674, 1.442695
  %v5696 = vpow.pop %v5695
  %v5697 = vmul.f32 %v5675, 1.442695
  %v5698 = vpow.pop %v5697
  %v5699 = vmul.f32 %v5676, 1.442695
  %v5700 = vpow.pop %v5699
  %v5701 = vmul.f32 %v5677, 1.442695
  %v5702 = vpow.pop %v5701
  %v5703 = vmul.f32 %v5678, 1.442695
  %v5704 = vpow.pop %v5703
  %v5705 = vmul.f32 %v5679, 1.442695
  %v5706 = vpow.pop %v5705
  %v5707 = vmul.f32 %v5680, 1.442695
  %v5708 = vpow.pop %v5707
  %v5709 = vmul.f32 %v5681, 1.442695
  %v5710 = vpow.pop %v5709
  %v5711 = vmul.f32 %v5682, 1.442695
  %v5712 = vpow.pop %v5711
  %v5713 = vmul.f32 %v5683, 1.442695
  %v5714 = vpow.pop %v5713
  %v5715 = vmul.f32 %v5684, 1.442695
  %v5716 = vpow.pop %v5715
  %v5717 = vadd.f32 %v5686, 1.0
  %v5718 = vadd.f32 %v5688, 1.0
  %v5719 = vadd.f32 %v5690, 1.0
  %v5720 = vadd.f32 %v5692, 1.0
  %v5721 = vadd.f32 %v5694, 1.0
  %v5722 = vadd.f32 %v5696, 1.0
  %v5723 = vadd.f32 %v5698, 1.0
  %v5724 = vadd.f32 %v5700, 1.0
  %v5725 = vadd.f32 %v5702, 1.0
  %v5726 = vadd.f32 %v5704, 1.0
  %v5727 = vadd.f32 %v5706, 1.0
  %v5728 = vadd.f32 %v5708, 1.0
  %v5729 = vadd.f32 %v5710, 1.0
  %v5730 = vadd.f32 %v5712, 1.0
  %v5731 = vadd.f32 %v5714, 1.0
  %v5732 = vadd.f32 %v5716, 1.0
  %v5733 = vrcp.pop %v5717
  %v5734 = vmul.f32 1.0, %v5733
  %v5735 = vrcp.pop %v5718
  %v5736 = vmul.f32 1.0, %v5735
  %v5737 = vrcp.pop %v5719
  %v5738 = vmul.f32 1.0, %v5737
  %v5739 = vrcp.pop %v5720
  %v5740 = vmul.f32 1.0, %v5739
  %v5741 = vrcp.pop %v5721
  %v5742 = vmul.f32 1.0, %v5741
  %v5743 = vrcp.pop %v5722
  %v5744 = vmul.f32 1.0, %v5743
  %v5745 = vrcp.pop %v5723
  %v5746 = vmul.f32 1.0, %v5745
  %v5747 = vrcp.pop %v5724
  %v5748 = vmul.f32 1.0, %v5747
  %v5749 = vrcp.pop %v5725
  %v5750 = vmul.f32 1.0, %v5749
  %v5751 = vrcp.pop %v5726
  %v5752 = vmul.f32 1.0, %v5751
  %v5753 = vrcp.pop %v5727
  %v5754 = vmul.f32 1.0, %v5753
  %v5755 = vrcp.pop %v5728
  %v5756 = vmul.f32 1.0, %v5755
  %v5757 = vrcp.pop %v5729
  %v5758 = vmul.f32 1.0, %v5757
  %v5759 = vrcp.pop %v5730
  %v5760 = vmul.f32 1.0, %v5759
  %v5761 = vrcp.pop %v5731
  %v5762 = vmul.f32 1.0, %v5761
  %v5763 = vrcp.pop %v5732
  %v5764 = vmul.f32 1.0, %v5763
  %5765 = vst.msk [vmem:[%s7] sm:$0xff] %vm254, %v5734
  %5766 = vst.msk [vmem:[%s7 + $0x8] sm:$0xff] %vm254, %v5736
  %5767 = vst.msk [vmem:[%s7 + $0x10] sm:$0xff] %vm254, %v5738
  %5768 = vst.msk [vmem:[%s7 + $0x18] sm:$0xff] %vm254, %v5740
  %5769 = vst.msk [vmem:[%s7 + $0x20] sm:$0xff] %vm254, %v5742
  %5770 = vst.msk [vmem:[%s7 + $0x28] sm:$0xff] %vm254, %v5744
  %5771 = vst.msk [vmem:[%s7 + $0x30] sm:$0xff] %vm254, %v5746
  %5772 = vst.msk [vmem:[%s7 + $0x38] sm:$0xff] %vm254, %v5748
  %5773 = vst.msk [vmem:[%s7 + $0x40] sm:$0xff] %vm254, %v5750
  %5774 = vst.msk [vmem:[%s7 + $0x48] sm:$0xff] %vm254, %v5752
  %5775 = vst.msk [vmem:[%s7 + $0x50] sm:$0xff] %vm254, %v5754
  %5776 = vst.msk [vmem:[%s7 + $0x58] sm:$0xff] %vm254, %v5756
  %5777 = vst.msk [vmem:[%s7 + $0x60] sm:$0xff] %vm254, %v5758
  %5778 = vst.msk [vmem:[%s7 + $0x68] sm:$0xff] %vm254, %v5760
  %5779 = vst.msk [vmem:[%s7 + $0x70] sm:$0xff] %vm254, %v5762
  %vm5780 = vcmask 128000
  %5781 = vst.msk [vmem:[%s7 + $0x78] sm:$0x3f] %vm5780, %v5764
  // Predicated region
  $region30: #{decoder_forward.1} parent=0 // pred_check
    _
  $region31: #{decoder_forward.1} parent=0 // pred_check_branch
    %5783 = sbr.rel (0) target = $region33
  $region32: #{decoder_forward.1} parent=0 // pred_region
    _
  $region33: #{decoder_forward.1} parent=0 // pred_fallthru
    _
  // Predicated region
  $region34: #{decoder_forward.1} parent=0 // pred_check
    _
  $region35: #{decoder_forward.1} parent=0 // pred_check_branch
    %5785 = sbr.rel (0) target = $region37
  $region36: #{decoder_forward.1} parent=0 // pred_region
    _
  $region37: #{decoder_forward.1} parent=0 // pred_fallthru
    _

</llo_original>
